<compile_context>
chip_gen: v7x
topology: tpu7x:2x2x1
jax: 0.10.0
libtpu: 0.0.40
codegen_flags: <defaults>
</compile_context>

<pallas_src>
import jax
import jax.numpy as jnp
from jax.experimental import pallas as pl
from jax.experimental.pallas import tpu as pltpu


def _round_up(x: int, m: int) -> int:
    return ((x + m - 1) // m) * m


def _cdiv(a: int, b: int) -> int:
    return (a + b - 1) // b


# ----------------------------- Pallas kernel --------------------------------
def _embed_kernel(ids_ref, pos_ids_ref, tok_tbl_ref, pos_tbl_ref, out_ref):
    """One grid step: one dense (ts, D) slab of flattened (batch*seq) rows.

    ids_ref     : SMEM (N_pad,) int32  token ids      (scalar-prefetched)
    pos_ids_ref : SMEM (N_pad,) int32  position ids   (scalar-prefetched)
    tok_tbl_ref : VMEM (V, D)          resident token embedding table
    pos_tbl_ref : VMEM (P, D)          resident position embedding table
    out_ref     : VMEM (ts, D)         output slab (one dense HBM writeback)
    """
    ts = out_ref.shape[0]
    base = pl.program_id(0) * ts

    # Fully unrolled per-row gather+add (ts is a small static tile, <= ~264 rows):
    # two dynamic single-sublane VMEM loads + one static store per row.  All VMEM
    # local; the only HBM traffic is the one-time table residency DMA and the dense
    # (ts, D) output write.
    for i in range(ts):
        tid = ids_ref[base + i]
        pid = pos_ids_ref[base + i]
        tok = tok_tbl_ref[pl.ds(tid, 1), :].astype(jnp.float32)
        pos = pos_tbl_ref[pl.ds(pid, 1), :].astype(jnp.float32)
        out_ref[pl.ds(i, 1), :] = (tok + pos).astype(out_ref.dtype)


# ------------------------------ Wrapper --------------------------------------
def _build_embed_call(*, n_pad, ts, vocab, max_pos, dim, out_dtype, tok_dtype,
                      pos_dtype, single_buffer_tables, vmem_limit_bytes):
    n_tiles = n_pad // ts

    tbl_kwargs = {}
    if single_buffer_tables:
        # Grid-invariant blocks don't need double buffering; halves their VMEM cost.
        tbl_kwargs = dict(pipeline_mode=pl.Buffered(buffer_count=1))

    grid_spec = pltpu.PrefetchScalarGridSpec(
        num_scalar_prefetch=2,                     # token ids + position ids -> SMEM
        grid=(n_tiles,),
        in_specs=[
            pl.BlockSpec((vocab, dim), lambda t, ids, pids: (0, 0), **tbl_kwargs),
            pl.BlockSpec((max_pos, dim), lambda t, ids, pids: (0, 0), **tbl_kwargs),
        ],
        out_specs=pl.BlockSpec((ts, dim), lambda t, ids, pids: (t, 0)),
    )

    # Memory-bound cost: tables read once, ids read once, output written once.
    cost = pl.CostEstimate(
        flops=int(n_pad * dim),                    # one add per output element
        transcendentals=0,
        bytes_accessed=int(
            vocab * dim * jnp.dtype(tok_dtype).itemsize
            + max_pos * dim * jnp.dtype(pos_dtype).itemsize
            + 2 * n_pad * 4
            + n_pad * dim * jnp.dtype(out_dtype).itemsize),
    )

    return pl.pallas_call(
        _embed_kernel,
        out_shape=jax.ShapeDtypeStruct((n_pad, dim), out_dtype),
        grid_spec=grid_spec,
        compiler_params=pltpu.CompilerParams(
            dimension_semantics=("parallel",),
            vmem_limit_bytes=vmem_limit_bytes),
        cost_estimate=cost,
    )


def clip_text_embeddings(input_ids, token_table, position_table,
                         position_ids=None, *, row_tile=256, vmem_limit_bytes=None):
    """Pallas equivalent of CLIPTextEmbeddings.forward(input_ids, position_ids)."""
    B, S = input_ids.shape
    V, D = token_table.shape
    P, Dp = position_table.shape
    if D != Dp:
        raise ValueError("token/position embedding dims differ")
    if S > P:
        raise ValueError(f"sequence length {S} exceeds max_position_embeddings {P}")

    out_dtype = jnp.result_type(token_table.dtype, position_table.dtype)

    tbl_bytes = (V * D * jnp.dtype(token_table.dtype).itemsize
                 + P * D * jnp.dtype(position_table.dtype).itemsize)
    if tbl_bytes > 96 * 1024 * 1024:
        # TODO(synk): switch to the HBM row-gather-DMA path (see module TODO) here.
        raise NotImplementedError(
            "embedding tables too large for the VMEM-resident gather path")

    if position_ids is None:
        pos_ids = jnp.broadcast_to(jnp.arange(S, dtype=jnp.int32)[None, :], (B, S))
    else:
        pos_ids = jnp.broadcast_to(position_ids.astype(jnp.int32), (B, S))

    # Fold batch+sequence into one row axis and pick a tile that minimizes padding.
    N = B * S
    n_tiles = max(1, _cdiv(N, row_tile))
    ts = _round_up(_cdiv(N, n_tiles), 8)
    n_pad = n_tiles * ts

    # Clamp ids so out-of-range indices can never read OOB VMEM (framework would
    # error instead; documented deviation).
    ids_flat = jnp.clip(input_ids.reshape(-1).astype(jnp.int32), 0, V - 1)
    pos_flat = jnp.clip(pos_ids.reshape(-1), 0, P - 1)
    if n_pad != N:
        ids_flat = jnp.pad(ids_flat, (0, n_pad - N))   # padded rows discarded below
        pos_flat = jnp.pad(pos_flat, (0, n_pad - N))

    def run(single_buffer_tables):
        call = _build_embed_call(
            n_pad=n_pad, ts=ts, vocab=V, max_pos=P, dim=D, out_dtype=out_dtype,
            tok_dtype=token_table.dtype, pos_dtype=position_table.dtype,
            single_buffer_tables=single_buffer_tables,
            vmem_limit_bytes=vmem_limit_bytes)
        return call(ids_flat, pos_flat, token_table, position_table)

    try:
        out = run(True)
    except Exception:
        # pl.Buffered(1) not supported by this JAX build: default double buffering.
        out = run(False)

    return out[:N].reshape(B, S, D)


# ------------------------------- Main -----------------------------------------
if __name__ == "__main__":
    # Small synthetic CLIPTextConfig-like sizes; HIDDEN chosen lane-dense (128).
    VOCAB_SIZE = 512
    MAX_POS = 64
    HIDDEN = 128
    BATCH, SEQ = 2, 64

    key = jax.random.PRNGKey(0)
    k_tok, k_pos, k_ids = jax.random.split(key, 3)

    token_table = jax.random.normal(k_tok, (VOCAB_SIZE, HIDDEN), dtype=jnp.float32)
    position_table = jax.random.normal(k_pos, (MAX_POS, HIDDEN), dtype=jnp.float32)
    input_ids = jax.random.randint(k_ids, (BATCH, SEQ), 0, VOCAB_SIZE, dtype=jnp.int32)

    # Default (arange) position path: one big tile.
    out = jax.block_until_ready(
        clip_text_embeddings(input_ids, token_table, position_table))

    pos_ids = jnp.broadcast_to(jnp.arange(SEQ, dtype=jnp.int32)[None, :], (BATCH, SEQ))
    ref = token_table[input_ids] + position_table[pos_ids]

    assert out.shape == (BATCH, SEQ, HIDDEN)
    assert out.dtype == jnp.float32
    assert jnp.allclose(out, ref, atol=1e-6, rtol=1e-6)

    # Explicit position_ids path + multi-tile grid (row_tile=64 -> 2 grid steps).
    out2 = jax.block_until_ready(
        clip_text_embeddings(input_ids, token_table, position_table,
                             position_ids=pos_ids, row_tile=64))
    assert jnp.allclose(out2, ref, atol=1e-6, rtol=1e-6)

    # Awkward (non-multiple-of-8) shapes exercise the padding / tile-choice path.
    ids_b = jax.random.randint(k_ids, (3, 50), 0, VOCAB_SIZE, dtype=jnp.int32)
    out3 = jax.block_until_ready(
        clip_text_embeddings(ids_b, token_table, position_table))
    ref3 = token_table[ids_b] + position_table[jnp.arange(50)]
    assert out3.shape == (3, 50, HIDDEN)
    assert jnp.allclose(out3, ref3, atol=1e-6, rtol=1e-6)

    print("KERNEL_OK")
</pallas_src>

<mosaic_0001>
module attributes {stable_mosaic.version = 11 : i64} {
  func.func @_embed_kernel(%arg0: i32, %arg1: memref<128xi32, #tpu.memory_space<smem>>, %arg2: memref<128xi32, #tpu.memory_space<smem>>, %arg3: memref<512x128xf32, #tpu.memory_space<vmem>>, %arg4: memref<64x128xf32, #tpu.memory_space<vmem>>, %arg5: memref<128x128xf32, #tpu.memory_space<vmem>>) attributes {dimension_semantics = [#tpu.dimension_semantics<parallel>], iteration_bounds = array<i64: 1>, scalar_prefetch = 2 : i64, scratch_operands = 0 : i64, tpu.core_type = #tpu.core_type<tc>, window_params = [{pipeline_mode = #tpu.pipeline_mode<synchronous>, transform_indices = @transform_0, window_bounds = array<i64: 512, 128>}, {pipeline_mode = #tpu.pipeline_mode<synchronous>, transform_indices = @transform_1, window_bounds = array<i64: 64, 128>}, {transform_indices = @transform_2, window_bounds = array<i64: 128, 128>}]} {
    %c128_i32 = arith.constant 128 : i32
    %0 = arith.muli %arg0, %c128_i32 : i32
    %c0_i32 = arith.constant 0 : i32
    %1 = arith.addi %0, %c0_i32 : i32
    %2 = arith.index_cast %1 : i32 to index
    %3 = memref.load %arg1[%2] : memref<128xi32, #tpu.memory_space<smem>>
    %c0_i32_0 = arith.constant 0 : i32
    %4 = arith.addi %0, %c0_i32_0 : i32
    %5 = arith.index_cast %4 : i32 to index
    %6 = memref.load %arg2[%5] : memref<128xi32, #tpu.memory_space<smem>>
    %7 = arith.index_cast %3 : i32 to index
    %c0 = arith.constant 0 : index
    %8 = vector.load %arg3[%7, %c0] : memref<512x128xf32, #tpu.memory_space<vmem>>, vector<1x128xf32>
    %9 = arith.index_cast %6 : i32 to index
    %c0_1 = arith.constant 0 : index
    %10 = vector.load %arg4[%9, %c0_1] : memref<64x128xf32, #tpu.memory_space<vmem>>, vector<1x128xf32>
    %11 = arith.addf %8, %10 : vector<1x128xf32>
    %c0_2 = arith.constant 0 : index
    %c0_3 = arith.constant 0 : index
    %12 = vector.load %arg5[%c0_2, %c0_3] : memref<128x128xf32, #tpu.memory_space<vmem>>, vector<1x128xf32>
    tpu.vector_store %arg5[%c0_2, %c0_3], %11 {strides = array<i32>} : memref<128x128xf32, #tpu.memory_space<vmem>>, vector<1x128xf32>,
    %c1_i32 = arith.constant 1 : i32
    %13 = arith.addi %0, %c1_i32 : i32
    %14 = arith.index_cast %13 : i32 to index
    %15 = memref.load %arg1[%14] : memref<128xi32, #tpu.memory_space<smem>>
    %c1_i32_4 = arith.constant 1 : i32
    %16 = arith.addi %0, %c1_i32_4 : i32
    %17 = arith.index_cast %16 : i32 to index
    %18 = memref.load %arg2[%17] : memref<128xi32, #tpu.memory_space<smem>>
    %19 = arith.index_cast %15 : i32 to index
    %c0_5 = arith.constant 0 : index
    %20 = vector.load %arg3[%19, %c0_5] : memref<512x128xf32, #tpu.memory_space<vmem>>, vector<1x128xf32>
    %21 = arith.index_cast %18 : i32 to index
    %c0_6 = arith.constant 0 : index
    %22 = vector.load %arg4[%21, %c0_6] : memref<64x128xf32, #tpu.memory_space<vmem>>, vector<1x128xf32>
    %23 = arith.addf %20, %22 : vector<1x128xf32>
    %c1 = arith.constant 1 : index
    %c0_7 = arith.constant 0 : index
    %24 = vector.load %arg5[%c1, %c0_7] : memref<128x128xf32, #tpu.memory_space<vmem>>, vector<1x128xf32>
    tpu.vector_store %arg5[%c1, %c0_7], %23 {strides = array<i32>} : memref<128x128xf32, #tpu.memory_space<vmem>>, vector<1x128xf32>,
    %c2_i32 = arith.constant 2 : i32
    %25 = arith.addi %0, %c2_i32 : i32
    %26 = arith.index_cast %25 : i32 to index
    %27 = memref.load %arg1[%26] : memref<128xi32, #tpu.memory_space<smem>>
    %c2_i32_8 = arith.constant 2 : i32
    %28 = arith.addi %0, %c2_i32_8 : i32
    %29 = arith.index_cast %28 : i32 to index
    %30 = memref.load %arg2[%29] : memref<128xi32, #tpu.memory_space<smem>>
    %31 = arith.index_cast %27 : i32 to index
    %c0_9 = arith.constant 0 : index
    %32 = vector.load %arg3[%31, %c0_9] : memref<512x128xf32, #tpu.memory_space<vmem>>, vector<1x128xf32>
    %33 = arith.index_cast %30 : i32 to index
    %c0_10 = arith.constant 0 : index
    %34 = vector.load %arg4[%33, %c0_10] : memref<64x128xf32, #tpu.memory_space<vmem>>, vector<1x128xf32>
    %35 = arith.addf %32, %34 : vector<1x128xf32>
    %c2 = arith.constant 2 : index
    %c0_11 = arith.constant 0 : index
    %36 = vector.load %arg5[%c2, %c0_11] : memref<128x128xf32, #tpu.memory_space<vmem>>, vector<1x128xf32>
    tpu.vector_store %arg5[%c2, %c0_11], %35 {strides = array<i32>} : memref<128x128xf32, #tpu.memory_space<vmem>>, vector<1x128xf32>,
    %c3_i32 = arith.constant 3 : i32
    %37 = arith.addi %0, %c3_i32 : i32
    %38 = arith.index_cast %37 : i32 to index
    %39 = memref.load %arg1[%38] : memref<128xi32, #tpu.memory_space<smem>>
    %c3_i32_12 = arith.constant 3 : i32
    %40 = arith.addi %0, %c3_i32_12 : i32
    %41 = arith.index_cast %40 : i32 to index
    %42 = memref.load %arg2[%41] : memref<128xi32, #tpu.memory_space<smem>>
    %43 = arith.index_cast %39 : i32 to index
    %c0_13 = arith.constant 0 : index
    %44 = vector.load %arg3[%43, %c0_13] : memref<512x128xf32, #tpu.memory_space<vmem>>, vector<1x128xf32>
    %45 = arith.index_cast %42 : i32 to index
    %c0_14 = arith.constant 0 : index
    %46 = vector.load %arg4[%45, %c0_14] : memref<64x128xf32, #tpu.memory_space<vmem>>, vector<1x128xf32>
    %47 = arith.addf %44, %46 : vector<1x128xf32>
    %c3 = arith.constant 3 : index
    %c0_15 = arith.constant 0 : index
    %48 = vector.load %arg5[%c3, %c0_15] : memref<128x128xf32, #tpu.memory_space<vmem>>, vector<1x128xf32>
    tpu.vector_store %arg5[%c3, %c0_15], %47 {strides = array<i32>} : memref<128x128xf32, #tpu.memory_space<vmem>>, vector<1x128xf32>,
    %c4_i32 = arith.constant 4 : i32
    %49 = arith.addi %0, %c4_i32 : i32
    %50 = arith.index_cast %49 : i32 to index
    %51 = memref.load %arg1[%50] : memref<128xi32, #tpu.memory_space<smem>>
    %c4_i32_16 = arith.constant 4 : i32
    %52 = arith.addi %0, %c4_i32_16 : i32
    %53 = arith.index_cast %52 : i32 to index
    %54 = memref.load %arg2[%53] : memref<128xi32, #tpu.memory_space<smem>>
    %55 = arith.index_cast %51 : i32 to index
    %c0_17 = arith.constant 0 : index
    %56 = vector.load %arg3[%55, %c0_17] : memref<512x128xf32, #tpu.memory_space<vmem>>, vector<1x128xf32>
    %57 = arith.index_cast %54 : i32 to index
    %c0_18 = arith.constant 0 : index
    %58 = vector.load %arg4[%57, %c0_18] : memref<64x128xf32, #tpu.memory_space<vmem>>, vector<1x128xf32>
    %59 = arith.addf %56, %58 : vector<1x128xf32>
    %c4 = arith.constant 4 : index
    %c0_19 = arith.constant 0 : index
    %60 = vector.load %arg5[%c4, %c0_19] : memref<128x128xf32, #tpu.memory_space<vmem>>, vector<1x128xf32>
    tpu.vector_store %arg5[%c4, %c0_19], %59 {strides = array<i32>} : memref<128x128xf32, #tpu.memory_space<vmem>>, vector<1x128xf32>,
    %c5_i32 = arith.constant 5 : i32
    %61 = arith.addi %0, %c5_i32 : i32
    %62 = arith.index_cast %61 : i32 to index
    %63 = memref.load %arg1[%62] : memref<128xi32, #tpu.memory_space<smem>>
    %c5_i32_20 = arith.constant 5 : i32
    %64 = arith.addi %0, %c5_i32_20 : i32
    %65 = arith.index_cast %64 : i32 to index
    %66 = memref.load %arg2[%65] : memref<128xi32, #tpu.memory_space<smem>>
    %67 = arith.index_cast %63 : i32 to index
    %c0_21 = arith.constant 0 : index
    %68 = vector.load %arg3[%67, %c0_21] : memref<512x128xf32, #tpu.memory_space<vmem>>, vector<1x128xf32>
    %69 = arith.index_cast %66 : i32 to index
    %c0_22 = arith.constant 0 : index
    %70 = vector.load %arg4[%69, %c0_22] : memref<64x128xf32, #tpu.memory_space<vmem>>, vector<1x128xf32>
    %71 = arith.addf %68, %70 : vector<1x128xf32>
    %c5 = arith.constant 5 : index
    %c0_23 = arith.constant 0 : index
    %72 = vector.load %arg5[%c5, %c0_23] : memref<128x128xf32, #tpu.memory_space<vmem>>, vector<1x128xf32>
    tpu.vector_store %arg5[%c5, %c0_23], %71 {strides = array<i32>} : memref<128x128xf32, #tpu.memory_space<vmem>>, vector<1x128xf32>,
    %c6_i32 = arith.constant 6 : i32
    %73 = arith.addi %0, %c6_i32 : i32
    %74 = arith.index_cast %73 : i32 to index
    %75 = memref.load %arg1[%74] : memref<128xi32, #tpu.memory_space<smem>>
    %c6_i32_24 = arith.constant 6 : i32
    %76 = arith.addi %0, %c6_i32_24 : i32
    %77 = arith.index_cast %76 : i32 to index
    %78 = memref.load %arg2[%77] : memref<128xi32, #tpu.memory_space<smem>>
    %79 = arith.index_cast %75 : i32 to index
    %c0_25 = arith.constant 0 : index
    %80 = vector.load %arg3[%79, %c0_25] : memref<512x128xf32, #tpu.memory_space<vmem>>, vector<1x128xf32>
    %81 = arith.index_cast %78 : i32 to index
    %c0_26 = arith.constant 0 : index
    %82 = vector.load %arg4[%81, %c0_26] : memref<64x128xf32, #tpu.memory_space<vmem>>, vector<1x128xf32>
    %83 = arith.addf %80, %82 : vector<1x128xf32>
    %c6 = arith.constant 6 : index
    %c0_27 = arith.constant 0 : index
    %84 = vector.load %arg5[%c6, %c0_27] : memref<128x128xf32, #tpu.memory_space<vmem>>, vector<1x128xf32>
    tpu.vector_store %arg5[%c6, %c0_27], %83 {strides = array<i32>} : memref<128x128xf32, #tpu.memory_space<vmem>>, vector<1x128xf32>,
    %c7_i32 = arith.constant 7 : i32
    %85 = arith.addi %0, %c7_i32 : i32
    %86 = arith.index_cast %85 : i32 to index
    %87 = memref.load %arg1[%86] : memref<128xi32, #tpu.memory_space<smem>>
    %c7_i32_28 = arith.constant 7 : i32
    %88 = arith.addi %0, %c7_i32_28 : i32
    %89 = arith.index_cast %88 : i32 to index
    %90 = memref.load %arg2[%89] : memref<128xi32, #tpu.memory_space<smem>>
    %91 = arith.index_cast %87 : i32 to index
    %c0_29 = arith.constant 0 : index
    %92 = vector.load %arg3[%91, %c0_29] : memref<512x128xf32, #tpu.memory_space<vmem>>, vector<1x128xf32>
    %93 = arith.index_cast %90 : i32 to index
    %c0_30 = arith.constant 0 : index
    %94 = vector.load %arg4[%93, %c0_30] : memref<64x128xf32, #tpu.memory_space<vmem>>, vector<1x128xf32>
    %95 = arith.addf %92, %94 : vector<1x128xf32>
    %c7 = arith.constant 7 : index
    %c0_31 = arith.constant 0 : index
    %96 = vector.load %arg5[%c7, %c0_31] : memref<128x128xf32, #tpu.memory_space<vmem>>, vector<1x128xf32>
    tpu.vector_store %arg5[%c7, %c0_31], %95 {strides = array<i32>} : memref<128x128xf32, #tpu.memory_space<vmem>>, vector<1x128xf32>,
    %c8_i32 = arith.constant 8 : i32
    %97 = arith.addi %0, %c8_i32 : i32
    %98 = arith.index_cast %97 : i32 to index
    %99 = memref.load %arg1[%98] : memref<128xi32, #tpu.memory_space<smem>>
    %c8_i32_32 = arith.constant 8 : i32
    %100 = arith.addi %0, %c8_i32_32 : i32
    %101 = arith.index_cast %100 : i32 to index
    %102 = memref.load %arg2[%101] : memref<128xi32, #tpu.memory_space<smem>>
    %103 = arith.index_cast %99 : i32 to index
    %c0_33 = arith.constant 0 : index
    %104 = vector.load %arg3[%103, %c0_33] : memref<512x128xf32, #tpu.memory_space<vmem>>, vector<1x128xf32>
    %105 = arith.index_cast %102 : i32 to index
    %c0_34 = arith.constant 0 : index
    %106 = vector.load %arg4[%105, %c0_34] : memref<64x128xf32, #tpu.memory_space<vmem>>, vector<1x128xf32>
    %107 = arith.addf %104, %106 : vector<1x128xf32>
    %c8 = arith.constant 8 : index
    %c0_35 = arith.constant 0 : index
    %108 = vector.load %arg5[%c8, %c0_35] : memref<128x128xf32, #tpu.memory_space<vmem>>, vector<1x128xf32>
    tpu.vector_store %arg5[%c8, %c0_35], %107 {strides = array<i32>} : memref<128x128xf32, #tpu.memory_space<vmem>>, vector<1x128xf32>,
    %c9_i32 = arith.constant 9 : i32
    %109 = arith.addi %0, %c9_i32 : i32
    %110 = arith.index_cast %109 : i32 to index
    %111 = memref.load %arg1[%110] : memref<128xi32, #tpu.memory_space<smem>>
    %c9_i32_36 = arith.constant 9 : i32
    %112 = arith.addi %0, %c9_i32_36 : i32
    %113 = arith.index_cast %112 : i32 to index
    %114 = memref.load %arg2[%113] : memref<128xi32, #tpu.memory_space<smem>>
    %115 = arith.index_cast %111 : i32 to index
    %c0_37 = arith.constant 0 : index
    %116 = vector.load %arg3[%115, %c0_37] : memref<512x128xf32, #tpu.memory_space<vmem>>, vector<1x128xf32>
    %117 = arith.index_cast %114 : i32 to index
    %c0_38 = arith.constant 0 : index
    %118 = vector.load %arg4[%117, %c0_38] : memref<64x128xf32, #tpu.memory_space<vmem>>, vector<1x128xf32>
    %119 = arith.addf %116, %118 : vector<1x128xf32>
    %c9 = arith.constant 9 : index
    %c0_39 = arith.constant 0 : index
    %120 = vector.load %arg5[%c9, %c0_39] : memref<128x128xf32, #tpu.memory_space<vmem>>, vector<1x128xf32>
    tpu.vector_store %arg5[%c9, %c0_39], %119 {strides = array<i32>} : memref<128x128xf32, #tpu.memory_space<vmem>>, vector<1x128xf32>,
    %c10_i32 = arith.constant 10 : i32
    %121 = arith.addi %0, %c10_i32 : i32
    %122 = arith.index_cast %121 : i32 to index
    %123 = memref.load %arg1[%122] : memref<128xi32, #tpu.memory_space<smem>>
    %c10_i32_40 = arith.constant 10 : i32
    %124 = arith.addi %0, %c10_i32_40 : i32
    %125 = arith.index_cast %124 : i32 to index
    %126 = memref.load %arg2[%125] : memref<128xi32, #tpu.memory_space<smem>>
    %127 = arith.index_cast %123 : i32 to index
    %c0_41 = arith.constant 0 : index
    %128 = vector.load %arg3[%127, %c0_41] : memref<512x128xf32, #tpu.memory_space<vmem>>, vector<1x128xf32>
    %129 = arith.index_cast %126 : i32 to index
    %c0_42 = arith.constant 0 : index
    %130 = vector.load %arg4[%129, %c0_42] : memref<64x128xf32, #tpu.memory_space<vmem>>, vector<1x128xf32>
    %131 = arith.addf %128, %130 : vector<1x128xf32>
    %c10 = arith.constant 10 : index
    %c0_43 = arith.constant 0 : index
    %132 = vector.load %arg5[%c10, %c0_43] : memref<128x128xf32, #tpu.memory_space<vmem>>, vector<1x128xf32>
    tpu.vector_store %arg5[%c10, %c0_43], %131 {strides = array<i32>} : memref<128x128xf32, #tpu.memory_space<vmem>>, vector<1x128xf32>,
    %c11_i32 = arith.constant 11 : i32
    %133 = arith.addi %0, %c11_i32 : i32
    %134 = arith.index_cast %133 : i32 to index
    %135 = memref.load %arg1[%134] : memref<128xi32, #tpu.memory_space<smem>>
    %c11_i32_44 = arith.constant 11 : i32
    %136 = arith.addi %0, %c11_i32_44 : i32
    %137 = arith.index_cast %136 : i32 to index
    %138 = memref.load %arg2[%137] : memref<128xi32, #tpu.memory_space<smem>>
    %139 = arith.index_cast %135 : i32 to index
    %c0_45 = arith.constant 0 : index
    %140 = vector.load %arg3[%139, %c0_45] : memref<512x128xf32, #tpu.memory_space<vmem>>, vector<1x128xf32>
    %141 = arith.index_cast %138 : i32 to index
    %c0_46 = arith.constant 0 : index
    %142 = vector.load %arg4[%141, %c0_46] : memref<64x128xf32, #tpu.memory_space<vmem>>, vector<1x128xf32>
    %143 = arith.addf %140, %142 : vector<1x128xf32>
    %c11 = arith.constant 11 : index
    %c0_47 = arith.constant 0 : index
    %144 = vector.load %arg5[%c11, %c0_47] : memref<128x128xf32, #tpu.memory_space<vmem>>, vector<1x128xf32>
    tpu.vector_store %arg5[%c11, %c0_47], %143 {strides = array<i32>} : memref<128x128xf32, #tpu.memory_space<vmem>>, vector<1x128xf32>,
    %c12_i32 = arith.constant 12 : i32
    %145 = arith.addi %0, %c12_i32 : i32
    %146 = arith.index_cast %145 : i32 to index
    %147 = memref.load %arg1[%146] : memref<128xi32, #tpu.memory_space<smem>>
    %c12_i32_48 = arith.constant 12 : i32
    %148 = arith.addi %0, %c12_i32_48 : i32
    %149 = arith.index_cast %148 : i32 to index
    %150 = memref.load %arg2[%149] : memref<128xi32, #tpu.memory_space<smem>>
    %151 = arith.index_cast %147 : i32 to index
    %c0_49 = arith.constant 0 : index
    %152 = vector.load %arg3[%151, %c0_49] : memref<512x128xf32, #tpu.memory_space<vmem>>, vector<1x128xf32>
    %153 = arith.index_cast %150 : i32 to index
    %c0_50 = arith.constant 0 : index
    %154 = vector.load %arg4[%153, %c0_50] : memref<64x128xf32, #tpu.memory_space<vmem>>, vector<1x128xf32>
    %155 = arith.addf %152, %154 : vector<1x128xf32>
    %c12 = arith.constant 12 : index
    %c0_51 = arith.constant 0 : index
    %156 = vector.load %arg5[%c12, %c0_51] : memref<128x128xf32, #tpu.memory_space<vmem>>, vector<1x128xf32>
    tpu.vector_store %arg5[%c12, %c0_51], %155 {strides = array<i32>} : memref<128x128xf32, #tpu.memory_space<vmem>>, vector<1x128xf32>,
    %c13_i32 = arith.constant 13 : i32
    %157 = arith.addi %0, %c13_i32 : i32
    %158 = arith.index_cast %157 : i32 to index
    %159 = memref.load %arg1[%158] : memref<128xi32, #tpu.memory_space<smem>>
    %c13_i32_52 = arith.constant 13 : i32
    %160 = arith.addi %0, %c13_i32_52 : i32
    %161 = arith.index_cast %160 : i32 to index
    %162 = memref.load %arg2[%161] : memref<128xi32, #tpu.memory_space<smem>>
    %163 = arith.index_cast %159 : i32 to index
    %c0_53 = arith.constant 0 : index
    %164 = vector.load %arg3[%163, %c0_53] : memref<512x128xf32, #tpu.memory_space<vmem>>, vector<1x128xf32>
    %165 = arith.index_cast %162 : i32 to index
    %c0_54 = arith.constant 0 : index
    %166 = vector.load %arg4[%165, %c0_54] : memref<64x128xf32, #tpu.memory_space<vmem>>, vector<1x128xf32>
    %167 = arith.addf %164, %166 : vector<1x128xf32>
    %c13 = arith.constant 13 : index
    %c0_55 = arith.constant 0 : index
    %168 = vector.load %arg5[%c13, %c0_55] : memref<128x128xf32, #tpu.memory_space<vmem>>, vector<1x128xf32>
    tpu.vector_store %arg5[%c13, %c0_55], %167 {strides = array<i32>} : memref<128x128xf32, #tpu.memory_space<vmem>>, vector<1x128xf32>,
    %c14_i32 = arith.constant 14 : i32
    %169 = arith.addi %0, %c14_i32 : i32
    %170 = arith.index_cast %169 : i32 to index
    %171 = memref.load %arg1[%170] : memref<128xi32, #tpu.memory_space<smem>>
    %c14_i32_56 = arith.constant 14 : i32
    %172 = arith.addi %0, %c14_i32_56 : i32
    %173 = arith.index_cast %172 : i32 to index
    %174 = memref.load %arg2[%173] : memref<128xi32, #tpu.memory_space<smem>>
    %175 = arith.index_cast %171 : i32 to index
    %c0_57 = arith.constant 0 : index
    %176 = vector.load %arg3[%175, %c0_57] : memref<512x128xf32, #tpu.memory_space<vmem>>, vector<1x128xf32>
    %177 = arith.index_cast %174 : i32 to index
    %c0_58 = arith.constant 0 : index
    %178 = vector.load %arg4[%177, %c0_58] : memref<64x128xf32, #tpu.memory_space<vmem>>, vector<1x128xf32>
    %179 = arith.addf %176, %178 : vector<1x128xf32>
    %c14 = arith.constant 14 : index
    %c0_59 = arith.constant 0 : index
    %180 = vector.load %arg5[%c14, %c0_59] : memref<128x128xf32, #tpu.memory_space<vmem>>, vector<1x128xf32>
    tpu.vector_store %arg5[%c14, %c0_59], %179 {strides = array<i32>} : memref<128x128xf32, #tpu.memory_space<vmem>>, vector<1x128xf32>,
    %c15_i32 = arith.constant 15 : i32
    %181 = arith.addi %0, %c15_i32 : i32
    %182 = arith.index_cast %181 : i32 to index
    %183 = memref.load %arg1[%182] : memref<128xi32, #tpu.memory_space<smem>>
    %c15_i32_60 = arith.constant 15 : i32
    %184 = arith.addi %0, %c15_i32_60 : i32
    %185 = arith.index_cast %184 : i32 to index
    %186 = memref.load %arg2[%185] : memref<128xi32, #tpu.memory_space<smem>>
    %187 = arith.index_cast %183 : i32 to index
    %c0_61 = arith.constant 0 : index
    %188 = vector.load %arg3[%187, %c0_61] : memref<512x128xf32, #tpu.memory_space<vmem>>, vector<1x128xf32>
    %189 = arith.index_cast %186 : i32 to index
    %c0_62 = arith.constant 0 : index
    %190 = vector.load %arg4[%189, %c0_62] : memref<64x128xf32, #tpu.memory_space<vmem>>, vector<1x128xf32>
    %191 = arith.addf %188, %190 : vector<1x128xf32>
    %c15 = arith.constant 15 : index
    %c0_63 = arith.constant 0 : index
    %192 = vector.load %arg5[%c15, %c0_63] : memref<128x128xf32, #tpu.memory_space<vmem>>, vector<1x128xf32>
    tpu.vector_store %arg5[%c15, %c0_63], %191 {strides = array<i32>} : memref<128x128xf32, #tpu.memory_space<vmem>>, vector<1x128xf32>,
    %c16_i32 = arith.constant 16 : i32
    %193 = arith.addi %0, %c16_i32 : i32
    %194 = arith.index_cast %193 : i32 to index
    %195 = memref.load %arg1[%194] : memref<128xi32, #tpu.memory_space<smem>>
    %c16_i32_64 = arith.constant 16 : i32
    %196 = arith.addi %0, %c16_i32_64 : i32
    %197 = arith.index_cast %196 : i32 to index
    %198 = memref.load %arg2[%197] : memref<128xi32, #tpu.memory_space<smem>>
    %199 = arith.index_cast %195 : i32 to index
    %c0_65 = arith.constant 0 : index
    %200 = vector.load %arg3[%199, %c0_65] : memref<512x128xf32, #tpu.memory_space<vmem>>, vector<1x128xf32>
    %201 = arith.index_cast %198 : i32 to index
    %c0_66 = arith.constant 0 : index
    %202 = vector.load %arg4[%201, %c0_66] : memref<64x128xf32, #tpu.memory_space<vmem>>, vector<1x128xf32>
    %203 = arith.addf %200, %202 : vector<1x128xf32>
    %c16 = arith.constant 16 : index
    %c0_67 = arith.constant 0 : index
    %204 = vector.load %arg5[%c16, %c0_67] : memref<128x128xf32, #tpu.memory_space<vmem>>, vector<1x128xf32>
    tpu.vector_store %arg5[%c16, %c0_67], %203 {strides = array<i32>} : memref<128x128xf32, #tpu.memory_space<vmem>>, vector<1x128xf32>,
    %c17_i32 = arith.constant 17 : i32
    %205 = arith.addi %0, %c17_i32 : i32
    %206 = arith.index_cast %205 : i32 to index
    %207 = memref.load %arg1[%206] : memref<128xi32, #tpu.memory_space<smem>>
    %c17_i32_68 = arith.constant 17 : i32
    %208 = arith.addi %0, %c17_i32_68 : i32
    %209 = arith.index_cast %208 : i32 to index
    %210 = memref.load %arg2[%209] : memref<128xi32, #tpu.memory_space<smem>>
    %211 = arith.index_cast %207 : i32 to index
    %c0_69 = arith.constant 0 : index
    %212 = vector.load %arg3[%211, %c0_69] : memref<512x128xf32, #tpu.memory_space<vmem>>, vector<1x128xf32>
    %213 = arith.index_cast %210 : i32 to index
    %c0_70 = arith.constant 0 : index
    %214 = vector.load %arg4[%213, %c0_70] : memref<64x128xf32, #tpu.memory_space<vmem>>, vector<1x128xf32>
    %215 = arith.addf %212, %214 : vector<1x128xf32>
    %c17 = arith.constant 17 : index
    %c0_71 = arith.constant 0 : index
    %216 = vector.load %arg5[%c17, %c0_71] : memref<128x128xf32, #tpu.memory_space<vmem>>, vector<1x128xf32>
    tpu.vector_store %arg5[%c17, %c0_71], %215 {strides = array<i32>} : memref<128x128xf32, #tpu.memory_space<vmem>>, vector<1x128xf32>,
    %c18_i32 = arith.constant 18 : i32
    %217 = arith.addi %0, %c18_i32 : i32
    %218 = arith.index_cast %217 : i32 to index
    %219 = memref.load %arg1[%218] : memref<128xi32, #tpu.memory_space<smem>>
    %c18_i32_72 = arith.constant 18 : i32
    %220 = arith.addi %0, %c18_i32_72 : i32
    %221 = arith.index_cast %220 : i32 to index
    %222 = memref.load %arg2[%221] : memref<128xi32, #tpu.memory_space<smem>>
    %223 = arith.index_cast %219 : i32 to index
    %c0_73 = arith.constant 0 : index
    %224 = vector.load %arg3[%223, %c0_73] : memref<512x128xf32, #tpu.memory_space<vmem>>, vector<1x128xf32>
    %225 = arith.index_cast %222 : i32 to index
    %c0_74 = arith.constant 0 : index
    %226 = vector.load %arg4[%225, %c0_74] : memref<64x128xf32, #tpu.memory_space<vmem>>, vector<1x128xf32>
    %227 = arith.addf %224, %226 : vector<1x128xf32>
    %c18 = arith.constant 18 : index
    %c0_75 = arith.constant 0 : index
    %228 = vector.load %arg5[%c18, %c0_75] : memref<128x128xf32, #tpu.memory_space<vmem>>, vector<1x128xf32>
    tpu.vector_store %arg5[%c18, %c0_75], %227 {strides = array<i32>} : memref<128x128xf32, #tpu.memory_space<vmem>>, vector<1x128xf32>,
    %c19_i32 = arith.constant 19 : i32
    %229 = arith.addi %0, %c19_i32 : i32
    %230 = arith.index_cast %229 : i32 to index
    %231 = memref.load %arg1[%230] : memref<128xi32, #tpu.memory_space<smem>>
    %c19_i32_76 = arith.constant 19 : i32
    %232 = arith.addi %0, %c19_i32_76 : i32
    %233 = arith.index_cast %232 : i32 to index
    %234 = memref.load %arg2[%233] : memref<128xi32, #tpu.memory_space<smem>>
    %235 = arith.index_cast %231 : i32 to index
    %c0_77 = arith.constant 0 : index
    %236 = vector.load %arg3[%235, %c0_77] : memref<512x128xf32, #tpu.memory_space<vmem>>, vector<1x128xf32>
    %237 = arith.index_cast %234 : i32 to index
    %c0_78 = arith.constant 0 : index
    %238 = vector.load %arg4[%237, %c0_78] : memref<64x128xf32, #tpu.memory_space<vmem>>, vector<1x128xf32>
    %239 = arith.addf %236, %238 : vector<1x128xf32>
    %c19 = arith.constant 19 : index
    %c0_79 = arith.constant 0 : index
    %240 = vector.load %arg5[%c19, %c0_79] : memref<128x128xf32, #tpu.memory_space<vmem>>, vector<1x128xf32>
    tpu.vector_store %arg5[%c19, %c0_79], %239 {strides = array<i32>} : memref<128x128xf32, #tpu.memory_space<vmem>>, vector<1x128xf32>,
    %c20_i32 = arith.constant 20 : i32
    %241 = arith.addi %0, %c20_i32 : i32
    %242 = arith.index_cast %241 : i32 to index
    %243 = memref.load %arg1[%242] : memref<128xi32, #tpu.memory_space<smem>>
    %c20_i32_80 = arith.constant 20 : i32
    %244 = arith.addi %0, %c20_i32_80 : i32
    %245 = arith.index_cast %244 : i32 to index
    %246 = memref.load %arg2[%245] : memref<128xi32, #tpu.memory_space<smem>>
    %247 = arith.index_cast %243 : i32 to index
    %c0_81 = arith.constant 0 : index
    %248 = vector.load %arg3[%247, %c0_81] : memref<512x128xf32, #tpu.memory_space<vmem>>, vector<1x128xf32>
    %249 = arith.index_cast %246 : i32 to index
    %c0_82 = arith.constant 0 : index
    %250 = vector.load %arg4[%249, %c0_82] : memref<64x128xf32, #tpu.memory_space<vmem>>, vector<1x128xf32>
    %251 = arith.addf %248, %250 : vector<1x128xf32>
    %c20 = arith.constant 20 : index
    %c0_83 = arith.constant 0 : index
    %252 = vector.load %arg5[%c20, %c0_83] : memref<128x128xf32, #tpu.memory_space<vmem>>, vector<1x128xf32>
    tpu.vector_store %arg5[%c20, %c0_83], %251 {strides = array<i32>} : memref<128x128xf32, #tpu.memory_space<vmem>>, vector<1x128xf32>,
    %c21_i32 = arith.constant 21 : i32
    %253 = arith.addi %0, %c21_i32 : i32
    %254 = arith.index_cast %253 : i32 to index
    %255 = memref.load %arg1[%254] : memref<128xi32, #tpu.memory_space<smem>>
    %c21_i32_84 = arith.constant 21 : i32
    %256 = arith.addi %0, %c21_i32_84 : i32
    %257 = arith.index_cast %256 : i32 to index
    %258 = memref.load %arg2[%257] : memref<128xi32, #tpu.memory_space<smem>>
    %259 = arith.index_cast %255 : i32 to index
    %c0_85 = arith.constant 0 : index
    %260 = vector.load %arg3[%259, %c0_85] : memref<512x128xf32, #tpu.memory_space<vmem>>, vector<1x128xf32>
    %261 = arith.index_cast %258 : i32 to index
    %c0_86 = arith.constant 0 : index
    %262 = vector.load %arg4[%261, %c0_86] : memref<64x128xf32, #tpu.memory_space<vmem>>, vector<1x128xf32>
    %263 = arith.addf %260, %262 : vector<1x128xf32>
    %c21 = arith.constant 21 : index
    %c0_87 = arith.constant 0 : index
    %264 = vector.load %arg5[%c21, %c0_87] : memref<128x128xf32, #tpu.memory_space<vmem>>, vector<1x128xf32>
    tpu.vector_store %arg5[%c21, %c0_87], %263 {strides = array<i32>} : memref<128x128xf32, #tpu.memory_space<vmem>>, vector<1x128xf32>,
    %c22_i32 = arith.constant 22 : i32
    %265 = arith.addi %0, %c22_i32 : i32
    %266 = arith.index_cast %265 : i32 to index
    %267 = memref.load %arg1[%266] : memref<128xi32, #tpu.memory_space<smem>>
    %c22_i32_88 = arith.constant 22 : i32
    %268 = arith.addi %0, %c22_i32_88 : i32
    %269 = arith.index_cast %268 : i32 to index
    %270 = memref.load %arg2[%269] : memref<128xi32, #tpu.memory_space<smem>>
    %271 = arith.index_cast %267 : i32 to index
    %c0_89 = arith.constant 0 : index
    %272 = vector.load %arg3[%271, %c0_89] : memref<512x128xf32, #tpu.memory_space<vmem>>, vector<1x128xf32>
    %273 = arith.index_cast %270 : i32 to index
    %c0_90 = arith.constant 0 : index
    %274 = vector.load %arg4[%273, %c0_90] : memref<64x128xf32, #tpu.memory_space<vmem>>, vector<1x128xf32>
    %275 = arith.addf %272, %274 : vector<1x128xf32>
    %c22 = arith.constant 22 : index
    %c0_91 = arith.constant 0 : index
    %276 = vector.load %arg5[%c22, %c0_91] : memref<128x128xf32, #tpu.memory_space<vmem>>, vector<1x128xf32>
    tpu.vector_store %arg5[%c22, %c0_91], %275 {strides = array<i32>} : memref<128x128xf32, #tpu.memory_space<vmem>>, vector<1x128xf32>,
    %c23_i32 = arith.constant 23 : i32
    %277 = arith.addi %0, %c23_i32 : i32
    %278 = arith.index_cast %277 : i32 to index
    %279 = memref.load %arg1[%278] : memref<128xi32, #tpu.memory_space<smem>>
    %c23_i32_92 = arith.constant 23 : i32
    %280 = arith.addi %0, %c23_i32_92 : i32
    %281 = arith.index_cast %280 : i32 to index
    %282 = memref.load %arg2[%281] : memref<128xi32, #tpu.memory_space<smem>>
    %283 = arith.index_cast %279 : i32 to index
    %c0_93 = arith.constant 0 : index
    %284 = vector.load %arg3[%283, %c0_93] : memref<512x128xf32, #tpu.memory_space<vmem>>, vector<1x128xf32>
    %285 = arith.index_cast %282 : i32 to index
    %c0_94 = arith.constant 0 : index
    %286 = vector.load %arg4[%285, %c0_94] : memref<64x128xf32, #tpu.memory_space<vmem>>, vector<1x128xf32>
    %287 = arith.addf %284, %286 : vector<1x128xf32>
    %c23 = arith.constant 23 : index
    %c0_95 = arith.constant 0 : index
    %288 = vector.load %arg5[%c23, %c0_95] : memref<128x128xf32, #tpu.memory_space<vmem>>, vector<1x128xf32>
    tpu.vector_store %arg5[%c23, %c0_95], %287 {strides = array<i32>} : memref<128x128xf32, #tpu.memory_space<vmem>>, vector<1x128xf32>,
    %c24_i32 = arith.constant 24 : i32
    %289 = arith.addi %0, %c24_i32 : i32
    %290 = arith.index_cast %289 : i32 to index
    %291 = memref.load %arg1[%290] : memref<128xi32, #tpu.memory_space<smem>>
    %c24_i32_96 = arith.constant 24 : i32
    %292 = arith.addi %0, %c24_i32_96 : i32
    %293 = arith.index_cast %292 : i32 to index
    %294 = memref.load %arg2[%293] : memref<128xi32, #tpu.memory_space<smem>>
    %295 = arith.index_cast %291 : i32 to index
    %c0_97 = arith.constant 0 : index
    %296 = vector.load %arg3[%295, %c0_97] : memref<512x128xf32, #tpu.memory_space<vmem>>, vector<1x128xf32>
    %297 = arith.index_cast %294 : i32 to index
    %c0_98 = arith.constant 0 : index
    %298 = vector.load %arg4[%297, %c0_98] : memref<64x128xf32, #tpu.memory_space<vmem>>, vector<1x128xf32>
    %299 = arith.addf %296, %298 : vector<1x128xf32>
    %c24 = arith.constant 24 : index
    %c0_99 = arith.constant 0 : index
    %300 = vector.load %arg5[%c24, %c0_99] : memref<128x128xf32, #tpu.memory_space<vmem>>, vector<1x128xf32>
    tpu.vector_store %arg5[%c24, %c0_99], %299 {strides = array<i32>} : memref<128x128xf32, #tpu.memory_space<vmem>>, vector<1x128xf32>,
    %c25_i32 = arith.constant 25 : i32
    %301 = arith.addi %0, %c25_i32 : i32
    %302 = arith.index_cast %301 : i32 to index
    %303 = memref.load %arg1[%302] : memref<128xi32, #tpu.memory_space<smem>>
    %c25_i32_100 = arith.constant 25 : i32
    %304 = arith.addi %0, %c25_i32_100 : i32
    %305 = arith.index_cast %304 : i32 to index
    %306 = memref.load %arg2[%305] : memref<128xi32, #tpu.memory_space<smem>>
    %307 = arith.index_cast %303 : i32 to index
    %c0_101 = arith.constant 0 : index
    %308 = vector.load %arg3[%307, %c0_101] : memref<512x128xf32, #tpu.memory_space<vmem>>, vector<1x128xf32>
    %309 = arith.index_cast %306 : i32 to index
    %c0_102 = arith.constant 0 : index
    %310 = vector.load %arg4[%309, %c0_102] : memref<64x128xf32, #tpu.memory_space<vmem>>, vector<1x128xf32>
    %311 = arith.addf %308, %310 : vector<1x128xf32>
    %c25 = arith.constant 25 : index
    %c0_103 = arith.constant 0 : index
    %312 = vector.load %arg5[%c25, %c0_103] : memref<128x128xf32, #tpu.memory_space<vmem>>, vector<1x128xf32>
    tpu.vector_store %arg5[%c25, %c0_103], %311 {strides = array<i32>} : memref<128x128xf32, #tpu.memory_space<vmem>>, vector<1x128xf32>,
    %c26_i32 = arith.constant 26 : i32
    %313 = arith.addi %0, %c26_i32 : i32
    %314 = arith.index_cast %313 : i32 to index
    %315 = memref.load %arg1[%314] : memref<128xi32, #tpu.memory_space<smem>>
    %c26_i32_104 = arith.constant 26 : i32
    %316 = arith.addi %0, %c26_i32_104 : i32
    %317 = arith.index_cast %316 : i32 to index
    %318 = memref.load %arg2[%317] : memref<128xi32, #tpu.memory_space<smem>>
    %319 = arith.index_cast %315 : i32 to index
    %c0_105 = arith.constant 0 : index
    %320 = vector.load %arg3[%319, %c0_105] : memref<512x128xf32, #tpu.memory_space<vmem>>, vector<1x128xf32>
    %321 = arith.index_cast %318 : i32 to index
    %c0_106 = arith.constant 0 : index
    %322 = vector.load %arg4[%321, %c0_106] : memref<64x128xf32, #tpu.memory_space<vmem>>, vector<1x128xf32>
    %323 = arith.addf %320, %322 : vector<1x128xf32>
    %c26 = arith.constant 26 : index
    %c0_107 = arith.constant 0 : index
    %324 = vector.load %arg5[%c26, %c0_107] : memref<128x128xf32, #tpu.memory_space<vmem>>, vector<1x128xf32>
    tpu.vector_store %arg5[%c26, %c0_107], %323 {strides = array<i32>} : memref<128x128xf32, #tpu.memory_space<vmem>>, vector<1x128xf32>,
    %c27_i32 = arith.constant 27 : i32
    %325 = arith.addi %0, %c27_i32 : i32
    %326 = arith.index_cast %325 : i32 to index
    %327 = memref.load %arg1[%326] : memref<128xi32, #tpu.memory_space<smem>>
    %c27_i32_108 = arith.constant 27 : i32
    %328 = arith.addi %0, %c27_i32_108 : i32
    %329 = arith.index_cast %328 : i32 to index
    %330 = memref.load %arg2[%329] : memref<128xi32, #tpu.memory_space<smem>>
    %331 = arith.index_cast %327 : i32 to index
    %c0_109 = arith.constant 0 : index
    %332 = vector.load %arg3[%331, %c0_109] : memref<512x128xf32, #tpu.memory_space<vmem>>, vector<1x128xf32>
    %333 = arith.index_cast %330 : i32 to index
    %c0_110 = arith.constant 0 : index
    %334 = vector.load %arg4[%333, %c0_110] : memref<64x128xf32, #tpu.memory_space<vmem>>, vector<1x128xf32>
    %335 = arith.addf %332, %334 : vector<1x128xf32>
    %c27 = arith.constant 27 : index
    %c0_111 = arith.constant 0 : index
    %336 = vector.load %arg5[%c27, %c0_111] : memref<128x128xf32, #tpu.memory_space<vmem>>, vector<1x128xf32>
    tpu.vector_store %arg5[%c27, %c0_111], %335 {strides = array<i32>} : memref<128x128xf32, #tpu.memory_space<vmem>>, vector<1x128xf32>,
    %c28_i32 = arith.constant 28 : i32
    %337 = arith.addi %0, %c28_i32 : i32
    %338 = arith.index_cast %337 : i32 to index
    %339 = memref.load %arg1[%338] : memref<128xi32, #tpu.memory_space<smem>>
    %c28_i32_112 = arith.constant 28 : i32
    %340 = arith.addi %0, %c28_i32_112 : i32
    %341 = arith.index_cast %340 : i32 to index
    %342 = memref.load %arg2[%341] : memref<128xi32, #tpu.memory_space<smem>>
    %343 = arith.index_cast %339 : i32 to index
    %c0_113 = arith.constant 0 : index
    %344 = vector.load %arg3[%343, %c0_113] : memref<512x128xf32, #tpu.memory_space<vmem>>, vector<1x128xf32>
    %345 = arith.index_cast %342 : i32 to index
    %c0_114 = arith.constant 0 : index
    %346 = vector.load %arg4[%345, %c0_114] : memref<64x128xf32, #tpu.memory_space<vmem>>, vector<1x128xf32>
    %347 = arith.addf %344, %346 : vector<1x128xf32>
    %c28 = arith.constant 28 : index
    %c0_115 = arith.constant 0 : index
    %348 = vector.load %arg5[%c28, %c0_115] : memref<128x128xf32, #tpu.memory_space<vmem>>, vector<1x128xf32>
    tpu.vector_store %arg5[%c28, %c0_115], %347 {strides = array<i32>} : memref<128x128xf32, #tpu.memory_space<vmem>>, vector<1x128xf32>,
    %c29_i32 = arith.constant 29 : i32
    %349 = arith.addi %0, %c29_i32 : i32
    %350 = arith.index_cast %349 : i32 to index
    %351 = memref.load %arg1[%350] : memref<128xi32, #tpu.memory_space<smem>>
    %c29_i32_116 = arith.constant 29 : i32
    %352 = arith.addi %0, %c29_i32_116 : i32
    %353 = arith.index_cast %352 : i32 to index
    %354 = memref.load %arg2[%353] : memref<128xi32, #tpu.memory_space<smem>>
    %355 = arith.index_cast %351 : i32 to index
    %c0_117 = arith.constant 0 : index
    %356 = vector.load %arg3[%355, %c0_117] : memref<512x128xf32, #tpu.memory_space<vmem>>, vector<1x128xf32>
    %357 = arith.index_cast %354 : i32 to index
    %c0_118 = arith.constant 0 : index
    %358 = vector.load %arg4[%357, %c0_118] : memref<64x128xf32, #tpu.memory_space<vmem>>, vector<1x128xf32>
    %359 = arith.addf %356, %358 : vector<1x128xf32>
    %c29 = arith.constant 29 : index
    %c0_119 = arith.constant 0 : index
    %360 = vector.load %arg5[%c29, %c0_119] : memref<128x128xf32, #tpu.memory_space<vmem>>, vector<1x128xf32>
    tpu.vector_store %arg5[%c29, %c0_119], %359 {strides = array<i32>} : memref<128x128xf32, #tpu.memory_space<vmem>>, vector<1x128xf32>,
    %c30_i32 = arith.constant 30 : i32
    %361 = arith.addi %0, %c30_i32 : i32
    %362 = arith.index_cast %361 : i32 to index
    %363 = memref.load %arg1[%362] : memref<128xi32, #tpu.memory_space<smem>>
    %c30_i32_120 = arith.constant 30 : i32
    %364 = arith.addi %0, %c30_i32_120 : i32
    %365 = arith.index_cast %364 : i32 to index
    %366 = memref.load %arg2[%365] : memref<128xi32, #tpu.memory_space<smem>>
    %367 = arith.index_cast %363 : i32 to index
    %c0_121 = arith.constant 0 : index
    %368 = vector.load %arg3[%367, %c0_121] : memref<512x128xf32, #tpu.memory_space<vmem>>, vector<1x128xf32>
    %369 = arith.index_cast %366 : i32 to index
    %c0_122 = arith.constant 0 : index
    %370 = vector.load %arg4[%369, %c0_122] : memref<64x128xf32, #tpu.memory_space<vmem>>, vector<1x128xf32>
    %371 = arith.addf %368, %370 : vector<1x128xf32>
    %c30 = arith.constant 30 : index
    %c0_123 = arith.constant 0 : index
    %372 = vector.load %arg5[%c30, %c0_123] : memref<128x128xf32, #tpu.memory_space<vmem>>, vector<1x128xf32>
    tpu.vector_store %arg5[%c30, %c0_123], %371 {strides = array<i32>} : memref<128x128xf32, #tpu.memory_space<vmem>>, vector<1x128xf32>,
    %c31_i32 = arith.constant 31 : i32
    %373 = arith.addi %0, %c31_i32 : i32
    %374 = arith.index_cast %373 : i32 to index
    %375 = memref.load %arg1[%374] : memref<128xi32, #tpu.memory_space<smem>>
    %c31_i32_124 = arith.constant 31 : i32
    %376 = arith.addi %0, %c31_i32_124 : i32
    %377 = arith.index_cast %376 : i32 to index
    %378 = memref.load %arg2[%377] : memref<128xi32, #tpu.memory_space<smem>>
    %379 = arith.index_cast %375 : i32 to index
    %c0_125 = arith.constant 0 : index
    %380 = vector.load %arg3[%379, %c0_125] : memref<512x128xf32, #tpu.memory_space<vmem>>, vector<1x128xf32>
    %381 = arith.index_cast %378 : i32 to index
    %c0_126 = arith.constant 0 : index
    %382 = vector.load %arg4[%381, %c0_126] : memref<64x128xf32, #tpu.memory_space<vmem>>, vector<1x128xf32>
    %383 = arith.addf %380, %382 : vector<1x128xf32>
    %c31 = arith.constant 31 : index
    %c0_127 = arith.constant 0 : index
    %384 = vector.load %arg5[%c31, %c0_127] : memref<128x128xf32, #tpu.memory_space<vmem>>, vector<1x128xf32>
    tpu.vector_store %arg5[%c31, %c0_127], %383 {strides = array<i32>} : memref<128x128xf32, #tpu.memory_space<vmem>>, vector<1x128xf32>,
    %c32_i32 = arith.constant 32 : i32
    %385 = arith.addi %0, %c32_i32 : i32
    %386 = arith.index_cast %385 : i32 to index
    %387 = memref.load %arg1[%386] : memref<128xi32, #tpu.memory_space<smem>>
    %c32_i32_128 = arith.constant 32 : i32
    %388 = arith.addi %0, %c32_i32_128 : i32
    %389 = arith.index_cast %388 : i32 to index
    %390 = memref.load %arg2[%389] : memref<128xi32, #tpu.memory_space<smem>>
    %391 = arith.index_cast %387 : i32 to index
    %c0_129 = arith.constant 0 : index
    %392 = vector.load %arg3[%391, %c0_129] : memref<512x128xf32, #tpu.memory_space<vmem>>, vector<1x128xf32>
    %393 = arith.index_cast %390 : i32 to index
    %c0_130 = arith.constant 0 : index
    %394 = vector.load %arg4[%393, %c0_130] : memref<64x128xf32, #tpu.memory_space<vmem>>, vector<1x128xf32>
    %395 = arith.addf %392, %394 : vector<1x128xf32>
    %c32 = arith.constant 32 : index
    %c0_131 = arith.constant 0 : index
    %396 = vector.load %arg5[%c32, %c0_131] : memref<128x128xf32, #tpu.memory_space<vmem>>, vector<1x128xf32>
    tpu.vector_store %arg5[%c32, %c0_131], %395 {strides = array<i32>} : memref<128x128xf32, #tpu.memory_space<vmem>>, vector<1x128xf32>,
    %c33_i32 = arith.constant 33 : i32
    %397 = arith.addi %0, %c33_i32 : i32
    %398 = arith.index_cast %397 : i32 to index
    %399 = memref.load %arg1[%398] : memref<128xi32, #tpu.memory_space<smem>>
    %c33_i32_132 = arith.constant 33 : i32
    %400 = arith.addi %0, %c33_i32_132 : i32
    %401 = arith.index_cast %400 : i32 to index
    %402 = memref.load %arg2[%401] : memref<128xi32, #tpu.memory_space<smem>>
    %403 = arith.index_cast %399 : i32 to index
    %c0_133 = arith.constant 0 : index
    %404 = vector.load %arg3[%403, %c0_133] : memref<512x128xf32, #tpu.memory_space<vmem>>, vector<1x128xf32>
    %405 = arith.index_cast %402 : i32 to index
    %c0_134 = arith.constant 0 : index
    %406 = vector.load %arg4[%405, %c0_134] : memref<64x128xf32, #tpu.memory_space<vmem>>, vector<1x128xf32>
    %407 = arith.addf %404, %406 : vector<1x128xf32>
    %c33 = arith.constant 33 : index
    %c0_135 = arith.constant 0 : index
    %408 = vector.load %arg5[%c33, %c0_135] : memref<128x128xf32, #tpu.memory_space<vmem>>, vector<1x128xf32>
    tpu.vector_store %arg5[%c33, %c0_135], %407 {strides = array<i32>} : memref<128x128xf32, #tpu.memory_space<vmem>>, vector<1x128xf32>,
    %c34_i32 = arith.constant 34 : i32
    %409 = arith.addi %0, %c34_i32 : i32
    %410 = arith.index_cast %409 : i32 to index
    %411 = memref.load %arg1[%410] : memref<128xi32, #tpu.memory_space<smem>>
    %c34_i32_136 = arith.constant 34 : i32
    %412 = arith.addi %0, %c34_i32_136 : i32
    %413 = arith.index_cast %412 : i32 to index
    %414 = memref.load %arg2[%413] : memref<128xi32, #tpu.memory_space<smem>>
    %415 = arith.index_cast %411 : i32 to index
    %c0_137 = arith.constant 0 : index
    %416 = vector.load %arg3[%415, %c0_137] : memref<512x128xf32, #tpu.memory_space<vmem>>, vector<1x128xf32>
    %417 = arith.index_cast %414 : i32 to index
    %c0_138 = arith.constant 0 : index
    %418 = vector.load %arg4[%417, %c0_138] : memref<64x128xf32, #tpu.memory_space<vmem>>, vector<1x128xf32>
    %419 = arith.addf %416, %418 : vector<1x128xf32>
    %c34 = arith.constant 34 : index
    %c0_139 = arith.constant 0 : index
    %420 = vector.load %arg5[%c34, %c0_139] : memref<128x128xf32, #tpu.memory_space<vmem>>, vector<1x128xf32>
    tpu.vector_store %arg5[%c34, %c0_139], %419 {strides = array<i32>} : memref<128x128xf32, #tpu.memory_space<vmem>>, vector<1x128xf32>,
    %c35_i32 = arith.constant 35 : i32
    %421 = arith.addi %0, %c35_i32 : i32
    %422 = arith.index_cast %421 : i32 to index
    %423 = memref.load %arg1[%422] : memref<128xi32, #tpu.memory_space<smem>>
    %c35_i32_140 = arith.constant 35 : i32
    %424 = arith.addi %0, %c35_i32_140 : i32
    %425 = arith.index_cast %424 : i32 to index
    %426 = memref.load %arg2[%425] : memref<128xi32, #tpu.memory_space<smem>>
    %427 = arith.index_cast %423 : i32 to index
    %c0_141 = arith.constant 0 : index
    %428 = vector.load %arg3[%427, %c0_141] : memref<512x128xf32, #tpu.memory_space<vmem>>, vector<1x128xf32>
    %429 = arith.index_cast %426 : i32 to index
    %c0_142 = arith.constant 0 : index
    %430 = vector.load %arg4[%429, %c0_142] : memref<64x128xf32, #tpu.memory_space<vmem>>, vector<1x128xf32>
    %431 = arith.addf %428, %430 : vector<1x128xf32>
    %c35 = arith.constant 35 : index
    %c0_143 = arith.constant 0 : index
    %432 = vector.load %arg5[%c35, %c0_143] : memref<128x128xf32, #tpu.memory_space<vmem>>, vector<1x128xf32>
    tpu.vector_store %arg5[%c35, %c0_143], %431 {strides = array<i32>} : memref<128x128xf32, #tpu.memory_space<vmem>>, vector<1x128xf32>,
    %c36_i32 = arith.constant 36 : i32
    %433 = arith.addi %0, %c36_i32 : i32
    %434 = arith.index_cast %433 : i32 to index
    %435 = memref.load %arg1[%434] : memref<128xi32, #tpu.memory_space<smem>>
    %c36_i32_144 = arith.constant 36 : i32
    %436 = arith.addi %0, %c36_i32_144 : i32
    %437 = arith.index_cast %436 : i32 to index
    %438 = memref.load %arg2[%437] : memref<128xi32, #tpu.memory_space<smem>>
    %439 = arith.index_cast %435 : i32 to index
    %c0_145 = arith.constant 0 : index
    %440 = vector.load %arg3[%439, %c0_145] : memref<512x128xf32, #tpu.memory_space<vmem>>, vector<1x128xf32>
    %441 = arith.index_cast %438 : i32 to index
    %c0_146 = arith.constant 0 : index
    %442 = vector.load %arg4[%441, %c0_146] : memref<64x128xf32, #tpu.memory_space<vmem>>, vector<1x128xf32>
    %443 = arith.addf %440, %442 : vector<1x128xf32>
    %c36 = arith.constant 36 : index
    %c0_147 = arith.constant 0 : index
    %444 = vector.load %arg5[%c36, %c0_147] : memref<128x128xf32, #tpu.memory_space<vmem>>, vector<1x128xf32>
    tpu.vector_store %arg5[%c36, %c0_147], %443 {strides = array<i32>} : memref<128x128xf32, #tpu.memory_space<vmem>>, vector<1x128xf32>,
    %c37_i32 = arith.constant 37 : i32
    %445 = arith.addi %0, %c37_i32 : i32
    %446 = arith.index_cast %445 : i32 to index
    %447 = memref.load %arg1[%446] : memref<128xi32, #tpu.memory_space<smem>>
    %c37_i32_148 = arith.constant 37 : i32
    %448 = arith.addi %0, %c37_i32_148 : i32
    %449 = arith.index_cast %448 : i32 to index
    %450 = memref.load %arg2[%449] : memref<128xi32, #tpu.memory_space<smem>>
    %451 = arith.index_cast %447 : i32 to index
    %c0_149 = arith.constant 0 : index
    %452 = vector.load %arg3[%451, %c0_149] : memref<512x128xf32, #tpu.memory_space<vmem>>, vector<1x128xf32>
    %453 = arith.index_cast %450 : i32 to index
    %c0_150 = arith.constant 0 : index
    %454 = vector.load %arg4[%453, %c0_150] : memref<64x128xf32, #tpu.memory_space<vmem>>, vector<1x128xf32>
    %455 = arith.addf %452, %454 : vector<1x128xf32>
    %c37 = arith.constant 37 : index
    %c0_151 = arith.constant 0 : index
    %456 = vector.load %arg5[%c37, %c0_151] : memref<128x128xf32, #tpu.memory_space<vmem>>, vector<1x128xf32>
    tpu.vector_store %arg5[%c37, %c0_151], %455 {strides = array<i32>} : memref<128x128xf32, #tpu.memory_space<vmem>>, vector<1x128xf32>,
    %c38_i32 = arith.constant 38 : i32
    %457 = arith.addi %0, %c38_i32 : i32
    %458 = arith.index_cast %457 : i32 to index
    %459 = memref.load %arg1[%458] : memref<128xi32, #tpu.memory_space<smem>>
    %c38_i32_152 = arith.constant 38 : i32
    %460 = arith.addi %0, %c38_i32_152 : i32
    %461 = arith.index_cast %460 : i32 to index
    %462 = memref.load %arg2[%461] : memref<128xi32, #tpu.memory_space<smem>>
    %463 = arith.index_cast %459 : i32 to index
    %c0_153 = arith.constant 0 : index
    %464 = vector.load %arg3[%463, %c0_153] : memref<512x128xf32, #tpu.memory_space<vmem>>, vector<1x128xf32>
    %465 = arith.index_cast %462 : i32 to index
    %c0_154 = arith.constant 0 : index
    %466 = vector.load %arg4[%465, %c0_154] : memref<64x128xf32, #tpu.memory_space<vmem>>, vector<1x128xf32>
    %467 = arith.addf %464, %466 : vector<1x128xf32>
    %c38 = arith.constant 38 : index
    %c0_155 = arith.constant 0 : index
    %468 = vector.load %arg5[%c38, %c0_155] : memref<128x128xf32, #tpu.memory_space<vmem>>, vector<1x128xf32>
    tpu.vector_store %arg5[%c38, %c0_155], %467 {strides = array<i32>} : memref<128x128xf32, #tpu.memory_space<vmem>>, vector<1x128xf32>,
    %c39_i32 = arith.constant 39 : i32
    %469 = arith.addi %0, %c39_i32 : i32
    %470 = arith.index_cast %469 : i32 to index
    %471 = memref.load %arg1[%470] : memref<128xi32, #tpu.memory_space<smem>>
    %c39_i32_156 = arith.constant 39 : i32
    %472 = arith.addi %0, %c39_i32_156 : i32
    %473 = arith.index_cast %472 : i32 to index
    %474 = memref.load %arg2[%473] : memref<128xi32, #tpu.memory_space<smem>>
    %475 = arith.index_cast %471 : i32 to index
    %c0_157 = arith.constant 0 : index
    %476 = vector.load %arg3[%475, %c0_157] : memref<512x128xf32, #tpu.memory_space<vmem>>, vector<1x128xf32>
    %477 = arith.index_cast %474 : i32 to index
    %c0_158 = arith.constant 0 : index
    %478 = vector.load %arg4[%477, %c0_158] : memref<64x128xf32, #tpu.memory_space<vmem>>, vector<1x128xf32>
    %479 = arith.addf %476, %478 : vector<1x128xf32>
    %c39 = arith.constant 39 : index
    %c0_159 = arith.constant 0 : index
    %480 = vector.load %arg5[%c39, %c0_159] : memref<128x128xf32, #tpu.memory_space<vmem>>, vector<1x128xf32>
    tpu.vector_store %arg5[%c39, %c0_159], %479 {strides = array<i32>} : memref<128x128xf32, #tpu.memory_space<vmem>>, vector<1x128xf32>,
    %c40_i32 = arith.constant 40 : i32
    %481 = arith.addi %0, %c40_i32 : i32
    %482 = arith.index_cast %481 : i32 to index
    %483 = memref.load %arg1[%482] : memref<128xi32, #tpu.memory_space<smem>>
    %c40_i32_160 = arith.constant 40 : i32
    %484 = arith.addi %0, %c40_i32_160 : i32
    %485 = arith.index_cast %484 : i32 to index
    %486 = memref.load %arg2[%485] : memref<128xi32, #tpu.memory_space<smem>>
    %487 = arith.index_cast %483 : i32 to index
    %c0_161 = arith.constant 0 : index
    %488 = vector.load %arg3[%487, %c0_161] : memref<512x128xf32, #tpu.memory_space<vmem>>, vector<1x128xf32>
    %489 = arith.index_cast %486 : i32 to index
    %c0_162 = arith.constant 0 : index
    %490 = vector.load %arg4[%489, %c0_162] : memref<64x128xf32, #tpu.memory_space<vmem>>, vector<1x128xf32>
    %491 = arith.addf %488, %490 : vector<1x128xf32>
    %c40 = arith.constant 40 : index
    %c0_163 = arith.constant 0 : index
    %492 = vector.load %arg5[%c40, %c0_163] : memref<128x128xf32, #tpu.memory_space<vmem>>, vector<1x128xf32>
    tpu.vector_store %arg5[%c40, %c0_163], %491 {strides = array<i32>} : memref<128x128xf32, #tpu.memory_space<vmem>>, vector<1x128xf32>,
    %c41_i32 = arith.constant 41 : i32
    %493 = arith.addi %0, %c41_i32 : i32
    %494 = arith.index_cast %493 : i32 to index
    %495 = memref.load %arg1[%494] : memref<128xi32, #tpu.memory_space<smem>>
    %c41_i32_164 = arith.constant 41 : i32
    %496 = arith.addi %0, %c41_i32_164 : i32
    %497 = arith.index_cast %496 : i32 to index
    %498 = memref.load %arg2[%497] : memref<128xi32, #tpu.memory_space<smem>>
    %499 = arith.index_cast %495 : i32 to index
    %c0_165 = arith.constant 0 : index
    %500 = vector.load %arg3[%499, %c0_165] : memref<512x128xf32, #tpu.memory_space<vmem>>, vector<1x128xf32>
    %501 = arith.index_cast %498 : i32 to index
    %c0_166 = arith.constant 0 : index
    %502 = vector.load %arg4[%501, %c0_166] : memref<64x128xf32, #tpu.memory_space<vmem>>, vector<1x128xf32>
    %503 = arith.addf %500, %502 : vector<1x128xf32>
    %c41 = arith.constant 41 : index
    %c0_167 = arith.constant 0 : index
    %504 = vector.load %arg5[%c41, %c0_167] : memref<128x128xf32, #tpu.memory_space<vmem>>, vector<1x128xf32>
    tpu.vector_store %arg5[%c41, %c0_167], %503 {strides = array<i32>} : memref<128x128xf32, #tpu.memory_space<vmem>>, vector<1x128xf32>,
    %c42_i32 = arith.constant 42 : i32
    %505 = arith.addi %0, %c42_i32 : i32
    %506 = arith.index_cast %505 : i32 to index
    %507 = memref.load %arg1[%506] : memref<128xi32, #tpu.memory_space<smem>>
    %c42_i32_168 = arith.constant 42 : i32
    %508 = arith.addi %0, %c42_i32_168 : i32
    %509 = arith.index_cast %508 : i32 to index
    %510 = memref.load %arg2[%509] : memref<128xi32, #tpu.memory_space<smem>>
    %511 = arith.index_cast %507 : i32 to index
    %c0_169 = arith.constant 0 : index
    %512 = vector.load %arg3[%511, %c0_169] : memref<512x128xf32, #tpu.memory_space<vmem>>, vector<1x128xf32>
    %513 = arith.index_cast %510 : i32 to index
    %c0_170 = arith.constant 0 : index
    %514 = vector.load %arg4[%513, %c0_170] : memref<64x128xf32, #tpu.memory_space<vmem>>, vector<1x128xf32>
    %515 = arith.addf %512, %514 : vector<1x128xf32>
    %c42 = arith.constant 42 : index
    %c0_171 = arith.constant 0 : index
    %516 = vector.load %arg5[%c42, %c0_171] : memref<128x128xf32, #tpu.memory_space<vmem>>, vector<1x128xf32>
    tpu.vector_store %arg5[%c42, %c0_171], %515 {strides = array<i32>} : memref<128x128xf32, #tpu.memory_space<vmem>>, vector<1x128xf32>,
    %c43_i32 = arith.constant 43 : i32
    %517 = arith.addi %0, %c43_i32 : i32
    %518 = arith.index_cast %517 : i32 to index
    %519 = memref.load %arg1[%518] : memref<128xi32, #tpu.memory_space<smem>>
    %c43_i32_172 = arith.constant 43 : i32
    %520 = arith.addi %0, %c43_i32_172 : i32
    %521 = arith.index_cast %520 : i32 to index
    %522 = memref.load %arg2[%521] : memref<128xi32, #tpu.memory_space<smem>>
    %523 = arith.index_cast %519 : i32 to index
    %c0_173 = arith.constant 0 : index
    %524 = vector.load %arg3[%523, %c0_173] : memref<512x128xf32, #tpu.memory_space<vmem>>, vector<1x128xf32>
    %525 = arith.index_cast %522 : i32 to index
    %c0_174 = arith.constant 0 : index
    %526 = vector.load %arg4[%525, %c0_174] : memref<64x128xf32, #tpu.memory_space<vmem>>, vector<1x128xf32>
    %527 = arith.addf %524, %526 : vector<1x128xf32>
    %c43 = arith.constant 43 : index
    %c0_175 = arith.constant 0 : index
    %528 = vector.load %arg5[%c43, %c0_175] : memref<128x128xf32, #tpu.memory_space<vmem>>, vector<1x128xf32>
    tpu.vector_store %arg5[%c43, %c0_175], %527 {strides = array<i32>} : memref<128x128xf32, #tpu.memory_space<vmem>>, vector<1x128xf32>,
    %c44_i32 = arith.constant 44 : i32
    %529 = arith.addi %0, %c44_i32 : i32
    %530 = arith.index_cast %529 : i32 to index
    %531 = memref.load %arg1[%530] : memref<128xi32, #tpu.memory_space<smem>>
    %c44_i32_176 = arith.constant 44 : i32
    %532 = arith.addi %0, %c44_i32_176 : i32
    %533 = arith.index_cast %532 : i32 to index
    %534 = memref.load %arg2[%533] : memref<128xi32, #tpu.memory_space<smem>>
    %535 = arith.index_cast %531 : i32 to index
    %c0_177 = arith.constant 0 : index
    %536 = vector.load %arg3[%535, %c0_177] : memref<512x128xf32, #tpu.memory_space<vmem>>, vector<1x128xf32>
    %537 = arith.index_cast %534 : i32 to index
    %c0_178 = arith.constant 0 : index
    %538 = vector.load %arg4[%537, %c0_178] : memref<64x128xf32, #tpu.memory_space<vmem>>, vector<1x128xf32>
    %539 = arith.addf %536, %538 : vector<1x128xf32>
    %c44 = arith.constant 44 : index
    %c0_179 = arith.constant 0 : index
    %540 = vector.load %arg5[%c44, %c0_179] : memref<128x128xf32, #tpu.memory_space<vmem>>, vector<1x128xf32>
    tpu.vector_store %arg5[%c44, %c0_179], %539 {strides = array<i32>} : memref<128x128xf32, #tpu.memory_space<vmem>>, vector<1x128xf32>,
    %c45_i32 = arith.constant 45 : i32
    %541 = arith.addi %0, %c45_i32 : i32
    %542 = arith.index_cast %541 : i32 to index
    %543 = memref.load %arg1[%542] : memref<128xi32, #tpu.memory_space<smem>>
    %c45_i32_180 = arith.constant 45 : i32
    %544 = arith.addi %0, %c45_i32_180 : i32
    %545 = arith.index_cast %544 : i32 to index
    %546 = memref.load %arg2[%545] : memref<128xi32, #tpu.memory_space<smem>>
    %547 = arith.index_cast %543 : i32 to index
    %c0_181 = arith.constant 0 : index
    %548 = vector.load %arg3[%547, %c0_181] : memref<512x128xf32, #tpu.memory_space<vmem>>, vector<1x128xf32>
    %549 = arith.index_cast %546 : i32 to index
    %c0_182 = arith.constant 0 : index
    %550 = vector.load %arg4[%549, %c0_182] : memref<64x128xf32, #tpu.memory_space<vmem>>, vector<1x128xf32>
    %551 = arith.addf %548, %550 : vector<1x128xf32>
    %c45 = arith.constant 45 : index
    %c0_183 = arith.constant 0 : index
    %552 = vector.load %arg5[%c45, %c0_183] : memref<128x128xf32, #tpu.memory_space<vmem>>, vector<1x128xf32>
    tpu.vector_store %arg5[%c45, %c0_183], %551 {strides = array<i32>} : memref<128x128xf32, #tpu.memory_space<vmem>>, vector<1x128xf32>,
    %c46_i32 = arith.constant 46 : i32
    %553 = arith.addi %0, %c46_i32 : i32
    %554 = arith.index_cast %553 : i32 to index
    %555 = memref.load %arg1[%554] : memref<128xi32, #tpu.memory_space<smem>>
    %c46_i32_184 = arith.constant 46 : i32
    %556 = arith.addi %0, %c46_i32_184 : i32
    %557 = arith.index_cast %556 : i32 to index
    %558 = memref.load %arg2[%557] : memref<128xi32, #tpu.memory_space<smem>>
    %559 = arith.index_cast %555 : i32 to index
    %c0_185 = arith.constant 0 : index
    %560 = vector.load %arg3[%559, %c0_185] : memref<512x128xf32, #tpu.memory_space<vmem>>, vector<1x128xf32>
    %561 = arith.index_cast %558 : i32 to index
    %c0_186 = arith.constant 0 : index
    %562 = vector.load %arg4[%561, %c0_186] : memref<64x128xf32, #tpu.memory_space<vmem>>, vector<1x128xf32>
    %563 = arith.addf %560, %562 : vector<1x128xf32>
    %c46 = arith.constant 46 : index
    %c0_187 = arith.constant 0 : index
    %564 = vector.load %arg5[%c46, %c0_187] : memref<128x128xf32, #tpu.memory_space<vmem>>, vector<1x128xf32>
    tpu.vector_store %arg5[%c46, %c0_187], %563 {strides = array<i32>} : memref<128x128xf32, #tpu.memory_space<vmem>>, vector<1x128xf32>,
    %c47_i32 = arith.constant 47 : i32
    %565 = arith.addi %0, %c47_i32 : i32
    %566 = arith.index_cast %565 : i32 to index
    %567 = memref.load %arg1[%566] : memref<128xi32, #tpu.memory_space<smem>>
    %c47_i32_188 = arith.constant 47 : i32
    %568 = arith.addi %0, %c47_i32_188 : i32
    %569 = arith.index_cast %568 : i32 to index
    %570 = memref.load %arg2[%569] : memref<128xi32, #tpu.memory_space<smem>>
    %571 = arith.index_cast %567 : i32 to index
    %c0_189 = arith.constant 0 : index
    %572 = vector.load %arg3[%571, %c0_189] : memref<512x128xf32, #tpu.memory_space<vmem>>, vector<1x128xf32>
    %573 = arith.index_cast %570 : i32 to index
    %c0_190 = arith.constant 0 : index
    %574 = vector.load %arg4[%573, %c0_190] : memref<64x128xf32, #tpu.memory_space<vmem>>, vector<1x128xf32>
    %575 = arith.addf %572, %574 : vector<1x128xf32>
    %c47 = arith.constant 47 : index
    %c0_191 = arith.constant 0 : index
    %576 = vector.load %arg5[%c47, %c0_191] : memref<128x128xf32, #tpu.memory_space<vmem>>, vector<1x128xf32>
    tpu.vector_store %arg5[%c47, %c0_191], %575 {strides = array<i32>} : memref<128x128xf32, #tpu.memory_space<vmem>>, vector<1x128xf32>,
    %c48_i32 = arith.constant 48 : i32
    %577 = arith.addi %0, %c48_i32 : i32
    %578 = arith.index_cast %577 : i32 to index
    %579 = memref.load %arg1[%578] : memref<128xi32, #tpu.memory_space<smem>>
    %c48_i32_192 = arith.constant 48 : i32
    %580 = arith.addi %0, %c48_i32_192 : i32
    %581 = arith.index_cast %580 : i32 to index
    %582 = memref.load %arg2[%581] : memref<128xi32, #tpu.memory_space<smem>>
    %583 = arith.index_cast %579 : i32 to index
    %c0_193 = arith.constant 0 : index
    %584 = vector.load %arg3[%583, %c0_193] : memref<512x128xf32, #tpu.memory_space<vmem>>, vector<1x128xf32>
    %585 = arith.index_cast %582 : i32 to index
    %c0_194 = arith.constant 0 : index
    %586 = vector.load %arg4[%585, %c0_194] : memref<64x128xf32, #tpu.memory_space<vmem>>, vector<1x128xf32>
    %587 = arith.addf %584, %586 : vector<1x128xf32>
    %c48 = arith.constant 48 : index
    %c0_195 = arith.constant 0 : index
    %588 = vector.load %arg5[%c48, %c0_195] : memref<128x128xf32, #tpu.memory_space<vmem>>, vector<1x128xf32>
    tpu.vector_store %arg5[%c48, %c0_195], %587 {strides = array<i32>} : memref<128x128xf32, #tpu.memory_space<vmem>>, vector<1x128xf32>,
    %c49_i32 = arith.constant 49 : i32
    %589 = arith.addi %0, %c49_i32 : i32
    %590 = arith.index_cast %589 : i32 to index
    %591 = memref.load %arg1[%590] : memref<128xi32, #tpu.memory_space<smem>>
    %c49_i32_196 = arith.constant 49 : i32
    %592 = arith.addi %0, %c49_i32_196 : i32
    %593 = arith.index_cast %592 : i32 to index
    %594 = memref.load %arg2[%593] : memref<128xi32, #tpu.memory_space<smem>>
    %595 = arith.index_cast %591 : i32 to index
    %c0_197 = arith.constant 0 : index
    %596 = vector.load %arg3[%595, %c0_197] : memref<512x128xf32, #tpu.memory_space<vmem>>, vector<1x128xf32>
    %597 = arith.index_cast %594 : i32 to index
    %c0_198 = arith.constant 0 : index
    %598 = vector.load %arg4[%597, %c0_198] : memref<64x128xf32, #tpu.memory_space<vmem>>, vector<1x128xf32>
    %599 = arith.addf %596, %598 : vector<1x128xf32>
    %c49 = arith.constant 49 : index
    %c0_199 = arith.constant 0 : index
    %600 = vector.load %arg5[%c49, %c0_199] : memref<128x128xf32, #tpu.memory_space<vmem>>, vector<1x128xf32>
    tpu.vector_store %arg5[%c49, %c0_199], %599 {strides = array<i32>} : memref<128x128xf32, #tpu.memory_space<vmem>>, vector<1x128xf32>,
    %c50_i32 = arith.constant 50 : i32
    %601 = arith.addi %0, %c50_i32 : i32
    %602 = arith.index_cast %601 : i32 to index
    %603 = memref.load %arg1[%602] : memref<128xi32, #tpu.memory_space<smem>>
    %c50_i32_200 = arith.constant 50 : i32
    %604 = arith.addi %0, %c50_i32_200 : i32
    %605 = arith.index_cast %604 : i32 to index
    %606 = memref.load %arg2[%605] : memref<128xi32, #tpu.memory_space<smem>>
    %607 = arith.index_cast %603 : i32 to index
    %c0_201 = arith.constant 0 : index
    %608 = vector.load %arg3[%607, %c0_201] : memref<512x128xf32, #tpu.memory_space<vmem>>, vector<1x128xf32>
    %609 = arith.index_cast %606 : i32 to index
    %c0_202 = arith.constant 0 : index
    %610 = vector.load %arg4[%609, %c0_202] : memref<64x128xf32, #tpu.memory_space<vmem>>, vector<1x128xf32>
    %611 = arith.addf %608, %610 : vector<1x128xf32>
    %c50 = arith.constant 50 : index
    %c0_203 = arith.constant 0 : index
    %612 = vector.load %arg5[%c50, %c0_203] : memref<128x128xf32, #tpu.memory_space<vmem>>, vector<1x128xf32>
    tpu.vector_store %arg5[%c50, %c0_203], %611 {strides = array<i32>} : memref<128x128xf32, #tpu.memory_space<vmem>>, vector<1x128xf32>,
    %c51_i32 = arith.constant 51 : i32
    %613 = arith.addi %0, %c51_i32 : i32
    %614 = arith.index_cast %613 : i32 to index
    %615 = memref.load %arg1[%614] : memref<128xi32, #tpu.memory_space<smem>>
    %c51_i32_204 = arith.constant 51 : i32
    %616 = arith.addi %0, %c51_i32_204 : i32
    %617 = arith.index_cast %616 : i32 to index
    %618 = memref.load %arg2[%617] : memref<128xi32, #tpu.memory_space<smem>>
    %619 = arith.index_cast %615 : i32 to index
    %c0_205 = arith.constant 0 : index
    %620 = vector.load %arg3[%619, %c0_205] : memref<512x128xf32, #tpu.memory_space<vmem>>, vector<1x128xf32>
    %621 = arith.index_cast %618 : i32 to index
    %c0_206 = arith.constant 0 : index
    %622 = vector.load %arg4[%621, %c0_206] : memref<64x128xf32, #tpu.memory_space<vmem>>, vector<1x128xf32>
    %623 = arith.addf %620, %622 : vector<1x128xf32>
    %c51 = arith.constant 51 : index
    %c0_207 = arith.constant 0 : index
    %624 = vector.load %arg5[%c51, %c0_207] : memref<128x128xf32, #tpu.memory_space<vmem>>, vector<1x128xf32>
    tpu.vector_store %arg5[%c51, %c0_207], %623 {strides = array<i32>} : memref<128x128xf32, #tpu.memory_space<vmem>>, vector<1x128xf32>,
    %c52_i32 = arith.constant 52 : i32
    %625 = arith.addi %0, %c52_i32 : i32
    %626 = arith.index_cast %625 : i32 to index
    %627 = memref.load %arg1[%626] : memref<128xi32, #tpu.memory_space<smem>>
    %c52_i32_208 = arith.constant 52 : i32
    %628 = arith.addi %0, %c52_i32_208 : i32
    %629 = arith.index_cast %628 : i32 to index
    %630 = memref.load %arg2[%629] : memref<128xi32, #tpu.memory_space<smem>>
    %631 = arith.index_cast %627 : i32 to index
    %c0_209 = arith.constant 0 : index
    %632 = vector.load %arg3[%631, %c0_209] : memref<512x128xf32, #tpu.memory_space<vmem>>, vector<1x128xf32>
    %633 = arith.index_cast %630 : i32 to index
    %c0_210 = arith.constant 0 : index
    %634 = vector.load %arg4[%633, %c0_210] : memref<64x128xf32, #tpu.memory_space<vmem>>, vector<1x128xf32>
    %635 = arith.addf %632, %634 : vector<1x128xf32>
    %c52 = arith.constant 52 : index
    %c0_211 = arith.constant 0 : index
    %636 = vector.load %arg5[%c52, %c0_211] : memref<128x128xf32, #tpu.memory_space<vmem>>, vector<1x128xf32>
    tpu.vector_store %arg5[%c52, %c0_211], %635 {strides = array<i32>} : memref<128x128xf32, #tpu.memory_space<vmem>>, vector<1x128xf32>,
    %c53_i32 = arith.constant 53 : i32
    %637 = arith.addi %0, %c53_i32 : i32
    %638 = arith.index_cast %637 : i32 to index
    %639 = memref.load %arg1[%638] : memref<128xi32, #tpu.memory_space<smem>>
    %c53_i32_212 = arith.constant 53 : i32
    %640 = arith.addi %0, %c53_i32_212 : i32
    %641 = arith.index_cast %640 : i32 to index
    %642 = memref.load %arg2[%641] : memref<128xi32, #tpu.memory_space<smem>>
    %643 = arith.index_cast %639 : i32 to index
    %c0_213 = arith.constant 0 : index
    %644 = vector.load %arg3[%643, %c0_213] : memref<512x128xf32, #tpu.memory_space<vmem>>, vector<1x128xf32>
    %645 = arith.index_cast %642 : i32 to index
    %c0_214 = arith.constant 0 : index
    %646 = vector.load %arg4[%645, %c0_214] : memref<64x128xf32, #tpu.memory_space<vmem>>, vector<1x128xf32>
    %647 = arith.addf %644, %646 : vector<1x128xf32>
    %c53 = arith.constant 53 : index
    %c0_215 = arith.constant 0 : index
    %648 = vector.load %arg5[%c53, %c0_215] : memref<128x128xf32, #tpu.memory_space<vmem>>, vector<1x128xf32>
    tpu.vector_store %arg5[%c53, %c0_215], %647 {strides = array<i32>} : memref<128x128xf32, #tpu.memory_space<vmem>>, vector<1x128xf32>,
    %c54_i32 = arith.constant 54 : i32
    %649 = arith.addi %0, %c54_i32 : i32
    %650 = arith.index_cast %649 : i32 to index
    %651 = memref.load %arg1[%650] : memref<128xi32, #tpu.memory_space<smem>>
    %c54_i32_216 = arith.constant 54 : i32
    %652 = arith.addi %0, %c54_i32_216 : i32
    %653 = arith.index_cast %652 : i32 to index
    %654 = memref.load %arg2[%653] : memref<128xi32, #tpu.memory_space<smem>>
    %655 = arith.index_cast %651 : i32 to index
    %c0_217 = arith.constant 0 : index
    %656 = vector.load %arg3[%655, %c0_217] : memref<512x128xf32, #tpu.memory_space<vmem>>, vector<1x128xf32>
    %657 = arith.index_cast %654 : i32 to index
    %c0_218 = arith.constant 0 : index
    %658 = vector.load %arg4[%657, %c0_218] : memref<64x128xf32, #tpu.memory_space<vmem>>, vector<1x128xf32>
    %659 = arith.addf %656, %658 : vector<1x128xf32>
    %c54 = arith.constant 54 : index
    %c0_219 = arith.constant 0 : index
    %660 = vector.load %arg5[%c54, %c0_219] : memref<128x128xf32, #tpu.memory_space<vmem>>, vector<1x128xf32>
    tpu.vector_store %arg5[%c54, %c0_219], %659 {strides = array<i32>} : memref<128x128xf32, #tpu.memory_space<vmem>>, vector<1x128xf32>,
    %c55_i32 = arith.constant 55 : i32
    %661 = arith.addi %0, %c55_i32 : i32
    %662 = arith.index_cast %661 : i32 to index
    %663 = memref.load %arg1[%662] : memref<128xi32, #tpu.memory_space<smem>>
    %c55_i32_220 = arith.constant 55 : i32
    %664 = arith.addi %0, %c55_i32_220 : i32
    %665 = arith.index_cast %664 : i32 to index
    %666 = memref.load %arg2[%665] : memref<128xi32, #tpu.memory_space<smem>>
    %667 = arith.index_cast %663 : i32 to index
    %c0_221 = arith.constant 0 : index
    %668 = vector.load %arg3[%667, %c0_221] : memref<512x128xf32, #tpu.memory_space<vmem>>, vector<1x128xf32>
    %669 = arith.index_cast %666 : i32 to index
    %c0_222 = arith.constant 0 : index
    %670 = vector.load %arg4[%669, %c0_222] : memref<64x128xf32, #tpu.memory_space<vmem>>, vector<1x128xf32>
    %671 = arith.addf %668, %670 : vector<1x128xf32>
    %c55 = arith.constant 55 : index
    %c0_223 = arith.constant 0 : index
    %672 = vector.load %arg5[%c55, %c0_223] : memref<128x128xf32, #tpu.memory_space<vmem>>, vector<1x128xf32>
    tpu.vector_store %arg5[%c55, %c0_223], %671 {strides = array<i32>} : memref<128x128xf32, #tpu.memory_space<vmem>>, vector<1x128xf32>,
    %c56_i32 = arith.constant 56 : i32
    %673 = arith.addi %0, %c56_i32 : i32
    %674 = arith.index_cast %673 : i32 to index
    %675 = memref.load %arg1[%674] : memref<128xi32, #tpu.memory_space<smem>>
    %c56_i32_224 = arith.constant 56 : i32
    %676 = arith.addi %0, %c56_i32_224 : i32
    %677 = arith.index_cast %676 : i32 to index
    %678 = memref.load %arg2[%677] : memref<128xi32, #tpu.memory_space<smem>>
    %679 = arith.index_cast %675 : i32 to index
    %c0_225 = arith.constant 0 : index
    %680 = vector.load %arg3[%679, %c0_225] : memref<512x128xf32, #tpu.memory_space<vmem>>, vector<1x128xf32>
    %681 = arith.index_cast %678 : i32 to index
    %c0_226 = arith.constant 0 : index
    %682 = vector.load %arg4[%681, %c0_226] : memref<64x128xf32, #tpu.memory_space<vmem>>, vector<1x128xf32>
    %683 = arith.addf %680, %682 : vector<1x128xf32>
    %c56 = arith.constant 56 : index
    %c0_227 = arith.constant 0 : index
    %684 = vector.load %arg5[%c56, %c0_227] : memref<128x128xf32, #tpu.memory_space<vmem>>, vector<1x128xf32>
    tpu.vector_store %arg5[%c56, %c0_227], %683 {strides = array<i32>} : memref<128x128xf32, #tpu.memory_space<vmem>>, vector<1x128xf32>,
    %c57_i32 = arith.constant 57 : i32
    %685 = arith.addi %0, %c57_i32 : i32
    %686 = arith.index_cast %685 : i32 to index
    %687 = memref.load %arg1[%686] : memref<128xi32, #tpu.memory_space<smem>>
    %c57_i32_228 = arith.constant 57 : i32
    %688 = arith.addi %0, %c57_i32_228 : i32
    %689 = arith.index_cast %688 : i32 to index
    %690 = memref.load %arg2[%689] : memref<128xi32, #tpu.memory_space<smem>>
    %691 = arith.index_cast %687 : i32 to index
    %c0_229 = arith.constant 0 : index
    %692 = vector.load %arg3[%691, %c0_229] : memref<512x128xf32, #tpu.memory_space<vmem>>, vector<1x128xf32>
    %693 = arith.index_cast %690 : i32 to index
    %c0_230 = arith.constant 0 : index
    %694 = vector.load %arg4[%693, %c0_230] : memref<64x128xf32, #tpu.memory_space<vmem>>, vector<1x128xf32>
    %695 = arith.addf %692, %694 : vector<1x128xf32>
    %c57 = arith.constant 57 : index
    %c0_231 = arith.constant 0 : index
    %696 = vector.load %arg5[%c57, %c0_231] : memref<128x128xf32, #tpu.memory_space<vmem>>, vector<1x128xf32>
    tpu.vector_store %arg5[%c57, %c0_231], %695 {strides = array<i32>} : memref<128x128xf32, #tpu.memory_space<vmem>>, vector<1x128xf32>,
    %c58_i32 = arith.constant 58 : i32
    %697 = arith.addi %0, %c58_i32 : i32
    %698 = arith.index_cast %697 : i32 to index
    %699 = memref.load %arg1[%698] : memref<128xi32, #tpu.memory_space<smem>>
    %c58_i32_232 = arith.constant 58 : i32
    %700 = arith.addi %0, %c58_i32_232 : i32
    %701 = arith.index_cast %700 : i32 to index
    %702 = memref.load %arg2[%701] : memref<128xi32, #tpu.memory_space<smem>>
    %703 = arith.index_cast %699 : i32 to index
    %c0_233 = arith.constant 0 : index
    %704 = vector.load %arg3[%703, %c0_233] : memref<512x128xf32, #tpu.memory_space<vmem>>, vector<1x128xf32>
    %705 = arith.index_cast %702 : i32 to index
    %c0_234 = arith.constant 0 : index
    %706 = vector.load %arg4[%705, %c0_234] : memref<64x128xf32, #tpu.memory_space<vmem>>, vector<1x128xf32>
    %707 = arith.addf %704, %706 : vector<1x128xf32>
    %c58 = arith.constant 58 : index
    %c0_235 = arith.constant 0 : index
    %708 = vector.load %arg5[%c58, %c0_235] : memref<128x128xf32, #tpu.memory_space<vmem>>, vector<1x128xf32>
    tpu.vector_store %arg5[%c58, %c0_235], %707 {strides = array<i32>} : memref<128x128xf32, #tpu.memory_space<vmem>>, vector<1x128xf32>,
    %c59_i32 = arith.constant 59 : i32
    %709 = arith.addi %0, %c59_i32 : i32
    %710 = arith.index_cast %709 : i32 to index
    %711 = memref.load %arg1[%710] : memref<128xi32, #tpu.memory_space<smem>>
    %c59_i32_236 = arith.constant 59 : i32
    %712 = arith.addi %0, %c59_i32_236 : i32
    %713 = arith.index_cast %712 : i32 to index
    %714 = memref.load %arg2[%713] : memref<128xi32, #tpu.memory_space<smem>>
    %715 = arith.index_cast %711 : i32 to index
    %c0_237 = arith.constant 0 : index
    %716 = vector.load %arg3[%715, %c0_237] : memref<512x128xf32, #tpu.memory_space<vmem>>, vector<1x128xf32>
    %717 = arith.index_cast %714 : i32 to index
    %c0_238 = arith.constant 0 : index
    %718 = vector.load %arg4[%717, %c0_238] : memref<64x128xf32, #tpu.memory_space<vmem>>, vector<1x128xf32>
    %719 = arith.addf %716, %718 : vector<1x128xf32>
    %c59 = arith.constant 59 : index
    %c0_239 = arith.constant 0 : index
    %720 = vector.load %arg5[%c59, %c0_239] : memref<128x128xf32, #tpu.memory_space<vmem>>, vector<1x128xf32>
    tpu.vector_store %arg5[%c59, %c0_239], %719 {strides = array<i32>} : memref<128x128xf32, #tpu.memory_space<vmem>>, vector<1x128xf32>,
    %c60_i32 = arith.constant 60 : i32
    %721 = arith.addi %0, %c60_i32 : i32
    %722 = arith.index_cast %721 : i32 to index
    %723 = memref.load %arg1[%722] : memref<128xi32, #tpu.memory_space<smem>>
    %c60_i32_240 = arith.constant 60 : i32
    %724 = arith.addi %0, %c60_i32_240 : i32
    %725 = arith.index_cast %724 : i32 to index
    %726 = memref.load %arg2[%725] : memref<128xi32, #tpu.memory_space<smem>>
    %727 = arith.index_cast %723 : i32 to index
    %c0_241 = arith.constant 0 : index
    %728 = vector.load %arg3[%727, %c0_241] : memref<512x128xf32, #tpu.memory_space<vmem>>, vector<1x128xf32>
    %729 = arith.index_cast %726 : i32 to index
    %c0_242 = arith.constant 0 : index
    %730 = vector.load %arg4[%729, %c0_242] : memref<64x128xf32, #tpu.memory_space<vmem>>, vector<1x128xf32>
    %731 = arith.addf %728, %730 : vector<1x128xf32>
    %c60 = arith.constant 60 : index
    %c0_243 = arith.constant 0 : index
    %732 = vector.load %arg5[%c60, %c0_243] : memref<128x128xf32, #tpu.memory_space<vmem>>, vector<1x128xf32>
    tpu.vector_store %arg5[%c60, %c0_243], %731 {strides = array<i32>} : memref<128x128xf32, #tpu.memory_space<vmem>>, vector<1x128xf32>,
    %c61_i32 = arith.constant 61 : i32
    %733 = arith.addi %0, %c61_i32 : i32
    %734 = arith.index_cast %733 : i32 to index
    %735 = memref.load %arg1[%734] : memref<128xi32, #tpu.memory_space<smem>>
    %c61_i32_244 = arith.constant 61 : i32
    %736 = arith.addi %0, %c61_i32_244 : i32
    %737 = arith.index_cast %736 : i32 to index
    %738 = memref.load %arg2[%737] : memref<128xi32, #tpu.memory_space<smem>>
    %739 = arith.index_cast %735 : i32 to index
    %c0_245 = arith.constant 0 : index
    %740 = vector.load %arg3[%739, %c0_245] : memref<512x128xf32, #tpu.memory_space<vmem>>, vector<1x128xf32>
    %741 = arith.index_cast %738 : i32 to index
    %c0_246 = arith.constant 0 : index
    %742 = vector.load %arg4[%741, %c0_246] : memref<64x128xf32, #tpu.memory_space<vmem>>, vector<1x128xf32>
    %743 = arith.addf %740, %742 : vector<1x128xf32>
    %c61 = arith.constant 61 : index
    %c0_247 = arith.constant 0 : index
    %744 = vector.load %arg5[%c61, %c0_247] : memref<128x128xf32, #tpu.memory_space<vmem>>, vector<1x128xf32>
    tpu.vector_store %arg5[%c61, %c0_247], %743 {strides = array<i32>} : memref<128x128xf32, #tpu.memory_space<vmem>>, vector<1x128xf32>,
    %c62_i32 = arith.constant 62 : i32
    %745 = arith.addi %0, %c62_i32 : i32
    %746 = arith.index_cast %745 : i32 to index
    %747 = memref.load %arg1[%746] : memref<128xi32, #tpu.memory_space<smem>>
    %c62_i32_248 = arith.constant 62 : i32
    %748 = arith.addi %0, %c62_i32_248 : i32
    %749 = arith.index_cast %748 : i32 to index
    %750 = memref.load %arg2[%749] : memref<128xi32, #tpu.memory_space<smem>>
    %751 = arith.index_cast %747 : i32 to index
    %c0_249 = arith.constant 0 : index
    %752 = vector.load %arg3[%751, %c0_249] : memref<512x128xf32, #tpu.memory_space<vmem>>, vector<1x128xf32>
    %753 = arith.index_cast %750 : i32 to index
    %c0_250 = arith.constant 0 : index
    %754 = vector.load %arg4[%753, %c0_250] : memref<64x128xf32, #tpu.memory_space<vmem>>, vector<1x128xf32>
    %755 = arith.addf %752, %754 : vector<1x128xf32>
    %c62 = arith.constant 62 : index
    %c0_251 = arith.constant 0 : index
    %756 = vector.load %arg5[%c62, %c0_251] : memref<128x128xf32, #tpu.memory_space<vmem>>, vector<1x128xf32>
    tpu.vector_store %arg5[%c62, %c0_251], %755 {strides = array<i32>} : memref<128x128xf32, #tpu.memory_space<vmem>>, vector<1x128xf32>,
    %c63_i32 = arith.constant 63 : i32
    %757 = arith.addi %0, %c63_i32 : i32
    %758 = arith.index_cast %757 : i32 to index
    %759 = memref.load %arg1[%758] : memref<128xi32, #tpu.memory_space<smem>>
    %c63_i32_252 = arith.constant 63 : i32
    %760 = arith.addi %0, %c63_i32_252 : i32
    %761 = arith.index_cast %760 : i32 to index
    %762 = memref.load %arg2[%761] : memref<128xi32, #tpu.memory_space<smem>>
    %763 = arith.index_cast %759 : i32 to index
    %c0_253 = arith.constant 0 : index
    %764 = vector.load %arg3[%763, %c0_253] : memref<512x128xf32, #tpu.memory_space<vmem>>, vector<1x128xf32>
    %765 = arith.index_cast %762 : i32 to index
    %c0_254 = arith.constant 0 : index
    %766 = vector.load %arg4[%765, %c0_254] : memref<64x128xf32, #tpu.memory_space<vmem>>, vector<1x128xf32>
    %767 = arith.addf %764, %766 : vector<1x128xf32>
    %c63 = arith.constant 63 : index
    %c0_255 = arith.constant 0 : index
    %768 = vector.load %arg5[%c63, %c0_255] : memref<128x128xf32, #tpu.memory_space<vmem>>, vector<1x128xf32>
    tpu.vector_store %arg5[%c63, %c0_255], %767 {strides = array<i32>} : memref<128x128xf32, #tpu.memory_space<vmem>>, vector<1x128xf32>,
    %c64_i32 = arith.constant 64 : i32
    %769 = arith.addi %0, %c64_i32 : i32
    %770 = arith.index_cast %769 : i32 to index
    %771 = memref.load %arg1[%770] : memref<128xi32, #tpu.memory_space<smem>>
    %c64_i32_256 = arith.constant 64 : i32
    %772 = arith.addi %0, %c64_i32_256 : i32
    %773 = arith.index_cast %772 : i32 to index
    %774 = memref.load %arg2[%773] : memref<128xi32, #tpu.memory_space<smem>>
    %775 = arith.index_cast %771 : i32 to index
    %c0_257 = arith.constant 0 : index
    %776 = vector.load %arg3[%775, %c0_257] : memref<512x128xf32, #tpu.memory_space<vmem>>, vector<1x128xf32>
    %777 = arith.index_cast %774 : i32 to index
    %c0_258 = arith.constant 0 : index
    %778 = vector.load %arg4[%777, %c0_258] : memref<64x128xf32, #tpu.memory_space<vmem>>, vector<1x128xf32>
    %779 = arith.addf %776, %778 : vector<1x128xf32>
    %c64 = arith.constant 64 : index
    %c0_259 = arith.constant 0 : index
    %780 = vector.load %arg5[%c64, %c0_259] : memref<128x128xf32, #tpu.memory_space<vmem>>, vector<1x128xf32>
    tpu.vector_store %arg5[%c64, %c0_259], %779 {strides = array<i32>} : memref<128x128xf32, #tpu.memory_space<vmem>>, vector<1x128xf32>,
    %c65_i32 = arith.constant 65 : i32
    %781 = arith.addi %0, %c65_i32 : i32
    %782 = arith.index_cast %781 : i32 to index
    %783 = memref.load %arg1[%782] : memref<128xi32, #tpu.memory_space<smem>>
    %c65_i32_260 = arith.constant 65 : i32
    %784 = arith.addi %0, %c65_i32_260 : i32
    %785 = arith.index_cast %784 : i32 to index
    %786 = memref.load %arg2[%785] : memref<128xi32, #tpu.memory_space<smem>>
    %787 = arith.index_cast %783 : i32 to index
    %c0_261 = arith.constant 0 : index
    %788 = vector.load %arg3[%787, %c0_261] : memref<512x128xf32, #tpu.memory_space<vmem>>, vector<1x128xf32>
    %789 = arith.index_cast %786 : i32 to index
    %c0_262 = arith.constant 0 : index
    %790 = vector.load %arg4[%789, %c0_262] : memref<64x128xf32, #tpu.memory_space<vmem>>, vector<1x128xf32>
    %791 = arith.addf %788, %790 : vector<1x128xf32>
    %c65 = arith.constant 65 : index
    %c0_263 = arith.constant 0 : index
    %792 = vector.load %arg5[%c65, %c0_263] : memref<128x128xf32, #tpu.memory_space<vmem>>, vector<1x128xf32>
    tpu.vector_store %arg5[%c65, %c0_263], %791 {strides = array<i32>} : memref<128x128xf32, #tpu.memory_space<vmem>>, vector<1x128xf32>,
    %c66_i32 = arith.constant 66 : i32
    %793 = arith.addi %0, %c66_i32 : i32
    %794 = arith.index_cast %793 : i32 to index
    %795 = memref.load %arg1[%794] : memref<128xi32, #tpu.memory_space<smem>>
    %c66_i32_264 = arith.constant 66 : i32
    %796 = arith.addi %0, %c66_i32_264 : i32
    %797 = arith.index_cast %796 : i32 to index
    %798 = memref.load %arg2[%797] : memref<128xi32, #tpu.memory_space<smem>>
    %799 = arith.index_cast %795 : i32 to index
    %c0_265 = arith.constant 0 : index
    %800 = vector.load %arg3[%799, %c0_265] : memref<512x128xf32, #tpu.memory_space<vmem>>, vector<1x128xf32>
    %801 = arith.index_cast %798 : i32 to index
    %c0_266 = arith.constant 0 : index
    %802 = vector.load %arg4[%801, %c0_266] : memref<64x128xf32, #tpu.memory_space<vmem>>, vector<1x128xf32>
    %803 = arith.addf %800, %802 : vector<1x128xf32>
    %c66 = arith.constant 66 : index
    %c0_267 = arith.constant 0 : index
    %804 = vector.load %arg5[%c66, %c0_267] : memref<128x128xf32, #tpu.memory_space<vmem>>, vector<1x128xf32>
    tpu.vector_store %arg5[%c66, %c0_267], %803 {strides = array<i32>} : memref<128x128xf32, #tpu.memory_space<vmem>>, vector<1x128xf32>,
    %c67_i32 = arith.constant 67 : i32
    %805 = arith.addi %0, %c67_i32 : i32
    %806 = arith.index_cast %805 : i32 to index
    %807 = memref.load %arg1[%806] : memref<128xi32, #tpu.memory_space<smem>>
    %c67_i32_268 = arith.constant 67 : i32
    %808 = arith.addi %0, %c67_i32_268 : i32
    %809 = arith.index_cast %808 : i32 to index
    %810 = memref.load %arg2[%809] : memref<128xi32, #tpu.memory_space<smem>>
    %811 = arith.index_cast %807 : i32 to index
    %c0_269 = arith.constant 0 : index
    %812 = vector.load %arg3[%811, %c0_269] : memref<512x128xf32, #tpu.memory_space<vmem>>, vector<1x128xf32>
    %813 = arith.index_cast %810 : i32 to index
    %c0_270 = arith.constant 0 : index
    %814 = vector.load %arg4[%813, %c0_270] : memref<64x128xf32, #tpu.memory_space<vmem>>, vector<1x128xf32>
    %815 = arith.addf %812, %814 : vector<1x128xf32>
    %c67 = arith.constant 67 : index
    %c0_271 = arith.constant 0 : index
    %816 = vector.load %arg5[%c67, %c0_271] : memref<128x128xf32, #tpu.memory_space<vmem>>, vector<1x128xf32>
    tpu.vector_store %arg5[%c67, %c0_271], %815 {strides = array<i32>} : memref<128x128xf32, #tpu.memory_space<vmem>>, vector<1x128xf32>,
    %c68_i32 = arith.constant 68 : i32
    %817 = arith.addi %0, %c68_i32 : i32
    %818 = arith.index_cast %817 : i32 to index
    %819 = memref.load %arg1[%818] : memref<128xi32, #tpu.memory_space<smem>>
    %c68_i32_272 = arith.constant 68 : i32
    %820 = arith.addi %0, %c68_i32_272 : i32
    %821 = arith.index_cast %820 : i32 to index
    %822 = memref.load %arg2[%821] : memref<128xi32, #tpu.memory_space<smem>>
    %823 = arith.index_cast %819 : i32 to index
    %c0_273 = arith.constant 0 : index
    %824 = vector.load %arg3[%823, %c0_273] : memref<512x128xf32, #tpu.memory_space<vmem>>, vector<1x128xf32>
    %825 = arith.index_cast %822 : i32 to index
    %c0_274 = arith.constant 0 : index
    %826 = vector.load %arg4[%825, %c0_274] : memref<64x128xf32, #tpu.memory_space<vmem>>, vector<1x128xf32>
    %827 = arith.addf %824, %826 : vector<1x128xf32>
    %c68 = arith.constant 68 : index
    %c0_275 = arith.constant 0 : index
    %828 = vector.load %arg5[%c68, %c0_275] : memref<128x128xf32, #tpu.memory_space<vmem>>, vector<1x128xf32>
    tpu.vector_store %arg5[%c68, %c0_275], %827 {strides = array<i32>} : memref<128x128xf32, #tpu.memory_space<vmem>>, vector<1x128xf32>,
    %c69_i32 = arith.constant 69 : i32
    %829 = arith.addi %0, %c69_i32 : i32
    %830 = arith.index_cast %829 : i32 to index
    %831 = memref.load %arg1[%830] : memref<128xi32, #tpu.memory_space<smem>>
    %c69_i32_276 = arith.constant 69 : i32
    %832 = arith.addi %0, %c69_i32_276 : i32
    %833 = arith.index_cast %832 : i32 to index
    %834 = memref.load %arg2[%833] : memref<128xi32, #tpu.memory_space<smem>>
    %835 = arith.index_cast %831 : i32 to index
    %c0_277 = arith.constant 0 : index
    %836 = vector.load %arg3[%835, %c0_277] : memref<512x128xf32, #tpu.memory_space<vmem>>, vector<1x128xf32>
    %837 = arith.index_cast %834 : i32 to index
    %c0_278 = arith.constant 0 : index
    %838 = vector.load %arg4[%837, %c0_278] : memref<64x128xf32, #tpu.memory_space<vmem>>, vector<1x128xf32>
    %839 = arith.addf %836, %838 : vector<1x128xf32>
    %c69 = arith.constant 69 : index
    %c0_279 = arith.constant 0 : index
    %840 = vector.load %arg5[%c69, %c0_279] : memref<128x128xf32, #tpu.memory_space<vmem>>, vector<1x128xf32>
    tpu.vector_store %arg5[%c69, %c0_279], %839 {strides = array<i32>} : memref<128x128xf32, #tpu.memory_space<vmem>>, vector<1x128xf32>,
    %c70_i32 = arith.constant 70 : i32
    %841 = arith.addi %0, %c70_i32 : i32
    %842 = arith.index_cast %841 : i32 to index
    %843 = memref.load %arg1[%842] : memref<128xi32, #tpu.memory_space<smem>>
    %c70_i32_280 = arith.constant 70 : i32
    %844 = arith.addi %0, %c70_i32_280 : i32
    %845 = arith.index_cast %844 : i32 to index
    %846 = memref.load %arg2[%845] : memref<128xi32, #tpu.memory_space<smem>>
    %847 = arith.index_cast %843 : i32 to index
    %c0_281 = arith.constant 0 : index
    %848 = vector.load %arg3[%847, %c0_281] : memref<512x128xf32, #tpu.memory_space<vmem>>, vector<1x128xf32>
    %849 = arith.index_cast %846 : i32 to index
    %c0_282 = arith.constant 0 : index
    %850 = vector.load %arg4[%849, %c0_282] : memref<64x128xf32, #tpu.memory_space<vmem>>, vector<1x128xf32>
    %851 = arith.addf %848, %850 : vector<1x128xf32>
    %c70 = arith.constant 70 : index
    %c0_283 = arith.constant 0 : index
    %852 = vector.load %arg5[%c70, %c0_283] : memref<128x128xf32, #tpu.memory_space<vmem>>, vector<1x128xf32>
    tpu.vector_store %arg5[%c70, %c0_283], %851 {strides = array<i32>} : memref<128x128xf32, #tpu.memory_space<vmem>>, vector<1x128xf32>,
    %c71_i32 = arith.constant 71 : i32
    %853 = arith.addi %0, %c71_i32 : i32
    %854 = arith.index_cast %853 : i32 to index
    %855 = memref.load %arg1[%854] : memref<128xi32, #tpu.memory_space<smem>>
    %c71_i32_284 = arith.constant 71 : i32
    %856 = arith.addi %0, %c71_i32_284 : i32
    %857 = arith.index_cast %856 : i32 to index
    %858 = memref.load %arg2[%857] : memref<128xi32, #tpu.memory_space<smem>>
    %859 = arith.index_cast %855 : i32 to index
    %c0_285 = arith.constant 0 : index
    %860 = vector.load %arg3[%859, %c0_285] : memref<512x128xf32, #tpu.memory_space<vmem>>, vector<1x128xf32>
    %861 = arith.index_cast %858 : i32 to index
    %c0_286 = arith.constant 0 : index
    %862 = vector.load %arg4[%861, %c0_286] : memref<64x128xf32, #tpu.memory_space<vmem>>, vector<1x128xf32>
    %863 = arith.addf %860, %862 : vector<1x128xf32>
    %c71 = arith.constant 71 : index
    %c0_287 = arith.constant 0 : index
    %864 = vector.load %arg5[%c71, %c0_287] : memref<128x128xf32, #tpu.memory_space<vmem>>, vector<1x128xf32>
    tpu.vector_store %arg5[%c71, %c0_287], %863 {strides = array<i32>} : memref<128x128xf32, #tpu.memory_space<vmem>>, vector<1x128xf32>,
    %c72_i32 = arith.constant 72 : i32
    %865 = arith.addi %0, %c72_i32 : i32
    %866 = arith.index_cast %865 : i32 to index
    %867 = memref.load %arg1[%866] : memref<128xi32, #tpu.memory_space<smem>>
    %c72_i32_288 = arith.constant 72 : i32
    %868 = arith.addi %0, %c72_i32_288 : i32
    %869 = arith.index_cast %868 : i32 to index
    %870 = memref.load %arg2[%869] : memref<128xi32, #tpu.memory_space<smem>>
    %871 = arith.index_cast %867 : i32 to index
    %c0_289 = arith.constant 0 : index
    %872 = vector.load %arg3[%871, %c0_289] : memref<512x128xf32, #tpu.memory_space<vmem>>, vector<1x128xf32>
    %873 = arith.index_cast %870 : i32 to index
    %c0_290 = arith.constant 0 : index
    %874 = vector.load %arg4[%873, %c0_290] : memref<64x128xf32, #tpu.memory_space<vmem>>, vector<1x128xf32>
    %875 = arith.addf %872, %874 : vector<1x128xf32>
    %c72 = arith.constant 72 : index
    %c0_291 = arith.constant 0 : index
    %876 = vector.load %arg5[%c72, %c0_291] : memref<128x128xf32, #tpu.memory_space<vmem>>, vector<1x128xf32>
    tpu.vector_store %arg5[%c72, %c0_291], %875 {strides = array<i32>} : memref<128x128xf32, #tpu.memory_space<vmem>>, vector<1x128xf32>,
    %c73_i32 = arith.constant 73 : i32
    %877 = arith.addi %0, %c73_i32 : i32
    %878 = arith.index_cast %877 : i32 to index
    %879 = memref.load %arg1[%878] : memref<128xi32, #tpu.memory_space<smem>>
    %c73_i32_292 = arith.constant 73 : i32
    %880 = arith.addi %0, %c73_i32_292 : i32
    %881 = arith.index_cast %880 : i32 to index
    %882 = memref.load %arg2[%881] : memref<128xi32, #tpu.memory_space<smem>>
    %883 = arith.index_cast %879 : i32 to index
    %c0_293 = arith.constant 0 : index
    %884 = vector.load %arg3[%883, %c0_293] : memref<512x128xf32, #tpu.memory_space<vmem>>, vector<1x128xf32>
    %885 = arith.index_cast %882 : i32 to index
    %c0_294 = arith.constant 0 : index
    %886 = vector.load %arg4[%885, %c0_294] : memref<64x128xf32, #tpu.memory_space<vmem>>, vector<1x128xf32>
    %887 = arith.addf %884, %886 : vector<1x128xf32>
    %c73 = arith.constant 73 : index
    %c0_295 = arith.constant 0 : index
    %888 = vector.load %arg5[%c73, %c0_295] : memref<128x128xf32, #tpu.memory_space<vmem>>, vector<1x128xf32>
    tpu.vector_store %arg5[%c73, %c0_295], %887 {strides = array<i32>} : memref<128x128xf32, #tpu.memory_space<vmem>>, vector<1x128xf32>,
    %c74_i32 = arith.constant 74 : i32
    %889 = arith.addi %0, %c74_i32 : i32
    %890 = arith.index_cast %889 : i32 to index
    %891 = memref.load %arg1[%890] : memref<128xi32, #tpu.memory_space<smem>>
    %c74_i32_296 = arith.constant 74 : i32
    %892 = arith.addi %0, %c74_i32_296 : i32
    %893 = arith.index_cast %892 : i32 to index
    %894 = memref.load %arg2[%893] : memref<128xi32, #tpu.memory_space<smem>>
    %895 = arith.index_cast %891 : i32 to index
    %c0_297 = arith.constant 0 : index
    %896 = vector.load %arg3[%895, %c0_297] : memref<512x128xf32, #tpu.memory_space<vmem>>, vector<1x128xf32>
    %897 = arith.index_cast %894 : i32 to index
    %c0_298 = arith.constant 0 : index
    %898 = vector.load %arg4[%897, %c0_298] : memref<64x128xf32, #tpu.memory_space<vmem>>, vector<1x128xf32>
    %899 = arith.addf %896, %898 : vector<1x128xf32>
    %c74 = arith.constant 74 : index
    %c0_299 = arith.constant 0 : index
    %900 = vector.load %arg5[%c74, %c0_299] : memref<128x128xf32, #tpu.memory_space<vmem>>, vector<1x128xf32>
    tpu.vector_store %arg5[%c74, %c0_299], %899 {strides = array<i32>} : memref<128x128xf32, #tpu.memory_space<vmem>>, vector<1x128xf32>,
    %c75_i32 = arith.constant 75 : i32
    %901 = arith.addi %0, %c75_i32 : i32
    %902 = arith.index_cast %901 : i32 to index
    %903 = memref.load %arg1[%902] : memref<128xi32, #tpu.memory_space<smem>>
    %c75_i32_300 = arith.constant 75 : i32
    %904 = arith.addi %0, %c75_i32_300 : i32
    %905 = arith.index_cast %904 : i32 to index
    %906 = memref.load %arg2[%905] : memref<128xi32, #tpu.memory_space<smem>>
    %907 = arith.index_cast %903 : i32 to index
    %c0_301 = arith.constant 0 : index
    %908 = vector.load %arg3[%907, %c0_301] : memref<512x128xf32, #tpu.memory_space<vmem>>, vector<1x128xf32>
    %909 = arith.index_cast %906 : i32 to index
    %c0_302 = arith.constant 0 : index
    %910 = vector.load %arg4[%909, %c0_302] : memref<64x128xf32, #tpu.memory_space<vmem>>, vector<1x128xf32>
    %911 = arith.addf %908, %910 : vector<1x128xf32>
    %c75 = arith.constant 75 : index
    %c0_303 = arith.constant 0 : index
    %912 = vector.load %arg5[%c75, %c0_303] : memref<128x128xf32, #tpu.memory_space<vmem>>, vector<1x128xf32>
    tpu.vector_store %arg5[%c75, %c0_303], %911 {strides = array<i32>} : memref<128x128xf32, #tpu.memory_space<vmem>>, vector<1x128xf32>,
    %c76_i32 = arith.constant 76 : i32
    %913 = arith.addi %0, %c76_i32 : i32
    %914 = arith.index_cast %913 : i32 to index
    %915 = memref.load %arg1[%914] : memref<128xi32, #tpu.memory_space<smem>>
    %c76_i32_304 = arith.constant 76 : i32
    %916 = arith.addi %0, %c76_i32_304 : i32
    %917 = arith.index_cast %916 : i32 to index
    %918 = memref.load %arg2[%917] : memref<128xi32, #tpu.memory_space<smem>>
    %919 = arith.index_cast %915 : i32 to index
    %c0_305 = arith.constant 0 : index
    %920 = vector.load %arg3[%919, %c0_305] : memref<512x128xf32, #tpu.memory_space<vmem>>, vector<1x128xf32>
    %921 = arith.index_cast %918 : i32 to index
    %c0_306 = arith.constant 0 : index
    %922 = vector.load %arg4[%921, %c0_306] : memref<64x128xf32, #tpu.memory_space<vmem>>, vector<1x128xf32>
    %923 = arith.addf %920, %922 : vector<1x128xf32>
    %c76 = arith.constant 76 : index
    %c0_307 = arith.constant 0 : index
    %924 = vector.load %arg5[%c76, %c0_307] : memref<128x128xf32, #tpu.memory_space<vmem>>, vector<1x128xf32>
    tpu.vector_store %arg5[%c76, %c0_307], %923 {strides = array<i32>} : memref<128x128xf32, #tpu.memory_space<vmem>>, vector<1x128xf32>,
    %c77_i32 = arith.constant 77 : i32
    %925 = arith.addi %0, %c77_i32 : i32
    %926 = arith.index_cast %925 : i32 to index
    %927 = memref.load %arg1[%926] : memref<128xi32, #tpu.memory_space<smem>>
    %c77_i32_308 = arith.constant 77 : i32
    %928 = arith.addi %0, %c77_i32_308 : i32
    %929 = arith.index_cast %928 : i32 to index
    %930 = memref.load %arg2[%929] : memref<128xi32, #tpu.memory_space<smem>>
    %931 = arith.index_cast %927 : i32 to index
    %c0_309 = arith.constant 0 : index
    %932 = vector.load %arg3[%931, %c0_309] : memref<512x128xf32, #tpu.memory_space<vmem>>, vector<1x128xf32>
    %933 = arith.index_cast %930 : i32 to index
    %c0_310 = arith.constant 0 : index
    %934 = vector.load %arg4[%933, %c0_310] : memref<64x128xf32, #tpu.memory_space<vmem>>, vector<1x128xf32>
    %935 = arith.addf %932, %934 : vector<1x128xf32>
    %c77 = arith.constant 77 : index
    %c0_311 = arith.constant 0 : index
    %936 = vector.load %arg5[%c77, %c0_311] : memref<128x128xf32, #tpu.memory_space<vmem>>, vector<1x128xf32>
    tpu.vector_store %arg5[%c77, %c0_311], %935 {strides = array<i32>} : memref<128x128xf32, #tpu.memory_space<vmem>>, vector<1x128xf32>,
    %c78_i32 = arith.constant 78 : i32
    %937 = arith.addi %0, %c78_i32 : i32
    %938 = arith.index_cast %937 : i32 to index
    %939 = memref.load %arg1[%938] : memref<128xi32, #tpu.memory_space<smem>>
    %c78_i32_312 = arith.constant 78 : i32
    %940 = arith.addi %0, %c78_i32_312 : i32
    %941 = arith.index_cast %940 : i32 to index
    %942 = memref.load %arg2[%941] : memref<128xi32, #tpu.memory_space<smem>>
    %943 = arith.index_cast %939 : i32 to index
    %c0_313 = arith.constant 0 : index
    %944 = vector.load %arg3[%943, %c0_313] : memref<512x128xf32, #tpu.memory_space<vmem>>, vector<1x128xf32>
    %945 = arith.index_cast %942 : i32 to index
    %c0_314 = arith.constant 0 : index
    %946 = vector.load %arg4[%945, %c0_314] : memref<64x128xf32, #tpu.memory_space<vmem>>, vector<1x128xf32>
    %947 = arith.addf %944, %946 : vector<1x128xf32>
    %c78 = arith.constant 78 : index
    %c0_315 = arith.constant 0 : index
    %948 = vector.load %arg5[%c78, %c0_315] : memref<128x128xf32, #tpu.memory_space<vmem>>, vector<1x128xf32>
    tpu.vector_store %arg5[%c78, %c0_315], %947 {strides = array<i32>} : memref<128x128xf32, #tpu.memory_space<vmem>>, vector<1x128xf32>,
    %c79_i32 = arith.constant 79 : i32
    %949 = arith.addi %0, %c79_i32 : i32
    %950 = arith.index_cast %949 : i32 to index
    %951 = memref.load %arg1[%950] : memref<128xi32, #tpu.memory_space<smem>>
    %c79_i32_316 = arith.constant 79 : i32
    %952 = arith.addi %0, %c79_i32_316 : i32
    %953 = arith.index_cast %952 : i32 to index
    %954 = memref.load %arg2[%953] : memref<128xi32, #tpu.memory_space<smem>>
    %955 = arith.index_cast %951 : i32 to index
    %c0_317 = arith.constant 0 : index
    %956 = vector.load %arg3[%955, %c0_317] : memref<512x128xf32, #tpu.memory_space<vmem>>, vector<1x128xf32>
    %957 = arith.index_cast %954 : i32 to index
    %c0_318 = arith.constant 0 : index
    %958 = vector.load %arg4[%957, %c0_318] : memref<64x128xf32, #tpu.memory_space<vmem>>, vector<1x128xf32>
    %959 = arith.addf %956, %958 : vector<1x128xf32>
    %c79 = arith.constant 79 : index
    %c0_319 = arith.constant 0 : index
    %960 = vector.load %arg5[%c79, %c0_319] : memref<128x128xf32, #tpu.memory_space<vmem>>, vector<1x128xf32>
    tpu.vector_store %arg5[%c79, %c0_319], %959 {strides = array<i32>} : memref<128x128xf32, #tpu.memory_space<vmem>>, vector<1x128xf32>,
    %c80_i32 = arith.constant 80 : i32
    %961 = arith.addi %0, %c80_i32 : i32
    %962 = arith.index_cast %961 : i32 to index
    %963 = memref.load %arg1[%962] : memref<128xi32, #tpu.memory_space<smem>>
    %c80_i32_320 = arith.constant 80 : i32
    %964 = arith.addi %0, %c80_i32_320 : i32
    %965 = arith.index_cast %964 : i32 to index
    %966 = memref.load %arg2[%965] : memref<128xi32, #tpu.memory_space<smem>>
    %967 = arith.index_cast %963 : i32 to index
    %c0_321 = arith.constant 0 : index
    %968 = vector.load %arg3[%967, %c0_321] : memref<512x128xf32, #tpu.memory_space<vmem>>, vector<1x128xf32>
    %969 = arith.index_cast %966 : i32 to index
    %c0_322 = arith.constant 0 : index
    %970 = vector.load %arg4[%969, %c0_322] : memref<64x128xf32, #tpu.memory_space<vmem>>, vector<1x128xf32>
    %971 = arith.addf %968, %970 : vector<1x128xf32>
    %c80 = arith.constant 80 : index
    %c0_323 = arith.constant 0 : index
    %972 = vector.load %arg5[%c80, %c0_323] : memref<128x128xf32, #tpu.memory_space<vmem>>, vector<1x128xf32>
    tpu.vector_store %arg5[%c80, %c0_323], %971 {strides = array<i32>} : memref<128x128xf32, #tpu.memory_space<vmem>>, vector<1x128xf32>,
    %c81_i32 = arith.constant 81 : i32
    %973 = arith.addi %0, %c81_i32 : i32
    %974 = arith.index_cast %973 : i32 to index
    %975 = memref.load %arg1[%974] : memref<128xi32, #tpu.memory_space<smem>>
    %c81_i32_324 = arith.constant 81 : i32
    %976 = arith.addi %0, %c81_i32_324 : i32
    %977 = arith.index_cast %976 : i32 to index
    %978 = memref.load %arg2[%977] : memref<128xi32, #tpu.memory_space<smem>>
    %979 = arith.index_cast %975 : i32 to index
    %c0_325 = arith.constant 0 : index
    %980 = vector.load %arg3[%979, %c0_325] : memref<512x128xf32, #tpu.memory_space<vmem>>, vector<1x128xf32>
    %981 = arith.index_cast %978 : i32 to index
    %c0_326 = arith.constant 0 : index
    %982 = vector.load %arg4[%981, %c0_326] : memref<64x128xf32, #tpu.memory_space<vmem>>, vector<1x128xf32>
    %983 = arith.addf %980, %982 : vector<1x128xf32>
    %c81 = arith.constant 81 : index
    %c0_327 = arith.constant 0 : index
    %984 = vector.load %arg5[%c81, %c0_327] : memref<128x128xf32, #tpu.memory_space<vmem>>, vector<1x128xf32>
    tpu.vector_store %arg5[%c81, %c0_327], %983 {strides = array<i32>} : memref<128x128xf32, #tpu.memory_space<vmem>>, vector<1x128xf32>,
    %c82_i32 = arith.constant 82 : i32
    %985 = arith.addi %0, %c82_i32 : i32
    %986 = arith.index_cast %985 : i32 to index
    %987 = memref.load %arg1[%986] : memref<128xi32, #tpu.memory_space<smem>>
    %c82_i32_328 = arith.constant 82 : i32
    %988 = arith.addi %0, %c82_i32_328 : i32
    %989 = arith.index_cast %988 : i32 to index
    %990 = memref.load %arg2[%989] : memref<128xi32, #tpu.memory_space<smem>>
    %991 = arith.index_cast %987 : i32 to index
    %c0_329 = arith.constant 0 : index
    %992 = vector.load %arg3[%991, %c0_329] : memref<512x128xf32, #tpu.memory_space<vmem>>, vector<1x128xf32>
    %993 = arith.index_cast %990 : i32 to index
    %c0_330 = arith.constant 0 : index
    %994 = vector.load %arg4[%993, %c0_330] : memref<64x128xf32, #tpu.memory_space<vmem>>, vector<1x128xf32>
    %995 = arith.addf %992, %994 : vector<1x128xf32>
    %c82 = arith.constant 82 : index
    %c0_331 = arith.constant 0 : index
    %996 = vector.load %arg5[%c82, %c0_331] : memref<128x128xf32, #tpu.memory_space<vmem>>, vector<1x128xf32>
    tpu.vector_store %arg5[%c82, %c0_331], %995 {strides = array<i32>} : memref<128x128xf32, #tpu.memory_space<vmem>>, vector<1x128xf32>,
    %c83_i32 = arith.constant 83 : i32
    %997 = arith.addi %0, %c83_i32 : i32
    %998 = arith.index_cast %997 : i32 to index
    %999 = memref.load %arg1[%998] : memref<128xi32, #tpu.memory_space<smem>>
    %c83_i32_332 = arith.constant 83 : i32
    %1000 = arith.addi %0, %c83_i32_332 : i32
    %1001 = arith.index_cast %1000 : i32 to index
    %1002 = memref.load %arg2[%1001] : memref<128xi32, #tpu.memory_space<smem>>
    %1003 = arith.index_cast %999 : i32 to index
    %c0_333 = arith.constant 0 : index
    %1004 = vector.load %arg3[%1003, %c0_333] : memref<512x128xf32, #tpu.memory_space<vmem>>, vector<1x128xf32>
    %1005 = arith.index_cast %1002 : i32 to index
    %c0_334 = arith.constant 0 : index
    %1006 = vector.load %arg4[%1005, %c0_334] : memref<64x128xf32, #tpu.memory_space<vmem>>, vector<1x128xf32>
    %1007 = arith.addf %1004, %1006 : vector<1x128xf32>
    %c83 = arith.constant 83 : index
    %c0_335 = arith.constant 0 : index
    %1008 = vector.load %arg5[%c83, %c0_335] : memref<128x128xf32, #tpu.memory_space<vmem>>, vector<1x128xf32>
    tpu.vector_store %arg5[%c83, %c0_335], %1007 {strides = array<i32>} : memref<128x128xf32, #tpu.memory_space<vmem>>, vector<1x128xf32>,
    %c84_i32 = arith.constant 84 : i32
    %1009 = arith.addi %0, %c84_i32 : i32
    %1010 = arith.index_cast %1009 : i32 to index
    %1011 = memref.load %arg1[%1010] : memref<128xi32, #tpu.memory_space<smem>>
    %c84_i32_336 = arith.constant 84 : i32
    %1012 = arith.addi %0, %c84_i32_336 : i32
    %1013 = arith.index_cast %1012 : i32 to index
    %1014 = memref.load %arg2[%1013] : memref<128xi32, #tpu.memory_space<smem>>
    %1015 = arith.index_cast %1011 : i32 to index
    %c0_337 = arith.constant 0 : index
    %1016 = vector.load %arg3[%1015, %c0_337] : memref<512x128xf32, #tpu.memory_space<vmem>>, vector<1x128xf32>
    %1017 = arith.index_cast %1014 : i32 to index
    %c0_338 = arith.constant 0 : index
    %1018 = vector.load %arg4[%1017, %c0_338] : memref<64x128xf32, #tpu.memory_space<vmem>>, vector<1x128xf32>
    %1019 = arith.addf %1016, %1018 : vector<1x128xf32>
    %c84 = arith.constant 84 : index
    %c0_339 = arith.constant 0 : index
    %1020 = vector.load %arg5[%c84, %c0_339] : memref<128x128xf32, #tpu.memory_space<vmem>>, vector<1x128xf32>
    tpu.vector_store %arg5[%c84, %c0_339], %1019 {strides = array<i32>} : memref<128x128xf32, #tpu.memory_space<vmem>>, vector<1x128xf32>,
    %c85_i32 = arith.constant 85 : i32
    %1021 = arith.addi %0, %c85_i32 : i32
    %1022 = arith.index_cast %1021 : i32 to index
    %1023 = memref.load %arg1[%1022] : memref<128xi32, #tpu.memory_space<smem>>
    %c85_i32_340 = arith.constant 85 : i32
    %1024 = arith.addi %0, %c85_i32_340 : i32
    %1025 = arith.index_cast %1024 : i32 to index
    %1026 = memref.load %arg2[%1025] : memref<128xi32, #tpu.memory_space<smem>>
    %1027 = arith.index_cast %1023 : i32 to index
    %c0_341 = arith.constant 0 : index
    %1028 = vector.load %arg3[%1027, %c0_341] : memref<512x128xf32, #tpu.memory_space<vmem>>, vector<1x128xf32>
    %1029 = arith.index_cast %1026 : i32 to index
    %c0_342 = arith.constant 0 : index
    %1030 = vector.load %arg4[%1029, %c0_342] : memref<64x128xf32, #tpu.memory_space<vmem>>, vector<1x128xf32>
    %1031 = arith.addf %1028, %1030 : vector<1x128xf32>
    %c85 = arith.constant 85 : index
    %c0_343 = arith.constant 0 : index
    %1032 = vector.load %arg5[%c85, %c0_343] : memref<128x128xf32, #tpu.memory_space<vmem>>, vector<1x128xf32>
    tpu.vector_store %arg5[%c85, %c0_343], %1031 {strides = array<i32>} : memref<128x128xf32, #tpu.memory_space<vmem>>, vector<1x128xf32>,
    %c86_i32 = arith.constant 86 : i32
    %1033 = arith.addi %0, %c86_i32 : i32
    %1034 = arith.index_cast %1033 : i32 to index
    %1035 = memref.load %arg1[%1034] : memref<128xi32, #tpu.memory_space<smem>>
    %c86_i32_344 = arith.constant 86 : i32
    %1036 = arith.addi %0, %c86_i32_344 : i32
    %1037 = arith.index_cast %1036 : i32 to index
    %1038 = memref.load %arg2[%1037] : memref<128xi32, #tpu.memory_space<smem>>
    %1039 = arith.index_cast %1035 : i32 to index
    %c0_345 = arith.constant 0 : index
    %1040 = vector.load %arg3[%1039, %c0_345] : memref<512x128xf32, #tpu.memory_space<vmem>>, vector<1x128xf32>
    %1041 = arith.index_cast %1038 : i32 to index
    %c0_346 = arith.constant 0 : index
    %1042 = vector.load %arg4[%1041, %c0_346] : memref<64x128xf32, #tpu.memory_space<vmem>>, vector<1x128xf32>
    %1043 = arith.addf %1040, %1042 : vector<1x128xf32>
    %c86 = arith.constant 86 : index
    %c0_347 = arith.constant 0 : index
    %1044 = vector.load %arg5[%c86, %c0_347] : memref<128x128xf32, #tpu.memory_space<vmem>>, vector<1x128xf32>
    tpu.vector_store %arg5[%c86, %c0_347], %1043 {strides = array<i32>} : memref<128x128xf32, #tpu.memory_space<vmem>>, vector<1x128xf32>,
    %c87_i32 = arith.constant 87 : i32
    %1045 = arith.addi %0, %c87_i32 : i32
    %1046 = arith.index_cast %1045 : i32 to index
    %1047 = memref.load %arg1[%1046] : memref<128xi32, #tpu.memory_space<smem>>
    %c87_i32_348 = arith.constant 87 : i32
    %1048 = arith.addi %0, %c87_i32_348 : i32
    %1049 = arith.index_cast %1048 : i32 to index
    %1050 = memref.load %arg2[%1049] : memref<128xi32, #tpu.memory_space<smem>>
    %1051 = arith.index_cast %1047 : i32 to index
    %c0_349 = arith.constant 0 : index
    %1052 = vector.load %arg3[%1051, %c0_349] : memref<512x128xf32, #tpu.memory_space<vmem>>, vector<1x128xf32>
    %1053 = arith.index_cast %1050 : i32 to index
    %c0_350 = arith.constant 0 : index
    %1054 = vector.load %arg4[%1053, %c0_350] : memref<64x128xf32, #tpu.memory_space<vmem>>, vector<1x128xf32>
    %1055 = arith.addf %1052, %1054 : vector<1x128xf32>
    %c87 = arith.constant 87 : index
    %c0_351 = arith.constant 0 : index
    %1056 = vector.load %arg5[%c87, %c0_351] : memref<128x128xf32, #tpu.memory_space<vmem>>, vector<1x128xf32>
    tpu.vector_store %arg5[%c87, %c0_351], %1055 {strides = array<i32>} : memref<128x128xf32, #tpu.memory_space<vmem>>, vector<1x128xf32>,
    %c88_i32 = arith.constant 88 : i32
    %1057 = arith.addi %0, %c88_i32 : i32
    %1058 = arith.index_cast %1057 : i32 to index
    %1059 = memref.load %arg1[%1058] : memref<128xi32, #tpu.memory_space<smem>>
    %c88_i32_352 = arith.constant 88 : i32
    %1060 = arith.addi %0, %c88_i32_352 : i32
    %1061 = arith.index_cast %1060 : i32 to index
    %1062 = memref.load %arg2[%1061] : memref<128xi32, #tpu.memory_space<smem>>
    %1063 = arith.index_cast %1059 : i32 to index
    %c0_353 = arith.constant 0 : index
    %1064 = vector.load %arg3[%1063, %c0_353] : memref<512x128xf32, #tpu.memory_space<vmem>>, vector<1x128xf32>
    %1065 = arith.index_cast %1062 : i32 to index
    %c0_354 = arith.constant 0 : index
    %1066 = vector.load %arg4[%1065, %c0_354] : memref<64x128xf32, #tpu.memory_space<vmem>>, vector<1x128xf32>
    %1067 = arith.addf %1064, %1066 : vector<1x128xf32>
    %c88 = arith.constant 88 : index
    %c0_355 = arith.constant 0 : index
    %1068 = vector.load %arg5[%c88, %c0_355] : memref<128x128xf32, #tpu.memory_space<vmem>>, vector<1x128xf32>
    tpu.vector_store %arg5[%c88, %c0_355], %1067 {strides = array<i32>} : memref<128x128xf32, #tpu.memory_space<vmem>>, vector<1x128xf32>,
    %c89_i32 = arith.constant 89 : i32
    %1069 = arith.addi %0, %c89_i32 : i32
    %1070 = arith.index_cast %1069 : i32 to index
    %1071 = memref.load %arg1[%1070] : memref<128xi32, #tpu.memory_space<smem>>
    %c89_i32_356 = arith.constant 89 : i32
    %1072 = arith.addi %0, %c89_i32_356 : i32
    %1073 = arith.index_cast %1072 : i32 to index
    %1074 = memref.load %arg2[%1073] : memref<128xi32, #tpu.memory_space<smem>>
    %1075 = arith.index_cast %1071 : i32 to index
    %c0_357 = arith.constant 0 : index
    %1076 = vector.load %arg3[%1075, %c0_357] : memref<512x128xf32, #tpu.memory_space<vmem>>, vector<1x128xf32>
    %1077 = arith.index_cast %1074 : i32 to index
    %c0_358 = arith.constant 0 : index
    %1078 = vector.load %arg4[%1077, %c0_358] : memref<64x128xf32, #tpu.memory_space<vmem>>, vector<1x128xf32>
    %1079 = arith.addf %1076, %1078 : vector<1x128xf32>
    %c89 = arith.constant 89 : index
    %c0_359 = arith.constant 0 : index
    %1080 = vector.load %arg5[%c89, %c0_359] : memref<128x128xf32, #tpu.memory_space<vmem>>, vector<1x128xf32>
    tpu.vector_store %arg5[%c89, %c0_359], %1079 {strides = array<i32>} : memref<128x128xf32, #tpu.memory_space<vmem>>, vector<1x128xf32>,
    %c90_i32 = arith.constant 90 : i32
    %1081 = arith.addi %0, %c90_i32 : i32
    %1082 = arith.index_cast %1081 : i32 to index
    %1083 = memref.load %arg1[%1082] : memref<128xi32, #tpu.memory_space<smem>>
    %c90_i32_360 = arith.constant 90 : i32
    %1084 = arith.addi %0, %c90_i32_360 : i32
    %1085 = arith.index_cast %1084 : i32 to index
    %1086 = memref.load %arg2[%1085] : memref<128xi32, #tpu.memory_space<smem>>
    %1087 = arith.index_cast %1083 : i32 to index
    %c0_361 = arith.constant 0 : index
    %1088 = vector.load %arg3[%1087, %c0_361] : memref<512x128xf32, #tpu.memory_space<vmem>>, vector<1x128xf32>
    %1089 = arith.index_cast %1086 : i32 to index
    %c0_362 = arith.constant 0 : index
    %1090 = vector.load %arg4[%1089, %c0_362] : memref<64x128xf32, #tpu.memory_space<vmem>>, vector<1x128xf32>
    %1091 = arith.addf %1088, %1090 : vector<1x128xf32>
    %c90 = arith.constant 90 : index
    %c0_363 = arith.constant 0 : index
    %1092 = vector.load %arg5[%c90, %c0_363] : memref<128x128xf32, #tpu.memory_space<vmem>>, vector<1x128xf32>
    tpu.vector_store %arg5[%c90, %c0_363], %1091 {strides = array<i32>} : memref<128x128xf32, #tpu.memory_space<vmem>>, vector<1x128xf32>,
    %c91_i32 = arith.constant 91 : i32
    %1093 = arith.addi %0, %c91_i32 : i32
    %1094 = arith.index_cast %1093 : i32 to index
    %1095 = memref.load %arg1[%1094] : memref<128xi32, #tpu.memory_space<smem>>
    %c91_i32_364 = arith.constant 91 : i32
    %1096 = arith.addi %0, %c91_i32_364 : i32
    %1097 = arith.index_cast %1096 : i32 to index
    %1098 = memref.load %arg2[%1097] : memref<128xi32, #tpu.memory_space<smem>>
    %1099 = arith.index_cast %1095 : i32 to index
    %c0_365 = arith.constant 0 : index
    %1100 = vector.load %arg3[%1099, %c0_365] : memref<512x128xf32, #tpu.memory_space<vmem>>, vector<1x128xf32>
    %1101 = arith.index_cast %1098 : i32 to index
    %c0_366 = arith.constant 0 : index
    %1102 = vector.load %arg4[%1101, %c0_366] : memref<64x128xf32, #tpu.memory_space<vmem>>, vector<1x128xf32>
    %1103 = arith.addf %1100, %1102 : vector<1x128xf32>
    %c91 = arith.constant 91 : index
    %c0_367 = arith.constant 0 : index
    %1104 = vector.load %arg5[%c91, %c0_367] : memref<128x128xf32, #tpu.memory_space<vmem>>, vector<1x128xf32>
    tpu.vector_store %arg5[%c91, %c0_367], %1103 {strides = array<i32>} : memref<128x128xf32, #tpu.memory_space<vmem>>, vector<1x128xf32>,
    %c92_i32 = arith.constant 92 : i32
    %1105 = arith.addi %0, %c92_i32 : i32
    %1106 = arith.index_cast %1105 : i32 to index
    %1107 = memref.load %arg1[%1106] : memref<128xi32, #tpu.memory_space<smem>>
    %c92_i32_368 = arith.constant 92 : i32
    %1108 = arith.addi %0, %c92_i32_368 : i32
    %1109 = arith.index_cast %1108 : i32 to index
    %1110 = memref.load %arg2[%1109] : memref<128xi32, #tpu.memory_space<smem>>
    %1111 = arith.index_cast %1107 : i32 to index
    %c0_369 = arith.constant 0 : index
    %1112 = vector.load %arg3[%1111, %c0_369] : memref<512x128xf32, #tpu.memory_space<vmem>>, vector<1x128xf32>
    %1113 = arith.index_cast %1110 : i32 to index
    %c0_370 = arith.constant 0 : index
    %1114 = vector.load %arg4[%1113, %c0_370] : memref<64x128xf32, #tpu.memory_space<vmem>>, vector<1x128xf32>
    %1115 = arith.addf %1112, %1114 : vector<1x128xf32>
    %c92 = arith.constant 92 : index
    %c0_371 = arith.constant 0 : index
    %1116 = vector.load %arg5[%c92, %c0_371] : memref<128x128xf32, #tpu.memory_space<vmem>>, vector<1x128xf32>
    tpu.vector_store %arg5[%c92, %c0_371], %1115 {strides = array<i32>} : memref<128x128xf32, #tpu.memory_space<vmem>>, vector<1x128xf32>,
    %c93_i32 = arith.constant 93 : i32
    %1117 = arith.addi %0, %c93_i32 : i32
    %1118 = arith.index_cast %1117 : i32 to index
    %1119 = memref.load %arg1[%1118] : memref<128xi32, #tpu.memory_space<smem>>
    %c93_i32_372 = arith.constant 93 : i32
    %1120 = arith.addi %0, %c93_i32_372 : i32
    %1121 = arith.index_cast %1120 : i32 to index
    %1122 = memref.load %arg2[%1121] : memref<128xi32, #tpu.memory_space<smem>>
    %1123 = arith.index_cast %1119 : i32 to index
    %c0_373 = arith.constant 0 : index
    %1124 = vector.load %arg3[%1123, %c0_373] : memref<512x128xf32, #tpu.memory_space<vmem>>, vector<1x128xf32>
    %1125 = arith.index_cast %1122 : i32 to index
    %c0_374 = arith.constant 0 : index
    %1126 = vector.load %arg4[%1125, %c0_374] : memref<64x128xf32, #tpu.memory_space<vmem>>, vector<1x128xf32>
    %1127 = arith.addf %1124, %1126 : vector<1x128xf32>
    %c93 = arith.constant 93 : index
    %c0_375 = arith.constant 0 : index
    %1128 = vector.load %arg5[%c93, %c0_375] : memref<128x128xf32, #tpu.memory_space<vmem>>, vector<1x128xf32>
    tpu.vector_store %arg5[%c93, %c0_375], %1127 {strides = array<i32>} : memref<128x128xf32, #tpu.memory_space<vmem>>, vector<1x128xf32>,
    %c94_i32 = arith.constant 94 : i32
    %1129 = arith.addi %0, %c94_i32 : i32
    %1130 = arith.index_cast %1129 : i32 to index
    %1131 = memref.load %arg1[%1130] : memref<128xi32, #tpu.memory_space<smem>>
    %c94_i32_376 = arith.constant 94 : i32
    %1132 = arith.addi %0, %c94_i32_376 : i32
    %1133 = arith.index_cast %1132 : i32 to index
    %1134 = memref.load %arg2[%1133] : memref<128xi32, #tpu.memory_space<smem>>
    %1135 = arith.index_cast %1131 : i32 to index
    %c0_377 = arith.constant 0 : index
    %1136 = vector.load %arg3[%1135, %c0_377] : memref<512x128xf32, #tpu.memory_space<vmem>>, vector<1x128xf32>
    %1137 = arith.index_cast %1134 : i32 to index
    %c0_378 = arith.constant 0 : index
    %1138 = vector.load %arg4[%1137, %c0_378] : memref<64x128xf32, #tpu.memory_space<vmem>>, vector<1x128xf32>
    %1139 = arith.addf %1136, %1138 : vector<1x128xf32>
    %c94 = arith.constant 94 : index
    %c0_379 = arith.constant 0 : index
    %1140 = vector.load %arg5[%c94, %c0_379] : memref<128x128xf32, #tpu.memory_space<vmem>>, vector<1x128xf32>
    tpu.vector_store %arg5[%c94, %c0_379], %1139 {strides = array<i32>} : memref<128x128xf32, #tpu.memory_space<vmem>>, vector<1x128xf32>,
    %c95_i32 = arith.constant 95 : i32
    %1141 = arith.addi %0, %c95_i32 : i32
    %1142 = arith.index_cast %1141 : i32 to index
    %1143 = memref.load %arg1[%1142] : memref<128xi32, #tpu.memory_space<smem>>
    %c95_i32_380 = arith.constant 95 : i32
    %1144 = arith.addi %0, %c95_i32_380 : i32
    %1145 = arith.index_cast %1144 : i32 to index
    %1146 = memref.load %arg2[%1145] : memref<128xi32, #tpu.memory_space<smem>>
    %1147 = arith.index_cast %1143 : i32 to index
    %c0_381 = arith.constant 0 : index
    %1148 = vector.load %arg3[%1147, %c0_381] : memref<512x128xf32, #tpu.memory_space<vmem>>, vector<1x128xf32>
    %1149 = arith.index_cast %1146 : i32 to index
    %c0_382 = arith.constant 0 : index
    %1150 = vector.load %arg4[%1149, %c0_382] : memref<64x128xf32, #tpu.memory_space<vmem>>, vector<1x128xf32>
    %1151 = arith.addf %1148, %1150 : vector<1x128xf32>
    %c95 = arith.constant 95 : index
    %c0_383 = arith.constant 0 : index
    %1152 = vector.load %arg5[%c95, %c0_383] : memref<128x128xf32, #tpu.memory_space<vmem>>, vector<1x128xf32>
    tpu.vector_store %arg5[%c95, %c0_383], %1151 {strides = array<i32>} : memref<128x128xf32, #tpu.memory_space<vmem>>, vector<1x128xf32>,
    %c96_i32 = arith.constant 96 : i32
    %1153 = arith.addi %0, %c96_i32 : i32
    %1154 = arith.index_cast %1153 : i32 to index
    %1155 = memref.load %arg1[%1154] : memref<128xi32, #tpu.memory_space<smem>>
    %c96_i32_384 = arith.constant 96 : i32
    %1156 = arith.addi %0, %c96_i32_384 : i32
    %1157 = arith.index_cast %1156 : i32 to index
    %1158 = memref.load %arg2[%1157] : memref<128xi32, #tpu.memory_space<smem>>
    %1159 = arith.index_cast %1155 : i32 to index
    %c0_385 = arith.constant 0 : index
    %1160 = vector.load %arg3[%1159, %c0_385] : memref<512x128xf32, #tpu.memory_space<vmem>>, vector<1x128xf32>
    %1161 = arith.index_cast %1158 : i32 to index
    %c0_386 = arith.constant 0 : index
    %1162 = vector.load %arg4[%1161, %c0_386] : memref<64x128xf32, #tpu.memory_space<vmem>>, vector<1x128xf32>
    %1163 = arith.addf %1160, %1162 : vector<1x128xf32>
    %c96 = arith.constant 96 : index
    %c0_387 = arith.constant 0 : index
    %1164 = vector.load %arg5[%c96, %c0_387] : memref<128x128xf32, #tpu.memory_space<vmem>>, vector<1x128xf32>
    tpu.vector_store %arg5[%c96, %c0_387], %1163 {strides = array<i32>} : memref<128x128xf32, #tpu.memory_space<vmem>>, vector<1x128xf32>,
    %c97_i32 = arith.constant 97 : i32
    %1165 = arith.addi %0, %c97_i32 : i32
    %1166 = arith.index_cast %1165 : i32 to index
    %1167 = memref.load %arg1[%1166] : memref<128xi32, #tpu.memory_space<smem>>
    %c97_i32_388 = arith.constant 97 : i32
    %1168 = arith.addi %0, %c97_i32_388 : i32
    %1169 = arith.index_cast %1168 : i32 to index
    %1170 = memref.load %arg2[%1169] : memref<128xi32, #tpu.memory_space<smem>>
    %1171 = arith.index_cast %1167 : i32 to index
    %c0_389 = arith.constant 0 : index
    %1172 = vector.load %arg3[%1171, %c0_389] : memref<512x128xf32, #tpu.memory_space<vmem>>, vector<1x128xf32>
    %1173 = arith.index_cast %1170 : i32 to index
    %c0_390 = arith.constant 0 : index
    %1174 = vector.load %arg4[%1173, %c0_390] : memref<64x128xf32, #tpu.memory_space<vmem>>, vector<1x128xf32>
    %1175 = arith.addf %1172, %1174 : vector<1x128xf32>
    %c97 = arith.constant 97 : index
    %c0_391 = arith.constant 0 : index
    %1176 = vector.load %arg5[%c97, %c0_391] : memref<128x128xf32, #tpu.memory_space<vmem>>, vector<1x128xf32>
    tpu.vector_store %arg5[%c97, %c0_391], %1175 {strides = array<i32>} : memref<128x128xf32, #tpu.memory_space<vmem>>, vector<1x128xf32>,
    %c98_i32 = arith.constant 98 : i32
    %1177 = arith.addi %0, %c98_i32 : i32
    %1178 = arith.index_cast %1177 : i32 to index
    %1179 = memref.load %arg1[%1178] : memref<128xi32, #tpu.memory_space<smem>>
    %c98_i32_392 = arith.constant 98 : i32
    %1180 = arith.addi %0, %c98_i32_392 : i32
    %1181 = arith.index_cast %1180 : i32 to index
    %1182 = memref.load %arg2[%1181] : memref<128xi32, #tpu.memory_space<smem>>
    %1183 = arith.index_cast %1179 : i32 to index
    %c0_393 = arith.constant 0 : index
    %1184 = vector.load %arg3[%1183, %c0_393] : memref<512x128xf32, #tpu.memory_space<vmem>>, vector<1x128xf32>
    %1185 = arith.index_cast %1182 : i32 to index
    %c0_394 = arith.constant 0 : index
    %1186 = vector.load %arg4[%1185, %c0_394] : memref<64x128xf32, #tpu.memory_space<vmem>>, vector<1x128xf32>
    %1187 = arith.addf %1184, %1186 : vector<1x128xf32>
    %c98 = arith.constant 98 : index
    %c0_395 = arith.constant 0 : index
    %1188 = vector.load %arg5[%c98, %c0_395] : memref<128x128xf32, #tpu.memory_space<vmem>>, vector<1x128xf32>
    tpu.vector_store %arg5[%c98, %c0_395], %1187 {strides = array<i32>} : memref<128x128xf32, #tpu.memory_space<vmem>>, vector<1x128xf32>,
    %c99_i32 = arith.constant 99 : i32
    %1189 = arith.addi %0, %c99_i32 : i32
    %1190 = arith.index_cast %1189 : i32 to index
    %1191 = memref.load %arg1[%1190] : memref<128xi32, #tpu.memory_space<smem>>
    %c99_i32_396 = arith.constant 99 : i32
    %1192 = arith.addi %0, %c99_i32_396 : i32
    %1193 = arith.index_cast %1192 : i32 to index
    %1194 = memref.load %arg2[%1193] : memref<128xi32, #tpu.memory_space<smem>>
    %1195 = arith.index_cast %1191 : i32 to index
    %c0_397 = arith.constant 0 : index
    %1196 = vector.load %arg3[%1195, %c0_397] : memref<512x128xf32, #tpu.memory_space<vmem>>, vector<1x128xf32>
    %1197 = arith.index_cast %1194 : i32 to index
    %c0_398 = arith.constant 0 : index
    %1198 = vector.load %arg4[%1197, %c0_398] : memref<64x128xf32, #tpu.memory_space<vmem>>, vector<1x128xf32>
    %1199 = arith.addf %1196, %1198 : vector<1x128xf32>
    %c99 = arith.constant 99 : index
    %c0_399 = arith.constant 0 : index
    %1200 = vector.load %arg5[%c99, %c0_399] : memref<128x128xf32, #tpu.memory_space<vmem>>, vector<1x128xf32>
    tpu.vector_store %arg5[%c99, %c0_399], %1199 {strides = array<i32>} : memref<128x128xf32, #tpu.memory_space<vmem>>, vector<1x128xf32>,
    %c100_i32 = arith.constant 100 : i32
    %1201 = arith.addi %0, %c100_i32 : i32
    %1202 = arith.index_cast %1201 : i32 to index
    %1203 = memref.load %arg1[%1202] : memref<128xi32, #tpu.memory_space<smem>>
    %c100_i32_400 = arith.constant 100 : i32
    %1204 = arith.addi %0, %c100_i32_400 : i32
    %1205 = arith.index_cast %1204 : i32 to index
    %1206 = memref.load %arg2[%1205] : memref<128xi32, #tpu.memory_space<smem>>
    %1207 = arith.index_cast %1203 : i32 to index
    %c0_401 = arith.constant 0 : index
    %1208 = vector.load %arg3[%1207, %c0_401] : memref<512x128xf32, #tpu.memory_space<vmem>>, vector<1x128xf32>
    %1209 = arith.index_cast %1206 : i32 to index
    %c0_402 = arith.constant 0 : index
    %1210 = vector.load %arg4[%1209, %c0_402] : memref<64x128xf32, #tpu.memory_space<vmem>>, vector<1x128xf32>
    %1211 = arith.addf %1208, %1210 : vector<1x128xf32>
    %c100 = arith.constant 100 : index
    %c0_403 = arith.constant 0 : index
    %1212 = vector.load %arg5[%c100, %c0_403] : memref<128x128xf32, #tpu.memory_space<vmem>>, vector<1x128xf32>
    tpu.vector_store %arg5[%c100, %c0_403], %1211 {strides = array<i32>} : memref<128x128xf32, #tpu.memory_space<vmem>>, vector<1x128xf32>,
    %c101_i32 = arith.constant 101 : i32
    %1213 = arith.addi %0, %c101_i32 : i32
    %1214 = arith.index_cast %1213 : i32 to index
    %1215 = memref.load %arg1[%1214] : memref<128xi32, #tpu.memory_space<smem>>
    %c101_i32_404 = arith.constant 101 : i32
    %1216 = arith.addi %0, %c101_i32_404 : i32
    %1217 = arith.index_cast %1216 : i32 to index
    %1218 = memref.load %arg2[%1217] : memref<128xi32, #tpu.memory_space<smem>>
    %1219 = arith.index_cast %1215 : i32 to index
    %c0_405 = arith.constant 0 : index
    %1220 = vector.load %arg3[%1219, %c0_405] : memref<512x128xf32, #tpu.memory_space<vmem>>, vector<1x128xf32>
    %1221 = arith.index_cast %1218 : i32 to index
    %c0_406 = arith.constant 0 : index
    %1222 = vector.load %arg4[%1221, %c0_406] : memref<64x128xf32, #tpu.memory_space<vmem>>, vector<1x128xf32>
    %1223 = arith.addf %1220, %1222 : vector<1x128xf32>
    %c101 = arith.constant 101 : index
    %c0_407 = arith.constant 0 : index
    %1224 = vector.load %arg5[%c101, %c0_407] : memref<128x128xf32, #tpu.memory_space<vmem>>, vector<1x128xf32>
    tpu.vector_store %arg5[%c101, %c0_407], %1223 {strides = array<i32>} : memref<128x128xf32, #tpu.memory_space<vmem>>, vector<1x128xf32>,
    %c102_i32 = arith.constant 102 : i32
    %1225 = arith.addi %0, %c102_i32 : i32
    %1226 = arith.index_cast %1225 : i32 to index
    %1227 = memref.load %arg1[%1226] : memref<128xi32, #tpu.memory_space<smem>>
    %c102_i32_408 = arith.constant 102 : i32
    %1228 = arith.addi %0, %c102_i32_408 : i32
    %1229 = arith.index_cast %1228 : i32 to index
    %1230 = memref.load %arg2[%1229] : memref<128xi32, #tpu.memory_space<smem>>
    %1231 = arith.index_cast %1227 : i32 to index
    %c0_409 = arith.constant 0 : index
    %1232 = vector.load %arg3[%1231, %c0_409] : memref<512x128xf32, #tpu.memory_space<vmem>>, vector<1x128xf32>
    %1233 = arith.index_cast %1230 : i32 to index
    %c0_410 = arith.constant 0 : index
    %1234 = vector.load %arg4[%1233, %c0_410] : memref<64x128xf32, #tpu.memory_space<vmem>>, vector<1x128xf32>
    %1235 = arith.addf %1232, %1234 : vector<1x128xf32>
    %c102 = arith.constant 102 : index
    %c0_411 = arith.constant 0 : index
    %1236 = vector.load %arg5[%c102, %c0_411] : memref<128x128xf32, #tpu.memory_space<vmem>>, vector<1x128xf32>
    tpu.vector_store %arg5[%c102, %c0_411], %1235 {strides = array<i32>} : memref<128x128xf32, #tpu.memory_space<vmem>>, vector<1x128xf32>,
    %c103_i32 = arith.constant 103 : i32
    %1237 = arith.addi %0, %c103_i32 : i32
    %1238 = arith.index_cast %1237 : i32 to index
    %1239 = memref.load %arg1[%1238] : memref<128xi32, #tpu.memory_space<smem>>
    %c103_i32_412 = arith.constant 103 : i32
    %1240 = arith.addi %0, %c103_i32_412 : i32
    %1241 = arith.index_cast %1240 : i32 to index
    %1242 = memref.load %arg2[%1241] : memref<128xi32, #tpu.memory_space<smem>>
    %1243 = arith.index_cast %1239 : i32 to index
    %c0_413 = arith.constant 0 : index
    %1244 = vector.load %arg3[%1243, %c0_413] : memref<512x128xf32, #tpu.memory_space<vmem>>, vector<1x128xf32>
    %1245 = arith.index_cast %1242 : i32 to index
    %c0_414 = arith.constant 0 : index
    %1246 = vector.load %arg4[%1245, %c0_414] : memref<64x128xf32, #tpu.memory_space<vmem>>, vector<1x128xf32>
    %1247 = arith.addf %1244, %1246 : vector<1x128xf32>
    %c103 = arith.constant 103 : index
    %c0_415 = arith.constant 0 : index
    %1248 = vector.load %arg5[%c103, %c0_415] : memref<128x128xf32, #tpu.memory_space<vmem>>, vector<1x128xf32>
    tpu.vector_store %arg5[%c103, %c0_415], %1247 {strides = array<i32>} : memref<128x128xf32, #tpu.memory_space<vmem>>, vector<1x128xf32>,
    %c104_i32 = arith.constant 104 : i32
    %1249 = arith.addi %0, %c104_i32 : i32
    %1250 = arith.index_cast %1249 : i32 to index
    %1251 = memref.load %arg1[%1250] : memref<128xi32, #tpu.memory_space<smem>>
    %c104_i32_416 = arith.constant 104 : i32
    %1252 = arith.addi %0, %c104_i32_416 : i32
    %1253 = arith.index_cast %1252 : i32 to index
    %1254 = memref.load %arg2[%1253] : memref<128xi32, #tpu.memory_space<smem>>
    %1255 = arith.index_cast %1251 : i32 to index
    %c0_417 = arith.constant 0 : index
    %1256 = vector.load %arg3[%1255, %c0_417] : memref<512x128xf32, #tpu.memory_space<vmem>>, vector<1x128xf32>
    %1257 = arith.index_cast %1254 : i32 to index
    %c0_418 = arith.constant 0 : index
    %1258 = vector.load %arg4[%1257, %c0_418] : memref<64x128xf32, #tpu.memory_space<vmem>>, vector<1x128xf32>
    %1259 = arith.addf %1256, %1258 : vector<1x128xf32>
    %c104 = arith.constant 104 : index
    %c0_419 = arith.constant 0 : index
    %1260 = vector.load %arg5[%c104, %c0_419] : memref<128x128xf32, #tpu.memory_space<vmem>>, vector<1x128xf32>
    tpu.vector_store %arg5[%c104, %c0_419], %1259 {strides = array<i32>} : memref<128x128xf32, #tpu.memory_space<vmem>>, vector<1x128xf32>,
    %c105_i32 = arith.constant 105 : i32
    %1261 = arith.addi %0, %c105_i32 : i32
    %1262 = arith.index_cast %1261 : i32 to index
    %1263 = memref.load %arg1[%1262] : memref<128xi32, #tpu.memory_space<smem>>
    %c105_i32_420 = arith.constant 105 : i32
    %1264 = arith.addi %0, %c105_i32_420 : i32
    %1265 = arith.index_cast %1264 : i32 to index
    %1266 = memref.load %arg2[%1265] : memref<128xi32, #tpu.memory_space<smem>>
    %1267 = arith.index_cast %1263 : i32 to index
    %c0_421 = arith.constant 0 : index
    %1268 = vector.load %arg3[%1267, %c0_421] : memref<512x128xf32, #tpu.memory_space<vmem>>, vector<1x128xf32>
    %1269 = arith.index_cast %1266 : i32 to index
    %c0_422 = arith.constant 0 : index
    %1270 = vector.load %arg4[%1269, %c0_422] : memref<64x128xf32, #tpu.memory_space<vmem>>, vector<1x128xf32>
    %1271 = arith.addf %1268, %1270 : vector<1x128xf32>
    %c105 = arith.constant 105 : index
    %c0_423 = arith.constant 0 : index
    %1272 = vector.load %arg5[%c105, %c0_423] : memref<128x128xf32, #tpu.memory_space<vmem>>, vector<1x128xf32>
    tpu.vector_store %arg5[%c105, %c0_423], %1271 {strides = array<i32>} : memref<128x128xf32, #tpu.memory_space<vmem>>, vector<1x128xf32>,
    %c106_i32 = arith.constant 106 : i32
    %1273 = arith.addi %0, %c106_i32 : i32
    %1274 = arith.index_cast %1273 : i32 to index
    %1275 = memref.load %arg1[%1274] : memref<128xi32, #tpu.memory_space<smem>>
    %c106_i32_424 = arith.constant 106 : i32
    %1276 = arith.addi %0, %c106_i32_424 : i32
    %1277 = arith.index_cast %1276 : i32 to index
    %1278 = memref.load %arg2[%1277] : memref<128xi32, #tpu.memory_space<smem>>
    %1279 = arith.index_cast %1275 : i32 to index
    %c0_425 = arith.constant 0 : index
    %1280 = vector.load %arg3[%1279, %c0_425] : memref<512x128xf32, #tpu.memory_space<vmem>>, vector<1x128xf32>
    %1281 = arith.index_cast %1278 : i32 to index
    %c0_426 = arith.constant 0 : index
    %1282 = vector.load %arg4[%1281, %c0_426] : memref<64x128xf32, #tpu.memory_space<vmem>>, vector<1x128xf32>
    %1283 = arith.addf %1280, %1282 : vector<1x128xf32>
    %c106 = arith.constant 106 : index
    %c0_427 = arith.constant 0 : index
    %1284 = vector.load %arg5[%c106, %c0_427] : memref<128x128xf32, #tpu.memory_space<vmem>>, vector<1x128xf32>
    tpu.vector_store %arg5[%c106, %c0_427], %1283 {strides = array<i32>} : memref<128x128xf32, #tpu.memory_space<vmem>>, vector<1x128xf32>,
    %c107_i32 = arith.constant 107 : i32
    %1285 = arith.addi %0, %c107_i32 : i32
    %1286 = arith.index_cast %1285 : i32 to index
    %1287 = memref.load %arg1[%1286] : memref<128xi32, #tpu.memory_space<smem>>
    %c107_i32_428 = arith.constant 107 : i32
    %1288 = arith.addi %0, %c107_i32_428 : i32
    %1289 = arith.index_cast %1288 : i32 to index
    %1290 = memref.load %arg2[%1289] : memref<128xi32, #tpu.memory_space<smem>>
    %1291 = arith.index_cast %1287 : i32 to index
    %c0_429 = arith.constant 0 : index
    %1292 = vector.load %arg3[%1291, %c0_429] : memref<512x128xf32, #tpu.memory_space<vmem>>, vector<1x128xf32>
    %1293 = arith.index_cast %1290 : i32 to index
    %c0_430 = arith.constant 0 : index
    %1294 = vector.load %arg4[%1293, %c0_430] : memref<64x128xf32, #tpu.memory_space<vmem>>, vector<1x128xf32>
    %1295 = arith.addf %1292, %1294 : vector<1x128xf32>
    %c107 = arith.constant 107 : index
    %c0_431 = arith.constant 0 : index
    %1296 = vector.load %arg5[%c107, %c0_431] : memref<128x128xf32, #tpu.memory_space<vmem>>, vector<1x128xf32>
    tpu.vector_store %arg5[%c107, %c0_431], %1295 {strides = array<i32>} : memref<128x128xf32, #tpu.memory_space<vmem>>, vector<1x128xf32>,
    %c108_i32 = arith.constant 108 : i32
    %1297 = arith.addi %0, %c108_i32 : i32
    %1298 = arith.index_cast %1297 : i32 to index
    %1299 = memref.load %arg1[%1298] : memref<128xi32, #tpu.memory_space<smem>>
    %c108_i32_432 = arith.constant 108 : i32
    %1300 = arith.addi %0, %c108_i32_432 : i32
    %1301 = arith.index_cast %1300 : i32 to index
    %1302 = memref.load %arg2[%1301] : memref<128xi32, #tpu.memory_space<smem>>
    %1303 = arith.index_cast %1299 : i32 to index
    %c0_433 = arith.constant 0 : index
    %1304 = vector.load %arg3[%1303, %c0_433] : memref<512x128xf32, #tpu.memory_space<vmem>>, vector<1x128xf32>
    %1305 = arith.index_cast %1302 : i32 to index
    %c0_434 = arith.constant 0 : index
    %1306 = vector.load %arg4[%1305, %c0_434] : memref<64x128xf32, #tpu.memory_space<vmem>>, vector<1x128xf32>
    %1307 = arith.addf %1304, %1306 : vector<1x128xf32>
    %c108 = arith.constant 108 : index
    %c0_435 = arith.constant 0 : index
    %1308 = vector.load %arg5[%c108, %c0_435] : memref<128x128xf32, #tpu.memory_space<vmem>>, vector<1x128xf32>
    tpu.vector_store %arg5[%c108, %c0_435], %1307 {strides = array<i32>} : memref<128x128xf32, #tpu.memory_space<vmem>>, vector<1x128xf32>,
    %c109_i32 = arith.constant 109 : i32
    %1309 = arith.addi %0, %c109_i32 : i32
    %1310 = arith.index_cast %1309 : i32 to index
    %1311 = memref.load %arg1[%1310] : memref<128xi32, #tpu.memory_space<smem>>
    %c109_i32_436 = arith.constant 109 : i32
    %1312 = arith.addi %0, %c109_i32_436 : i32
    %1313 = arith.index_cast %1312 : i32 to index
    %1314 = memref.load %arg2[%1313] : memref<128xi32, #tpu.memory_space<smem>>
    %1315 = arith.index_cast %1311 : i32 to index
    %c0_437 = arith.constant 0 : index
    %1316 = vector.load %arg3[%1315, %c0_437] : memref<512x128xf32, #tpu.memory_space<vmem>>, vector<1x128xf32>
    %1317 = arith.index_cast %1314 : i32 to index
    %c0_438 = arith.constant 0 : index
    %1318 = vector.load %arg4[%1317, %c0_438] : memref<64x128xf32, #tpu.memory_space<vmem>>, vector<1x128xf32>
    %1319 = arith.addf %1316, %1318 : vector<1x128xf32>
    %c109 = arith.constant 109 : index
    %c0_439 = arith.constant 0 : index
    %1320 = vector.load %arg5[%c109, %c0_439] : memref<128x128xf32, #tpu.memory_space<vmem>>, vector<1x128xf32>
    tpu.vector_store %arg5[%c109, %c0_439], %1319 {strides = array<i32>} : memref<128x128xf32, #tpu.memory_space<vmem>>, vector<1x128xf32>,
    %c110_i32 = arith.constant 110 : i32
    %1321 = arith.addi %0, %c110_i32 : i32
    %1322 = arith.index_cast %1321 : i32 to index
    %1323 = memref.load %arg1[%1322] : memref<128xi32, #tpu.memory_space<smem>>
    %c110_i32_440 = arith.constant 110 : i32
    %1324 = arith.addi %0, %c110_i32_440 : i32
    %1325 = arith.index_cast %1324 : i32 to index
    %1326 = memref.load %arg2[%1325] : memref<128xi32, #tpu.memory_space<smem>>
    %1327 = arith.index_cast %1323 : i32 to index
    %c0_441 = arith.constant 0 : index
    %1328 = vector.load %arg3[%1327, %c0_441] : memref<512x128xf32, #tpu.memory_space<vmem>>, vector<1x128xf32>
    %1329 = arith.index_cast %1326 : i32 to index
    %c0_442 = arith.constant 0 : index
    %1330 = vector.load %arg4[%1329, %c0_442] : memref<64x128xf32, #tpu.memory_space<vmem>>, vector<1x128xf32>
    %1331 = arith.addf %1328, %1330 : vector<1x128xf32>
    %c110 = arith.constant 110 : index
    %c0_443 = arith.constant 0 : index
    %1332 = vector.load %arg5[%c110, %c0_443] : memref<128x128xf32, #tpu.memory_space<vmem>>, vector<1x128xf32>
    tpu.vector_store %arg5[%c110, %c0_443], %1331 {strides = array<i32>} : memref<128x128xf32, #tpu.memory_space<vmem>>, vector<1x128xf32>,
    %c111_i32 = arith.constant 111 : i32
    %1333 = arith.addi %0, %c111_i32 : i32
    %1334 = arith.index_cast %1333 : i32 to index
    %1335 = memref.load %arg1[%1334] : memref<128xi32, #tpu.memory_space<smem>>
    %c111_i32_444 = arith.constant 111 : i32
    %1336 = arith.addi %0, %c111_i32_444 : i32
    %1337 = arith.index_cast %1336 : i32 to index
    %1338 = memref.load %arg2[%1337] : memref<128xi32, #tpu.memory_space<smem>>
    %1339 = arith.index_cast %1335 : i32 to index
    %c0_445 = arith.constant 0 : index
    %1340 = vector.load %arg3[%1339, %c0_445] : memref<512x128xf32, #tpu.memory_space<vmem>>, vector<1x128xf32>
    %1341 = arith.index_cast %1338 : i32 to index
    %c0_446 = arith.constant 0 : index
    %1342 = vector.load %arg4[%1341, %c0_446] : memref<64x128xf32, #tpu.memory_space<vmem>>, vector<1x128xf32>
    %1343 = arith.addf %1340, %1342 : vector<1x128xf32>
    %c111 = arith.constant 111 : index
    %c0_447 = arith.constant 0 : index
    %1344 = vector.load %arg5[%c111, %c0_447] : memref<128x128xf32, #tpu.memory_space<vmem>>, vector<1x128xf32>
    tpu.vector_store %arg5[%c111, %c0_447], %1343 {strides = array<i32>} : memref<128x128xf32, #tpu.memory_space<vmem>>, vector<1x128xf32>,
    %c112_i32 = arith.constant 112 : i32
    %1345 = arith.addi %0, %c112_i32 : i32
    %1346 = arith.index_cast %1345 : i32 to index
    %1347 = memref.load %arg1[%1346] : memref<128xi32, #tpu.memory_space<smem>>
    %c112_i32_448 = arith.constant 112 : i32
    %1348 = arith.addi %0, %c112_i32_448 : i32
    %1349 = arith.index_cast %1348 : i32 to index
    %1350 = memref.load %arg2[%1349] : memref<128xi32, #tpu.memory_space<smem>>
    %1351 = arith.index_cast %1347 : i32 to index
    %c0_449 = arith.constant 0 : index
    %1352 = vector.load %arg3[%1351, %c0_449] : memref<512x128xf32, #tpu.memory_space<vmem>>, vector<1x128xf32>
    %1353 = arith.index_cast %1350 : i32 to index
    %c0_450 = arith.constant 0 : index
    %1354 = vector.load %arg4[%1353, %c0_450] : memref<64x128xf32, #tpu.memory_space<vmem>>, vector<1x128xf32>
    %1355 = arith.addf %1352, %1354 : vector<1x128xf32>
    %c112 = arith.constant 112 : index
    %c0_451 = arith.constant 0 : index
    %1356 = vector.load %arg5[%c112, %c0_451] : memref<128x128xf32, #tpu.memory_space<vmem>>, vector<1x128xf32>
    tpu.vector_store %arg5[%c112, %c0_451], %1355 {strides = array<i32>} : memref<128x128xf32, #tpu.memory_space<vmem>>, vector<1x128xf32>,
    %c113_i32 = arith.constant 113 : i32
    %1357 = arith.addi %0, %c113_i32 : i32
    %1358 = arith.index_cast %1357 : i32 to index
    %1359 = memref.load %arg1[%1358] : memref<128xi32, #tpu.memory_space<smem>>
    %c113_i32_452 = arith.constant 113 : i32
    %1360 = arith.addi %0, %c113_i32_452 : i32
    %1361 = arith.index_cast %1360 : i32 to index
    %1362 = memref.load %arg2[%1361] : memref<128xi32, #tpu.memory_space<smem>>
    %1363 = arith.index_cast %1359 : i32 to index
    %c0_453 = arith.constant 0 : index
    %1364 = vector.load %arg3[%1363, %c0_453] : memref<512x128xf32, #tpu.memory_space<vmem>>, vector<1x128xf32>
    %1365 = arith.index_cast %1362 : i32 to index
    %c0_454 = arith.constant 0 : index
    %1366 = vector.load %arg4[%1365, %c0_454] : memref<64x128xf32, #tpu.memory_space<vmem>>, vector<1x128xf32>
    %1367 = arith.addf %1364, %1366 : vector<1x128xf32>
    %c113 = arith.constant 113 : index
    %c0_455 = arith.constant 0 : index
    %1368 = vector.load %arg5[%c113, %c0_455] : memref<128x128xf32, #tpu.memory_space<vmem>>, vector<1x128xf32>
    tpu.vector_store %arg5[%c113, %c0_455], %1367 {strides = array<i32>} : memref<128x128xf32, #tpu.memory_space<vmem>>, vector<1x128xf32>,
    %c114_i32 = arith.constant 114 : i32
    %1369 = arith.addi %0, %c114_i32 : i32
    %1370 = arith.index_cast %1369 : i32 to index
    %1371 = memref.load %arg1[%1370] : memref<128xi32, #tpu.memory_space<smem>>
    %c114_i32_456 = arith.constant 114 : i32
    %1372 = arith.addi %0, %c114_i32_456 : i32
    %1373 = arith.index_cast %1372 : i32 to index
    %1374 = memref.load %arg2[%1373] : memref<128xi32, #tpu.memory_space<smem>>
    %1375 = arith.index_cast %1371 : i32 to index
    %c0_457 = arith.constant 0 : index
    %1376 = vector.load %arg3[%1375, %c0_457] : memref<512x128xf32, #tpu.memory_space<vmem>>, vector<1x128xf32>
    %1377 = arith.index_cast %1374 : i32 to index
    %c0_458 = arith.constant 0 : index
    %1378 = vector.load %arg4[%1377, %c0_458] : memref<64x128xf32, #tpu.memory_space<vmem>>, vector<1x128xf32>
    %1379 = arith.addf %1376, %1378 : vector<1x128xf32>
    %c114 = arith.constant 114 : index
    %c0_459 = arith.constant 0 : index
    %1380 = vector.load %arg5[%c114, %c0_459] : memref<128x128xf32, #tpu.memory_space<vmem>>, vector<1x128xf32>
    tpu.vector_store %arg5[%c114, %c0_459], %1379 {strides = array<i32>} : memref<128x128xf32, #tpu.memory_space<vmem>>, vector<1x128xf32>,
    %c115_i32 = arith.constant 115 : i32
    %1381 = arith.addi %0, %c115_i32 : i32
    %1382 = arith.index_cast %1381 : i32 to index
    %1383 = memref.load %arg1[%1382] : memref<128xi32, #tpu.memory_space<smem>>
    %c115_i32_460 = arith.constant 115 : i32
    %1384 = arith.addi %0, %c115_i32_460 : i32
    %1385 = arith.index_cast %1384 : i32 to index
    %1386 = memref.load %arg2[%1385] : memref<128xi32, #tpu.memory_space<smem>>
    %1387 = arith.index_cast %1383 : i32 to index
    %c0_461 = arith.constant 0 : index
    %1388 = vector.load %arg3[%1387, %c0_461] : memref<512x128xf32, #tpu.memory_space<vmem>>, vector<1x128xf32>
    %1389 = arith.index_cast %1386 : i32 to index
    %c0_462 = arith.constant 0 : index
    %1390 = vector.load %arg4[%1389, %c0_462] : memref<64x128xf32, #tpu.memory_space<vmem>>, vector<1x128xf32>
    %1391 = arith.addf %1388, %1390 : vector<1x128xf32>
    %c115 = arith.constant 115 : index
    %c0_463 = arith.constant 0 : index
    %1392 = vector.load %arg5[%c115, %c0_463] : memref<128x128xf32, #tpu.memory_space<vmem>>, vector<1x128xf32>
    tpu.vector_store %arg5[%c115, %c0_463], %1391 {strides = array<i32>} : memref<128x128xf32, #tpu.memory_space<vmem>>, vector<1x128xf32>,
    %c116_i32 = arith.constant 116 : i32
    %1393 = arith.addi %0, %c116_i32 : i32
    %1394 = arith.index_cast %1393 : i32 to index
    %1395 = memref.load %arg1[%1394] : memref<128xi32, #tpu.memory_space<smem>>
    %c116_i32_464 = arith.constant 116 : i32
    %1396 = arith.addi %0, %c116_i32_464 : i32
    %1397 = arith.index_cast %1396 : i32 to index
    %1398 = memref.load %arg2[%1397] : memref<128xi32, #tpu.memory_space<smem>>
    %1399 = arith.index_cast %1395 : i32 to index
    %c0_465 = arith.constant 0 : index
    %1400 = vector.load %arg3[%1399, %c0_465] : memref<512x128xf32, #tpu.memory_space<vmem>>, vector<1x128xf32>
    %1401 = arith.index_cast %1398 : i32 to index
    %c0_466 = arith.constant 0 : index
    %1402 = vector.load %arg4[%1401, %c0_466] : memref<64x128xf32, #tpu.memory_space<vmem>>, vector<1x128xf32>
    %1403 = arith.addf %1400, %1402 : vector<1x128xf32>
    %c116 = arith.constant 116 : index
    %c0_467 = arith.constant 0 : index
    %1404 = vector.load %arg5[%c116, %c0_467] : memref<128x128xf32, #tpu.memory_space<vmem>>, vector<1x128xf32>
    tpu.vector_store %arg5[%c116, %c0_467], %1403 {strides = array<i32>} : memref<128x128xf32, #tpu.memory_space<vmem>>, vector<1x128xf32>,
    %c117_i32 = arith.constant 117 : i32
    %1405 = arith.addi %0, %c117_i32 : i32
    %1406 = arith.index_cast %1405 : i32 to index
    %1407 = memref.load %arg1[%1406] : memref<128xi32, #tpu.memory_space<smem>>
    %c117_i32_468 = arith.constant 117 : i32
    %1408 = arith.addi %0, %c117_i32_468 : i32
    %1409 = arith.index_cast %1408 : i32 to index
    %1410 = memref.load %arg2[%1409] : memref<128xi32, #tpu.memory_space<smem>>
    %1411 = arith.index_cast %1407 : i32 to index
    %c0_469 = arith.constant 0 : index
    %1412 = vector.load %arg3[%1411, %c0_469] : memref<512x128xf32, #tpu.memory_space<vmem>>, vector<1x128xf32>
    %1413 = arith.index_cast %1410 : i32 to index
    %c0_470 = arith.constant 0 : index
    %1414 = vector.load %arg4[%1413, %c0_470] : memref<64x128xf32, #tpu.memory_space<vmem>>, vector<1x128xf32>
    %1415 = arith.addf %1412, %1414 : vector<1x128xf32>
    %c117 = arith.constant 117 : index
    %c0_471 = arith.constant 0 : index
    %1416 = vector.load %arg5[%c117, %c0_471] : memref<128x128xf32, #tpu.memory_space<vmem>>, vector<1x128xf32>
    tpu.vector_store %arg5[%c117, %c0_471], %1415 {strides = array<i32>} : memref<128x128xf32, #tpu.memory_space<vmem>>, vector<1x128xf32>,
    %c118_i32 = arith.constant 118 : i32
    %1417 = arith.addi %0, %c118_i32 : i32
    %1418 = arith.index_cast %1417 : i32 to index
    %1419 = memref.load %arg1[%1418] : memref<128xi32, #tpu.memory_space<smem>>
    %c118_i32_472 = arith.constant 118 : i32
    %1420 = arith.addi %0, %c118_i32_472 : i32
    %1421 = arith.index_cast %1420 : i32 to index
    %1422 = memref.load %arg2[%1421] : memref<128xi32, #tpu.memory_space<smem>>
    %1423 = arith.index_cast %1419 : i32 to index
    %c0_473 = arith.constant 0 : index
    %1424 = vector.load %arg3[%1423, %c0_473] : memref<512x128xf32, #tpu.memory_space<vmem>>, vector<1x128xf32>
    %1425 = arith.index_cast %1422 : i32 to index
    %c0_474 = arith.constant 0 : index
    %1426 = vector.load %arg4[%1425, %c0_474] : memref<64x128xf32, #tpu.memory_space<vmem>>, vector<1x128xf32>
    %1427 = arith.addf %1424, %1426 : vector<1x128xf32>
    %c118 = arith.constant 118 : index
    %c0_475 = arith.constant 0 : index
    %1428 = vector.load %arg5[%c118, %c0_475] : memref<128x128xf32, #tpu.memory_space<vmem>>, vector<1x128xf32>
    tpu.vector_store %arg5[%c118, %c0_475], %1427 {strides = array<i32>} : memref<128x128xf32, #tpu.memory_space<vmem>>, vector<1x128xf32>,
    %c119_i32 = arith.constant 119 : i32
    %1429 = arith.addi %0, %c119_i32 : i32
    %1430 = arith.index_cast %1429 : i32 to index
    %1431 = memref.load %arg1[%1430] : memref<128xi32, #tpu.memory_space<smem>>
    %c119_i32_476 = arith.constant 119 : i32
    %1432 = arith.addi %0, %c119_i32_476 : i32
    %1433 = arith.index_cast %1432 : i32 to index
    %1434 = memref.load %arg2[%1433] : memref<128xi32, #tpu.memory_space<smem>>
    %1435 = arith.index_cast %1431 : i32 to index
    %c0_477 = arith.constant 0 : index
    %1436 = vector.load %arg3[%1435, %c0_477] : memref<512x128xf32, #tpu.memory_space<vmem>>, vector<1x128xf32>
    %1437 = arith.index_cast %1434 : i32 to index
    %c0_478 = arith.constant 0 : index
    %1438 = vector.load %arg4[%1437, %c0_478] : memref<64x128xf32, #tpu.memory_space<vmem>>, vector<1x128xf32>
    %1439 = arith.addf %1436, %1438 : vector<1x128xf32>
    %c119 = arith.constant 119 : index
    %c0_479 = arith.constant 0 : index
    %1440 = vector.load %arg5[%c119, %c0_479] : memref<128x128xf32, #tpu.memory_space<vmem>>, vector<1x128xf32>
    tpu.vector_store %arg5[%c119, %c0_479], %1439 {strides = array<i32>} : memref<128x128xf32, #tpu.memory_space<vmem>>, vector<1x128xf32>,
    %c120_i32 = arith.constant 120 : i32
    %1441 = arith.addi %0, %c120_i32 : i32
    %1442 = arith.index_cast %1441 : i32 to index
    %1443 = memref.load %arg1[%1442] : memref<128xi32, #tpu.memory_space<smem>>
    %c120_i32_480 = arith.constant 120 : i32
    %1444 = arith.addi %0, %c120_i32_480 : i32
    %1445 = arith.index_cast %1444 : i32 to index
    %1446 = memref.load %arg2[%1445] : memref<128xi32, #tpu.memory_space<smem>>
    %1447 = arith.index_cast %1443 : i32 to index
    %c0_481 = arith.constant 0 : index
    %1448 = vector.load %arg3[%1447, %c0_481] : memref<512x128xf32, #tpu.memory_space<vmem>>, vector<1x128xf32>
    %1449 = arith.index_cast %1446 : i32 to index
    %c0_482 = arith.constant 0 : index
    %1450 = vector.load %arg4[%1449, %c0_482] : memref<64x128xf32, #tpu.memory_space<vmem>>, vector<1x128xf32>
    %1451 = arith.addf %1448, %1450 : vector<1x128xf32>
    %c120 = arith.constant 120 : index
    %c0_483 = arith.constant 0 : index
    %1452 = vector.load %arg5[%c120, %c0_483] : memref<128x128xf32, #tpu.memory_space<vmem>>, vector<1x128xf32>
    tpu.vector_store %arg5[%c120, %c0_483], %1451 {strides = array<i32>} : memref<128x128xf32, #tpu.memory_space<vmem>>, vector<1x128xf32>,
    %c121_i32 = arith.constant 121 : i32
    %1453 = arith.addi %0, %c121_i32 : i32
    %1454 = arith.index_cast %1453 : i32 to index
    %1455 = memref.load %arg1[%1454] : memref<128xi32, #tpu.memory_space<smem>>
    %c121_i32_484 = arith.constant 121 : i32
    %1456 = arith.addi %0, %c121_i32_484 : i32
    %1457 = arith.index_cast %1456 : i32 to index
    %1458 = memref.load %arg2[%1457] : memref<128xi32, #tpu.memory_space<smem>>
    %1459 = arith.index_cast %1455 : i32 to index
    %c0_485 = arith.constant 0 : index
    %1460 = vector.load %arg3[%1459, %c0_485] : memref<512x128xf32, #tpu.memory_space<vmem>>, vector<1x128xf32>
    %1461 = arith.index_cast %1458 : i32 to index
    %c0_486 = arith.constant 0 : index
    %1462 = vector.load %arg4[%1461, %c0_486] : memref<64x128xf32, #tpu.memory_space<vmem>>, vector<1x128xf32>
    %1463 = arith.addf %1460, %1462 : vector<1x128xf32>
    %c121 = arith.constant 121 : index
    %c0_487 = arith.constant 0 : index
    %1464 = vector.load %arg5[%c121, %c0_487] : memref<128x128xf32, #tpu.memory_space<vmem>>, vector<1x128xf32>
    tpu.vector_store %arg5[%c121, %c0_487], %1463 {strides = array<i32>} : memref<128x128xf32, #tpu.memory_space<vmem>>, vector<1x128xf32>,
    %c122_i32 = arith.constant 122 : i32
    %1465 = arith.addi %0, %c122_i32 : i32
    %1466 = arith.index_cast %1465 : i32 to index
    %1467 = memref.load %arg1[%1466] : memref<128xi32, #tpu.memory_space<smem>>
    %c122_i32_488 = arith.constant 122 : i32
    %1468 = arith.addi %0, %c122_i32_488 : i32
    %1469 = arith.index_cast %1468 : i32 to index
    %1470 = memref.load %arg2[%1469] : memref<128xi32, #tpu.memory_space<smem>>
    %1471 = arith.index_cast %1467 : i32 to index
    %c0_489 = arith.constant 0 : index
    %1472 = vector.load %arg3[%1471, %c0_489] : memref<512x128xf32, #tpu.memory_space<vmem>>, vector<1x128xf32>
    %1473 = arith.index_cast %1470 : i32 to index
    %c0_490 = arith.constant 0 : index
    %1474 = vector.load %arg4[%1473, %c0_490] : memref<64x128xf32, #tpu.memory_space<vmem>>, vector<1x128xf32>
    %1475 = arith.addf %1472, %1474 : vector<1x128xf32>
    %c122 = arith.constant 122 : index
    %c0_491 = arith.constant 0 : index
    %1476 = vector.load %arg5[%c122, %c0_491] : memref<128x128xf32, #tpu.memory_space<vmem>>, vector<1x128xf32>
    tpu.vector_store %arg5[%c122, %c0_491], %1475 {strides = array<i32>} : memref<128x128xf32, #tpu.memory_space<vmem>>, vector<1x128xf32>,
    %c123_i32 = arith.constant 123 : i32
    %1477 = arith.addi %0, %c123_i32 : i32
    %1478 = arith.index_cast %1477 : i32 to index
    %1479 = memref.load %arg1[%1478] : memref<128xi32, #tpu.memory_space<smem>>
    %c123_i32_492 = arith.constant 123 : i32
    %1480 = arith.addi %0, %c123_i32_492 : i32
    %1481 = arith.index_cast %1480 : i32 to index
    %1482 = memref.load %arg2[%1481] : memref<128xi32, #tpu.memory_space<smem>>
    %1483 = arith.index_cast %1479 : i32 to index
    %c0_493 = arith.constant 0 : index
    %1484 = vector.load %arg3[%1483, %c0_493] : memref<512x128xf32, #tpu.memory_space<vmem>>, vector<1x128xf32>
    %1485 = arith.index_cast %1482 : i32 to index
    %c0_494 = arith.constant 0 : index
    %1486 = vector.load %arg4[%1485, %c0_494] : memref<64x128xf32, #tpu.memory_space<vmem>>, vector<1x128xf32>
    %1487 = arith.addf %1484, %1486 : vector<1x128xf32>
    %c123 = arith.constant 123 : index
    %c0_495 = arith.constant 0 : index
    %1488 = vector.load %arg5[%c123, %c0_495] : memref<128x128xf32, #tpu.memory_space<vmem>>, vector<1x128xf32>
    tpu.vector_store %arg5[%c123, %c0_495], %1487 {strides = array<i32>} : memref<128x128xf32, #tpu.memory_space<vmem>>, vector<1x128xf32>,
    %c124_i32 = arith.constant 124 : i32
    %1489 = arith.addi %0, %c124_i32 : i32
    %1490 = arith.index_cast %1489 : i32 to index
    %1491 = memref.load %arg1[%1490] : memref<128xi32, #tpu.memory_space<smem>>
    %c124_i32_496 = arith.constant 124 : i32
    %1492 = arith.addi %0, %c124_i32_496 : i32
    %1493 = arith.index_cast %1492 : i32 to index
    %1494 = memref.load %arg2[%1493] : memref<128xi32, #tpu.memory_space<smem>>
    %1495 = arith.index_cast %1491 : i32 to index
    %c0_497 = arith.constant 0 : index
    %1496 = vector.load %arg3[%1495, %c0_497] : memref<512x128xf32, #tpu.memory_space<vmem>>, vector<1x128xf32>
    %1497 = arith.index_cast %1494 : i32 to index
    %c0_498 = arith.constant 0 : index
    %1498 = vector.load %arg4[%1497, %c0_498] : memref<64x128xf32, #tpu.memory_space<vmem>>, vector<1x128xf32>
    %1499 = arith.addf %1496, %1498 : vector<1x128xf32>
    %c124 = arith.constant 124 : index
    %c0_499 = arith.constant 0 : index
    %1500 = vector.load %arg5[%c124, %c0_499] : memref<128x128xf32, #tpu.memory_space<vmem>>, vector<1x128xf32>
    tpu.vector_store %arg5[%c124, %c0_499], %1499 {strides = array<i32>} : memref<128x128xf32, #tpu.memory_space<vmem>>, vector<1x128xf32>,
    %c125_i32 = arith.constant 125 : i32
    %1501 = arith.addi %0, %c125_i32 : i32
    %1502 = arith.index_cast %1501 : i32 to index
    %1503 = memref.load %arg1[%1502] : memref<128xi32, #tpu.memory_space<smem>>
    %c125_i32_500 = arith.constant 125 : i32
    %1504 = arith.addi %0, %c125_i32_500 : i32
    %1505 = arith.index_cast %1504 : i32 to index
    %1506 = memref.load %arg2[%1505] : memref<128xi32, #tpu.memory_space<smem>>
    %1507 = arith.index_cast %1503 : i32 to index
    %c0_501 = arith.constant 0 : index
    %1508 = vector.load %arg3[%1507, %c0_501] : memref<512x128xf32, #tpu.memory_space<vmem>>, vector<1x128xf32>
    %1509 = arith.index_cast %1506 : i32 to index
    %c0_502 = arith.constant 0 : index
    %1510 = vector.load %arg4[%1509, %c0_502] : memref<64x128xf32, #tpu.memory_space<vmem>>, vector<1x128xf32>
    %1511 = arith.addf %1508, %1510 : vector<1x128xf32>
    %c125 = arith.constant 125 : index
    %c0_503 = arith.constant 0 : index
    %1512 = vector.load %arg5[%c125, %c0_503] : memref<128x128xf32, #tpu.memory_space<vmem>>, vector<1x128xf32>
    tpu.vector_store %arg5[%c125, %c0_503], %1511 {strides = array<i32>} : memref<128x128xf32, #tpu.memory_space<vmem>>, vector<1x128xf32>,
    %c126_i32 = arith.constant 126 : i32
    %1513 = arith.addi %0, %c126_i32 : i32
    %1514 = arith.index_cast %1513 : i32 to index
    %1515 = memref.load %arg1[%1514] : memref<128xi32, #tpu.memory_space<smem>>
    %c126_i32_504 = arith.constant 126 : i32
    %1516 = arith.addi %0, %c126_i32_504 : i32
    %1517 = arith.index_cast %1516 : i32 to index
    %1518 = memref.load %arg2[%1517] : memref<128xi32, #tpu.memory_space<smem>>
    %1519 = arith.index_cast %1515 : i32 to index
    %c0_505 = arith.constant 0 : index
    %1520 = vector.load %arg3[%1519, %c0_505] : memref<512x128xf32, #tpu.memory_space<vmem>>, vector<1x128xf32>
    %1521 = arith.index_cast %1518 : i32 to index
    %c0_506 = arith.constant 0 : index
    %1522 = vector.load %arg4[%1521, %c0_506] : memref<64x128xf32, #tpu.memory_space<vmem>>, vector<1x128xf32>
    %1523 = arith.addf %1520, %1522 : vector<1x128xf32>
    %c126 = arith.constant 126 : index
    %c0_507 = arith.constant 0 : index
    %1524 = vector.load %arg5[%c126, %c0_507] : memref<128x128xf32, #tpu.memory_space<vmem>>, vector<1x128xf32>
    tpu.vector_store %arg5[%c126, %c0_507], %1523 {strides = array<i32>} : memref<128x128xf32, #tpu.memory_space<vmem>>, vector<1x128xf32>,
    %c127_i32 = arith.constant 127 : i32
    %1525 = arith.addi %0, %c127_i32 : i32
    %1526 = arith.index_cast %1525 : i32 to index
    %1527 = memref.load %arg1[%1526] : memref<128xi32, #tpu.memory_space<smem>>
    %c127_i32_508 = arith.constant 127 : i32
    %1528 = arith.addi %0, %c127_i32_508 : i32
    %1529 = arith.index_cast %1528 : i32 to index
    %1530 = memref.load %arg2[%1529] : memref<128xi32, #tpu.memory_space<smem>>
    %1531 = arith.index_cast %1527 : i32 to index
    %c0_509 = arith.constant 0 : index
    %1532 = vector.load %arg3[%1531, %c0_509] : memref<512x128xf32, #tpu.memory_space<vmem>>, vector<1x128xf32>
    %1533 = arith.index_cast %1530 : i32 to index
    %c0_510 = arith.constant 0 : index
    %1534 = vector.load %arg4[%1533, %c0_510] : memref<64x128xf32, #tpu.memory_space<vmem>>, vector<1x128xf32>
    %1535 = arith.addf %1532, %1534 : vector<1x128xf32>
    %c127 = arith.constant 127 : index
    %c0_511 = arith.constant 0 : index
    %1536 = vector.load %arg5[%c127, %c0_511] : memref<128x128xf32, #tpu.memory_space<vmem>>, vector<1x128xf32>
    tpu.vector_store %arg5[%c127, %c0_511], %1535 {strides = array<i32>} : memref<128x128xf32, #tpu.memory_space<vmem>>, vector<1x128xf32>,
    return
  }
  func.func @transform_0(%arg0: i32, %arg1: memref<128xi32, #tpu.memory_space<smem>>, %arg2: memref<128xi32, #tpu.memory_space<smem>>) -> (i32, i32) {
    %c0_i32 = arith.constant 0 : i32
    %c0_i32_0 = arith.constant 0 : i32
    %c0_i32_1 = arith.constant 0 : i32
    return %c0_i32, %c0_i32_0 : i32, i32
  }
  func.func @transform_1(%arg0: i32, %arg1: memref<128xi32, #tpu.memory_space<smem>>, %arg2: memref<128xi32, #tpu.memory_space<smem>>) -> (i32, i32) {
    %c0_i32 = arith.constant 0 : i32
    %c0_i32_0 = arith.constant 0 : i32
    %c0_i32_1 = arith.constant 0 : i32
    return %c0_i32, %c0_i32_0 : i32, i32
  }
  func.func @transform_2(%arg0: i32, %arg1: memref<128xi32, #tpu.memory_space<smem>>, %arg2: memref<128xi32, #tpu.memory_space<smem>>) -> (i32, i32) {
    %c0_i32 = arith.constant 0 : i32
    %c0_i32_0 = arith.constant 0 : i32
    return %arg0, %c0_i32 : i32, i32
  }
}

module attributes {stable_mosaic.version = 11 : i64} {
  func.func @_embed_kernel(%arg0: i32, %arg1: memref<128xi32, #tpu.memory_space<smem>>, %arg2: memref<128xi32, #tpu.memory_space<smem>>, %arg3: memref<512x128xf32, #tpu.memory_space<vmem>>, %arg4: memref<64x128xf32, #tpu.memory_space<vmem>>, %arg5: memref<128x128xf32, #tpu.memory_space<vmem>>) attributes {dimension_semantics = [#tpu.dimension_semantics<parallel>], iteration_bounds = array<i64: 1>, scalar_prefetch = 2 : i64, scratch_operands = 0 : i64, tpu.core_type = #tpu.core_type<tc>, window_params = [{pipeline_mode = #tpu.pipeline_mode<synchronous>, transform_indices = @transform_0, window_bounds = array<i64: 512, 128>}, {pipeline_mode = #tpu.pipeline_mode<synchronous>, transform_indices = @transform_1, window_bounds = array<i64: 64, 128>}, {transform_indices = @transform_2, window_bounds = array<i64: 128, 128>}]} {
    %c128_i32 = arith.constant 128 : i32
    %0 = arith.muli %arg0, %c128_i32 : i32
    %c0_i32 = arith.constant 0 : i32
    %1 = arith.addi %0, %c0_i32 : i32
    %2 = arith.index_cast %1 : i32 to index
    %3 = memref.load %arg1[%2] : memref<128xi32, #tpu.memory_space<smem>>
    %c0_i32_0 = arith.constant 0 : i32
    %4 = arith.addi %0, %c0_i32_0 : i32
    %5 = arith.index_cast %4 : i32 to index
    %6 = memref.load %arg2[%5] : memref<128xi32, #tpu.memory_space<smem>>
    %7 = arith.index_cast %3 : i32 to index
    %c0 = arith.constant 0 : index
    %8 = vector.load %arg3[%7, %c0] : memref<512x128xf32, #tpu.memory_space<vmem>>, vector<1x128xf32>
    %9 = arith.index_cast %6 : i32 to index
    %c0_1 = arith.constant 0 : index
    %10 = vector.load %arg4[%9, %c0_1] : memref<64x128xf32, #tpu.memory_space<vmem>>, vector<1x128xf32>
    %11 = arith.addf %8, %10 : vector<1x128xf32>
    %c0_2 = arith.constant 0 : index
    %c0_3 = arith.constant 0 : index
    %12 = vector.load %arg5[%c0_2, %c0_3] : memref<128x128xf32, #tpu.memory_space<vmem>>, vector<1x128xf32>
    tpu.vector_store %arg5[%c0_2, %c0_3], %11 {strides = array<i32>} : memref<128x128xf32, #tpu.memory_space<vmem>>, vector<1x128xf32>,
    %c1_i32 = arith.constant 1 : i32
    %13 = arith.addi %0, %c1_i32 : i32
    %14 = arith.index_cast %13 : i32 to index
    %15 = memref.load %arg1[%14] : memref<128xi32, #tpu.memory_space<smem>>
    %c1_i32_4 = arith.constant 1 : i32
    %16 = arith.addi %0, %c1_i32_4 : i32
    %17 = arith.index_cast %16 : i32 to index
    %18 = memref.load %arg2[%17] : memref<128xi32, #tpu.memory_space<smem>>
    %19 = arith.index_cast %15 : i32 to index
    %c0_5 = arith.constant 0 : index
    %20 = vector.load %arg3[%19, %c0_5] : memref<512x128xf32, #tpu.memory_space<vmem>>, vector<1x128xf32>
    %21 = arith.index_cast %18 : i32 to index
    %c0_6 = arith.constant 0 : index
    %22 = vector.load %arg4[%21, %c0_6] : memref<64x128xf32, #tpu.memory_space<vmem>>, vector<1x128xf32>
    %23 = arith.addf %20, %22 : vector<1x128xf32>
    %c1 = arith.constant 1 : index
    %c0_7 = arith.constant 0 : index
    %24 = vector.load %arg5[%c1, %c0_7] : memref<128x128xf32, #tpu.memory_space<vmem>>, vector<1x128xf32>
    tpu.vector_store %arg5[%c1, %c0_7], %23 {strides = array<i32>} : memref<128x128xf32, #tpu.memory_space<vmem>>, vector<1x128xf32>,
    %c2_i32 = arith.constant 2 : i32
    %25 = arith.addi %0, %c2_i32 : i32
    %26 = arith.index_cast %25 : i32 to index
    %27 = memref.load %arg1[%26] : memref<128xi32, #tpu.memory_space<smem>>
    %c2_i32_8 = arith.constant 2 : i32
    %28 = arith.addi %0, %c2_i32_8 : i32
    %29 = arith.index_cast %28 : i32 to index
    %30 = memref.load %arg2[%29] : memref<128xi32, #tpu.memory_space<smem>>
    %31 = arith.index_cast %27 : i32 to index
    %c0_9 = arith.constant 0 : index
    %32 = vector.load %arg3[%31, %c0_9] : memref<512x128xf32, #tpu.memory_space<vmem>>, vector<1x128xf32>
    %33 = arith.index_cast %30 : i32 to index
    %c0_10 = arith.constant 0 : index
    %34 = vector.load %arg4[%33, %c0_10] : memref<64x128xf32, #tpu.memory_space<vmem>>, vector<1x128xf32>
    %35 = arith.addf %32, %34 : vector<1x128xf32>
    %c2 = arith.constant 2 : index
    %c0_11 = arith.constant 0 : index
    %36 = vector.load %arg5[%c2, %c0_11] : memref<128x128xf32, #tpu.memory_space<vmem>>, vector<1x128xf32>
    tpu.vector_store %arg5[%c2, %c0_11], %35 {strides = array<i32>} : memref<128x128xf32, #tpu.memory_space<vmem>>, vector<1x128xf32>,
    %c3_i32 = arith.constant 3 : i32
    %37 = arith.addi %0, %c3_i32 : i32
    %38 = arith.index_cast %37 : i32 to index
    %39 = memref.load %arg1[%38] : memref<128xi32, #tpu.memory_space<smem>>
    %c3_i32_12 = arith.constant 3 : i32
    %40 = arith.addi %0, %c3_i32_12 : i32
    %41 = arith.index_cast %40 : i32 to index
    %42 = memref.load %arg2[%41] : memref<128xi32, #tpu.memory_space<smem>>
    %43 = arith.index_cast %39 : i32 to index
    %c0_13 = arith.constant 0 : index
    %44 = vector.load %arg3[%43, %c0_13] : memref<512x128xf32, #tpu.memory_space<vmem>>, vector<1x128xf32>
    %45 = arith.index_cast %42 : i32 to index
    %c0_14 = arith.constant 0 : index
    %46 = vector.load %arg4[%45, %c0_14] : memref<64x128xf32, #tpu.memory_space<vmem>>, vector<1x128xf32>
    %47 = arith.addf %44, %46 : vector<1x128xf32>
    %c3 = arith.constant 3 : index
    %c0_15 = arith.constant 0 : index
    %48 = vector.load %arg5[%c3, %c0_15] : memref<128x128xf32, #tpu.memory_space<vmem>>, vector<1x128xf32>
    tpu.vector_store %arg5[%c3, %c0_15], %47 {strides = array<i32>} : memref<128x128xf32, #tpu.memory_space<vmem>>, vector<1x128xf32>,
    %c4_i32 = arith.constant 4 : i32
    %49 = arith.addi %0, %c4_i32 : i32
    %50 = arith.index_cast %49 : i32 to index
    %51 = memref.load %arg1[%50] : memref<128xi32, #tpu.memory_space<smem>>
    %c4_i32_16 = arith.constant 4 : i32
    %52 = arith.addi %0, %c4_i32_16 : i32
    %53 = arith.index_cast %52 : i32 to index
    %54 = memref.load %arg2[%53] : memref<128xi32, #tpu.memory_space<smem>>
    %55 = arith.index_cast %51 : i32 to index
    %c0_17 = arith.constant 0 : index
    %56 = vector.load %arg3[%55, %c0_17] : memref<512x128xf32, #tpu.memory_space<vmem>>, vector<1x128xf32>
    %57 = arith.index_cast %54 : i32 to index
    %c0_18 = arith.constant 0 : index
    %58 = vector.load %arg4[%57, %c0_18] : memref<64x128xf32, #tpu.memory_space<vmem>>, vector<1x128xf32>
    %59 = arith.addf %56, %58 : vector<1x128xf32>
    %c4 = arith.constant 4 : index
    %c0_19 = arith.constant 0 : index
    %60 = vector.load %arg5[%c4, %c0_19] : memref<128x128xf32, #tpu.memory_space<vmem>>, vector<1x128xf32>
    tpu.vector_store %arg5[%c4, %c0_19], %59 {strides = array<i32>} : memref<128x128xf32, #tpu.memory_space<vmem>>, vector<1x128xf32>,
    %c5_i32 = arith.constant 5 : i32
    %61 = arith.addi %0, %c5_i32 : i32
    %62 = arith.index_cast %61 : i32 to index
    %63 = memref.load %arg1[%62] : memref<128xi32, #tpu.memory_space<smem>>
    %c5_i32_20 = arith.constant 5 : i32
    %64 = arith.addi %0, %c5_i32_20 : i32
    %65 = arith.index_cast %64 : i32 to index
    %66 = memref.load %arg2[%65] : memref<128xi32, #tpu.memory_space<smem>>
    %67 = arith.index_cast %63 : i32 to index
    %c0_21 = arith.constant 0 : index
    %68 = vector.load %arg3[%67, %c0_21] : memref<512x128xf32, #tpu.memory_space<vmem>>, vector<1x128xf32>
    %69 = arith.index_cast %66 : i32 to index
    %c0_22 = arith.constant 0 : index
    %70 = vector.load %arg4[%69, %c0_22] : memref<64x128xf32, #tpu.memory_space<vmem>>, vector<1x128xf32>
    %71 = arith.addf %68, %70 : vector<1x128xf32>
    %c5 = arith.constant 5 : index
    %c0_23 = arith.constant 0 : index
    %72 = vector.load %arg5[%c5, %c0_23] : memref<128x128xf32, #tpu.memory_space<vmem>>, vector<1x128xf32>
    tpu.vector_store %arg5[%c5, %c0_23], %71 {strides = array<i32>} : memref<128x128xf32, #tpu.memory_space<vmem>>, vector<1x128xf32>,
    %c6_i32 = arith.constant 6 : i32
    %73 = arith.addi %0, %c6_i32 : i32
    %74 = arith.index_cast %73 : i32 to index
    %75 = memref.load %arg1[%74] : memref<128xi32, #tpu.memory_space<smem>>
    %c6_i32_24 = arith.constant 6 : i32
    %76 = arith.addi %0, %c6_i32_24 : i32
    %77 = arith.index_cast %76 : i32 to index
    %78 = memref.load %arg2[%77] : memref<128xi32, #tpu.memory_space<smem>>
    %79 = arith.index_cast %75 : i32 to index
    %c0_25 = arith.constant 0 : index
    %80 = vector.load %arg3[%79, %c0_25] : memref<512x128xf32, #tpu.memory_space<vmem>>, vector<1x128xf32>
    %81 = arith.index_cast %78 : i32 to index
    %c0_26 = arith.constant 0 : index
    %82 = vector.load %arg4[%81, %c0_26] : memref<64x128xf32, #tpu.memory_space<vmem>>, vector<1x128xf32>
    %83 = arith.addf %80, %82 : vector<1x128xf32>
    %c6 = arith.constant 6 : index
    %c0_27 = arith.constant 0 : index
    %84 = vector.load %arg5[%c6, %c0_27] : memref<128x128xf32, #tpu.memory_space<vmem>>, vector<1x128xf32>
    tpu.vector_store %arg5[%c6, %c0_27], %83 {strides = array<i32>} : memref<128x128xf32, #tpu.memory_space<vmem>>, vector<1x128xf32>,
    %c7_i32 = arith.constant 7 : i32
    %85 = arith.addi %0, %c7_i32 : i32
    %86 = arith.index_cast %85 : i32 to index
    %87 = memref.load %arg1[%86] : memref<128xi32, #tpu.memory_space<smem>>
    %c7_i32_28 = arith.constant 7 : i32
    %88 = arith.addi %0, %c7_i32_28 : i32
    %89 = arith.index_cast %88 : i32 to index
    %90 = memref.load %arg2[%89] : memref<128xi32, #tpu.memory_space<smem>>
    %91 = arith.index_cast %87 : i32 to index
    %c0_29 = arith.constant 0 : index
    %92 = vector.load %arg3[%91, %c0_29] : memref<512x128xf32, #tpu.memory_space<vmem>>, vector<1x128xf32>
    %93 = arith.index_cast %90 : i32 to index
    %c0_30 = arith.constant 0 : index
    %94 = vector.load %arg4[%93, %c0_30] : memref<64x128xf32, #tpu.memory_space<vmem>>, vector<1x128xf32>
    %95 = arith.addf %92, %94 : vector<1x128xf32>
    %c7 = arith.constant 7 : index
    %c0_31 = arith.constant 0 : index
    %96 = vector.load %arg5[%c7, %c0_31] : memref<128x128xf32, #tpu.memory_space<vmem>>, vector<1x128xf32>
    tpu.vector_store %arg5[%c7, %c0_31], %95 {strides = array<i32>} : memref<128x128xf32, #tpu.memory_space<vmem>>, vector<1x128xf32>,
    %c8_i32 = arith.constant 8 : i32
    %97 = arith.addi %0, %c8_i32 : i32
    %98 = arith.index_cast %97 : i32 to index
    %99 = memref.load %arg1[%98] : memref<128xi32, #tpu.memory_space<smem>>
    %c8_i32_32 = arith.constant 8 : i32
    %100 = arith.addi %0, %c8_i32_32 : i32
    %101 = arith.index_cast %100 : i32 to index
    %102 = memref.load %arg2[%101] : memref<128xi32, #tpu.memory_space<smem>>
    %103 = arith.index_cast %99 : i32 to index
    %c0_33 = arith.constant 0 : index
    %104 = vector.load %arg3[%103, %c0_33] : memref<512x128xf32, #tpu.memory_space<vmem>>, vector<1x128xf32>
    %105 = arith.index_cast %102 : i32 to index
    %c0_34 = arith.constant 0 : index
    %106 = vector.load %arg4[%105, %c0_34] : memref<64x128xf32, #tpu.memory_space<vmem>>, vector<1x128xf32>
    %107 = arith.addf %104, %106 : vector<1x128xf32>
    %c8 = arith.constant 8 : index
    %c0_35 = arith.constant 0 : index
    %108 = vector.load %arg5[%c8, %c0_35] : memref<128x128xf32, #tpu.memory_space<vmem>>, vector<1x128xf32>
    tpu.vector_store %arg5[%c8, %c0_35], %107 {strides = array<i32>} : memref<128x128xf32, #tpu.memory_space<vmem>>, vector<1x128xf32>,
    %c9_i32 = arith.constant 9 : i32
    %109 = arith.addi %0, %c9_i32 : i32
    %110 = arith.index_cast %109 : i32 to index
    %111 = memref.load %arg1[%110] : memref<128xi32, #tpu.memory_space<smem>>
    %c9_i32_36 = arith.constant 9 : i32
    %112 = arith.addi %0, %c9_i32_36 : i32
    %113 = arith.index_cast %112 : i32 to index
    %114 = memref.load %arg2[%113] : memref<128xi32, #tpu.memory_space<smem>>
    %115 = arith.index_cast %111 : i32 to index
    %c0_37 = arith.constant 0 : index
    %116 = vector.load %arg3[%115, %c0_37] : memref<512x128xf32, #tpu.memory_space<vmem>>, vector<1x128xf32>
    %117 = arith.index_cast %114 : i32 to index
    %c0_38 = arith.constant 0 : index
    %118 = vector.load %arg4[%117, %c0_38] : memref<64x128xf32, #tpu.memory_space<vmem>>, vector<1x128xf32>
    %119 = arith.addf %116, %118 : vector<1x128xf32>
    %c9 = arith.constant 9 : index
    %c0_39 = arith.constant 0 : index
    %120 = vector.load %arg5[%c9, %c0_39] : memref<128x128xf32, #tpu.memory_space<vmem>>, vector<1x128xf32>
    tpu.vector_store %arg5[%c9, %c0_39], %119 {strides = array<i32>} : memref<128x128xf32, #tpu.memory_space<vmem>>, vector<1x128xf32>,
    %c10_i32 = arith.constant 10 : i32
    %121 = arith.addi %0, %c10_i32 : i32
    %122 = arith.index_cast %121 : i32 to index
    %123 = memref.load %arg1[%122] : memref<128xi32, #tpu.memory_space<smem>>
    %c10_i32_40 = arith.constant 10 : i32
    %124 = arith.addi %0, %c10_i32_40 : i32
    %125 = arith.index_cast %124 : i32 to index
    %126 = memref.load %arg2[%125] : memref<128xi32, #tpu.memory_space<smem>>
    %127 = arith.index_cast %123 : i32 to index
    %c0_41 = arith.constant 0 : index
    %128 = vector.load %arg3[%127, %c0_41] : memref<512x128xf32, #tpu.memory_space<vmem>>, vector<1x128xf32>
    %129 = arith.index_cast %126 : i32 to index
    %c0_42 = arith.constant 0 : index
    %130 = vector.load %arg4[%129, %c0_42] : memref<64x128xf32, #tpu.memory_space<vmem>>, vector<1x128xf32>
    %131 = arith.addf %128, %130 : vector<1x128xf32>
    %c10 = arith.constant 10 : index
    %c0_43 = arith.constant 0 : index
    %132 = vector.load %arg5[%c10, %c0_43] : memref<128x128xf32, #tpu.memory_space<vmem>>, vector<1x128xf32>
    tpu.vector_store %arg5[%c10, %c0_43], %131 {strides = array<i32>} : memref<128x128xf32, #tpu.memory_space<vmem>>, vector<1x128xf32>,
    %c11_i32 = arith.constant 11 : i32
    %133 = arith.addi %0, %c11_i32 : i32
    %134 = arith.index_cast %133 : i32 to index
    %135 = memref.load %arg1[%134] : memref<128xi32, #tpu.memory_space<smem>>
    %c11_i32_44 = arith.constant 11 : i32
    %136 = arith.addi %0, %c11_i32_44 : i32
    %137 = arith.index_cast %136 : i32 to index
    %138 = memref.load %arg2[%137] : memref<128xi32, #tpu.memory_space<smem>>
    %139 = arith.index_cast %135 : i32 to index
    %c0_45 = arith.constant 0 : index
    %140 = vector.load %arg3[%139, %c0_45] : memref<512x128xf32, #tpu.memory_space<vmem>>, vector<1x128xf32>
    %141 = arith.index_cast %138 : i32 to index
    %c0_46 = arith.constant 0 : index
    %142 = vector.load %arg4[%141, %c0_46] : memref<64x128xf32, #tpu.memory_space<vmem>>, vector<1x128xf32>
    %143 = arith.addf %140, %142 : vector<1x128xf32>
    %c11 = arith.constant 11 : index
    %c0_47 = arith.constant 0 : index
    %144 = vector.load %arg5[%c11, %c0_47] : memref<128x128xf32, #tpu.memory_space<vmem>>, vector<1x128xf32>
    tpu.vector_store %arg5[%c11, %c0_47], %143 {strides = array<i32>} : memref<128x128xf32, #tpu.memory_space<vmem>>, vector<1x128xf32>,
    %c12_i32 = arith.constant 12 : i32
    %145 = arith.addi %0, %c12_i32 : i32
    %146 = arith.index_cast %145 : i32 to index
    %147 = memref.load %arg1[%146] : memref<128xi32, #tpu.memory_space<smem>>
    %c12_i32_48 = arith.constant 12 : i32
    %148 = arith.addi %0, %c12_i32_48 : i32
    %149 = arith.index_cast %148 : i32 to index
    %150 = memref.load %arg2[%149] : memref<128xi32, #tpu.memory_space<smem>>
    %151 = arith.index_cast %147 : i32 to index
    %c0_49 = arith.constant 0 : index
    %152 = vector.load %arg3[%151, %c0_49] : memref<512x128xf32, #tpu.memory_space<vmem>>, vector<1x128xf32>
    %153 = arith.index_cast %150 : i32 to index
    %c0_50 = arith.constant 0 : index
    %154 = vector.load %arg4[%153, %c0_50] : memref<64x128xf32, #tpu.memory_space<vmem>>, vector<1x128xf32>
    %155 = arith.addf %152, %154 : vector<1x128xf32>
    %c12 = arith.constant 12 : index
    %c0_51 = arith.constant 0 : index
    %156 = vector.load %arg5[%c12, %c0_51] : memref<128x128xf32, #tpu.memory_space<vmem>>, vector<1x128xf32>
    tpu.vector_store %arg5[%c12, %c0_51], %155 {strides = array<i32>} : memref<128x128xf32, #tpu.memory_space<vmem>>, vector<1x128xf32>,
    %c13_i32 = arith.constant 13 : i32
    %157 = arith.addi %0, %c13_i32 : i32
    %158 = arith.index_cast %157 : i32 to index
    %159 = memref.load %arg1[%158] : memref<128xi32, #tpu.memory_space<smem>>
    %c13_i32_52 = arith.constant 13 : i32
    %160 = arith.addi %0, %c13_i32_52 : i32
    %161 = arith.index_cast %160 : i32 to index
    %162 = memref.load %arg2[%161] : memref<128xi32, #tpu.memory_space<smem>>
    %163 = arith.index_cast %159 : i32 to index
    %c0_53 = arith.constant 0 : index
    %164 = vector.load %arg3[%163, %c0_53] : memref<512x128xf32, #tpu.memory_space<vmem>>, vector<1x128xf32>
    %165 = arith.index_cast %162 : i32 to index
    %c0_54 = arith.constant 0 : index
    %166 = vector.load %arg4[%165, %c0_54] : memref<64x128xf32, #tpu.memory_space<vmem>>, vector<1x128xf32>
    %167 = arith.addf %164, %166 : vector<1x128xf32>
    %c13 = arith.constant 13 : index
    %c0_55 = arith.constant 0 : index
    %168 = vector.load %arg5[%c13, %c0_55] : memref<128x128xf32, #tpu.memory_space<vmem>>, vector<1x128xf32>
    tpu.vector_store %arg5[%c13, %c0_55], %167 {strides = array<i32>} : memref<128x128xf32, #tpu.memory_space<vmem>>, vector<1x128xf32>,
    %c14_i32 = arith.constant 14 : i32
    %169 = arith.addi %0, %c14_i32 : i32
    %170 = arith.index_cast %169 : i32 to index
    %171 = memref.load %arg1[%170] : memref<128xi32, #tpu.memory_space<smem>>
    %c14_i32_56 = arith.constant 14 : i32
    %172 = arith.addi %0, %c14_i32_56 : i32
    %173 = arith.index_cast %172 : i32 to index
    %174 = memref.load %arg2[%173] : memref<128xi32, #tpu.memory_space<smem>>
    %175 = arith.index_cast %171 : i32 to index
    %c0_57 = arith.constant 0 : index
    %176 = vector.load %arg3[%175, %c0_57] : memref<512x128xf32, #tpu.memory_space<vmem>>, vector<1x128xf32>
    %177 = arith.index_cast %174 : i32 to index
    %c0_58 = arith.constant 0 : index
    %178 = vector.load %arg4[%177, %c0_58] : memref<64x128xf32, #tpu.memory_space<vmem>>, vector<1x128xf32>
    %179 = arith.addf %176, %178 : vector<1x128xf32>
    %c14 = arith.constant 14 : index
    %c0_59 = arith.constant 0 : index
    %180 = vector.load %arg5[%c14, %c0_59] : memref<128x128xf32, #tpu.memory_space<vmem>>, vector<1x128xf32>
    tpu.vector_store %arg5[%c14, %c0_59], %179 {strides = array<i32>} : memref<128x128xf32, #tpu.memory_space<vmem>>, vector<1x128xf32>,
    %c15_i32 = arith.constant 15 : i32
    %181 = arith.addi %0, %c15_i32 : i32
    %182 = arith.index_cast %181 : i32 to index
    %183 = memref.load %arg1[%182] : memref<128xi32, #tpu.memory_space<smem>>
    %c15_i32_60 = arith.constant 15 : i32
    %184 = arith.addi %0, %c15_i32_60 : i32
    %185 = arith.index_cast %184 : i32 to index
    %186 = memref.load %arg2[%185] : memref<128xi32, #tpu.memory_space<smem>>
    %187 = arith.index_cast %183 : i32 to index
    %c0_61 = arith.constant 0 : index
    %188 = vector.load %arg3[%187, %c0_61] : memref<512x128xf32, #tpu.memory_space<vmem>>, vector<1x128xf32>
    %189 = arith.index_cast %186 : i32 to index
    %c0_62 = arith.constant 0 : index
    %190 = vector.load %arg4[%189, %c0_62] : memref<64x128xf32, #tpu.memory_space<vmem>>, vector<1x128xf32>
    %191 = arith.addf %188, %190 : vector<1x128xf32>
    %c15 = arith.constant 15 : index
    %c0_63 = arith.constant 0 : index
    %192 = vector.load %arg5[%c15, %c0_63] : memref<128x128xf32, #tpu.memory_space<vmem>>, vector<1x128xf32>
    tpu.vector_store %arg5[%c15, %c0_63], %191 {strides = array<i32>} : memref<128x128xf32, #tpu.memory_space<vmem>>, vector<1x128xf32>,
    %c16_i32 = arith.constant 16 : i32
    %193 = arith.addi %0, %c16_i32 : i32
    %194 = arith.index_cast %193 : i32 to index
    %195 = memref.load %arg1[%194] : memref<128xi32, #tpu.memory_space<smem>>
    %c16_i32_64 = arith.constant 16 : i32
    %196 = arith.addi %0, %c16_i32_64 : i32
    %197 = arith.index_cast %196 : i32 to index
    %198 = memref.load %arg2[%197] : memref<128xi32, #tpu.memory_space<smem>>
    %199 = arith.index_cast %195 : i32 to index
    %c0_65 = arith.constant 0 : index
    %200 = vector.load %arg3[%199, %c0_65] : memref<512x128xf32, #tpu.memory_space<vmem>>, vector<1x128xf32>
    %201 = arith.index_cast %198 : i32 to index
    %c0_66 = arith.constant 0 : index
    %202 = vector.load %arg4[%201, %c0_66] : memref<64x128xf32, #tpu.memory_space<vmem>>, vector<1x128xf32>
    %203 = arith.addf %200, %202 : vector<1x128xf32>
    %c16 = arith.constant 16 : index
    %c0_67 = arith.constant 0 : index
    %204 = vector.load %arg5[%c16, %c0_67] : memref<128x128xf32, #tpu.memory_space<vmem>>, vector<1x128xf32>
    tpu.vector_store %arg5[%c16, %c0_67], %203 {strides = array<i32>} : memref<128x128xf32, #tpu.memory_space<vmem>>, vector<1x128xf32>,
    %c17_i32 = arith.constant 17 : i32
    %205 = arith.addi %0, %c17_i32 : i32
    %206 = arith.index_cast %205 : i32 to index
    %207 = memref.load %arg1[%206] : memref<128xi32, #tpu.memory_space<smem>>
    %c17_i32_68 = arith.constant 17 : i32
    %208 = arith.addi %0, %c17_i32_68 : i32
    %209 = arith.index_cast %208 : i32 to index
    %210 = memref.load %arg2[%209] : memref<128xi32, #tpu.memory_space<smem>>
    %211 = arith.index_cast %207 : i32 to index
    %c0_69 = arith.constant 0 : index
    %212 = vector.load %arg3[%211, %c0_69] : memref<512x128xf32, #tpu.memory_space<vmem>>, vector<1x128xf32>
    %213 = arith.index_cast %210 : i32 to index
    %c0_70 = arith.constant 0 : index
    %214 = vector.load %arg4[%213, %c0_70] : memref<64x128xf32, #tpu.memory_space<vmem>>, vector<1x128xf32>
    %215 = arith.addf %212, %214 : vector<1x128xf32>
    %c17 = arith.constant 17 : index
    %c0_71 = arith.constant 0 : index
    %216 = vector.load %arg5[%c17, %c0_71] : memref<128x128xf32, #tpu.memory_space<vmem>>, vector<1x128xf32>
    tpu.vector_store %arg5[%c17, %c0_71], %215 {strides = array<i32>} : memref<128x128xf32, #tpu.memory_space<vmem>>, vector<1x128xf32>,
    %c18_i32 = arith.constant 18 : i32
    %217 = arith.addi %0, %c18_i32 : i32
    %218 = arith.index_cast %217 : i32 to index
    %219 = memref.load %arg1[%218] : memref<128xi32, #tpu.memory_space<smem>>
    %c18_i32_72 = arith.constant 18 : i32
    %220 = arith.addi %0, %c18_i32_72 : i32
    %221 = arith.index_cast %220 : i32 to index
    %222 = memref.load %arg2[%221] : memref<128xi32, #tpu.memory_space<smem>>
    %223 = arith.index_cast %219 : i32 to index
    %c0_73 = arith.constant 0 : index
    %224 = vector.load %arg3[%223, %c0_73] : memref<512x128xf32, #tpu.memory_space<vmem>>, vector<1x128xf32>
    %225 = arith.index_cast %222 : i32 to index
    %c0_74 = arith.constant 0 : index
    %226 = vector.load %arg4[%225, %c0_74] : memref<64x128xf32, #tpu.memory_space<vmem>>, vector<1x128xf32>
    %227 = arith.addf %224, %226 : vector<1x128xf32>
    %c18 = arith.constant 18 : index
    %c0_75 = arith.constant 0 : index
    %228 = vector.load %arg5[%c18, %c0_75] : memref<128x128xf32, #tpu.memory_space<vmem>>, vector<1x128xf32>
    tpu.vector_store %arg5[%c18, %c0_75], %227 {strides = array<i32>} : memref<128x128xf32, #tpu.memory_space<vmem>>, vector<1x128xf32>,
    %c19_i32 = arith.constant 19 : i32
    %229 = arith.addi %0, %c19_i32 : i32
    %230 = arith.index_cast %229 : i32 to index
    %231 = memref.load %arg1[%230] : memref<128xi32, #tpu.memory_space<smem>>
    %c19_i32_76 = arith.constant 19 : i32
    %232 = arith.addi %0, %c19_i32_76 : i32
    %233 = arith.index_cast %232 : i32 to index
    %234 = memref.load %arg2[%233] : memref<128xi32, #tpu.memory_space<smem>>
    %235 = arith.index_cast %231 : i32 to index
    %c0_77 = arith.constant 0 : index
    %236 = vector.load %arg3[%235, %c0_77] : memref<512x128xf32, #tpu.memory_space<vmem>>, vector<1x128xf32>
    %237 = arith.index_cast %234 : i32 to index
    %c0_78 = arith.constant 0 : index
    %238 = vector.load %arg4[%237, %c0_78] : memref<64x128xf32, #tpu.memory_space<vmem>>, vector<1x128xf32>
    %239 = arith.addf %236, %238 : vector<1x128xf32>
    %c19 = arith.constant 19 : index
    %c0_79 = arith.constant 0 : index
    %240 = vector.load %arg5[%c19, %c0_79] : memref<128x128xf32, #tpu.memory_space<vmem>>, vector<1x128xf32>
    tpu.vector_store %arg5[%c19, %c0_79], %239 {strides = array<i32>} : memref<128x128xf32, #tpu.memory_space<vmem>>, vector<1x128xf32>,
    %c20_i32 = arith.constant 20 : i32
    %241 = arith.addi %0, %c20_i32 : i32
    %242 = arith.index_cast %241 : i32 to index
    %243 = memref.load %arg1[%242] : memref<128xi32, #tpu.memory_space<smem>>
    %c20_i32_80 = arith.constant 20 : i32
    %244 = arith.addi %0, %c20_i32_80 : i32
    %245 = arith.index_cast %244 : i32 to index
    %246 = memref.load %arg2[%245] : memref<128xi32, #tpu.memory_space<smem>>
    %247 = arith.index_cast %243 : i32 to index
    %c0_81 = arith.constant 0 : index
    %248 = vector.load %arg3[%247, %c0_81] : memref<512x128xf32, #tpu.memory_space<vmem>>, vector<1x128xf32>
    %249 = arith.index_cast %246 : i32 to index
    %c0_82 = arith.constant 0 : index
    %250 = vector.load %arg4[%249, %c0_82] : memref<64x128xf32, #tpu.memory_space<vmem>>, vector<1x128xf32>
    %251 = arith.addf %248, %250 : vector<1x128xf32>
    %c20 = arith.constant 20 : index
    %c0_83 = arith.constant 0 : index
    %252 = vector.load %arg5[%c20, %c0_83] : memref<128x128xf32, #tpu.memory_space<vmem>>, vector<1x128xf32>
    tpu.vector_store %arg5[%c20, %c0_83], %251 {strides = array<i32>} : memref<128x128xf32, #tpu.memory_space<vmem>>, vector<1x128xf32>,
    %c21_i32 = arith.constant 21 : i32
    %253 = arith.addi %0, %c21_i32 : i32
    %254 = arith.index_cast %253 : i32 to index
    %255 = memref.load %arg1[%254] : memref<128xi32, #tpu.memory_space<smem>>
    %c21_i32_84 = arith.constant 21 : i32
    %256 = arith.addi %0, %c21_i32_84 : i32
    %257 = arith.index_cast %256 : i32 to index
    %258 = memref.load %arg2[%257] : memref<128xi32, #tpu.memory_space<smem>>
    %259 = arith.index_cast %255 : i32 to index
    %c0_85 = arith.constant 0 : index
    %260 = vector.load %arg3[%259, %c0_85] : memref<512x128xf32, #tpu.memory_space<vmem>>, vector<1x128xf32>
    %261 = arith.index_cast %258 : i32 to index
    %c0_86 = arith.constant 0 : index
    %262 = vector.load %arg4[%261, %c0_86] : memref<64x128xf32, #tpu.memory_space<vmem>>, vector<1x128xf32>
    %263 = arith.addf %260, %262 : vector<1x128xf32>
    %c21 = arith.constant 21 : index
    %c0_87 = arith.constant 0 : index
    %264 = vector.load %arg5[%c21, %c0_87] : memref<128x128xf32, #tpu.memory_space<vmem>>, vector<1x128xf32>
    tpu.vector_store %arg5[%c21, %c0_87], %263 {strides = array<i32>} : memref<128x128xf32, #tpu.memory_space<vmem>>, vector<1x128xf32>,
    %c22_i32 = arith.constant 22 : i32
    %265 = arith.addi %0, %c22_i32 : i32
    %266 = arith.index_cast %265 : i32 to index
    %267 = memref.load %arg1[%266] : memref<128xi32, #tpu.memory_space<smem>>
    %c22_i32_88 = arith.constant 22 : i32
    %268 = arith.addi %0, %c22_i32_88 : i32
    %269 = arith.index_cast %268 : i32 to index
    %270 = memref.load %arg2[%269] : memref<128xi32, #tpu.memory_space<smem>>
    %271 = arith.index_cast %267 : i32 to index
    %c0_89 = arith.constant 0 : index
    %272 = vector.load %arg3[%271, %c0_89] : memref<512x128xf32, #tpu.memory_space<vmem>>, vector<1x128xf32>
    %273 = arith.index_cast %270 : i32 to index
    %c0_90 = arith.constant 0 : index
    %274 = vector.load %arg4[%273, %c0_90] : memref<64x128xf32, #tpu.memory_space<vmem>>, vector<1x128xf32>
    %275 = arith.addf %272, %274 : vector<1x128xf32>
    %c22 = arith.constant 22 : index
    %c0_91 = arith.constant 0 : index
    %276 = vector.load %arg5[%c22, %c0_91] : memref<128x128xf32, #tpu.memory_space<vmem>>, vector<1x128xf32>
    tpu.vector_store %arg5[%c22, %c0_91], %275 {strides = array<i32>} : memref<128x128xf32, #tpu.memory_space<vmem>>, vector<1x128xf32>,
    %c23_i32 = arith.constant 23 : i32
    %277 = arith.addi %0, %c23_i32 : i32
    %278 = arith.index_cast %277 : i32 to index
    %279 = memref.load %arg1[%278] : memref<128xi32, #tpu.memory_space<smem>>
    %c23_i32_92 = arith.constant 23 : i32
    %280 = arith.addi %0, %c23_i32_92 : i32
    %281 = arith.index_cast %280 : i32 to index
    %282 = memref.load %arg2[%281] : memref<128xi32, #tpu.memory_space<smem>>
    %283 = arith.index_cast %279 : i32 to index
    %c0_93 = arith.constant 0 : index
    %284 = vector.load %arg3[%283, %c0_93] : memref<512x128xf32, #tpu.memory_space<vmem>>, vector<1x128xf32>
    %285 = arith.index_cast %282 : i32 to index
    %c0_94 = arith.constant 0 : index
    %286 = vector.load %arg4[%285, %c0_94] : memref<64x128xf32, #tpu.memory_space<vmem>>, vector<1x128xf32>
    %287 = arith.addf %284, %286 : vector<1x128xf32>
    %c23 = arith.constant 23 : index
    %c0_95 = arith.constant 0 : index
    %288 = vector.load %arg5[%c23, %c0_95] : memref<128x128xf32, #tpu.memory_space<vmem>>, vector<1x128xf32>
    tpu.vector_store %arg5[%c23, %c0_95], %287 {strides = array<i32>} : memref<128x128xf32, #tpu.memory_space<vmem>>, vector<1x128xf32>,
    %c24_i32 = arith.constant 24 : i32
    %289 = arith.addi %0, %c24_i32 : i32
    %290 = arith.index_cast %289 : i32 to index
    %291 = memref.load %arg1[%290] : memref<128xi32, #tpu.memory_space<smem>>
    %c24_i32_96 = arith.constant 24 : i32
    %292 = arith.addi %0, %c24_i32_96 : i32
    %293 = arith.index_cast %292 : i32 to index
    %294 = memref.load %arg2[%293] : memref<128xi32, #tpu.memory_space<smem>>
    %295 = arith.index_cast %291 : i32 to index
    %c0_97 = arith.constant 0 : index
    %296 = vector.load %arg3[%295, %c0_97] : memref<512x128xf32, #tpu.memory_space<vmem>>, vector<1x128xf32>
    %297 = arith.index_cast %294 : i32 to index
    %c0_98 = arith.constant 0 : index
    %298 = vector.load %arg4[%297, %c0_98] : memref<64x128xf32, #tpu.memory_space<vmem>>, vector<1x128xf32>
    %299 = arith.addf %296, %298 : vector<1x128xf32>
    %c24 = arith.constant 24 : index
    %c0_99 = arith.constant 0 : index
    %300 = vector.load %arg5[%c24, %c0_99] : memref<128x128xf32, #tpu.memory_space<vmem>>, vector<1x128xf32>
    tpu.vector_store %arg5[%c24, %c0_99], %299 {strides = array<i32>} : memref<128x128xf32, #tpu.memory_space<vmem>>, vector<1x128xf32>,
    %c25_i32 = arith.constant 25 : i32
    %301 = arith.addi %0, %c25_i32 : i32
    %302 = arith.index_cast %301 : i32 to index
    %303 = memref.load %arg1[%302] : memref<128xi32, #tpu.memory_space<smem>>
    %c25_i32_100 = arith.constant 25 : i32
    %304 = arith.addi %0, %c25_i32_100 : i32
    %305 = arith.index_cast %304 : i32 to index
    %306 = memref.load %arg2[%305] : memref<128xi32, #tpu.memory_space<smem>>
    %307 = arith.index_cast %303 : i32 to index
    %c0_101 = arith.constant 0 : index
    %308 = vector.load %arg3[%307, %c0_101] : memref<512x128xf32, #tpu.memory_space<vmem>>, vector<1x128xf32>
    %309 = arith.index_cast %306 : i32 to index
    %c0_102 = arith.constant 0 : index
    %310 = vector.load %arg4[%309, %c0_102] : memref<64x128xf32, #tpu.memory_space<vmem>>, vector<1x128xf32>
    %311 = arith.addf %308, %310 : vector<1x128xf32>
    %c25 = arith.constant 25 : index
    %c0_103 = arith.constant 0 : index
    %312 = vector.load %arg5[%c25, %c0_103] : memref<128x128xf32, #tpu.memory_space<vmem>>, vector<1x128xf32>
    tpu.vector_store %arg5[%c25, %c0_103], %311 {strides = array<i32>} : memref<128x128xf32, #tpu.memory_space<vmem>>, vector<1x128xf32>,
    %c26_i32 = arith.constant 26 : i32
    %313 = arith.addi %0, %c26_i32 : i32
    %314 = arith.index_cast %313 : i32 to index
    %315 = memref.load %arg1[%314] : memref<128xi32, #tpu.memory_space<smem>>
    %c26_i32_104 = arith.constant 26 : i32
    %316 = arith.addi %0, %c26_i32_104 : i32
    %317 = arith.index_cast %316 : i32 to index
    %318 = memref.load %arg2[%317] : memref<128xi32, #tpu.memory_space<smem>>
    %319 = arith.index_cast %315 : i32 to index
    %c0_105 = arith.constant 0 : index
    %320 = vector.load %arg3[%319, %c0_105] : memref<512x128xf32, #tpu.memory_space<vmem>>, vector<1x128xf32>
    %321 = arith.index_cast %318 : i32 to index
    %c0_106 = arith.constant 0 : index
    %322 = vector.load %arg4[%321, %c0_106] : memref<64x128xf32, #tpu.memory_space<vmem>>, vector<1x128xf32>
    %323 = arith.addf %320, %322 : vector<1x128xf32>
    %c26 = arith.constant 26 : index
    %c0_107 = arith.constant 0 : index
    %324 = vector.load %arg5[%c26, %c0_107] : memref<128x128xf32, #tpu.memory_space<vmem>>, vector<1x128xf32>
    tpu.vector_store %arg5[%c26, %c0_107], %323 {strides = array<i32>} : memref<128x128xf32, #tpu.memory_space<vmem>>, vector<1x128xf32>,
    %c27_i32 = arith.constant 27 : i32
    %325 = arith.addi %0, %c27_i32 : i32
    %326 = arith.index_cast %325 : i32 to index
    %327 = memref.load %arg1[%326] : memref<128xi32, #tpu.memory_space<smem>>
    %c27_i32_108 = arith.constant 27 : i32
    %328 = arith.addi %0, %c27_i32_108 : i32
    %329 = arith.index_cast %328 : i32 to index
    %330 = memref.load %arg2[%329] : memref<128xi32, #tpu.memory_space<smem>>
    %331 = arith.index_cast %327 : i32 to index
    %c0_109 = arith.constant 0 : index
    %332 = vector.load %arg3[%331, %c0_109] : memref<512x128xf32, #tpu.memory_space<vmem>>, vector<1x128xf32>
    %333 = arith.index_cast %330 : i32 to index
    %c0_110 = arith.constant 0 : index
    %334 = vector.load %arg4[%333, %c0_110] : memref<64x128xf32, #tpu.memory_space<vmem>>, vector<1x128xf32>
    %335 = arith.addf %332, %334 : vector<1x128xf32>
    %c27 = arith.constant 27 : index
    %c0_111 = arith.constant 0 : index
    %336 = vector.load %arg5[%c27, %c0_111] : memref<128x128xf32, #tpu.memory_space<vmem>>, vector<1x128xf32>
    tpu.vector_store %arg5[%c27, %c0_111], %335 {strides = array<i32>} : memref<128x128xf32, #tpu.memory_space<vmem>>, vector<1x128xf32>,
    %c28_i32 = arith.constant 28 : i32
    %337 = arith.addi %0, %c28_i32 : i32
    %338 = arith.index_cast %337 : i32 to index
    %339 = memref.load %arg1[%338] : memref<128xi32, #tpu.memory_space<smem>>
    %c28_i32_112 = arith.constant 28 : i32
    %340 = arith.addi %0, %c28_i32_112 : i32
    %341 = arith.index_cast %340 : i32 to index
    %342 = memref.load %arg2[%341] : memref<128xi32, #tpu.memory_space<smem>>
    %343 = arith.index_cast %339 : i32 to index
    %c0_113 = arith.constant 0 : index
    %344 = vector.load %arg3[%343, %c0_113] : memref<512x128xf32, #tpu.memory_space<vmem>>, vector<1x128xf32>
    %345 = arith.index_cast %342 : i32 to index
    %c0_114 = arith.constant 0 : index
    %346 = vector.load %arg4[%345, %c0_114] : memref<64x128xf32, #tpu.memory_space<vmem>>, vector<1x128xf32>
    %347 = arith.addf %344, %346 : vector<1x128xf32>
    %c28 = arith.constant 28 : index
    %c0_115 = arith.constant 0 : index
    %348 = vector.load %arg5[%c28, %c0_115] : memref<128x128xf32, #tpu.memory_space<vmem>>, vector<1x128xf32>
    tpu.vector_store %arg5[%c28, %c0_115], %347 {strides = array<i32>} : memref<128x128xf32, #tpu.memory_space<vmem>>, vector<1x128xf32>,
    %c29_i32 = arith.constant 29 : i32
    %349 = arith.addi %0, %c29_i32 : i32
    %350 = arith.index_cast %349 : i32 to index
    %351 = memref.load %arg1[%350] : memref<128xi32, #tpu.memory_space<smem>>
    %c29_i32_116 = arith.constant 29 : i32
    %352 = arith.addi %0, %c29_i32_116 : i32
    %353 = arith.index_cast %352 : i32 to index
    %354 = memref.load %arg2[%353] : memref<128xi32, #tpu.memory_space<smem>>
    %355 = arith.index_cast %351 : i32 to index
    %c0_117 = arith.constant 0 : index
    %356 = vector.load %arg3[%355, %c0_117] : memref<512x128xf32, #tpu.memory_space<vmem>>, vector<1x128xf32>
    %357 = arith.index_cast %354 : i32 to index
    %c0_118 = arith.constant 0 : index
    %358 = vector.load %arg4[%357, %c0_118] : memref<64x128xf32, #tpu.memory_space<vmem>>, vector<1x128xf32>
    %359 = arith.addf %356, %358 : vector<1x128xf32>
    %c29 = arith.constant 29 : index
    %c0_119 = arith.constant 0 : index
    %360 = vector.load %arg5[%c29, %c0_119] : memref<128x128xf32, #tpu.memory_space<vmem>>, vector<1x128xf32>
    tpu.vector_store %arg5[%c29, %c0_119], %359 {strides = array<i32>} : memref<128x128xf32, #tpu.memory_space<vmem>>, vector<1x128xf32>,
    %c30_i32 = arith.constant 30 : i32
    %361 = arith.addi %0, %c30_i32 : i32
    %362 = arith.index_cast %361 : i32 to index
    %363 = memref.load %arg1[%362] : memref<128xi32, #tpu.memory_space<smem>>
    %c30_i32_120 = arith.constant 30 : i32
    %364 = arith.addi %0, %c30_i32_120 : i32
    %365 = arith.index_cast %364 : i32 to index
    %366 = memref.load %arg2[%365] : memref<128xi32, #tpu.memory_space<smem>>
    %367 = arith.index_cast %363 : i32 to index
    %c0_121 = arith.constant 0 : index
    %368 = vector.load %arg3[%367, %c0_121] : memref<512x128xf32, #tpu.memory_space<vmem>>, vector<1x128xf32>
    %369 = arith.index_cast %366 : i32 to index
    %c0_122 = arith.constant 0 : index
    %370 = vector.load %arg4[%369, %c0_122] : memref<64x128xf32, #tpu.memory_space<vmem>>, vector<1x128xf32>
    %371 = arith.addf %368, %370 : vector<1x128xf32>
    %c30 = arith.constant 30 : index
    %c0_123 = arith.constant 0 : index
    %372 = vector.load %arg5[%c30, %c0_123] : memref<128x128xf32, #tpu.memory_space<vmem>>, vector<1x128xf32>
    tpu.vector_store %arg5[%c30, %c0_123], %371 {strides = array<i32>} : memref<128x128xf32, #tpu.memory_space<vmem>>, vector<1x128xf32>,
    %c31_i32 = arith.constant 31 : i32
    %373 = arith.addi %0, %c31_i32 : i32
    %374 = arith.index_cast %373 : i32 to index
    %375 = memref.load %arg1[%374] : memref<128xi32, #tpu.memory_space<smem>>
    %c31_i32_124 = arith.constant 31 : i32
    %376 = arith.addi %0, %c31_i32_124 : i32
    %377 = arith.index_cast %376 : i32 to index
    %378 = memref.load %arg2[%377] : memref<128xi32, #tpu.memory_space<smem>>
    %379 = arith.index_cast %375 : i32 to index
    %c0_125 = arith.constant 0 : index
    %380 = vector.load %arg3[%379, %c0_125] : memref<512x128xf32, #tpu.memory_space<vmem>>, vector<1x128xf32>
    %381 = arith.index_cast %378 : i32 to index
    %c0_126 = arith.constant 0 : index
    %382 = vector.load %arg4[%381, %c0_126] : memref<64x128xf32, #tpu.memory_space<vmem>>, vector<1x128xf32>
    %383 = arith.addf %380, %382 : vector<1x128xf32>
    %c31 = arith.constant 31 : index
    %c0_127 = arith.constant 0 : index
    %384 = vector.load %arg5[%c31, %c0_127] : memref<128x128xf32, #tpu.memory_space<vmem>>, vector<1x128xf32>
    tpu.vector_store %arg5[%c31, %c0_127], %383 {strides = array<i32>} : memref<128x128xf32, #tpu.memory_space<vmem>>, vector<1x128xf32>,
    %c32_i32 = arith.constant 32 : i32
    %385 = arith.addi %0, %c32_i32 : i32
    %386 = arith.index_cast %385 : i32 to index
    %387 = memref.load %arg1[%386] : memref<128xi32, #tpu.memory_space<smem>>
    %c32_i32_128 = arith.constant 32 : i32
    %388 = arith.addi %0, %c32_i32_128 : i32
    %389 = arith.index_cast %388 : i32 to index
    %390 = memref.load %arg2[%389] : memref<128xi32, #tpu.memory_space<smem>>
    %391 = arith.index_cast %387 : i32 to index
    %c0_129 = arith.constant 0 : index
    %392 = vector.load %arg3[%391, %c0_129] : memref<512x128xf32, #tpu.memory_space<vmem>>, vector<1x128xf32>
    %393 = arith.index_cast %390 : i32 to index
    %c0_130 = arith.constant 0 : index
    %394 = vector.load %arg4[%393, %c0_130] : memref<64x128xf32, #tpu.memory_space<vmem>>, vector<1x128xf32>
    %395 = arith.addf %392, %394 : vector<1x128xf32>
    %c32 = arith.constant 32 : index
    %c0_131 = arith.constant 0 : index
    %396 = vector.load %arg5[%c32, %c0_131] : memref<128x128xf32, #tpu.memory_space<vmem>>, vector<1x128xf32>
    tpu.vector_store %arg5[%c32, %c0_131], %395 {strides = array<i32>} : memref<128x128xf32, #tpu.memory_space<vmem>>, vector<1x128xf32>,
    %c33_i32 = arith.constant 33 : i32
    %397 = arith.addi %0, %c33_i32 : i32
    %398 = arith.index_cast %397 : i32 to index
    %399 = memref.load %arg1[%398] : memref<128xi32, #tpu.memory_space<smem>>
    %c33_i32_132 = arith.constant 33 : i32
    %400 = arith.addi %0, %c33_i32_132 : i32
    %401 = arith.index_cast %400 : i32 to index
    %402 = memref.load %arg2[%401] : memref<128xi32, #tpu.memory_space<smem>>
    %403 = arith.index_cast %399 : i32 to index
    %c0_133 = arith.constant 0 : index
    %404 = vector.load %arg3[%403, %c0_133] : memref<512x128xf32, #tpu.memory_space<vmem>>, vector<1x128xf32>
    %405 = arith.index_cast %402 : i32 to index
    %c0_134 = arith.constant 0 : index
    %406 = vector.load %arg4[%405, %c0_134] : memref<64x128xf32, #tpu.memory_space<vmem>>, vector<1x128xf32>
    %407 = arith.addf %404, %406 : vector<1x128xf32>
    %c33 = arith.constant 33 : index
    %c0_135 = arith.constant 0 : index
    %408 = vector.load %arg5[%c33, %c0_135] : memref<128x128xf32, #tpu.memory_space<vmem>>, vector<1x128xf32>
    tpu.vector_store %arg5[%c33, %c0_135], %407 {strides = array<i32>} : memref<128x128xf32, #tpu.memory_space<vmem>>, vector<1x128xf32>,
    %c34_i32 = arith.constant 34 : i32
    %409 = arith.addi %0, %c34_i32 : i32
    %410 = arith.index_cast %409 : i32 to index
    %411 = memref.load %arg1[%410] : memref<128xi32, #tpu.memory_space<smem>>
    %c34_i32_136 = arith.constant 34 : i32
    %412 = arith.addi %0, %c34_i32_136 : i32
    %413 = arith.index_cast %412 : i32 to index
    %414 = memref.load %arg2[%413] : memref<128xi32, #tpu.memory_space<smem>>
    %415 = arith.index_cast %411 : i32 to index
    %c0_137 = arith.constant 0 : index
    %416 = vector.load %arg3[%415, %c0_137] : memref<512x128xf32, #tpu.memory_space<vmem>>, vector<1x128xf32>
    %417 = arith.index_cast %414 : i32 to index
    %c0_138 = arith.constant 0 : index
    %418 = vector.load %arg4[%417, %c0_138] : memref<64x128xf32, #tpu.memory_space<vmem>>, vector<1x128xf32>
    %419 = arith.addf %416, %418 : vector<1x128xf32>
    %c34 = arith.constant 34 : index
    %c0_139 = arith.constant 0 : index
    %420 = vector.load %arg5[%c34, %c0_139] : memref<128x128xf32, #tpu.memory_space<vmem>>, vector<1x128xf32>
    tpu.vector_store %arg5[%c34, %c0_139], %419 {strides = array<i32>} : memref<128x128xf32, #tpu.memory_space<vmem>>, vector<1x128xf32>,
    %c35_i32 = arith.constant 35 : i32
    %421 = arith.addi %0, %c35_i32 : i32
    %422 = arith.index_cast %421 : i32 to index
    %423 = memref.load %arg1[%422] : memref<128xi32, #tpu.memory_space<smem>>
    %c35_i32_140 = arith.constant 35 : i32
    %424 = arith.addi %0, %c35_i32_140 : i32
    %425 = arith.index_cast %424 : i32 to index
    %426 = memref.load %arg2[%425] : memref<128xi32, #tpu.memory_space<smem>>
    %427 = arith.index_cast %423 : i32 to index
    %c0_141 = arith.constant 0 : index
    %428 = vector.load %arg3[%427, %c0_141] : memref<512x128xf32, #tpu.memory_space<vmem>>, vector<1x128xf32>
    %429 = arith.index_cast %426 : i32 to index
    %c0_142 = arith.constant 0 : index
    %430 = vector.load %arg4[%429, %c0_142] : memref<64x128xf32, #tpu.memory_space<vmem>>, vector<1x128xf32>
    %431 = arith.addf %428, %430 : vector<1x128xf32>
    %c35 = arith.constant 35 : index
    %c0_143 = arith.constant 0 : index
    %432 = vector.load %arg5[%c35, %c0_143] : memref<128x128xf32, #tpu.memory_space<vmem>>, vector<1x128xf32>
    tpu.vector_store %arg5[%c35, %c0_143], %431 {strides = array<i32>} : memref<128x128xf32, #tpu.memory_space<vmem>>, vector<1x128xf32>,
    %c36_i32 = arith.constant 36 : i32
    %433 = arith.addi %0, %c36_i32 : i32
    %434 = arith.index_cast %433 : i32 to index
    %435 = memref.load %arg1[%434] : memref<128xi32, #tpu.memory_space<smem>>
    %c36_i32_144 = arith.constant 36 : i32
    %436 = arith.addi %0, %c36_i32_144 : i32
    %437 = arith.index_cast %436 : i32 to index
    %438 = memref.load %arg2[%437] : memref<128xi32, #tpu.memory_space<smem>>
    %439 = arith.index_cast %435 : i32 to index
    %c0_145 = arith.constant 0 : index
    %440 = vector.load %arg3[%439, %c0_145] : memref<512x128xf32, #tpu.memory_space<vmem>>, vector<1x128xf32>
    %441 = arith.index_cast %438 : i32 to index
    %c0_146 = arith.constant 0 : index
    %442 = vector.load %arg4[%441, %c0_146] : memref<64x128xf32, #tpu.memory_space<vmem>>, vector<1x128xf32>
    %443 = arith.addf %440, %442 : vector<1x128xf32>
    %c36 = arith.constant 36 : index
    %c0_147 = arith.constant 0 : index
    %444 = vector.load %arg5[%c36, %c0_147] : memref<128x128xf32, #tpu.memory_space<vmem>>, vector<1x128xf32>
    tpu.vector_store %arg5[%c36, %c0_147], %443 {strides = array<i32>} : memref<128x128xf32, #tpu.memory_space<vmem>>, vector<1x128xf32>,
    %c37_i32 = arith.constant 37 : i32
    %445 = arith.addi %0, %c37_i32 : i32
    %446 = arith.index_cast %445 : i32 to index
    %447 = memref.load %arg1[%446] : memref<128xi32, #tpu.memory_space<smem>>
    %c37_i32_148 = arith.constant 37 : i32
    %448 = arith.addi %0, %c37_i32_148 : i32
    %449 = arith.index_cast %448 : i32 to index
    %450 = memref.load %arg2[%449] : memref<128xi32, #tpu.memory_space<smem>>
    %451 = arith.index_cast %447 : i32 to index
    %c0_149 = arith.constant 0 : index
    %452 = vector.load %arg3[%451, %c0_149] : memref<512x128xf32, #tpu.memory_space<vmem>>, vector<1x128xf32>
    %453 = arith.index_cast %450 : i32 to index
    %c0_150 = arith.constant 0 : index
    %454 = vector.load %arg4[%453, %c0_150] : memref<64x128xf32, #tpu.memory_space<vmem>>, vector<1x128xf32>
    %455 = arith.addf %452, %454 : vector<1x128xf32>
    %c37 = arith.constant 37 : index
    %c0_151 = arith.constant 0 : index
    %456 = vector.load %arg5[%c37, %c0_151] : memref<128x128xf32, #tpu.memory_space<vmem>>, vector<1x128xf32>
    tpu.vector_store %arg5[%c37, %c0_151], %455 {strides = array<i32>} : memref<128x128xf32, #tpu.memory_space<vmem>>, vector<1x128xf32>,
    %c38_i32 = arith.constant 38 : i32
    %457 = arith.addi %0, %c38_i32 : i32
    %458 = arith.index_cast %457 : i32 to index
    %459 = memref.load %arg1[%458] : memref<128xi32, #tpu.memory_space<smem>>
    %c38_i32_152 = arith.constant 38 : i32
    %460 = arith.addi %0, %c38_i32_152 : i32
    %461 = arith.index_cast %460 : i32 to index
    %462 = memref.load %arg2[%461] : memref<128xi32, #tpu.memory_space<smem>>
    %463 = arith.index_cast %459 : i32 to index
    %c0_153 = arith.constant 0 : index
    %464 = vector.load %arg3[%463, %c0_153] : memref<512x128xf32, #tpu.memory_space<vmem>>, vector<1x128xf32>
    %465 = arith.index_cast %462 : i32 to index
    %c0_154 = arith.constant 0 : index
    %466 = vector.load %arg4[%465, %c0_154] : memref<64x128xf32, #tpu.memory_space<vmem>>, vector<1x128xf32>
    %467 = arith.addf %464, %466 : vector<1x128xf32>
    %c38 = arith.constant 38 : index
    %c0_155 = arith.constant 0 : index
    %468 = vector.load %arg5[%c38, %c0_155] : memref<128x128xf32, #tpu.memory_space<vmem>>, vector<1x128xf32>
    tpu.vector_store %arg5[%c38, %c0_155], %467 {strides = array<i32>} : memref<128x128xf32, #tpu.memory_space<vmem>>, vector<1x128xf32>,
    %c39_i32 = arith.constant 39 : i32
    %469 = arith.addi %0, %c39_i32 : i32
    %470 = arith.index_cast %469 : i32 to index
    %471 = memref.load %arg1[%470] : memref<128xi32, #tpu.memory_space<smem>>
    %c39_i32_156 = arith.constant 39 : i32
    %472 = arith.addi %0, %c39_i32_156 : i32
    %473 = arith.index_cast %472 : i32 to index
    %474 = memref.load %arg2[%473] : memref<128xi32, #tpu.memory_space<smem>>
    %475 = arith.index_cast %471 : i32 to index
    %c0_157 = arith.constant 0 : index
    %476 = vector.load %arg3[%475, %c0_157] : memref<512x128xf32, #tpu.memory_space<vmem>>, vector<1x128xf32>
    %477 = arith.index_cast %474 : i32 to index
    %c0_158 = arith.constant 0 : index
    %478 = vector.load %arg4[%477, %c0_158] : memref<64x128xf32, #tpu.memory_space<vmem>>, vector<1x128xf32>
    %479 = arith.addf %476, %478 : vector<1x128xf32>
    %c39 = arith.constant 39 : index
    %c0_159 = arith.constant 0 : index
    %480 = vector.load %arg5[%c39, %c0_159] : memref<128x128xf32, #tpu.memory_space<vmem>>, vector<1x128xf32>
    tpu.vector_store %arg5[%c39, %c0_159], %479 {strides = array<i32>} : memref<128x128xf32, #tpu.memory_space<vmem>>, vector<1x128xf32>,
    %c40_i32 = arith.constant 40 : i32
    %481 = arith.addi %0, %c40_i32 : i32
    %482 = arith.index_cast %481 : i32 to index
    %483 = memref.load %arg1[%482] : memref<128xi32, #tpu.memory_space<smem>>
    %c40_i32_160 = arith.constant 40 : i32
    %484 = arith.addi %0, %c40_i32_160 : i32
    %485 = arith.index_cast %484 : i32 to index
    %486 = memref.load %arg2[%485] : memref<128xi32, #tpu.memory_space<smem>>
    %487 = arith.index_cast %483 : i32 to index
    %c0_161 = arith.constant 0 : index
    %488 = vector.load %arg3[%487, %c0_161] : memref<512x128xf32, #tpu.memory_space<vmem>>, vector<1x128xf32>
    %489 = arith.index_cast %486 : i32 to index
    %c0_162 = arith.constant 0 : index
    %490 = vector.load %arg4[%489, %c0_162] : memref<64x128xf32, #tpu.memory_space<vmem>>, vector<1x128xf32>
    %491 = arith.addf %488, %490 : vector<1x128xf32>
    %c40 = arith.constant 40 : index
    %c0_163 = arith.constant 0 : index
    %492 = vector.load %arg5[%c40, %c0_163] : memref<128x128xf32, #tpu.memory_space<vmem>>, vector<1x128xf32>
    tpu.vector_store %arg5[%c40, %c0_163], %491 {strides = array<i32>} : memref<128x128xf32, #tpu.memory_space<vmem>>, vector<1x128xf32>,
    %c41_i32 = arith.constant 41 : i32
    %493 = arith.addi %0, %c41_i32 : i32
    %494 = arith.index_cast %493 : i32 to index
    %495 = memref.load %arg1[%494] : memref<128xi32, #tpu.memory_space<smem>>
    %c41_i32_164 = arith.constant 41 : i32
    %496 = arith.addi %0, %c41_i32_164 : i32
    %497 = arith.index_cast %496 : i32 to index
    %498 = memref.load %arg2[%497] : memref<128xi32, #tpu.memory_space<smem>>
    %499 = arith.index_cast %495 : i32 to index
    %c0_165 = arith.constant 0 : index
    %500 = vector.load %arg3[%499, %c0_165] : memref<512x128xf32, #tpu.memory_space<vmem>>, vector<1x128xf32>
    %501 = arith.index_cast %498 : i32 to index
    %c0_166 = arith.constant 0 : index
    %502 = vector.load %arg4[%501, %c0_166] : memref<64x128xf32, #tpu.memory_space<vmem>>, vector<1x128xf32>
    %503 = arith.addf %500, %502 : vector<1x128xf32>
    %c41 = arith.constant 41 : index
    %c0_167 = arith.constant 0 : index
    %504 = vector.load %arg5[%c41, %c0_167] : memref<128x128xf32, #tpu.memory_space<vmem>>, vector<1x128xf32>
    tpu.vector_store %arg5[%c41, %c0_167], %503 {strides = array<i32>} : memref<128x128xf32, #tpu.memory_space<vmem>>, vector<1x128xf32>,
    %c42_i32 = arith.constant 42 : i32
    %505 = arith.addi %0, %c42_i32 : i32
    %506 = arith.index_cast %505 : i32 to index
    %507 = memref.load %arg1[%506] : memref<128xi32, #tpu.memory_space<smem>>
    %c42_i32_168 = arith.constant 42 : i32
    %508 = arith.addi %0, %c42_i32_168 : i32
    %509 = arith.index_cast %508 : i32 to index
    %510 = memref.load %arg2[%509] : memref<128xi32, #tpu.memory_space<smem>>
    %511 = arith.index_cast %507 : i32 to index
    %c0_169 = arith.constant 0 : index
    %512 = vector.load %arg3[%511, %c0_169] : memref<512x128xf32, #tpu.memory_space<vmem>>, vector<1x128xf32>
    %513 = arith.index_cast %510 : i32 to index
    %c0_170 = arith.constant 0 : index
    %514 = vector.load %arg4[%513, %c0_170] : memref<64x128xf32, #tpu.memory_space<vmem>>, vector<1x128xf32>
    %515 = arith.addf %512, %514 : vector<1x128xf32>
    %c42 = arith.constant 42 : index
    %c0_171 = arith.constant 0 : index
    %516 = vector.load %arg5[%c42, %c0_171] : memref<128x128xf32, #tpu.memory_space<vmem>>, vector<1x128xf32>
    tpu.vector_store %arg5[%c42, %c0_171], %515 {strides = array<i32>} : memref<128x128xf32, #tpu.memory_space<vmem>>, vector<1x128xf32>,
    %c43_i32 = arith.constant 43 : i32
    %517 = arith.addi %0, %c43_i32 : i32
    %518 = arith.index_cast %517 : i32 to index
    %519 = memref.load %arg1[%518] : memref<128xi32, #tpu.memory_space<smem>>
    %c43_i32_172 = arith.constant 43 : i32
    %520 = arith.addi %0, %c43_i32_172 : i32
    %521 = arith.index_cast %520 : i32 to index
    %522 = memref.load %arg2[%521] : memref<128xi32, #tpu.memory_space<smem>>
    %523 = arith.index_cast %519 : i32 to index
    %c0_173 = arith.constant 0 : index
    %524 = vector.load %arg3[%523, %c0_173] : memref<512x128xf32, #tpu.memory_space<vmem>>, vector<1x128xf32>
    %525 = arith.index_cast %522 : i32 to index
    %c0_174 = arith.constant 0 : index
    %526 = vector.load %arg4[%525, %c0_174] : memref<64x128xf32, #tpu.memory_space<vmem>>, vector<1x128xf32>
    %527 = arith.addf %524, %526 : vector<1x128xf32>
    %c43 = arith.constant 43 : index
    %c0_175 = arith.constant 0 : index
    %528 = vector.load %arg5[%c43, %c0_175] : memref<128x128xf32, #tpu.memory_space<vmem>>, vector<1x128xf32>
    tpu.vector_store %arg5[%c43, %c0_175], %527 {strides = array<i32>} : memref<128x128xf32, #tpu.memory_space<vmem>>, vector<1x128xf32>,
    %c44_i32 = arith.constant 44 : i32
    %529 = arith.addi %0, %c44_i32 : i32
    %530 = arith.index_cast %529 : i32 to index
    %531 = memref.load %arg1[%530] : memref<128xi32, #tpu.memory_space<smem>>
    %c44_i32_176 = arith.constant 44 : i32
    %532 = arith.addi %0, %c44_i32_176 : i32
    %533 = arith.index_cast %532 : i32 to index
    %534 = memref.load %arg2[%533] : memref<128xi32, #tpu.memory_space<smem>>
    %535 = arith.index_cast %531 : i32 to index
    %c0_177 = arith.constant 0 : index
    %536 = vector.load %arg3[%535, %c0_177] : memref<512x128xf32, #tpu.memory_space<vmem>>, vector<1x128xf32>
    %537 = arith.index_cast %534 : i32 to index
    %c0_178 = arith.constant 0 : index
    %538 = vector.load %arg4[%537, %c0_178] : memref<64x128xf32, #tpu.memory_space<vmem>>, vector<1x128xf32>
    %539 = arith.addf %536, %538 : vector<1x128xf32>
    %c44 = arith.constant 44 : index
    %c0_179 = arith.constant 0 : index
    %540 = vector.load %arg5[%c44, %c0_179] : memref<128x128xf32, #tpu.memory_space<vmem>>, vector<1x128xf32>
    tpu.vector_store %arg5[%c44, %c0_179], %539 {strides = array<i32>} : memref<128x128xf32, #tpu.memory_space<vmem>>, vector<1x128xf32>,
    %c45_i32 = arith.constant 45 : i32
    %541 = arith.addi %0, %c45_i32 : i32
    %542 = arith.index_cast %541 : i32 to index
    %543 = memref.load %arg1[%542] : memref<128xi32, #tpu.memory_space<smem>>
    %c45_i32_180 = arith.constant 45 : i32
    %544 = arith.addi %0, %c45_i32_180 : i32
    %545 = arith.index_cast %544 : i32 to index
    %546 = memref.load %arg2[%545] : memref<128xi32, #tpu.memory_space<smem>>
    %547 = arith.index_cast %543 : i32 to index
    %c0_181 = arith.constant 0 : index
    %548 = vector.load %arg3[%547, %c0_181] : memref<512x128xf32, #tpu.memory_space<vmem>>, vector<1x128xf32>
    %549 = arith.index_cast %546 : i32 to index
    %c0_182 = arith.constant 0 : index
    %550 = vector.load %arg4[%549, %c0_182] : memref<64x128xf32, #tpu.memory_space<vmem>>, vector<1x128xf32>
    %551 = arith.addf %548, %550 : vector<1x128xf32>
    %c45 = arith.constant 45 : index
    %c0_183 = arith.constant 0 : index
    %552 = vector.load %arg5[%c45, %c0_183] : memref<128x128xf32, #tpu.memory_space<vmem>>, vector<1x128xf32>
    tpu.vector_store %arg5[%c45, %c0_183], %551 {strides = array<i32>} : memref<128x128xf32, #tpu.memory_space<vmem>>, vector<1x128xf32>,
    %c46_i32 = arith.constant 46 : i32
    %553 = arith.addi %0, %c46_i32 : i32
    %554 = arith.index_cast %553 : i32 to index
    %555 = memref.load %arg1[%554] : memref<128xi32, #tpu.memory_space<smem>>
    %c46_i32_184 = arith.constant 46 : i32
    %556 = arith.addi %0, %c46_i32_184 : i32
    %557 = arith.index_cast %556 : i32 to index
    %558 = memref.load %arg2[%557] : memref<128xi32, #tpu.memory_space<smem>>
    %559 = arith.index_cast %555 : i32 to index
    %c0_185 = arith.constant 0 : index
    %560 = vector.load %arg3[%559, %c0_185] : memref<512x128xf32, #tpu.memory_space<vmem>>, vector<1x128xf32>
    %561 = arith.index_cast %558 : i32 to index
    %c0_186 = arith.constant 0 : index
    %562 = vector.load %arg4[%561, %c0_186] : memref<64x128xf32, #tpu.memory_space<vmem>>, vector<1x128xf32>
    %563 = arith.addf %560, %562 : vector<1x128xf32>
    %c46 = arith.constant 46 : index
    %c0_187 = arith.constant 0 : index
    %564 = vector.load %arg5[%c46, %c0_187] : memref<128x128xf32, #tpu.memory_space<vmem>>, vector<1x128xf32>
    tpu.vector_store %arg5[%c46, %c0_187], %563 {strides = array<i32>} : memref<128x128xf32, #tpu.memory_space<vmem>>, vector<1x128xf32>,
    %c47_i32 = arith.constant 47 : i32
    %565 = arith.addi %0, %c47_i32 : i32
    %566 = arith.index_cast %565 : i32 to index
    %567 = memref.load %arg1[%566] : memref<128xi32, #tpu.memory_space<smem>>
    %c47_i32_188 = arith.constant 47 : i32
    %568 = arith.addi %0, %c47_i32_188 : i32
    %569 = arith.index_cast %568 : i32 to index
    %570 = memref.load %arg2[%569] : memref<128xi32, #tpu.memory_space<smem>>
    %571 = arith.index_cast %567 : i32 to index
    %c0_189 = arith.constant 0 : index
    %572 = vector.load %arg3[%571, %c0_189] : memref<512x128xf32, #tpu.memory_space<vmem>>, vector<1x128xf32>
    %573 = arith.index_cast %570 : i32 to index
    %c0_190 = arith.constant 0 : index
    %574 = vector.load %arg4[%573, %c0_190] : memref<64x128xf32, #tpu.memory_space<vmem>>, vector<1x128xf32>
    %575 = arith.addf %572, %574 : vector<1x128xf32>
    %c47 = arith.constant 47 : index
    %c0_191 = arith.constant 0 : index
    %576 = vector.load %arg5[%c47, %c0_191] : memref<128x128xf32, #tpu.memory_space<vmem>>, vector<1x128xf32>
    tpu.vector_store %arg5[%c47, %c0_191], %575 {strides = array<i32>} : memref<128x128xf32, #tpu.memory_space<vmem>>, vector<1x128xf32>,
    %c48_i32 = arith.constant 48 : i32
    %577 = arith.addi %0, %c48_i32 : i32
    %578 = arith.index_cast %577 : i32 to index
    %579 = memref.load %arg1[%578] : memref<128xi32, #tpu.memory_space<smem>>
    %c48_i32_192 = arith.constant 48 : i32
    %580 = arith.addi %0, %c48_i32_192 : i32
    %581 = arith.index_cast %580 : i32 to index
    %582 = memref.load %arg2[%581] : memref<128xi32, #tpu.memory_space<smem>>
    %583 = arith.index_cast %579 : i32 to index
    %c0_193 = arith.constant 0 : index
    %584 = vector.load %arg3[%583, %c0_193] : memref<512x128xf32, #tpu.memory_space<vmem>>, vector<1x128xf32>
    %585 = arith.index_cast %582 : i32 to index
    %c0_194 = arith.constant 0 : index
    %586 = vector.load %arg4[%585, %c0_194] : memref<64x128xf32, #tpu.memory_space<vmem>>, vector<1x128xf32>
    %587 = arith.addf %584, %586 : vector<1x128xf32>
    %c48 = arith.constant 48 : index
    %c0_195 = arith.constant 0 : index
    %588 = vector.load %arg5[%c48, %c0_195] : memref<128x128xf32, #tpu.memory_space<vmem>>, vector<1x128xf32>
    tpu.vector_store %arg5[%c48, %c0_195], %587 {strides = array<i32>} : memref<128x128xf32, #tpu.memory_space<vmem>>, vector<1x128xf32>,
    %c49_i32 = arith.constant 49 : i32
    %589 = arith.addi %0, %c49_i32 : i32
    %590 = arith.index_cast %589 : i32 to index
    %591 = memref.load %arg1[%590] : memref<128xi32, #tpu.memory_space<smem>>
    %c49_i32_196 = arith.constant 49 : i32
    %592 = arith.addi %0, %c49_i32_196 : i32
    %593 = arith.index_cast %592 : i32 to index
    %594 = memref.load %arg2[%593] : memref<128xi32, #tpu.memory_space<smem>>
    %595 = arith.index_cast %591 : i32 to index
    %c0_197 = arith.constant 0 : index
    %596 = vector.load %arg3[%595, %c0_197] : memref<512x128xf32, #tpu.memory_space<vmem>>, vector<1x128xf32>
    %597 = arith.index_cast %594 : i32 to index
    %c0_198 = arith.constant 0 : index
    %598 = vector.load %arg4[%597, %c0_198] : memref<64x128xf32, #tpu.memory_space<vmem>>, vector<1x128xf32>
    %599 = arith.addf %596, %598 : vector<1x128xf32>
    %c49 = arith.constant 49 : index
    %c0_199 = arith.constant 0 : index
    %600 = vector.load %arg5[%c49, %c0_199] : memref<128x128xf32, #tpu.memory_space<vmem>>, vector<1x128xf32>
    tpu.vector_store %arg5[%c49, %c0_199], %599 {strides = array<i32>} : memref<128x128xf32, #tpu.memory_space<vmem>>, vector<1x128xf32>,
    %c50_i32 = arith.constant 50 : i32
    %601 = arith.addi %0, %c50_i32 : i32
    %602 = arith.index_cast %601 : i32 to index
    %603 = memref.load %arg1[%602] : memref<128xi32, #tpu.memory_space<smem>>
    %c50_i32_200 = arith.constant 50 : i32
    %604 = arith.addi %0, %c50_i32_200 : i32
    %605 = arith.index_cast %604 : i32 to index
    %606 = memref.load %arg2[%605] : memref<128xi32, #tpu.memory_space<smem>>
    %607 = arith.index_cast %603 : i32 to index
    %c0_201 = arith.constant 0 : index
    %608 = vector.load %arg3[%607, %c0_201] : memref<512x128xf32, #tpu.memory_space<vmem>>, vector<1x128xf32>
    %609 = arith.index_cast %606 : i32 to index
    %c0_202 = arith.constant 0 : index
    %610 = vector.load %arg4[%609, %c0_202] : memref<64x128xf32, #tpu.memory_space<vmem>>, vector<1x128xf32>
    %611 = arith.addf %608, %610 : vector<1x128xf32>
    %c50 = arith.constant 50 : index
    %c0_203 = arith.constant 0 : index
    %612 = vector.load %arg5[%c50, %c0_203] : memref<128x128xf32, #tpu.memory_space<vmem>>, vector<1x128xf32>
    tpu.vector_store %arg5[%c50, %c0_203], %611 {strides = array<i32>} : memref<128x128xf32, #tpu.memory_space<vmem>>, vector<1x128xf32>,
    %c51_i32 = arith.constant 51 : i32
    %613 = arith.addi %0, %c51_i32 : i32
    %614 = arith.index_cast %613 : i32 to index
    %615 = memref.load %arg1[%614] : memref<128xi32, #tpu.memory_space<smem>>
    %c51_i32_204 = arith.constant 51 : i32
    %616 = arith.addi %0, %c51_i32_204 : i32
    %617 = arith.index_cast %616 : i32 to index
    %618 = memref.load %arg2[%617] : memref<128xi32, #tpu.memory_space<smem>>
    %619 = arith.index_cast %615 : i32 to index
    %c0_205 = arith.constant 0 : index
    %620 = vector.load %arg3[%619, %c0_205] : memref<512x128xf32, #tpu.memory_space<vmem>>, vector<1x128xf32>
    %621 = arith.index_cast %618 : i32 to index
    %c0_206 = arith.constant 0 : index
    %622 = vector.load %arg4[%621, %c0_206] : memref<64x128xf32, #tpu.memory_space<vmem>>, vector<1x128xf32>
    %623 = arith.addf %620, %622 : vector<1x128xf32>
    %c51 = arith.constant 51 : index
    %c0_207 = arith.constant 0 : index
    %624 = vector.load %arg5[%c51, %c0_207] : memref<128x128xf32, #tpu.memory_space<vmem>>, vector<1x128xf32>
    tpu.vector_store %arg5[%c51, %c0_207], %623 {strides = array<i32>} : memref<128x128xf32, #tpu.memory_space<vmem>>, vector<1x128xf32>,
    %c52_i32 = arith.constant 52 : i32
    %625 = arith.addi %0, %c52_i32 : i32
    %626 = arith.index_cast %625 : i32 to index
    %627 = memref.load %arg1[%626] : memref<128xi32, #tpu.memory_space<smem>>
    %c52_i32_208 = arith.constant 52 : i32
    %628 = arith.addi %0, %c52_i32_208 : i32
    %629 = arith.index_cast %628 : i32 to index
    %630 = memref.load %arg2[%629] : memref<128xi32, #tpu.memory_space<smem>>
    %631 = arith.index_cast %627 : i32 to index
    %c0_209 = arith.constant 0 : index
    %632 = vector.load %arg3[%631, %c0_209] : memref<512x128xf32, #tpu.memory_space<vmem>>, vector<1x128xf32>
    %633 = arith.index_cast %630 : i32 to index
    %c0_210 = arith.constant 0 : index
    %634 = vector.load %arg4[%633, %c0_210] : memref<64x128xf32, #tpu.memory_space<vmem>>, vector<1x128xf32>
    %635 = arith.addf %632, %634 : vector<1x128xf32>
    %c52 = arith.constant 52 : index
    %c0_211 = arith.constant 0 : index
    %636 = vector.load %arg5[%c52, %c0_211] : memref<128x128xf32, #tpu.memory_space<vmem>>, vector<1x128xf32>
    tpu.vector_store %arg5[%c52, %c0_211], %635 {strides = array<i32>} : memref<128x128xf32, #tpu.memory_space<vmem>>, vector<1x128xf32>,
    %c53_i32 = arith.constant 53 : i32
    %637 = arith.addi %0, %c53_i32 : i32
    %638 = arith.index_cast %637 : i32 to index
    %639 = memref.load %arg1[%638] : memref<128xi32, #tpu.memory_space<smem>>
    %c53_i32_212 = arith.constant 53 : i32
    %640 = arith.addi %0, %c53_i32_212 : i32
    %641 = arith.index_cast %640 : i32 to index
    %642 = memref.load %arg2[%641] : memref<128xi32, #tpu.memory_space<smem>>
    %643 = arith.index_cast %639 : i32 to index
    %c0_213 = arith.constant 0 : index
    %644 = vector.load %arg3[%643, %c0_213] : memref<512x128xf32, #tpu.memory_space<vmem>>, vector<1x128xf32>
    %645 = arith.index_cast %642 : i32 to index
    %c0_214 = arith.constant 0 : index
    %646 = vector.load %arg4[%645, %c0_214] : memref<64x128xf32, #tpu.memory_space<vmem>>, vector<1x128xf32>
    %647 = arith.addf %644, %646 : vector<1x128xf32>
    %c53 = arith.constant 53 : index
    %c0_215 = arith.constant 0 : index
    %648 = vector.load %arg5[%c53, %c0_215] : memref<128x128xf32, #tpu.memory_space<vmem>>, vector<1x128xf32>
    tpu.vector_store %arg5[%c53, %c0_215], %647 {strides = array<i32>} : memref<128x128xf32, #tpu.memory_space<vmem>>, vector<1x128xf32>,
    %c54_i32 = arith.constant 54 : i32
    %649 = arith.addi %0, %c54_i32 : i32
    %650 = arith.index_cast %649 : i32 to index
    %651 = memref.load %arg1[%650] : memref<128xi32, #tpu.memory_space<smem>>
    %c54_i32_216 = arith.constant 54 : i32
    %652 = arith.addi %0, %c54_i32_216 : i32
    %653 = arith.index_cast %652 : i32 to index
    %654 = memref.load %arg2[%653] : memref<128xi32, #tpu.memory_space<smem>>
    %655 = arith.index_cast %651 : i32 to index
    %c0_217 = arith.constant 0 : index
    %656 = vector.load %arg3[%655, %c0_217] : memref<512x128xf32, #tpu.memory_space<vmem>>, vector<1x128xf32>
    %657 = arith.index_cast %654 : i32 to index
    %c0_218 = arith.constant 0 : index
    %658 = vector.load %arg4[%657, %c0_218] : memref<64x128xf32, #tpu.memory_space<vmem>>, vector<1x128xf32>
    %659 = arith.addf %656, %658 : vector<1x128xf32>
    %c54 = arith.constant 54 : index
    %c0_219 = arith.constant 0 : index
    %660 = vector.load %arg5[%c54, %c0_219] : memref<128x128xf32, #tpu.memory_space<vmem>>, vector<1x128xf32>
    tpu.vector_store %arg5[%c54, %c0_219], %659 {strides = array<i32>} : memref<128x128xf32, #tpu.memory_space<vmem>>, vector<1x128xf32>,
    %c55_i32 = arith.constant 55 : i32
    %661 = arith.addi %0, %c55_i32 : i32
    %662 = arith.index_cast %661 : i32 to index
    %663 = memref.load %arg1[%662] : memref<128xi32, #tpu.memory_space<smem>>
    %c55_i32_220 = arith.constant 55 : i32
    %664 = arith.addi %0, %c55_i32_220 : i32
    %665 = arith.index_cast %664 : i32 to index
    %666 = memref.load %arg2[%665] : memref<128xi32, #tpu.memory_space<smem>>
    %667 = arith.index_cast %663 : i32 to index
    %c0_221 = arith.constant 0 : index
    %668 = vector.load %arg3[%667, %c0_221] : memref<512x128xf32, #tpu.memory_space<vmem>>, vector<1x128xf32>
    %669 = arith.index_cast %666 : i32 to index
    %c0_222 = arith.constant 0 : index
    %670 = vector.load %arg4[%669, %c0_222] : memref<64x128xf32, #tpu.memory_space<vmem>>, vector<1x128xf32>
    %671 = arith.addf %668, %670 : vector<1x128xf32>
    %c55 = arith.constant 55 : index
    %c0_223 = arith.constant 0 : index
    %672 = vector.load %arg5[%c55, %c0_223] : memref<128x128xf32, #tpu.memory_space<vmem>>, vector<1x128xf32>
    tpu.vector_store %arg5[%c55, %c0_223], %671 {strides = array<i32>} : memref<128x128xf32, #tpu.memory_space<vmem>>, vector<1x128xf32>,
    %c56_i32 = arith.constant 56 : i32
    %673 = arith.addi %0, %c56_i32 : i32
    %674 = arith.index_cast %673 : i32 to index
    %675 = memref.load %arg1[%674] : memref<128xi32, #tpu.memory_space<smem>>
    %c56_i32_224 = arith.constant 56 : i32
    %676 = arith.addi %0, %c56_i32_224 : i32
    %677 = arith.index_cast %676 : i32 to index
    %678 = memref.load %arg2[%677] : memref<128xi32, #tpu.memory_space<smem>>
    %679 = arith.index_cast %675 : i32 to index
    %c0_225 = arith.constant 0 : index
    %680 = vector.load %arg3[%679, %c0_225] : memref<512x128xf32, #tpu.memory_space<vmem>>, vector<1x128xf32>
    %681 = arith.index_cast %678 : i32 to index
    %c0_226 = arith.constant 0 : index
    %682 = vector.load %arg4[%681, %c0_226] : memref<64x128xf32, #tpu.memory_space<vmem>>, vector<1x128xf32>
    %683 = arith.addf %680, %682 : vector<1x128xf32>
    %c56 = arith.constant 56 : index
    %c0_227 = arith.constant 0 : index
    %684 = vector.load %arg5[%c56, %c0_227] : memref<128x128xf32, #tpu.memory_space<vmem>>, vector<1x128xf32>
    tpu.vector_store %arg5[%c56, %c0_227], %683 {strides = array<i32>} : memref<128x128xf32, #tpu.memory_space<vmem>>, vector<1x128xf32>,
    %c57_i32 = arith.constant 57 : i32
    %685 = arith.addi %0, %c57_i32 : i32
    %686 = arith.index_cast %685 : i32 to index
    %687 = memref.load %arg1[%686] : memref<128xi32, #tpu.memory_space<smem>>
    %c57_i32_228 = arith.constant 57 : i32
    %688 = arith.addi %0, %c57_i32_228 : i32
    %689 = arith.index_cast %688 : i32 to index
    %690 = memref.load %arg2[%689] : memref<128xi32, #tpu.memory_space<smem>>
    %691 = arith.index_cast %687 : i32 to index
    %c0_229 = arith.constant 0 : index
    %692 = vector.load %arg3[%691, %c0_229] : memref<512x128xf32, #tpu.memory_space<vmem>>, vector<1x128xf32>
    %693 = arith.index_cast %690 : i32 to index
    %c0_230 = arith.constant 0 : index
    %694 = vector.load %arg4[%693, %c0_230] : memref<64x128xf32, #tpu.memory_space<vmem>>, vector<1x128xf32>
    %695 = arith.addf %692, %694 : vector<1x128xf32>
    %c57 = arith.constant 57 : index
    %c0_231 = arith.constant 0 : index
    %696 = vector.load %arg5[%c57, %c0_231] : memref<128x128xf32, #tpu.memory_space<vmem>>, vector<1x128xf32>
    tpu.vector_store %arg5[%c57, %c0_231], %695 {strides = array<i32>} : memref<128x128xf32, #tpu.memory_space<vmem>>, vector<1x128xf32>,
    %c58_i32 = arith.constant 58 : i32
    %697 = arith.addi %0, %c58_i32 : i32
    %698 = arith.index_cast %697 : i32 to index
    %699 = memref.load %arg1[%698] : memref<128xi32, #tpu.memory_space<smem>>
    %c58_i32_232 = arith.constant 58 : i32
    %700 = arith.addi %0, %c58_i32_232 : i32
    %701 = arith.index_cast %700 : i32 to index
    %702 = memref.load %arg2[%701] : memref<128xi32, #tpu.memory_space<smem>>
    %703 = arith.index_cast %699 : i32 to index
    %c0_233 = arith.constant 0 : index
    %704 = vector.load %arg3[%703, %c0_233] : memref<512x128xf32, #tpu.memory_space<vmem>>, vector<1x128xf32>
    %705 = arith.index_cast %702 : i32 to index
    %c0_234 = arith.constant 0 : index
    %706 = vector.load %arg4[%705, %c0_234] : memref<64x128xf32, #tpu.memory_space<vmem>>, vector<1x128xf32>
    %707 = arith.addf %704, %706 : vector<1x128xf32>
    %c58 = arith.constant 58 : index
    %c0_235 = arith.constant 0 : index
    %708 = vector.load %arg5[%c58, %c0_235] : memref<128x128xf32, #tpu.memory_space<vmem>>, vector<1x128xf32>
    tpu.vector_store %arg5[%c58, %c0_235], %707 {strides = array<i32>} : memref<128x128xf32, #tpu.memory_space<vmem>>, vector<1x128xf32>,
    %c59_i32 = arith.constant 59 : i32
    %709 = arith.addi %0, %c59_i32 : i32
    %710 = arith.index_cast %709 : i32 to index
    %711 = memref.load %arg1[%710] : memref<128xi32, #tpu.memory_space<smem>>
    %c59_i32_236 = arith.constant 59 : i32
    %712 = arith.addi %0, %c59_i32_236 : i32
    %713 = arith.index_cast %712 : i32 to index
    %714 = memref.load %arg2[%713] : memref<128xi32, #tpu.memory_space<smem>>
    %715 = arith.index_cast %711 : i32 to index
    %c0_237 = arith.constant 0 : index
    %716 = vector.load %arg3[%715, %c0_237] : memref<512x128xf32, #tpu.memory_space<vmem>>, vector<1x128xf32>
    %717 = arith.index_cast %714 : i32 to index
    %c0_238 = arith.constant 0 : index
    %718 = vector.load %arg4[%717, %c0_238] : memref<64x128xf32, #tpu.memory_space<vmem>>, vector<1x128xf32>
    %719 = arith.addf %716, %718 : vector<1x128xf32>
    %c59 = arith.constant 59 : index
    %c0_239 = arith.constant 0 : index
    %720 = vector.load %arg5[%c59, %c0_239] : memref<128x128xf32, #tpu.memory_space<vmem>>, vector<1x128xf32>
    tpu.vector_store %arg5[%c59, %c0_239], %719 {strides = array<i32>} : memref<128x128xf32, #tpu.memory_space<vmem>>, vector<1x128xf32>,
    %c60_i32 = arith.constant 60 : i32
    %721 = arith.addi %0, %c60_i32 : i32
    %722 = arith.index_cast %721 : i32 to index
    %723 = memref.load %arg1[%722] : memref<128xi32, #tpu.memory_space<smem>>
    %c60_i32_240 = arith.constant 60 : i32
    %724 = arith.addi %0, %c60_i32_240 : i32
    %725 = arith.index_cast %724 : i32 to index
    %726 = memref.load %arg2[%725] : memref<128xi32, #tpu.memory_space<smem>>
    %727 = arith.index_cast %723 : i32 to index
    %c0_241 = arith.constant 0 : index
    %728 = vector.load %arg3[%727, %c0_241] : memref<512x128xf32, #tpu.memory_space<vmem>>, vector<1x128xf32>
    %729 = arith.index_cast %726 : i32 to index
    %c0_242 = arith.constant 0 : index
    %730 = vector.load %arg4[%729, %c0_242] : memref<64x128xf32, #tpu.memory_space<vmem>>, vector<1x128xf32>
    %731 = arith.addf %728, %730 : vector<1x128xf32>
    %c60 = arith.constant 60 : index
    %c0_243 = arith.constant 0 : index
    %732 = vector.load %arg5[%c60, %c0_243] : memref<128x128xf32, #tpu.memory_space<vmem>>, vector<1x128xf32>
    tpu.vector_store %arg5[%c60, %c0_243], %731 {strides = array<i32>} : memref<128x128xf32, #tpu.memory_space<vmem>>, vector<1x128xf32>,
    %c61_i32 = arith.constant 61 : i32
    %733 = arith.addi %0, %c61_i32 : i32
    %734 = arith.index_cast %733 : i32 to index
    %735 = memref.load %arg1[%734] : memref<128xi32, #tpu.memory_space<smem>>
    %c61_i32_244 = arith.constant 61 : i32
    %736 = arith.addi %0, %c61_i32_244 : i32
    %737 = arith.index_cast %736 : i32 to index
    %738 = memref.load %arg2[%737] : memref<128xi32, #tpu.memory_space<smem>>
    %739 = arith.index_cast %735 : i32 to index
    %c0_245 = arith.constant 0 : index
    %740 = vector.load %arg3[%739, %c0_245] : memref<512x128xf32, #tpu.memory_space<vmem>>, vector<1x128xf32>
    %741 = arith.index_cast %738 : i32 to index
    %c0_246 = arith.constant 0 : index
    %742 = vector.load %arg4[%741, %c0_246] : memref<64x128xf32, #tpu.memory_space<vmem>>, vector<1x128xf32>
    %743 = arith.addf %740, %742 : vector<1x128xf32>
    %c61 = arith.constant 61 : index
    %c0_247 = arith.constant 0 : index
    %744 = vector.load %arg5[%c61, %c0_247] : memref<128x128xf32, #tpu.memory_space<vmem>>, vector<1x128xf32>
    tpu.vector_store %arg5[%c61, %c0_247], %743 {strides = array<i32>} : memref<128x128xf32, #tpu.memory_space<vmem>>, vector<1x128xf32>,
    %c62_i32 = arith.constant 62 : i32
    %745 = arith.addi %0, %c62_i32 : i32
    %746 = arith.index_cast %745 : i32 to index
    %747 = memref.load %arg1[%746] : memref<128xi32, #tpu.memory_space<smem>>
    %c62_i32_248 = arith.constant 62 : i32
    %748 = arith.addi %0, %c62_i32_248 : i32
    %749 = arith.index_cast %748 : i32 to index
    %750 = memref.load %arg2[%749] : memref<128xi32, #tpu.memory_space<smem>>
    %751 = arith.index_cast %747 : i32 to index
    %c0_249 = arith.constant 0 : index
    %752 = vector.load %arg3[%751, %c0_249] : memref<512x128xf32, #tpu.memory_space<vmem>>, vector<1x128xf32>
    %753 = arith.index_cast %750 : i32 to index
    %c0_250 = arith.constant 0 : index
    %754 = vector.load %arg4[%753, %c0_250] : memref<64x128xf32, #tpu.memory_space<vmem>>, vector<1x128xf32>
    %755 = arith.addf %752, %754 : vector<1x128xf32>
    %c62 = arith.constant 62 : index
    %c0_251 = arith.constant 0 : index
    %756 = vector.load %arg5[%c62, %c0_251] : memref<128x128xf32, #tpu.memory_space<vmem>>, vector<1x128xf32>
    tpu.vector_store %arg5[%c62, %c0_251], %755 {strides = array<i32>} : memref<128x128xf32, #tpu.memory_space<vmem>>, vector<1x128xf32>,
    %c63_i32 = arith.constant 63 : i32
    %757 = arith.addi %0, %c63_i32 : i32
    %758 = arith.index_cast %757 : i32 to index
    %759 = memref.load %arg1[%758] : memref<128xi32, #tpu.memory_space<smem>>
    %c63_i32_252 = arith.constant 63 : i32
    %760 = arith.addi %0, %c63_i32_252 : i32
    %761 = arith.index_cast %760 : i32 to index
    %762 = memref.load %arg2[%761] : memref<128xi32, #tpu.memory_space<smem>>
    %763 = arith.index_cast %759 : i32 to index
    %c0_253 = arith.constant 0 : index
    %764 = vector.load %arg3[%763, %c0_253] : memref<512x128xf32, #tpu.memory_space<vmem>>, vector<1x128xf32>
    %765 = arith.index_cast %762 : i32 to index
    %c0_254 = arith.constant 0 : index
    %766 = vector.load %arg4[%765, %c0_254] : memref<64x128xf32, #tpu.memory_space<vmem>>, vector<1x128xf32>
    %767 = arith.addf %764, %766 : vector<1x128xf32>
    %c63 = arith.constant 63 : index
    %c0_255 = arith.constant 0 : index
    %768 = vector.load %arg5[%c63, %c0_255] : memref<128x128xf32, #tpu.memory_space<vmem>>, vector<1x128xf32>
    tpu.vector_store %arg5[%c63, %c0_255], %767 {strides = array<i32>} : memref<128x128xf32, #tpu.memory_space<vmem>>, vector<1x128xf32>,
    %c64_i32 = arith.constant 64 : i32
    %769 = arith.addi %0, %c64_i32 : i32
    %770 = arith.index_cast %769 : i32 to index
    %771 = memref.load %arg1[%770] : memref<128xi32, #tpu.memory_space<smem>>
    %c64_i32_256 = arith.constant 64 : i32
    %772 = arith.addi %0, %c64_i32_256 : i32
    %773 = arith.index_cast %772 : i32 to index
    %774 = memref.load %arg2[%773] : memref<128xi32, #tpu.memory_space<smem>>
    %775 = arith.index_cast %771 : i32 to index
    %c0_257 = arith.constant 0 : index
    %776 = vector.load %arg3[%775, %c0_257] : memref<512x128xf32, #tpu.memory_space<vmem>>, vector<1x128xf32>
    %777 = arith.index_cast %774 : i32 to index
    %c0_258 = arith.constant 0 : index
    %778 = vector.load %arg4[%777, %c0_258] : memref<64x128xf32, #tpu.memory_space<vmem>>, vector<1x128xf32>
    %779 = arith.addf %776, %778 : vector<1x128xf32>
    %c64 = arith.constant 64 : index
    %c0_259 = arith.constant 0 : index
    %780 = vector.load %arg5[%c64, %c0_259] : memref<128x128xf32, #tpu.memory_space<vmem>>, vector<1x128xf32>
    tpu.vector_store %arg5[%c64, %c0_259], %779 {strides = array<i32>} : memref<128x128xf32, #tpu.memory_space<vmem>>, vector<1x128xf32>,
    %c65_i32 = arith.constant 65 : i32
    %781 = arith.addi %0, %c65_i32 : i32
    %782 = arith.index_cast %781 : i32 to index
    %783 = memref.load %arg1[%782] : memref<128xi32, #tpu.memory_space<smem>>
    %c65_i32_260 = arith.constant 65 : i32
    %784 = arith.addi %0, %c65_i32_260 : i32
    %785 = arith.index_cast %784 : i32 to index
    %786 = memref.load %arg2[%785] : memref<128xi32, #tpu.memory_space<smem>>
    %787 = arith.index_cast %783 : i32 to index
    %c0_261 = arith.constant 0 : index
    %788 = vector.load %arg3[%787, %c0_261] : memref<512x128xf32, #tpu.memory_space<vmem>>, vector<1x128xf32>
    %789 = arith.index_cast %786 : i32 to index
    %c0_262 = arith.constant 0 : index
    %790 = vector.load %arg4[%789, %c0_262] : memref<64x128xf32, #tpu.memory_space<vmem>>, vector<1x128xf32>
    %791 = arith.addf %788, %790 : vector<1x128xf32>
    %c65 = arith.constant 65 : index
    %c0_263 = arith.constant 0 : index
    %792 = vector.load %arg5[%c65, %c0_263] : memref<128x128xf32, #tpu.memory_space<vmem>>, vector<1x128xf32>
    tpu.vector_store %arg5[%c65, %c0_263], %791 {strides = array<i32>} : memref<128x128xf32, #tpu.memory_space<vmem>>, vector<1x128xf32>,
    %c66_i32 = arith.constant 66 : i32
    %793 = arith.addi %0, %c66_i32 : i32
    %794 = arith.index_cast %793 : i32 to index
    %795 = memref.load %arg1[%794] : memref<128xi32, #tpu.memory_space<smem>>
    %c66_i32_264 = arith.constant 66 : i32
    %796 = arith.addi %0, %c66_i32_264 : i32
    %797 = arith.index_cast %796 : i32 to index
    %798 = memref.load %arg2[%797] : memref<128xi32, #tpu.memory_space<smem>>
    %799 = arith.index_cast %795 : i32 to index
    %c0_265 = arith.constant 0 : index
    %800 = vector.load %arg3[%799, %c0_265] : memref<512x128xf32, #tpu.memory_space<vmem>>, vector<1x128xf32>
    %801 = arith.index_cast %798 : i32 to index
    %c0_266 = arith.constant 0 : index
    %802 = vector.load %arg4[%801, %c0_266] : memref<64x128xf32, #tpu.memory_space<vmem>>, vector<1x128xf32>
    %803 = arith.addf %800, %802 : vector<1x128xf32>
    %c66 = arith.constant 66 : index
    %c0_267 = arith.constant 0 : index
    %804 = vector.load %arg5[%c66, %c0_267] : memref<128x128xf32, #tpu.memory_space<vmem>>, vector<1x128xf32>
    tpu.vector_store %arg5[%c66, %c0_267], %803 {strides = array<i32>} : memref<128x128xf32, #tpu.memory_space<vmem>>, vector<1x128xf32>,
    %c67_i32 = arith.constant 67 : i32
    %805 = arith.addi %0, %c67_i32 : i32
    %806 = arith.index_cast %805 : i32 to index
    %807 = memref.load %arg1[%806] : memref<128xi32, #tpu.memory_space<smem>>
    %c67_i32_268 = arith.constant 67 : i32
    %808 = arith.addi %0, %c67_i32_268 : i32
    %809 = arith.index_cast %808 : i32 to index
    %810 = memref.load %arg2[%809] : memref<128xi32, #tpu.memory_space<smem>>
    %811 = arith.index_cast %807 : i32 to index
    %c0_269 = arith.constant 0 : index
    %812 = vector.load %arg3[%811, %c0_269] : memref<512x128xf32, #tpu.memory_space<vmem>>, vector<1x128xf32>
    %813 = arith.index_cast %810 : i32 to index
    %c0_270 = arith.constant 0 : index
    %814 = vector.load %arg4[%813, %c0_270] : memref<64x128xf32, #tpu.memory_space<vmem>>, vector<1x128xf32>
    %815 = arith.addf %812, %814 : vector<1x128xf32>
    %c67 = arith.constant 67 : index
    %c0_271 = arith.constant 0 : index
    %816 = vector.load %arg5[%c67, %c0_271] : memref<128x128xf32, #tpu.memory_space<vmem>>, vector<1x128xf32>
    tpu.vector_store %arg5[%c67, %c0_271], %815 {strides = array<i32>} : memref<128x128xf32, #tpu.memory_space<vmem>>, vector<1x128xf32>,
    %c68_i32 = arith.constant 68 : i32
    %817 = arith.addi %0, %c68_i32 : i32
    %818 = arith.index_cast %817 : i32 to index
    %819 = memref.load %arg1[%818] : memref<128xi32, #tpu.memory_space<smem>>
    %c68_i32_272 = arith.constant 68 : i32
    %820 = arith.addi %0, %c68_i32_272 : i32
    %821 = arith.index_cast %820 : i32 to index
    %822 = memref.load %arg2[%821] : memref<128xi32, #tpu.memory_space<smem>>
    %823 = arith.index_cast %819 : i32 to index
    %c0_273 = arith.constant 0 : index
    %824 = vector.load %arg3[%823, %c0_273] : memref<512x128xf32, #tpu.memory_space<vmem>>, vector<1x128xf32>
    %825 = arith.index_cast %822 : i32 to index
    %c0_274 = arith.constant 0 : index
    %826 = vector.load %arg4[%825, %c0_274] : memref<64x128xf32, #tpu.memory_space<vmem>>, vector<1x128xf32>
    %827 = arith.addf %824, %826 : vector<1x128xf32>
    %c68 = arith.constant 68 : index
    %c0_275 = arith.constant 0 : index
    %828 = vector.load %arg5[%c68, %c0_275] : memref<128x128xf32, #tpu.memory_space<vmem>>, vector<1x128xf32>
    tpu.vector_store %arg5[%c68, %c0_275], %827 {strides = array<i32>} : memref<128x128xf32, #tpu.memory_space<vmem>>, vector<1x128xf32>,
    %c69_i32 = arith.constant 69 : i32
    %829 = arith.addi %0, %c69_i32 : i32
    %830 = arith.index_cast %829 : i32 to index
    %831 = memref.load %arg1[%830] : memref<128xi32, #tpu.memory_space<smem>>
    %c69_i32_276 = arith.constant 69 : i32
    %832 = arith.addi %0, %c69_i32_276 : i32
    %833 = arith.index_cast %832 : i32 to index
    %834 = memref.load %arg2[%833] : memref<128xi32, #tpu.memory_space<smem>>
    %835 = arith.index_cast %831 : i32 to index
    %c0_277 = arith.constant 0 : index
    %836 = vector.load %arg3[%835, %c0_277] : memref<512x128xf32, #tpu.memory_space<vmem>>, vector<1x128xf32>
    %837 = arith.index_cast %834 : i32 to index
    %c0_278 = arith.constant 0 : index
    %838 = vector.load %arg4[%837, %c0_278] : memref<64x128xf32, #tpu.memory_space<vmem>>, vector<1x128xf32>
    %839 = arith.addf %836, %838 : vector<1x128xf32>
    %c69 = arith.constant 69 : index
    %c0_279 = arith.constant 0 : index
    %840 = vector.load %arg5[%c69, %c0_279] : memref<128x128xf32, #tpu.memory_space<vmem>>, vector<1x128xf32>
    tpu.vector_store %arg5[%c69, %c0_279], %839 {strides = array<i32>} : memref<128x128xf32, #tpu.memory_space<vmem>>, vector<1x128xf32>,
    %c70_i32 = arith.constant 70 : i32
    %841 = arith.addi %0, %c70_i32 : i32
    %842 = arith.index_cast %841 : i32 to index
    %843 = memref.load %arg1[%842] : memref<128xi32, #tpu.memory_space<smem>>
    %c70_i32_280 = arith.constant 70 : i32
    %844 = arith.addi %0, %c70_i32_280 : i32
    %845 = arith.index_cast %844 : i32 to index
    %846 = memref.load %arg2[%845] : memref<128xi32, #tpu.memory_space<smem>>
    %847 = arith.index_cast %843 : i32 to index
    %c0_281 = arith.constant 0 : index
    %848 = vector.load %arg3[%847, %c0_281] : memref<512x128xf32, #tpu.memory_space<vmem>>, vector<1x128xf32>
    %849 = arith.index_cast %846 : i32 to index
    %c0_282 = arith.constant 0 : index
    %850 = vector.load %arg4[%849, %c0_282] : memref<64x128xf32, #tpu.memory_space<vmem>>, vector<1x128xf32>
    %851 = arith.addf %848, %850 : vector<1x128xf32>
    %c70 = arith.constant 70 : index
    %c0_283 = arith.constant 0 : index
    %852 = vector.load %arg5[%c70, %c0_283] : memref<128x128xf32, #tpu.memory_space<vmem>>, vector<1x128xf32>
    tpu.vector_store %arg5[%c70, %c0_283], %851 {strides = array<i32>} : memref<128x128xf32, #tpu.memory_space<vmem>>, vector<1x128xf32>,
    %c71_i32 = arith.constant 71 : i32
    %853 = arith.addi %0, %c71_i32 : i32
    %854 = arith.index_cast %853 : i32 to index
    %855 = memref.load %arg1[%854] : memref<128xi32, #tpu.memory_space<smem>>
    %c71_i32_284 = arith.constant 71 : i32
    %856 = arith.addi %0, %c71_i32_284 : i32
    %857 = arith.index_cast %856 : i32 to index
    %858 = memref.load %arg2[%857] : memref<128xi32, #tpu.memory_space<smem>>
    %859 = arith.index_cast %855 : i32 to index
    %c0_285 = arith.constant 0 : index
    %860 = vector.load %arg3[%859, %c0_285] : memref<512x128xf32, #tpu.memory_space<vmem>>, vector<1x128xf32>
    %861 = arith.index_cast %858 : i32 to index
    %c0_286 = arith.constant 0 : index
    %862 = vector.load %arg4[%861, %c0_286] : memref<64x128xf32, #tpu.memory_space<vmem>>, vector<1x128xf32>
    %863 = arith.addf %860, %862 : vector<1x128xf32>
    %c71 = arith.constant 71 : index
    %c0_287 = arith.constant 0 : index
    %864 = vector.load %arg5[%c71, %c0_287] : memref<128x128xf32, #tpu.memory_space<vmem>>, vector<1x128xf32>
    tpu.vector_store %arg5[%c71, %c0_287], %863 {strides = array<i32>} : memref<128x128xf32, #tpu.memory_space<vmem>>, vector<1x128xf32>,
    %c72_i32 = arith.constant 72 : i32
    %865 = arith.addi %0, %c72_i32 : i32
    %866 = arith.index_cast %865 : i32 to index
    %867 = memref.load %arg1[%866] : memref<128xi32, #tpu.memory_space<smem>>
    %c72_i32_288 = arith.constant 72 : i32
    %868 = arith.addi %0, %c72_i32_288 : i32
    %869 = arith.index_cast %868 : i32 to index
    %870 = memref.load %arg2[%869] : memref<128xi32, #tpu.memory_space<smem>>
    %871 = arith.index_cast %867 : i32 to index
    %c0_289 = arith.constant 0 : index
    %872 = vector.load %arg3[%871, %c0_289] : memref<512x128xf32, #tpu.memory_space<vmem>>, vector<1x128xf32>
    %873 = arith.index_cast %870 : i32 to index
    %c0_290 = arith.constant 0 : index
    %874 = vector.load %arg4[%873, %c0_290] : memref<64x128xf32, #tpu.memory_space<vmem>>, vector<1x128xf32>
    %875 = arith.addf %872, %874 : vector<1x128xf32>
    %c72 = arith.constant 72 : index
    %c0_291 = arith.constant 0 : index
    %876 = vector.load %arg5[%c72, %c0_291] : memref<128x128xf32, #tpu.memory_space<vmem>>, vector<1x128xf32>
    tpu.vector_store %arg5[%c72, %c0_291], %875 {strides = array<i32>} : memref<128x128xf32, #tpu.memory_space<vmem>>, vector<1x128xf32>,
    %c73_i32 = arith.constant 73 : i32
    %877 = arith.addi %0, %c73_i32 : i32
    %878 = arith.index_cast %877 : i32 to index
    %879 = memref.load %arg1[%878] : memref<128xi32, #tpu.memory_space<smem>>
    %c73_i32_292 = arith.constant 73 : i32
    %880 = arith.addi %0, %c73_i32_292 : i32
    %881 = arith.index_cast %880 : i32 to index
    %882 = memref.load %arg2[%881] : memref<128xi32, #tpu.memory_space<smem>>
    %883 = arith.index_cast %879 : i32 to index
    %c0_293 = arith.constant 0 : index
    %884 = vector.load %arg3[%883, %c0_293] : memref<512x128xf32, #tpu.memory_space<vmem>>, vector<1x128xf32>
    %885 = arith.index_cast %882 : i32 to index
    %c0_294 = arith.constant 0 : index
    %886 = vector.load %arg4[%885, %c0_294] : memref<64x128xf32, #tpu.memory_space<vmem>>, vector<1x128xf32>
    %887 = arith.addf %884, %886 : vector<1x128xf32>
    %c73 = arith.constant 73 : index
    %c0_295 = arith.constant 0 : index
    %888 = vector.load %arg5[%c73, %c0_295] : memref<128x128xf32, #tpu.memory_space<vmem>>, vector<1x128xf32>
    tpu.vector_store %arg5[%c73, %c0_295], %887 {strides = array<i32>} : memref<128x128xf32, #tpu.memory_space<vmem>>, vector<1x128xf32>,
    %c74_i32 = arith.constant 74 : i32
    %889 = arith.addi %0, %c74_i32 : i32
    %890 = arith.index_cast %889 : i32 to index
    %891 = memref.load %arg1[%890] : memref<128xi32, #tpu.memory_space<smem>>
    %c74_i32_296 = arith.constant 74 : i32
    %892 = arith.addi %0, %c74_i32_296 : i32
    %893 = arith.index_cast %892 : i32 to index
    %894 = memref.load %arg2[%893] : memref<128xi32, #tpu.memory_space<smem>>
    %895 = arith.index_cast %891 : i32 to index
    %c0_297 = arith.constant 0 : index
    %896 = vector.load %arg3[%895, %c0_297] : memref<512x128xf32, #tpu.memory_space<vmem>>, vector<1x128xf32>
    %897 = arith.index_cast %894 : i32 to index
    %c0_298 = arith.constant 0 : index
    %898 = vector.load %arg4[%897, %c0_298] : memref<64x128xf32, #tpu.memory_space<vmem>>, vector<1x128xf32>
    %899 = arith.addf %896, %898 : vector<1x128xf32>
    %c74 = arith.constant 74 : index
    %c0_299 = arith.constant 0 : index
    %900 = vector.load %arg5[%c74, %c0_299] : memref<128x128xf32, #tpu.memory_space<vmem>>, vector<1x128xf32>
    tpu.vector_store %arg5[%c74, %c0_299], %899 {strides = array<i32>} : memref<128x128xf32, #tpu.memory_space<vmem>>, vector<1x128xf32>,
    %c75_i32 = arith.constant 75 : i32
    %901 = arith.addi %0, %c75_i32 : i32
    %902 = arith.index_cast %901 : i32 to index
    %903 = memref.load %arg1[%902] : memref<128xi32, #tpu.memory_space<smem>>
    %c75_i32_300 = arith.constant 75 : i32
    %904 = arith.addi %0, %c75_i32_300 : i32
    %905 = arith.index_cast %904 : i32 to index
    %906 = memref.load %arg2[%905] : memref<128xi32, #tpu.memory_space<smem>>
    %907 = arith.index_cast %903 : i32 to index
    %c0_301 = arith.constant 0 : index
    %908 = vector.load %arg3[%907, %c0_301] : memref<512x128xf32, #tpu.memory_space<vmem>>, vector<1x128xf32>
    %909 = arith.index_cast %906 : i32 to index
    %c0_302 = arith.constant 0 : index
    %910 = vector.load %arg4[%909, %c0_302] : memref<64x128xf32, #tpu.memory_space<vmem>>, vector<1x128xf32>
    %911 = arith.addf %908, %910 : vector<1x128xf32>
    %c75 = arith.constant 75 : index
    %c0_303 = arith.constant 0 : index
    %912 = vector.load %arg5[%c75, %c0_303] : memref<128x128xf32, #tpu.memory_space<vmem>>, vector<1x128xf32>
    tpu.vector_store %arg5[%c75, %c0_303], %911 {strides = array<i32>} : memref<128x128xf32, #tpu.memory_space<vmem>>, vector<1x128xf32>,
    %c76_i32 = arith.constant 76 : i32
    %913 = arith.addi %0, %c76_i32 : i32
    %914 = arith.index_cast %913 : i32 to index
    %915 = memref.load %arg1[%914] : memref<128xi32, #tpu.memory_space<smem>>
    %c76_i32_304 = arith.constant 76 : i32
    %916 = arith.addi %0, %c76_i32_304 : i32
    %917 = arith.index_cast %916 : i32 to index
    %918 = memref.load %arg2[%917] : memref<128xi32, #tpu.memory_space<smem>>
    %919 = arith.index_cast %915 : i32 to index
    %c0_305 = arith.constant 0 : index
    %920 = vector.load %arg3[%919, %c0_305] : memref<512x128xf32, #tpu.memory_space<vmem>>, vector<1x128xf32>
    %921 = arith.index_cast %918 : i32 to index
    %c0_306 = arith.constant 0 : index
    %922 = vector.load %arg4[%921, %c0_306] : memref<64x128xf32, #tpu.memory_space<vmem>>, vector<1x128xf32>
    %923 = arith.addf %920, %922 : vector<1x128xf32>
    %c76 = arith.constant 76 : index
    %c0_307 = arith.constant 0 : index
    %924 = vector.load %arg5[%c76, %c0_307] : memref<128x128xf32, #tpu.memory_space<vmem>>, vector<1x128xf32>
    tpu.vector_store %arg5[%c76, %c0_307], %923 {strides = array<i32>} : memref<128x128xf32, #tpu.memory_space<vmem>>, vector<1x128xf32>,
    %c77_i32 = arith.constant 77 : i32
    %925 = arith.addi %0, %c77_i32 : i32
    %926 = arith.index_cast %925 : i32 to index
    %927 = memref.load %arg1[%926] : memref<128xi32, #tpu.memory_space<smem>>
    %c77_i32_308 = arith.constant 77 : i32
    %928 = arith.addi %0, %c77_i32_308 : i32
    %929 = arith.index_cast %928 : i32 to index
    %930 = memref.load %arg2[%929] : memref<128xi32, #tpu.memory_space<smem>>
    %931 = arith.index_cast %927 : i32 to index
    %c0_309 = arith.constant 0 : index
    %932 = vector.load %arg3[%931, %c0_309] : memref<512x128xf32, #tpu.memory_space<vmem>>, vector<1x128xf32>
    %933 = arith.index_cast %930 : i32 to index
    %c0_310 = arith.constant 0 : index
    %934 = vector.load %arg4[%933, %c0_310] : memref<64x128xf32, #tpu.memory_space<vmem>>, vector<1x128xf32>
    %935 = arith.addf %932, %934 : vector<1x128xf32>
    %c77 = arith.constant 77 : index
    %c0_311 = arith.constant 0 : index
    %936 = vector.load %arg5[%c77, %c0_311] : memref<128x128xf32, #tpu.memory_space<vmem>>, vector<1x128xf32>
    tpu.vector_store %arg5[%c77, %c0_311], %935 {strides = array<i32>} : memref<128x128xf32, #tpu.memory_space<vmem>>, vector<1x128xf32>,
    %c78_i32 = arith.constant 78 : i32
    %937 = arith.addi %0, %c78_i32 : i32
    %938 = arith.index_cast %937 : i32 to index
    %939 = memref.load %arg1[%938] : memref<128xi32, #tpu.memory_space<smem>>
    %c78_i32_312 = arith.constant 78 : i32
    %940 = arith.addi %0, %c78_i32_312 : i32
    %941 = arith.index_cast %940 : i32 to index
    %942 = memref.load %arg2[%941] : memref<128xi32, #tpu.memory_space<smem>>
    %943 = arith.index_cast %939 : i32 to index
    %c0_313 = arith.constant 0 : index
    %944 = vector.load %arg3[%943, %c0_313] : memref<512x128xf32, #tpu.memory_space<vmem>>, vector<1x128xf32>
    %945 = arith.index_cast %942 : i32 to index
    %c0_314 = arith.constant 0 : index
    %946 = vector.load %arg4[%945, %c0_314] : memref<64x128xf32, #tpu.memory_space<vmem>>, vector<1x128xf32>
    %947 = arith.addf %944, %946 : vector<1x128xf32>
    %c78 = arith.constant 78 : index
    %c0_315 = arith.constant 0 : index
    %948 = vector.load %arg5[%c78, %c0_315] : memref<128x128xf32, #tpu.memory_space<vmem>>, vector<1x128xf32>
    tpu.vector_store %arg5[%c78, %c0_315], %947 {strides = array<i32>} : memref<128x128xf32, #tpu.memory_space<vmem>>, vector<1x128xf32>,
    %c79_i32 = arith.constant 79 : i32
    %949 = arith.addi %0, %c79_i32 : i32
    %950 = arith.index_cast %949 : i32 to index
    %951 = memref.load %arg1[%950] : memref<128xi32, #tpu.memory_space<smem>>
    %c79_i32_316 = arith.constant 79 : i32
    %952 = arith.addi %0, %c79_i32_316 : i32
    %953 = arith.index_cast %952 : i32 to index
    %954 = memref.load %arg2[%953] : memref<128xi32, #tpu.memory_space<smem>>
    %955 = arith.index_cast %951 : i32 to index
    %c0_317 = arith.constant 0 : index
    %956 = vector.load %arg3[%955, %c0_317] : memref<512x128xf32, #tpu.memory_space<vmem>>, vector<1x128xf32>
    %957 = arith.index_cast %954 : i32 to index
    %c0_318 = arith.constant 0 : index
    %958 = vector.load %arg4[%957, %c0_318] : memref<64x128xf32, #tpu.memory_space<vmem>>, vector<1x128xf32>
    %959 = arith.addf %956, %958 : vector<1x128xf32>
    %c79 = arith.constant 79 : index
    %c0_319 = arith.constant 0 : index
    %960 = vector.load %arg5[%c79, %c0_319] : memref<128x128xf32, #tpu.memory_space<vmem>>, vector<1x128xf32>
    tpu.vector_store %arg5[%c79, %c0_319], %959 {strides = array<i32>} : memref<128x128xf32, #tpu.memory_space<vmem>>, vector<1x128xf32>,
    %c80_i32 = arith.constant 80 : i32
    %961 = arith.addi %0, %c80_i32 : i32
    %962 = arith.index_cast %961 : i32 to index
    %963 = memref.load %arg1[%962] : memref<128xi32, #tpu.memory_space<smem>>
    %c80_i32_320 = arith.constant 80 : i32
    %964 = arith.addi %0, %c80_i32_320 : i32
    %965 = arith.index_cast %964 : i32 to index
    %966 = memref.load %arg2[%965] : memref<128xi32, #tpu.memory_space<smem>>
    %967 = arith.index_cast %963 : i32 to index
    %c0_321 = arith.constant 0 : index
    %968 = vector.load %arg3[%967, %c0_321] : memref<512x128xf32, #tpu.memory_space<vmem>>, vector<1x128xf32>
    %969 = arith.index_cast %966 : i32 to index
    %c0_322 = arith.constant 0 : index
    %970 = vector.load %arg4[%969, %c0_322] : memref<64x128xf32, #tpu.memory_space<vmem>>, vector<1x128xf32>
    %971 = arith.addf %968, %970 : vector<1x128xf32>
    %c80 = arith.constant 80 : index
    %c0_323 = arith.constant 0 : index
    %972 = vector.load %arg5[%c80, %c0_323] : memref<128x128xf32, #tpu.memory_space<vmem>>, vector<1x128xf32>
    tpu.vector_store %arg5[%c80, %c0_323], %971 {strides = array<i32>} : memref<128x128xf32, #tpu.memory_space<vmem>>, vector<1x128xf32>,
    %c81_i32 = arith.constant 81 : i32
    %973 = arith.addi %0, %c81_i32 : i32
    %974 = arith.index_cast %973 : i32 to index
    %975 = memref.load %arg1[%974] : memref<128xi32, #tpu.memory_space<smem>>
    %c81_i32_324 = arith.constant 81 : i32
    %976 = arith.addi %0, %c81_i32_324 : i32
    %977 = arith.index_cast %976 : i32 to index
    %978 = memref.load %arg2[%977] : memref<128xi32, #tpu.memory_space<smem>>
    %979 = arith.index_cast %975 : i32 to index
    %c0_325 = arith.constant 0 : index
    %980 = vector.load %arg3[%979, %c0_325] : memref<512x128xf32, #tpu.memory_space<vmem>>, vector<1x128xf32>
    %981 = arith.index_cast %978 : i32 to index
    %c0_326 = arith.constant 0 : index
    %982 = vector.load %arg4[%981, %c0_326] : memref<64x128xf32, #tpu.memory_space<vmem>>, vector<1x128xf32>
    %983 = arith.addf %980, %982 : vector<1x128xf32>
    %c81 = arith.constant 81 : index
    %c0_327 = arith.constant 0 : index
    %984 = vector.load %arg5[%c81, %c0_327] : memref<128x128xf32, #tpu.memory_space<vmem>>, vector<1x128xf32>
    tpu.vector_store %arg5[%c81, %c0_327], %983 {strides = array<i32>} : memref<128x128xf32, #tpu.memory_space<vmem>>, vector<1x128xf32>,
    %c82_i32 = arith.constant 82 : i32
    %985 = arith.addi %0, %c82_i32 : i32
    %986 = arith.index_cast %985 : i32 to index
    %987 = memref.load %arg1[%986] : memref<128xi32, #tpu.memory_space<smem>>
    %c82_i32_328 = arith.constant 82 : i32
    %988 = arith.addi %0, %c82_i32_328 : i32
    %989 = arith.index_cast %988 : i32 to index
    %990 = memref.load %arg2[%989] : memref<128xi32, #tpu.memory_space<smem>>
    %991 = arith.index_cast %987 : i32 to index
    %c0_329 = arith.constant 0 : index
    %992 = vector.load %arg3[%991, %c0_329] : memref<512x128xf32, #tpu.memory_space<vmem>>, vector<1x128xf32>
    %993 = arith.index_cast %990 : i32 to index
    %c0_330 = arith.constant 0 : index
    %994 = vector.load %arg4[%993, %c0_330] : memref<64x128xf32, #tpu.memory_space<vmem>>, vector<1x128xf32>
    %995 = arith.addf %992, %994 : vector<1x128xf32>
    %c82 = arith.constant 82 : index
    %c0_331 = arith.constant 0 : index
    %996 = vector.load %arg5[%c82, %c0_331] : memref<128x128xf32, #tpu.memory_space<vmem>>, vector<1x128xf32>
    tpu.vector_store %arg5[%c82, %c0_331], %995 {strides = array<i32>} : memref<128x128xf32, #tpu.memory_space<vmem>>, vector<1x128xf32>,
    %c83_i32 = arith.constant 83 : i32
    %997 = arith.addi %0, %c83_i32 : i32
    %998 = arith.index_cast %997 : i32 to index
    %999 = memref.load %arg1[%998] : memref<128xi32, #tpu.memory_space<smem>>
    %c83_i32_332 = arith.constant 83 : i32
    %1000 = arith.addi %0, %c83_i32_332 : i32
    %1001 = arith.index_cast %1000 : i32 to index
    %1002 = memref.load %arg2[%1001] : memref<128xi32, #tpu.memory_space<smem>>
    %1003 = arith.index_cast %999 : i32 to index
    %c0_333 = arith.constant 0 : index
    %1004 = vector.load %arg3[%1003, %c0_333] : memref<512x128xf32, #tpu.memory_space<vmem>>, vector<1x128xf32>
    %1005 = arith.index_cast %1002 : i32 to index
    %c0_334 = arith.constant 0 : index
    %1006 = vector.load %arg4[%1005, %c0_334] : memref<64x128xf32, #tpu.memory_space<vmem>>, vector<1x128xf32>
    %1007 = arith.addf %1004, %1006 : vector<1x128xf32>
    %c83 = arith.constant 83 : index
    %c0_335 = arith.constant 0 : index
    %1008 = vector.load %arg5[%c83, %c0_335] : memref<128x128xf32, #tpu.memory_space<vmem>>, vector<1x128xf32>
    tpu.vector_store %arg5[%c83, %c0_335], %1007 {strides = array<i32>} : memref<128x128xf32, #tpu.memory_space<vmem>>, vector<1x128xf32>,
    %c84_i32 = arith.constant 84 : i32
    %1009 = arith.addi %0, %c84_i32 : i32
    %1010 = arith.index_cast %1009 : i32 to index
    %1011 = memref.load %arg1[%1010] : memref<128xi32, #tpu.memory_space<smem>>
    %c84_i32_336 = arith.constant 84 : i32
    %1012 = arith.addi %0, %c84_i32_336 : i32
    %1013 = arith.index_cast %1012 : i32 to index
    %1014 = memref.load %arg2[%1013] : memref<128xi32, #tpu.memory_space<smem>>
    %1015 = arith.index_cast %1011 : i32 to index
    %c0_337 = arith.constant 0 : index
    %1016 = vector.load %arg3[%1015, %c0_337] : memref<512x128xf32, #tpu.memory_space<vmem>>, vector<1x128xf32>
    %1017 = arith.index_cast %1014 : i32 to index
    %c0_338 = arith.constant 0 : index
    %1018 = vector.load %arg4[%1017, %c0_338] : memref<64x128xf32, #tpu.memory_space<vmem>>, vector<1x128xf32>
    %1019 = arith.addf %1016, %1018 : vector<1x128xf32>
    %c84 = arith.constant 84 : index
    %c0_339 = arith.constant 0 : index
    %1020 = vector.load %arg5[%c84, %c0_339] : memref<128x128xf32, #tpu.memory_space<vmem>>, vector<1x128xf32>
    tpu.vector_store %arg5[%c84, %c0_339], %1019 {strides = array<i32>} : memref<128x128xf32, #tpu.memory_space<vmem>>, vector<1x128xf32>,
    %c85_i32 = arith.constant 85 : i32
    %1021 = arith.addi %0, %c85_i32 : i32
    %1022 = arith.index_cast %1021 : i32 to index
    %1023 = memref.load %arg1[%1022] : memref<128xi32, #tpu.memory_space<smem>>
    %c85_i32_340 = arith.constant 85 : i32
    %1024 = arith.addi %0, %c85_i32_340 : i32
    %1025 = arith.index_cast %1024 : i32 to index
    %1026 = memref.load %arg2[%1025] : memref<128xi32, #tpu.memory_space<smem>>
    %1027 = arith.index_cast %1023 : i32 to index
    %c0_341 = arith.constant 0 : index
    %1028 = vector.load %arg3[%1027, %c0_341] : memref<512x128xf32, #tpu.memory_space<vmem>>, vector<1x128xf32>
    %1029 = arith.index_cast %1026 : i32 to index
    %c0_342 = arith.constant 0 : index
    %1030 = vector.load %arg4[%1029, %c0_342] : memref<64x128xf32, #tpu.memory_space<vmem>>, vector<1x128xf32>
    %1031 = arith.addf %1028, %1030 : vector<1x128xf32>
    %c85 = arith.constant 85 : index
    %c0_343 = arith.constant 0 : index
    %1032 = vector.load %arg5[%c85, %c0_343] : memref<128x128xf32, #tpu.memory_space<vmem>>, vector<1x128xf32>
    tpu.vector_store %arg5[%c85, %c0_343], %1031 {strides = array<i32>} : memref<128x128xf32, #tpu.memory_space<vmem>>, vector<1x128xf32>,
    %c86_i32 = arith.constant 86 : i32
    %1033 = arith.addi %0, %c86_i32 : i32
    %1034 = arith.index_cast %1033 : i32 to index
    %1035 = memref.load %arg1[%1034] : memref<128xi32, #tpu.memory_space<smem>>
    %c86_i32_344 = arith.constant 86 : i32
    %1036 = arith.addi %0, %c86_i32_344 : i32
    %1037 = arith.index_cast %1036 : i32 to index
    %1038 = memref.load %arg2[%1037] : memref<128xi32, #tpu.memory_space<smem>>
    %1039 = arith.index_cast %1035 : i32 to index
    %c0_345 = arith.constant 0 : index
    %1040 = vector.load %arg3[%1039, %c0_345] : memref<512x128xf32, #tpu.memory_space<vmem>>, vector<1x128xf32>
    %1041 = arith.index_cast %1038 : i32 to index
    %c0_346 = arith.constant 0 : index
    %1042 = vector.load %arg4[%1041, %c0_346] : memref<64x128xf32, #tpu.memory_space<vmem>>, vector<1x128xf32>
    %1043 = arith.addf %1040, %1042 : vector<1x128xf32>
    %c86 = arith.constant 86 : index
    %c0_347 = arith.constant 0 : index
    %1044 = vector.load %arg5[%c86, %c0_347] : memref<128x128xf32, #tpu.memory_space<vmem>>, vector<1x128xf32>
    tpu.vector_store %arg5[%c86, %c0_347], %1043 {strides = array<i32>} : memref<128x128xf32, #tpu.memory_space<vmem>>, vector<1x128xf32>,
    %c87_i32 = arith.constant 87 : i32
    %1045 = arith.addi %0, %c87_i32 : i32
    %1046 = arith.index_cast %1045 : i32 to index
    %1047 = memref.load %arg1[%1046] : memref<128xi32, #tpu.memory_space<smem>>
    %c87_i32_348 = arith.constant 87 : i32
    %1048 = arith.addi %0, %c87_i32_348 : i32
    %1049 = arith.index_cast %1048 : i32 to index
    %1050 = memref.load %arg2[%1049] : memref<128xi32, #tpu.memory_space<smem>>
    %1051 = arith.index_cast %1047 : i32 to index
    %c0_349 = arith.constant 0 : index
    %1052 = vector.load %arg3[%1051, %c0_349] : memref<512x128xf32, #tpu.memory_space<vmem>>, vector<1x128xf32>
    %1053 = arith.index_cast %1050 : i32 to index
    %c0_350 = arith.constant 0 : index
    %1054 = vector.load %arg4[%1053, %c0_350] : memref<64x128xf32, #tpu.memory_space<vmem>>, vector<1x128xf32>
    %1055 = arith.addf %1052, %1054 : vector<1x128xf32>
    %c87 = arith.constant 87 : index
    %c0_351 = arith.constant 0 : index
    %1056 = vector.load %arg5[%c87, %c0_351] : memref<128x128xf32, #tpu.memory_space<vmem>>, vector<1x128xf32>
    tpu.vector_store %arg5[%c87, %c0_351], %1055 {strides = array<i32>} : memref<128x128xf32, #tpu.memory_space<vmem>>, vector<1x128xf32>,
    %c88_i32 = arith.constant 88 : i32
    %1057 = arith.addi %0, %c88_i32 : i32
    %1058 = arith.index_cast %1057 : i32 to index
    %1059 = memref.load %arg1[%1058] : memref<128xi32, #tpu.memory_space<smem>>
    %c88_i32_352 = arith.constant 88 : i32
    %1060 = arith.addi %0, %c88_i32_352 : i32
    %1061 = arith.index_cast %1060 : i32 to index
    %1062 = memref.load %arg2[%1061] : memref<128xi32, #tpu.memory_space<smem>>
    %1063 = arith.index_cast %1059 : i32 to index
    %c0_353 = arith.constant 0 : index
    %1064 = vector.load %arg3[%1063, %c0_353] : memref<512x128xf32, #tpu.memory_space<vmem>>, vector<1x128xf32>
    %1065 = arith.index_cast %1062 : i32 to index
    %c0_354 = arith.constant 0 : index
    %1066 = vector.load %arg4[%1065, %c0_354] : memref<64x128xf32, #tpu.memory_space<vmem>>, vector<1x128xf32>
    %1067 = arith.addf %1064, %1066 : vector<1x128xf32>
    %c88 = arith.constant 88 : index
    %c0_355 = arith.constant 0 : index
    %1068 = vector.load %arg5[%c88, %c0_355] : memref<128x128xf32, #tpu.memory_space<vmem>>, vector<1x128xf32>
    tpu.vector_store %arg5[%c88, %c0_355], %1067 {strides = array<i32>} : memref<128x128xf32, #tpu.memory_space<vmem>>, vector<1x128xf32>,
    %c89_i32 = arith.constant 89 : i32
    %1069 = arith.addi %0, %c89_i32 : i32
    %1070 = arith.index_cast %1069 : i32 to index
    %1071 = memref.load %arg1[%1070] : memref<128xi32, #tpu.memory_space<smem>>
    %c89_i32_356 = arith.constant 89 : i32
    %1072 = arith.addi %0, %c89_i32_356 : i32
    %1073 = arith.index_cast %1072 : i32 to index
    %1074 = memref.load %arg2[%1073] : memref<128xi32, #tpu.memory_space<smem>>
    %1075 = arith.index_cast %1071 : i32 to index
    %c0_357 = arith.constant 0 : index
    %1076 = vector.load %arg3[%1075, %c0_357] : memref<512x128xf32, #tpu.memory_space<vmem>>, vector<1x128xf32>
    %1077 = arith.index_cast %1074 : i32 to index
    %c0_358 = arith.constant 0 : index
    %1078 = vector.load %arg4[%1077, %c0_358] : memref<64x128xf32, #tpu.memory_space<vmem>>, vector<1x128xf32>
    %1079 = arith.addf %1076, %1078 : vector<1x128xf32>
    %c89 = arith.constant 89 : index
    %c0_359 = arith.constant 0 : index
    %1080 = vector.load %arg5[%c89, %c0_359] : memref<128x128xf32, #tpu.memory_space<vmem>>, vector<1x128xf32>
    tpu.vector_store %arg5[%c89, %c0_359], %1079 {strides = array<i32>} : memref<128x128xf32, #tpu.memory_space<vmem>>, vector<1x128xf32>,
    %c90_i32 = arith.constant 90 : i32
    %1081 = arith.addi %0, %c90_i32 : i32
    %1082 = arith.index_cast %1081 : i32 to index
    %1083 = memref.load %arg1[%1082] : memref<128xi32, #tpu.memory_space<smem>>
    %c90_i32_360 = arith.constant 90 : i32
    %1084 = arith.addi %0, %c90_i32_360 : i32
    %1085 = arith.index_cast %1084 : i32 to index
    %1086 = memref.load %arg2[%1085] : memref<128xi32, #tpu.memory_space<smem>>
    %1087 = arith.index_cast %1083 : i32 to index
    %c0_361 = arith.constant 0 : index
    %1088 = vector.load %arg3[%1087, %c0_361] : memref<512x128xf32, #tpu.memory_space<vmem>>, vector<1x128xf32>
    %1089 = arith.index_cast %1086 : i32 to index
    %c0_362 = arith.constant 0 : index
    %1090 = vector.load %arg4[%1089, %c0_362] : memref<64x128xf32, #tpu.memory_space<vmem>>, vector<1x128xf32>
    %1091 = arith.addf %1088, %1090 : vector<1x128xf32>
    %c90 = arith.constant 90 : index
    %c0_363 = arith.constant 0 : index
    %1092 = vector.load %arg5[%c90, %c0_363] : memref<128x128xf32, #tpu.memory_space<vmem>>, vector<1x128xf32>
    tpu.vector_store %arg5[%c90, %c0_363], %1091 {strides = array<i32>} : memref<128x128xf32, #tpu.memory_space<vmem>>, vector<1x128xf32>,
    %c91_i32 = arith.constant 91 : i32
    %1093 = arith.addi %0, %c91_i32 : i32
    %1094 = arith.index_cast %1093 : i32 to index
    %1095 = memref.load %arg1[%1094] : memref<128xi32, #tpu.memory_space<smem>>
    %c91_i32_364 = arith.constant 91 : i32
    %1096 = arith.addi %0, %c91_i32_364 : i32
    %1097 = arith.index_cast %1096 : i32 to index
    %1098 = memref.load %arg2[%1097] : memref<128xi32, #tpu.memory_space<smem>>
    %1099 = arith.index_cast %1095 : i32 to index
    %c0_365 = arith.constant 0 : index
    %1100 = vector.load %arg3[%1099, %c0_365] : memref<512x128xf32, #tpu.memory_space<vmem>>, vector<1x128xf32>
    %1101 = arith.index_cast %1098 : i32 to index
    %c0_366 = arith.constant 0 : index
    %1102 = vector.load %arg4[%1101, %c0_366] : memref<64x128xf32, #tpu.memory_space<vmem>>, vector<1x128xf32>
    %1103 = arith.addf %1100, %1102 : vector<1x128xf32>
    %c91 = arith.constant 91 : index
    %c0_367 = arith.constant 0 : index
    %1104 = vector.load %arg5[%c91, %c0_367] : memref<128x128xf32, #tpu.memory_space<vmem>>, vector<1x128xf32>
    tpu.vector_store %arg5[%c91, %c0_367], %1103 {strides = array<i32>} : memref<128x128xf32, #tpu.memory_space<vmem>>, vector<1x128xf32>,
    %c92_i32 = arith.constant 92 : i32
    %1105 = arith.addi %0, %c92_i32 : i32
    %1106 = arith.index_cast %1105 : i32 to index
    %1107 = memref.load %arg1[%1106] : memref<128xi32, #tpu.memory_space<smem>>
    %c92_i32_368 = arith.constant 92 : i32
    %1108 = arith.addi %0, %c92_i32_368 : i32
    %1109 = arith.index_cast %1108 : i32 to index
    %1110 = memref.load %arg2[%1109] : memref<128xi32, #tpu.memory_space<smem>>
    %1111 = arith.index_cast %1107 : i32 to index
    %c0_369 = arith.constant 0 : index
    %1112 = vector.load %arg3[%1111, %c0_369] : memref<512x128xf32, #tpu.memory_space<vmem>>, vector<1x128xf32>
    %1113 = arith.index_cast %1110 : i32 to index
    %c0_370 = arith.constant 0 : index
    %1114 = vector.load %arg4[%1113, %c0_370] : memref<64x128xf32, #tpu.memory_space<vmem>>, vector<1x128xf32>
    %1115 = arith.addf %1112, %1114 : vector<1x128xf32>
    %c92 = arith.constant 92 : index
    %c0_371 = arith.constant 0 : index
    %1116 = vector.load %arg5[%c92, %c0_371] : memref<128x128xf32, #tpu.memory_space<vmem>>, vector<1x128xf32>
    tpu.vector_store %arg5[%c92, %c0_371], %1115 {strides = array<i32>} : memref<128x128xf32, #tpu.memory_space<vmem>>, vector<1x128xf32>,
    %c93_i32 = arith.constant 93 : i32
    %1117 = arith.addi %0, %c93_i32 : i32
    %1118 = arith.index_cast %1117 : i32 to index
    %1119 = memref.load %arg1[%1118] : memref<128xi32, #tpu.memory_space<smem>>
    %c93_i32_372 = arith.constant 93 : i32
    %1120 = arith.addi %0, %c93_i32_372 : i32
    %1121 = arith.index_cast %1120 : i32 to index
    %1122 = memref.load %arg2[%1121] : memref<128xi32, #tpu.memory_space<smem>>
    %1123 = arith.index_cast %1119 : i32 to index
    %c0_373 = arith.constant 0 : index
    %1124 = vector.load %arg3[%1123, %c0_373] : memref<512x128xf32, #tpu.memory_space<vmem>>, vector<1x128xf32>
    %1125 = arith.index_cast %1122 : i32 to index
    %c0_374 = arith.constant 0 : index
    %1126 = vector.load %arg4[%1125, %c0_374] : memref<64x128xf32, #tpu.memory_space<vmem>>, vector<1x128xf32>
    %1127 = arith.addf %1124, %1126 : vector<1x128xf32>
    %c93 = arith.constant 93 : index
    %c0_375 = arith.constant 0 : index
    %1128 = vector.load %arg5[%c93, %c0_375] : memref<128x128xf32, #tpu.memory_space<vmem>>, vector<1x128xf32>
    tpu.vector_store %arg5[%c93, %c0_375], %1127 {strides = array<i32>} : memref<128x128xf32, #tpu.memory_space<vmem>>, vector<1x128xf32>,
    %c94_i32 = arith.constant 94 : i32
    %1129 = arith.addi %0, %c94_i32 : i32
    %1130 = arith.index_cast %1129 : i32 to index
    %1131 = memref.load %arg1[%1130] : memref<128xi32, #tpu.memory_space<smem>>
    %c94_i32_376 = arith.constant 94 : i32
    %1132 = arith.addi %0, %c94_i32_376 : i32
    %1133 = arith.index_cast %1132 : i32 to index
    %1134 = memref.load %arg2[%1133] : memref<128xi32, #tpu.memory_space<smem>>
    %1135 = arith.index_cast %1131 : i32 to index
    %c0_377 = arith.constant 0 : index
    %1136 = vector.load %arg3[%1135, %c0_377] : memref<512x128xf32, #tpu.memory_space<vmem>>, vector<1x128xf32>
    %1137 = arith.index_cast %1134 : i32 to index
    %c0_378 = arith.constant 0 : index
    %1138 = vector.load %arg4[%1137, %c0_378] : memref<64x128xf32, #tpu.memory_space<vmem>>, vector<1x128xf32>
    %1139 = arith.addf %1136, %1138 : vector<1x128xf32>
    %c94 = arith.constant 94 : index
    %c0_379 = arith.constant 0 : index
    %1140 = vector.load %arg5[%c94, %c0_379] : memref<128x128xf32, #tpu.memory_space<vmem>>, vector<1x128xf32>
    tpu.vector_store %arg5[%c94, %c0_379], %1139 {strides = array<i32>} : memref<128x128xf32, #tpu.memory_space<vmem>>, vector<1x128xf32>,
    %c95_i32 = arith.constant 95 : i32
    %1141 = arith.addi %0, %c95_i32 : i32
    %1142 = arith.index_cast %1141 : i32 to index
    %1143 = memref.load %arg1[%1142] : memref<128xi32, #tpu.memory_space<smem>>
    %c95_i32_380 = arith.constant 95 : i32
    %1144 = arith.addi %0, %c95_i32_380 : i32
    %1145 = arith.index_cast %1144 : i32 to index
    %1146 = memref.load %arg2[%1145] : memref<128xi32, #tpu.memory_space<smem>>
    %1147 = arith.index_cast %1143 : i32 to index
    %c0_381 = arith.constant 0 : index
    %1148 = vector.load %arg3[%1147, %c0_381] : memref<512x128xf32, #tpu.memory_space<vmem>>, vector<1x128xf32>
    %1149 = arith.index_cast %1146 : i32 to index
    %c0_382 = arith.constant 0 : index
    %1150 = vector.load %arg4[%1149, %c0_382] : memref<64x128xf32, #tpu.memory_space<vmem>>, vector<1x128xf32>
    %1151 = arith.addf %1148, %1150 : vector<1x128xf32>
    %c95 = arith.constant 95 : index
    %c0_383 = arith.constant 0 : index
    %1152 = vector.load %arg5[%c95, %c0_383] : memref<128x128xf32, #tpu.memory_space<vmem>>, vector<1x128xf32>
    tpu.vector_store %arg5[%c95, %c0_383], %1151 {strides = array<i32>} : memref<128x128xf32, #tpu.memory_space<vmem>>, vector<1x128xf32>,
    %c96_i32 = arith.constant 96 : i32
    %1153 = arith.addi %0, %c96_i32 : i32
    %1154 = arith.index_cast %1153 : i32 to index
    %1155 = memref.load %arg1[%1154] : memref<128xi32, #tpu.memory_space<smem>>
    %c96_i32_384 = arith.constant 96 : i32
    %1156 = arith.addi %0, %c96_i32_384 : i32
    %1157 = arith.index_cast %1156 : i32 to index
    %1158 = memref.load %arg2[%1157] : memref<128xi32, #tpu.memory_space<smem>>
    %1159 = arith.index_cast %1155 : i32 to index
    %c0_385 = arith.constant 0 : index
    %1160 = vector.load %arg3[%1159, %c0_385] : memref<512x128xf32, #tpu.memory_space<vmem>>, vector<1x128xf32>
    %1161 = arith.index_cast %1158 : i32 to index
    %c0_386 = arith.constant 0 : index
    %1162 = vector.load %arg4[%1161, %c0_386] : memref<64x128xf32, #tpu.memory_space<vmem>>, vector<1x128xf32>
    %1163 = arith.addf %1160, %1162 : vector<1x128xf32>
    %c96 = arith.constant 96 : index
    %c0_387 = arith.constant 0 : index
    %1164 = vector.load %arg5[%c96, %c0_387] : memref<128x128xf32, #tpu.memory_space<vmem>>, vector<1x128xf32>
    tpu.vector_store %arg5[%c96, %c0_387], %1163 {strides = array<i32>} : memref<128x128xf32, #tpu.memory_space<vmem>>, vector<1x128xf32>,
    %c97_i32 = arith.constant 97 : i32
    %1165 = arith.addi %0, %c97_i32 : i32
    %1166 = arith.index_cast %1165 : i32 to index
    %1167 = memref.load %arg1[%1166] : memref<128xi32, #tpu.memory_space<smem>>
    %c97_i32_388 = arith.constant 97 : i32
    %1168 = arith.addi %0, %c97_i32_388 : i32
    %1169 = arith.index_cast %1168 : i32 to index
    %1170 = memref.load %arg2[%1169] : memref<128xi32, #tpu.memory_space<smem>>
    %1171 = arith.index_cast %1167 : i32 to index
    %c0_389 = arith.constant 0 : index
    %1172 = vector.load %arg3[%1171, %c0_389] : memref<512x128xf32, #tpu.memory_space<vmem>>, vector<1x128xf32>
    %1173 = arith.index_cast %1170 : i32 to index
    %c0_390 = arith.constant 0 : index
    %1174 = vector.load %arg4[%1173, %c0_390] : memref<64x128xf32, #tpu.memory_space<vmem>>, vector<1x128xf32>
    %1175 = arith.addf %1172, %1174 : vector<1x128xf32>
    %c97 = arith.constant 97 : index
    %c0_391 = arith.constant 0 : index
    %1176 = vector.load %arg5[%c97, %c0_391] : memref<128x128xf32, #tpu.memory_space<vmem>>, vector<1x128xf32>
    tpu.vector_store %arg5[%c97, %c0_391], %1175 {strides = array<i32>} : memref<128x128xf32, #tpu.memory_space<vmem>>, vector<1x128xf32>,
    %c98_i32 = arith.constant 98 : i32
    %1177 = arith.addi %0, %c98_i32 : i32
    %1178 = arith.index_cast %1177 : i32 to index
    %1179 = memref.load %arg1[%1178] : memref<128xi32, #tpu.memory_space<smem>>
    %c98_i32_392 = arith.constant 98 : i32
    %1180 = arith.addi %0, %c98_i32_392 : i32
    %1181 = arith.index_cast %1180 : i32 to index
    %1182 = memref.load %arg2[%1181] : memref<128xi32, #tpu.memory_space<smem>>
    %1183 = arith.index_cast %1179 : i32 to index
    %c0_393 = arith.constant 0 : index
    %1184 = vector.load %arg3[%1183, %c0_393] : memref<512x128xf32, #tpu.memory_space<vmem>>, vector<1x128xf32>
    %1185 = arith.index_cast %1182 : i32 to index
    %c0_394 = arith.constant 0 : index
    %1186 = vector.load %arg4[%1185, %c0_394] : memref<64x128xf32, #tpu.memory_space<vmem>>, vector<1x128xf32>
    %1187 = arith.addf %1184, %1186 : vector<1x128xf32>
    %c98 = arith.constant 98 : index
    %c0_395 = arith.constant 0 : index
    %1188 = vector.load %arg5[%c98, %c0_395] : memref<128x128xf32, #tpu.memory_space<vmem>>, vector<1x128xf32>
    tpu.vector_store %arg5[%c98, %c0_395], %1187 {strides = array<i32>} : memref<128x128xf32, #tpu.memory_space<vmem>>, vector<1x128xf32>,
    %c99_i32 = arith.constant 99 : i32
    %1189 = arith.addi %0, %c99_i32 : i32
    %1190 = arith.index_cast %1189 : i32 to index
    %1191 = memref.load %arg1[%1190] : memref<128xi32, #tpu.memory_space<smem>>
    %c99_i32_396 = arith.constant 99 : i32
    %1192 = arith.addi %0, %c99_i32_396 : i32
    %1193 = arith.index_cast %1192 : i32 to index
    %1194 = memref.load %arg2[%1193] : memref<128xi32, #tpu.memory_space<smem>>
    %1195 = arith.index_cast %1191 : i32 to index
    %c0_397 = arith.constant 0 : index
    %1196 = vector.load %arg3[%1195, %c0_397] : memref<512x128xf32, #tpu.memory_space<vmem>>, vector<1x128xf32>
    %1197 = arith.index_cast %1194 : i32 to index
    %c0_398 = arith.constant 0 : index
    %1198 = vector.load %arg4[%1197, %c0_398] : memref<64x128xf32, #tpu.memory_space<vmem>>, vector<1x128xf32>
    %1199 = arith.addf %1196, %1198 : vector<1x128xf32>
    %c99 = arith.constant 99 : index
    %c0_399 = arith.constant 0 : index
    %1200 = vector.load %arg5[%c99, %c0_399] : memref<128x128xf32, #tpu.memory_space<vmem>>, vector<1x128xf32>
    tpu.vector_store %arg5[%c99, %c0_399], %1199 {strides = array<i32>} : memref<128x128xf32, #tpu.memory_space<vmem>>, vector<1x128xf32>,
    %c100_i32 = arith.constant 100 : i32
    %1201 = arith.addi %0, %c100_i32 : i32
    %1202 = arith.index_cast %1201 : i32 to index
    %1203 = memref.load %arg1[%1202] : memref<128xi32, #tpu.memory_space<smem>>
    %c100_i32_400 = arith.constant 100 : i32
    %1204 = arith.addi %0, %c100_i32_400 : i32
    %1205 = arith.index_cast %1204 : i32 to index
    %1206 = memref.load %arg2[%1205] : memref<128xi32, #tpu.memory_space<smem>>
    %1207 = arith.index_cast %1203 : i32 to index
    %c0_401 = arith.constant 0 : index
    %1208 = vector.load %arg3[%1207, %c0_401] : memref<512x128xf32, #tpu.memory_space<vmem>>, vector<1x128xf32>
    %1209 = arith.index_cast %1206 : i32 to index
    %c0_402 = arith.constant 0 : index
    %1210 = vector.load %arg4[%1209, %c0_402] : memref<64x128xf32, #tpu.memory_space<vmem>>, vector<1x128xf32>
    %1211 = arith.addf %1208, %1210 : vector<1x128xf32>
    %c100 = arith.constant 100 : index
    %c0_403 = arith.constant 0 : index
    %1212 = vector.load %arg5[%c100, %c0_403] : memref<128x128xf32, #tpu.memory_space<vmem>>, vector<1x128xf32>
    tpu.vector_store %arg5[%c100, %c0_403], %1211 {strides = array<i32>} : memref<128x128xf32, #tpu.memory_space<vmem>>, vector<1x128xf32>,
    %c101_i32 = arith.constant 101 : i32
    %1213 = arith.addi %0, %c101_i32 : i32
    %1214 = arith.index_cast %1213 : i32 to index
    %1215 = memref.load %arg1[%1214] : memref<128xi32, #tpu.memory_space<smem>>
    %c101_i32_404 = arith.constant 101 : i32
    %1216 = arith.addi %0, %c101_i32_404 : i32
    %1217 = arith.index_cast %1216 : i32 to index
    %1218 = memref.load %arg2[%1217] : memref<128xi32, #tpu.memory_space<smem>>
    %1219 = arith.index_cast %1215 : i32 to index
    %c0_405 = arith.constant 0 : index
    %1220 = vector.load %arg3[%1219, %c0_405] : memref<512x128xf32, #tpu.memory_space<vmem>>, vector<1x128xf32>
    %1221 = arith.index_cast %1218 : i32 to index
    %c0_406 = arith.constant 0 : index
    %1222 = vector.load %arg4[%1221, %c0_406] : memref<64x128xf32, #tpu.memory_space<vmem>>, vector<1x128xf32>
    %1223 = arith.addf %1220, %1222 : vector<1x128xf32>
    %c101 = arith.constant 101 : index
    %c0_407 = arith.constant 0 : index
    %1224 = vector.load %arg5[%c101, %c0_407] : memref<128x128xf32, #tpu.memory_space<vmem>>, vector<1x128xf32>
    tpu.vector_store %arg5[%c101, %c0_407], %1223 {strides = array<i32>} : memref<128x128xf32, #tpu.memory_space<vmem>>, vector<1x128xf32>,
    %c102_i32 = arith.constant 102 : i32
    %1225 = arith.addi %0, %c102_i32 : i32
    %1226 = arith.index_cast %1225 : i32 to index
    %1227 = memref.load %arg1[%1226] : memref<128xi32, #tpu.memory_space<smem>>
    %c102_i32_408 = arith.constant 102 : i32
    %1228 = arith.addi %0, %c102_i32_408 : i32
    %1229 = arith.index_cast %1228 : i32 to index
    %1230 = memref.load %arg2[%1229] : memref<128xi32, #tpu.memory_space<smem>>
    %1231 = arith.index_cast %1227 : i32 to index
    %c0_409 = arith.constant 0 : index
    %1232 = vector.load %arg3[%1231, %c0_409] : memref<512x128xf32, #tpu.memory_space<vmem>>, vector<1x128xf32>
    %1233 = arith.index_cast %1230 : i32 to index
    %c0_410 = arith.constant 0 : index
    %1234 = vector.load %arg4[%1233, %c0_410] : memref<64x128xf32, #tpu.memory_space<vmem>>, vector<1x128xf32>
    %1235 = arith.addf %1232, %1234 : vector<1x128xf32>
    %c102 = arith.constant 102 : index
    %c0_411 = arith.constant 0 : index
    %1236 = vector.load %arg5[%c102, %c0_411] : memref<128x128xf32, #tpu.memory_space<vmem>>, vector<1x128xf32>
    tpu.vector_store %arg5[%c102, %c0_411], %1235 {strides = array<i32>} : memref<128x128xf32, #tpu.memory_space<vmem>>, vector<1x128xf32>,
    %c103_i32 = arith.constant 103 : i32
    %1237 = arith.addi %0, %c103_i32 : i32
    %1238 = arith.index_cast %1237 : i32 to index
    %1239 = memref.load %arg1[%1238] : memref<128xi32, #tpu.memory_space<smem>>
    %c103_i32_412 = arith.constant 103 : i32
    %1240 = arith.addi %0, %c103_i32_412 : i32
    %1241 = arith.index_cast %1240 : i32 to index
    %1242 = memref.load %arg2[%1241] : memref<128xi32, #tpu.memory_space<smem>>
    %1243 = arith.index_cast %1239 : i32 to index
    %c0_413 = arith.constant 0 : index
    %1244 = vector.load %arg3[%1243, %c0_413] : memref<512x128xf32, #tpu.memory_space<vmem>>, vector<1x128xf32>
    %1245 = arith.index_cast %1242 : i32 to index
    %c0_414 = arith.constant 0 : index
    %1246 = vector.load %arg4[%1245, %c0_414] : memref<64x128xf32, #tpu.memory_space<vmem>>, vector<1x128xf32>
    %1247 = arith.addf %1244, %1246 : vector<1x128xf32>
    %c103 = arith.constant 103 : index
    %c0_415 = arith.constant 0 : index
    %1248 = vector.load %arg5[%c103, %c0_415] : memref<128x128xf32, #tpu.memory_space<vmem>>, vector<1x128xf32>
    tpu.vector_store %arg5[%c103, %c0_415], %1247 {strides = array<i32>} : memref<128x128xf32, #tpu.memory_space<vmem>>, vector<1x128xf32>,
    %c104_i32 = arith.constant 104 : i32
    %1249 = arith.addi %0, %c104_i32 : i32
    %1250 = arith.index_cast %1249 : i32 to index
    %1251 = memref.load %arg1[%1250] : memref<128xi32, #tpu.memory_space<smem>>
    %c104_i32_416 = arith.constant 104 : i32
    %1252 = arith.addi %0, %c104_i32_416 : i32
    %1253 = arith.index_cast %1252 : i32 to index
    %1254 = memref.load %arg2[%1253] : memref<128xi32, #tpu.memory_space<smem>>
    %1255 = arith.index_cast %1251 : i32 to index
    %c0_417 = arith.constant 0 : index
    %1256 = vector.load %arg3[%1255, %c0_417] : memref<512x128xf32, #tpu.memory_space<vmem>>, vector<1x128xf32>
    %1257 = arith.index_cast %1254 : i32 to index
    %c0_418 = arith.constant 0 : index
    %1258 = vector.load %arg4[%1257, %c0_418] : memref<64x128xf32, #tpu.memory_space<vmem>>, vector<1x128xf32>
    %1259 = arith.addf %1256, %1258 : vector<1x128xf32>
    %c104 = arith.constant 104 : index
    %c0_419 = arith.constant 0 : index
    %1260 = vector.load %arg5[%c104, %c0_419] : memref<128x128xf32, #tpu.memory_space<vmem>>, vector<1x128xf32>
    tpu.vector_store %arg5[%c104, %c0_419], %1259 {strides = array<i32>} : memref<128x128xf32, #tpu.memory_space<vmem>>, vector<1x128xf32>,
    %c105_i32 = arith.constant 105 : i32
    %1261 = arith.addi %0, %c105_i32 : i32
    %1262 = arith.index_cast %1261 : i32 to index
    %1263 = memref.load %arg1[%1262] : memref<128xi32, #tpu.memory_space<smem>>
    %c105_i32_420 = arith.constant 105 : i32
    %1264 = arith.addi %0, %c105_i32_420 : i32
    %1265 = arith.index_cast %1264 : i32 to index
    %1266 = memref.load %arg2[%1265] : memref<128xi32, #tpu.memory_space<smem>>
    %1267 = arith.index_cast %1263 : i32 to index
    %c0_421 = arith.constant 0 : index
    %1268 = vector.load %arg3[%1267, %c0_421] : memref<512x128xf32, #tpu.memory_space<vmem>>, vector<1x128xf32>
    %1269 = arith.index_cast %1266 : i32 to index
    %c0_422 = arith.constant 0 : index
    %1270 = vector.load %arg4[%1269, %c0_422] : memref<64x128xf32, #tpu.memory_space<vmem>>, vector<1x128xf32>
    %1271 = arith.addf %1268, %1270 : vector<1x128xf32>
    %c105 = arith.constant 105 : index
    %c0_423 = arith.constant 0 : index
    %1272 = vector.load %arg5[%c105, %c0_423] : memref<128x128xf32, #tpu.memory_space<vmem>>, vector<1x128xf32>
    tpu.vector_store %arg5[%c105, %c0_423], %1271 {strides = array<i32>} : memref<128x128xf32, #tpu.memory_space<vmem>>, vector<1x128xf32>,
    %c106_i32 = arith.constant 106 : i32
    %1273 = arith.addi %0, %c106_i32 : i32
    %1274 = arith.index_cast %1273 : i32 to index
    %1275 = memref.load %arg1[%1274] : memref<128xi32, #tpu.memory_space<smem>>
    %c106_i32_424 = arith.constant 106 : i32
    %1276 = arith.addi %0, %c106_i32_424 : i32
    %1277 = arith.index_cast %1276 : i32 to index
    %1278 = memref.load %arg2[%1277] : memref<128xi32, #tpu.memory_space<smem>>
    %1279 = arith.index_cast %1275 : i32 to index
    %c0_425 = arith.constant 0 : index
    %1280 = vector.load %arg3[%1279, %c0_425] : memref<512x128xf32, #tpu.memory_space<vmem>>, vector<1x128xf32>
    %1281 = arith.index_cast %1278 : i32 to index
    %c0_426 = arith.constant 0 : index
    %1282 = vector.load %arg4[%1281, %c0_426] : memref<64x128xf32, #tpu.memory_space<vmem>>, vector<1x128xf32>
    %1283 = arith.addf %1280, %1282 : vector<1x128xf32>
    %c106 = arith.constant 106 : index
    %c0_427 = arith.constant 0 : index
    %1284 = vector.load %arg5[%c106, %c0_427] : memref<128x128xf32, #tpu.memory_space<vmem>>, vector<1x128xf32>
    tpu.vector_store %arg5[%c106, %c0_427], %1283 {strides = array<i32>} : memref<128x128xf32, #tpu.memory_space<vmem>>, vector<1x128xf32>,
    %c107_i32 = arith.constant 107 : i32
    %1285 = arith.addi %0, %c107_i32 : i32
    %1286 = arith.index_cast %1285 : i32 to index
    %1287 = memref.load %arg1[%1286] : memref<128xi32, #tpu.memory_space<smem>>
    %c107_i32_428 = arith.constant 107 : i32
    %1288 = arith.addi %0, %c107_i32_428 : i32
    %1289 = arith.index_cast %1288 : i32 to index
    %1290 = memref.load %arg2[%1289] : memref<128xi32, #tpu.memory_space<smem>>
    %1291 = arith.index_cast %1287 : i32 to index
    %c0_429 = arith.constant 0 : index
    %1292 = vector.load %arg3[%1291, %c0_429] : memref<512x128xf32, #tpu.memory_space<vmem>>, vector<1x128xf32>
    %1293 = arith.index_cast %1290 : i32 to index
    %c0_430 = arith.constant 0 : index
    %1294 = vector.load %arg4[%1293, %c0_430] : memref<64x128xf32, #tpu.memory_space<vmem>>, vector<1x128xf32>
    %1295 = arith.addf %1292, %1294 : vector<1x128xf32>
    %c107 = arith.constant 107 : index
    %c0_431 = arith.constant 0 : index
    %1296 = vector.load %arg5[%c107, %c0_431] : memref<128x128xf32, #tpu.memory_space<vmem>>, vector<1x128xf32>
    tpu.vector_store %arg5[%c107, %c0_431], %1295 {strides = array<i32>} : memref<128x128xf32, #tpu.memory_space<vmem>>, vector<1x128xf32>,
    %c108_i32 = arith.constant 108 : i32
    %1297 = arith.addi %0, %c108_i32 : i32
    %1298 = arith.index_cast %1297 : i32 to index
    %1299 = memref.load %arg1[%1298] : memref<128xi32, #tpu.memory_space<smem>>
    %c108_i32_432 = arith.constant 108 : i32
    %1300 = arith.addi %0, %c108_i32_432 : i32
    %1301 = arith.index_cast %1300 : i32 to index
    %1302 = memref.load %arg2[%1301] : memref<128xi32, #tpu.memory_space<smem>>
    %1303 = arith.index_cast %1299 : i32 to index
    %c0_433 = arith.constant 0 : index
    %1304 = vector.load %arg3[%1303, %c0_433] : memref<512x128xf32, #tpu.memory_space<vmem>>, vector<1x128xf32>
    %1305 = arith.index_cast %1302 : i32 to index
    %c0_434 = arith.constant 0 : index
    %1306 = vector.load %arg4[%1305, %c0_434] : memref<64x128xf32, #tpu.memory_space<vmem>>, vector<1x128xf32>
    %1307 = arith.addf %1304, %1306 : vector<1x128xf32>
    %c108 = arith.constant 108 : index
    %c0_435 = arith.constant 0 : index
    %1308 = vector.load %arg5[%c108, %c0_435] : memref<128x128xf32, #tpu.memory_space<vmem>>, vector<1x128xf32>
    tpu.vector_store %arg5[%c108, %c0_435], %1307 {strides = array<i32>} : memref<128x128xf32, #tpu.memory_space<vmem>>, vector<1x128xf32>,
    %c109_i32 = arith.constant 109 : i32
    %1309 = arith.addi %0, %c109_i32 : i32
    %1310 = arith.index_cast %1309 : i32 to index
    %1311 = memref.load %arg1[%1310] : memref<128xi32, #tpu.memory_space<smem>>
    %c109_i32_436 = arith.constant 109 : i32
    %1312 = arith.addi %0, %c109_i32_436 : i32
    %1313 = arith.index_cast %1312 : i32 to index
    %1314 = memref.load %arg2[%1313] : memref<128xi32, #tpu.memory_space<smem>>
    %1315 = arith.index_cast %1311 : i32 to index
    %c0_437 = arith.constant 0 : index
    %1316 = vector.load %arg3[%1315, %c0_437] : memref<512x128xf32, #tpu.memory_space<vmem>>, vector<1x128xf32>
    %1317 = arith.index_cast %1314 : i32 to index
    %c0_438 = arith.constant 0 : index
    %1318 = vector.load %arg4[%1317, %c0_438] : memref<64x128xf32, #tpu.memory_space<vmem>>, vector<1x128xf32>
    %1319 = arith.addf %1316, %1318 : vector<1x128xf32>
    %c109 = arith.constant 109 : index
    %c0_439 = arith.constant 0 : index
    %1320 = vector.load %arg5[%c109, %c0_439] : memref<128x128xf32, #tpu.memory_space<vmem>>, vector<1x128xf32>
    tpu.vector_store %arg5[%c109, %c0_439], %1319 {strides = array<i32>} : memref<128x128xf32, #tpu.memory_space<vmem>>, vector<1x128xf32>,
    %c110_i32 = arith.constant 110 : i32
    %1321 = arith.addi %0, %c110_i32 : i32
    %1322 = arith.index_cast %1321 : i32 to index
    %1323 = memref.load %arg1[%1322] : memref<128xi32, #tpu.memory_space<smem>>
    %c110_i32_440 = arith.constant 110 : i32
    %1324 = arith.addi %0, %c110_i32_440 : i32
    %1325 = arith.index_cast %1324 : i32 to index
    %1326 = memref.load %arg2[%1325] : memref<128xi32, #tpu.memory_space<smem>>
    %1327 = arith.index_cast %1323 : i32 to index
    %c0_441 = arith.constant 0 : index
    %1328 = vector.load %arg3[%1327, %c0_441] : memref<512x128xf32, #tpu.memory_space<vmem>>, vector<1x128xf32>
    %1329 = arith.index_cast %1326 : i32 to index
    %c0_442 = arith.constant 0 : index
    %1330 = vector.load %arg4[%1329, %c0_442] : memref<64x128xf32, #tpu.memory_space<vmem>>, vector<1x128xf32>
    %1331 = arith.addf %1328, %1330 : vector<1x128xf32>
    %c110 = arith.constant 110 : index
    %c0_443 = arith.constant 0 : index
    %1332 = vector.load %arg5[%c110, %c0_443] : memref<128x128xf32, #tpu.memory_space<vmem>>, vector<1x128xf32>
    tpu.vector_store %arg5[%c110, %c0_443], %1331 {strides = array<i32>} : memref<128x128xf32, #tpu.memory_space<vmem>>, vector<1x128xf32>,
    %c111_i32 = arith.constant 111 : i32
    %1333 = arith.addi %0, %c111_i32 : i32
    %1334 = arith.index_cast %1333 : i32 to index
    %1335 = memref.load %arg1[%1334] : memref<128xi32, #tpu.memory_space<smem>>
    %c111_i32_444 = arith.constant 111 : i32
    %1336 = arith.addi %0, %c111_i32_444 : i32
    %1337 = arith.index_cast %1336 : i32 to index
    %1338 = memref.load %arg2[%1337] : memref<128xi32, #tpu.memory_space<smem>>
    %1339 = arith.index_cast %1335 : i32 to index
    %c0_445 = arith.constant 0 : index
    %1340 = vector.load %arg3[%1339, %c0_445] : memref<512x128xf32, #tpu.memory_space<vmem>>, vector<1x128xf32>
    %1341 = arith.index_cast %1338 : i32 to index
    %c0_446 = arith.constant 0 : index
    %1342 = vector.load %arg4[%1341, %c0_446] : memref<64x128xf32, #tpu.memory_space<vmem>>, vector<1x128xf32>
    %1343 = arith.addf %1340, %1342 : vector<1x128xf32>
    %c111 = arith.constant 111 : index
    %c0_447 = arith.constant 0 : index
    %1344 = vector.load %arg5[%c111, %c0_447] : memref<128x128xf32, #tpu.memory_space<vmem>>, vector<1x128xf32>
    tpu.vector_store %arg5[%c111, %c0_447], %1343 {strides = array<i32>} : memref<128x128xf32, #tpu.memory_space<vmem>>, vector<1x128xf32>,
    %c112_i32 = arith.constant 112 : i32
    %1345 = arith.addi %0, %c112_i32 : i32
    %1346 = arith.index_cast %1345 : i32 to index
    %1347 = memref.load %arg1[%1346] : memref<128xi32, #tpu.memory_space<smem>>
    %c112_i32_448 = arith.constant 112 : i32
    %1348 = arith.addi %0, %c112_i32_448 : i32
    %1349 = arith.index_cast %1348 : i32 to index
    %1350 = memref.load %arg2[%1349] : memref<128xi32, #tpu.memory_space<smem>>
    %1351 = arith.index_cast %1347 : i32 to index
    %c0_449 = arith.constant 0 : index
    %1352 = vector.load %arg3[%1351, %c0_449] : memref<512x128xf32, #tpu.memory_space<vmem>>, vector<1x128xf32>
    %1353 = arith.index_cast %1350 : i32 to index
    %c0_450 = arith.constant 0 : index
    %1354 = vector.load %arg4[%1353, %c0_450] : memref<64x128xf32, #tpu.memory_space<vmem>>, vector<1x128xf32>
    %1355 = arith.addf %1352, %1354 : vector<1x128xf32>
    %c112 = arith.constant 112 : index
    %c0_451 = arith.constant 0 : index
    %1356 = vector.load %arg5[%c112, %c0_451] : memref<128x128xf32, #tpu.memory_space<vmem>>, vector<1x128xf32>
    tpu.vector_store %arg5[%c112, %c0_451], %1355 {strides = array<i32>} : memref<128x128xf32, #tpu.memory_space<vmem>>, vector<1x128xf32>,
    %c113_i32 = arith.constant 113 : i32
    %1357 = arith.addi %0, %c113_i32 : i32
    %1358 = arith.index_cast %1357 : i32 to index
    %1359 = memref.load %arg1[%1358] : memref<128xi32, #tpu.memory_space<smem>>
    %c113_i32_452 = arith.constant 113 : i32
    %1360 = arith.addi %0, %c113_i32_452 : i32
    %1361 = arith.index_cast %1360 : i32 to index
    %1362 = memref.load %arg2[%1361] : memref<128xi32, #tpu.memory_space<smem>>
    %1363 = arith.index_cast %1359 : i32 to index
    %c0_453 = arith.constant 0 : index
    %1364 = vector.load %arg3[%1363, %c0_453] : memref<512x128xf32, #tpu.memory_space<vmem>>, vector<1x128xf32>
    %1365 = arith.index_cast %1362 : i32 to index
    %c0_454 = arith.constant 0 : index
    %1366 = vector.load %arg4[%1365, %c0_454] : memref<64x128xf32, #tpu.memory_space<vmem>>, vector<1x128xf32>
    %1367 = arith.addf %1364, %1366 : vector<1x128xf32>
    %c113 = arith.constant 113 : index
    %c0_455 = arith.constant 0 : index
    %1368 = vector.load %arg5[%c113, %c0_455] : memref<128x128xf32, #tpu.memory_space<vmem>>, vector<1x128xf32>
    tpu.vector_store %arg5[%c113, %c0_455], %1367 {strides = array<i32>} : memref<128x128xf32, #tpu.memory_space<vmem>>, vector<1x128xf32>,
    %c114_i32 = arith.constant 114 : i32
    %1369 = arith.addi %0, %c114_i32 : i32
    %1370 = arith.index_cast %1369 : i32 to index
    %1371 = memref.load %arg1[%1370] : memref<128xi32, #tpu.memory_space<smem>>
    %c114_i32_456 = arith.constant 114 : i32
    %1372 = arith.addi %0, %c114_i32_456 : i32
    %1373 = arith.index_cast %1372 : i32 to index
    %1374 = memref.load %arg2[%1373] : memref<128xi32, #tpu.memory_space<smem>>
    %1375 = arith.index_cast %1371 : i32 to index
    %c0_457 = arith.constant 0 : index
    %1376 = vector.load %arg3[%1375, %c0_457] : memref<512x128xf32, #tpu.memory_space<vmem>>, vector<1x128xf32>
    %1377 = arith.index_cast %1374 : i32 to index
    %c0_458 = arith.constant 0 : index
    %1378 = vector.load %arg4[%1377, %c0_458] : memref<64x128xf32, #tpu.memory_space<vmem>>, vector<1x128xf32>
    %1379 = arith.addf %1376, %1378 : vector<1x128xf32>
    %c114 = arith.constant 114 : index
    %c0_459 = arith.constant 0 : index
    %1380 = vector.load %arg5[%c114, %c0_459] : memref<128x128xf32, #tpu.memory_space<vmem>>, vector<1x128xf32>
    tpu.vector_store %arg5[%c114, %c0_459], %1379 {strides = array<i32>} : memref<128x128xf32, #tpu.memory_space<vmem>>, vector<1x128xf32>,
    %c115_i32 = arith.constant 115 : i32
    %1381 = arith.addi %0, %c115_i32 : i32
    %1382 = arith.index_cast %1381 : i32 to index
    %1383 = memref.load %arg1[%1382] : memref<128xi32, #tpu.memory_space<smem>>
    %c115_i32_460 = arith.constant 115 : i32
    %1384 = arith.addi %0, %c115_i32_460 : i32
    %1385 = arith.index_cast %1384 : i32 to index
    %1386 = memref.load %arg2[%1385] : memref<128xi32, #tpu.memory_space<smem>>
    %1387 = arith.index_cast %1383 : i32 to index
    %c0_461 = arith.constant 0 : index
    %1388 = vector.load %arg3[%1387, %c0_461] : memref<512x128xf32, #tpu.memory_space<vmem>>, vector<1x128xf32>
    %1389 = arith.index_cast %1386 : i32 to index
    %c0_462 = arith.constant 0 : index
    %1390 = vector.load %arg4[%1389, %c0_462] : memref<64x128xf32, #tpu.memory_space<vmem>>, vector<1x128xf32>
    %1391 = arith.addf %1388, %1390 : vector<1x128xf32>
    %c115 = arith.constant 115 : index
    %c0_463 = arith.constant 0 : index
    %1392 = vector.load %arg5[%c115, %c0_463] : memref<128x128xf32, #tpu.memory_space<vmem>>, vector<1x128xf32>
    tpu.vector_store %arg5[%c115, %c0_463], %1391 {strides = array<i32>} : memref<128x128xf32, #tpu.memory_space<vmem>>, vector<1x128xf32>,
    %c116_i32 = arith.constant 116 : i32
    %1393 = arith.addi %0, %c116_i32 : i32
    %1394 = arith.index_cast %1393 : i32 to index
    %1395 = memref.load %arg1[%1394] : memref<128xi32, #tpu.memory_space<smem>>
    %c116_i32_464 = arith.constant 116 : i32
    %1396 = arith.addi %0, %c116_i32_464 : i32
    %1397 = arith.index_cast %1396 : i32 to index
    %1398 = memref.load %arg2[%1397] : memref<128xi32, #tpu.memory_space<smem>>
    %1399 = arith.index_cast %1395 : i32 to index
    %c0_465 = arith.constant 0 : index
    %1400 = vector.load %arg3[%1399, %c0_465] : memref<512x128xf32, #tpu.memory_space<vmem>>, vector<1x128xf32>
    %1401 = arith.index_cast %1398 : i32 to index
    %c0_466 = arith.constant 0 : index
    %1402 = vector.load %arg4[%1401, %c0_466] : memref<64x128xf32, #tpu.memory_space<vmem>>, vector<1x128xf32>
    %1403 = arith.addf %1400, %1402 : vector<1x128xf32>
    %c116 = arith.constant 116 : index
    %c0_467 = arith.constant 0 : index
    %1404 = vector.load %arg5[%c116, %c0_467] : memref<128x128xf32, #tpu.memory_space<vmem>>, vector<1x128xf32>
    tpu.vector_store %arg5[%c116, %c0_467], %1403 {strides = array<i32>} : memref<128x128xf32, #tpu.memory_space<vmem>>, vector<1x128xf32>,
    %c117_i32 = arith.constant 117 : i32
    %1405 = arith.addi %0, %c117_i32 : i32
    %1406 = arith.index_cast %1405 : i32 to index
    %1407 = memref.load %arg1[%1406] : memref<128xi32, #tpu.memory_space<smem>>
    %c117_i32_468 = arith.constant 117 : i32
    %1408 = arith.addi %0, %c117_i32_468 : i32
    %1409 = arith.index_cast %1408 : i32 to index
    %1410 = memref.load %arg2[%1409] : memref<128xi32, #tpu.memory_space<smem>>
    %1411 = arith.index_cast %1407 : i32 to index
    %c0_469 = arith.constant 0 : index
    %1412 = vector.load %arg3[%1411, %c0_469] : memref<512x128xf32, #tpu.memory_space<vmem>>, vector<1x128xf32>
    %1413 = arith.index_cast %1410 : i32 to index
    %c0_470 = arith.constant 0 : index
    %1414 = vector.load %arg4[%1413, %c0_470] : memref<64x128xf32, #tpu.memory_space<vmem>>, vector<1x128xf32>
    %1415 = arith.addf %1412, %1414 : vector<1x128xf32>
    %c117 = arith.constant 117 : index
    %c0_471 = arith.constant 0 : index
    %1416 = vector.load %arg5[%c117, %c0_471] : memref<128x128xf32, #tpu.memory_space<vmem>>, vector<1x128xf32>
    tpu.vector_store %arg5[%c117, %c0_471], %1415 {strides = array<i32>} : memref<128x128xf32, #tpu.memory_space<vmem>>, vector<1x128xf32>,
    %c118_i32 = arith.constant 118 : i32
    %1417 = arith.addi %0, %c118_i32 : i32
    %1418 = arith.index_cast %1417 : i32 to index
    %1419 = memref.load %arg1[%1418] : memref<128xi32, #tpu.memory_space<smem>>
    %c118_i32_472 = arith.constant 118 : i32
    %1420 = arith.addi %0, %c118_i32_472 : i32
    %1421 = arith.index_cast %1420 : i32 to index
    %1422 = memref.load %arg2[%1421] : memref<128xi32, #tpu.memory_space<smem>>
    %1423 = arith.index_cast %1419 : i32 to index
    %c0_473 = arith.constant 0 : index
    %1424 = vector.load %arg3[%1423, %c0_473] : memref<512x128xf32, #tpu.memory_space<vmem>>, vector<1x128xf32>
    %1425 = arith.index_cast %1422 : i32 to index
    %c0_474 = arith.constant 0 : index
    %1426 = vector.load %arg4[%1425, %c0_474] : memref<64x128xf32, #tpu.memory_space<vmem>>, vector<1x128xf32>
    %1427 = arith.addf %1424, %1426 : vector<1x128xf32>
    %c118 = arith.constant 118 : index
    %c0_475 = arith.constant 0 : index
    %1428 = vector.load %arg5[%c118, %c0_475] : memref<128x128xf32, #tpu.memory_space<vmem>>, vector<1x128xf32>
    tpu.vector_store %arg5[%c118, %c0_475], %1427 {strides = array<i32>} : memref<128x128xf32, #tpu.memory_space<vmem>>, vector<1x128xf32>,
    %c119_i32 = arith.constant 119 : i32
    %1429 = arith.addi %0, %c119_i32 : i32
    %1430 = arith.index_cast %1429 : i32 to index
    %1431 = memref.load %arg1[%1430] : memref<128xi32, #tpu.memory_space<smem>>
    %c119_i32_476 = arith.constant 119 : i32
    %1432 = arith.addi %0, %c119_i32_476 : i32
    %1433 = arith.index_cast %1432 : i32 to index
    %1434 = memref.load %arg2[%1433] : memref<128xi32, #tpu.memory_space<smem>>
    %1435 = arith.index_cast %1431 : i32 to index
    %c0_477 = arith.constant 0 : index
    %1436 = vector.load %arg3[%1435, %c0_477] : memref<512x128xf32, #tpu.memory_space<vmem>>, vector<1x128xf32>
    %1437 = arith.index_cast %1434 : i32 to index
    %c0_478 = arith.constant 0 : index
    %1438 = vector.load %arg4[%1437, %c0_478] : memref<64x128xf32, #tpu.memory_space<vmem>>, vector<1x128xf32>
    %1439 = arith.addf %1436, %1438 : vector<1x128xf32>
    %c119 = arith.constant 119 : index
    %c0_479 = arith.constant 0 : index
    %1440 = vector.load %arg5[%c119, %c0_479] : memref<128x128xf32, #tpu.memory_space<vmem>>, vector<1x128xf32>
    tpu.vector_store %arg5[%c119, %c0_479], %1439 {strides = array<i32>} : memref<128x128xf32, #tpu.memory_space<vmem>>, vector<1x128xf32>,
    %c120_i32 = arith.constant 120 : i32
    %1441 = arith.addi %0, %c120_i32 : i32
    %1442 = arith.index_cast %1441 : i32 to index
    %1443 = memref.load %arg1[%1442] : memref<128xi32, #tpu.memory_space<smem>>
    %c120_i32_480 = arith.constant 120 : i32
    %1444 = arith.addi %0, %c120_i32_480 : i32
    %1445 = arith.index_cast %1444 : i32 to index
    %1446 = memref.load %arg2[%1445] : memref<128xi32, #tpu.memory_space<smem>>
    %1447 = arith.index_cast %1443 : i32 to index
    %c0_481 = arith.constant 0 : index
    %1448 = vector.load %arg3[%1447, %c0_481] : memref<512x128xf32, #tpu.memory_space<vmem>>, vector<1x128xf32>
    %1449 = arith.index_cast %1446 : i32 to index
    %c0_482 = arith.constant 0 : index
    %1450 = vector.load %arg4[%1449, %c0_482] : memref<64x128xf32, #tpu.memory_space<vmem>>, vector<1x128xf32>
    %1451 = arith.addf %1448, %1450 : vector<1x128xf32>
    %c120 = arith.constant 120 : index
    %c0_483 = arith.constant 0 : index
    %1452 = vector.load %arg5[%c120, %c0_483] : memref<128x128xf32, #tpu.memory_space<vmem>>, vector<1x128xf32>
    tpu.vector_store %arg5[%c120, %c0_483], %1451 {strides = array<i32>} : memref<128x128xf32, #tpu.memory_space<vmem>>, vector<1x128xf32>,
    %c121_i32 = arith.constant 121 : i32
    %1453 = arith.addi %0, %c121_i32 : i32
    %1454 = arith.index_cast %1453 : i32 to index
    %1455 = memref.load %arg1[%1454] : memref<128xi32, #tpu.memory_space<smem>>
    %c121_i32_484 = arith.constant 121 : i32
    %1456 = arith.addi %0, %c121_i32_484 : i32
    %1457 = arith.index_cast %1456 : i32 to index
    %1458 = memref.load %arg2[%1457] : memref<128xi32, #tpu.memory_space<smem>>
    %1459 = arith.index_cast %1455 : i32 to index
    %c0_485 = arith.constant 0 : index
    %1460 = vector.load %arg3[%1459, %c0_485] : memref<512x128xf32, #tpu.memory_space<vmem>>, vector<1x128xf32>
    %1461 = arith.index_cast %1458 : i32 to index
    %c0_486 = arith.constant 0 : index
    %1462 = vector.load %arg4[%1461, %c0_486] : memref<64x128xf32, #tpu.memory_space<vmem>>, vector<1x128xf32>
    %1463 = arith.addf %1460, %1462 : vector<1x128xf32>
    %c121 = arith.constant 121 : index
    %c0_487 = arith.constant 0 : index
    %1464 = vector.load %arg5[%c121, %c0_487] : memref<128x128xf32, #tpu.memory_space<vmem>>, vector<1x128xf32>
    tpu.vector_store %arg5[%c121, %c0_487], %1463 {strides = array<i32>} : memref<128x128xf32, #tpu.memory_space<vmem>>, vector<1x128xf32>,
    %c122_i32 = arith.constant 122 : i32
    %1465 = arith.addi %0, %c122_i32 : i32
    %1466 = arith.index_cast %1465 : i32 to index
    %1467 = memref.load %arg1[%1466] : memref<128xi32, #tpu.memory_space<smem>>
    %c122_i32_488 = arith.constant 122 : i32
    %1468 = arith.addi %0, %c122_i32_488 : i32
    %1469 = arith.index_cast %1468 : i32 to index
    %1470 = memref.load %arg2[%1469] : memref<128xi32, #tpu.memory_space<smem>>
    %1471 = arith.index_cast %1467 : i32 to index
    %c0_489 = arith.constant 0 : index
    %1472 = vector.load %arg3[%1471, %c0_489] : memref<512x128xf32, #tpu.memory_space<vmem>>, vector<1x128xf32>
    %1473 = arith.index_cast %1470 : i32 to index
    %c0_490 = arith.constant 0 : index
    %1474 = vector.load %arg4[%1473, %c0_490] : memref<64x128xf32, #tpu.memory_space<vmem>>, vector<1x128xf32>
    %1475 = arith.addf %1472, %1474 : vector<1x128xf32>
    %c122 = arith.constant 122 : index
    %c0_491 = arith.constant 0 : index
    %1476 = vector.load %arg5[%c122, %c0_491] : memref<128x128xf32, #tpu.memory_space<vmem>>, vector<1x128xf32>
    tpu.vector_store %arg5[%c122, %c0_491], %1475 {strides = array<i32>} : memref<128x128xf32, #tpu.memory_space<vmem>>, vector<1x128xf32>,
    %c123_i32 = arith.constant 123 : i32
    %1477 = arith.addi %0, %c123_i32 : i32
    %1478 = arith.index_cast %1477 : i32 to index
    %1479 = memref.load %arg1[%1478] : memref<128xi32, #tpu.memory_space<smem>>
    %c123_i32_492 = arith.constant 123 : i32
    %1480 = arith.addi %0, %c123_i32_492 : i32
    %1481 = arith.index_cast %1480 : i32 to index
    %1482 = memref.load %arg2[%1481] : memref<128xi32, #tpu.memory_space<smem>>
    %1483 = arith.index_cast %1479 : i32 to index
    %c0_493 = arith.constant 0 : index
    %1484 = vector.load %arg3[%1483, %c0_493] : memref<512x128xf32, #tpu.memory_space<vmem>>, vector<1x128xf32>
    %1485 = arith.index_cast %1482 : i32 to index
    %c0_494 = arith.constant 0 : index
    %1486 = vector.load %arg4[%1485, %c0_494] : memref<64x128xf32, #tpu.memory_space<vmem>>, vector<1x128xf32>
    %1487 = arith.addf %1484, %1486 : vector<1x128xf32>
    %c123 = arith.constant 123 : index
    %c0_495 = arith.constant 0 : index
    %1488 = vector.load %arg5[%c123, %c0_495] : memref<128x128xf32, #tpu.memory_space<vmem>>, vector<1x128xf32>
    tpu.vector_store %arg5[%c123, %c0_495], %1487 {strides = array<i32>} : memref<128x128xf32, #tpu.memory_space<vmem>>, vector<1x128xf32>,
    %c124_i32 = arith.constant 124 : i32
    %1489 = arith.addi %0, %c124_i32 : i32
    %1490 = arith.index_cast %1489 : i32 to index
    %1491 = memref.load %arg1[%1490] : memref<128xi32, #tpu.memory_space<smem>>
    %c124_i32_496 = arith.constant 124 : i32
    %1492 = arith.addi %0, %c124_i32_496 : i32
    %1493 = arith.index_cast %1492 : i32 to index
    %1494 = memref.load %arg2[%1493] : memref<128xi32, #tpu.memory_space<smem>>
    %1495 = arith.index_cast %1491 : i32 to index
    %c0_497 = arith.constant 0 : index
    %1496 = vector.load %arg3[%1495, %c0_497] : memref<512x128xf32, #tpu.memory_space<vmem>>, vector<1x128xf32>
    %1497 = arith.index_cast %1494 : i32 to index
    %c0_498 = arith.constant 0 : index
    %1498 = vector.load %arg4[%1497, %c0_498] : memref<64x128xf32, #tpu.memory_space<vmem>>, vector<1x128xf32>
    %1499 = arith.addf %1496, %1498 : vector<1x128xf32>
    %c124 = arith.constant 124 : index
    %c0_499 = arith.constant 0 : index
    %1500 = vector.load %arg5[%c124, %c0_499] : memref<128x128xf32, #tpu.memory_space<vmem>>, vector<1x128xf32>
    tpu.vector_store %arg5[%c124, %c0_499], %1499 {strides = array<i32>} : memref<128x128xf32, #tpu.memory_space<vmem>>, vector<1x128xf32>,
    %c125_i32 = arith.constant 125 : i32
    %1501 = arith.addi %0, %c125_i32 : i32
    %1502 = arith.index_cast %1501 : i32 to index
    %1503 = memref.load %arg1[%1502] : memref<128xi32, #tpu.memory_space<smem>>
    %c125_i32_500 = arith.constant 125 : i32
    %1504 = arith.addi %0, %c125_i32_500 : i32
    %1505 = arith.index_cast %1504 : i32 to index
    %1506 = memref.load %arg2[%1505] : memref<128xi32, #tpu.memory_space<smem>>
    %1507 = arith.index_cast %1503 : i32 to index
    %c0_501 = arith.constant 0 : index
    %1508 = vector.load %arg3[%1507, %c0_501] : memref<512x128xf32, #tpu.memory_space<vmem>>, vector<1x128xf32>
    %1509 = arith.index_cast %1506 : i32 to index
    %c0_502 = arith.constant 0 : index
    %1510 = vector.load %arg4[%1509, %c0_502] : memref<64x128xf32, #tpu.memory_space<vmem>>, vector<1x128xf32>
    %1511 = arith.addf %1508, %1510 : vector<1x128xf32>
    %c125 = arith.constant 125 : index
    %c0_503 = arith.constant 0 : index
    %1512 = vector.load %arg5[%c125, %c0_503] : memref<128x128xf32, #tpu.memory_space<vmem>>, vector<1x128xf32>
    tpu.vector_store %arg5[%c125, %c0_503], %1511 {strides = array<i32>} : memref<128x128xf32, #tpu.memory_space<vmem>>, vector<1x128xf32>,
    %c126_i32 = arith.constant 126 : i32
    %1513 = arith.addi %0, %c126_i32 : i32
    %1514 = arith.index_cast %1513 : i32 to index
    %1515 = memref.load %arg1[%1514] : memref<128xi32, #tpu.memory_space<smem>>
    %c126_i32_504 = arith.constant 126 : i32
    %1516 = arith.addi %0, %c126_i32_504 : i32
    %1517 = arith.index_cast %1516 : i32 to index
    %1518 = memref.load %arg2[%1517] : memref<128xi32, #tpu.memory_space<smem>>
    %1519 = arith.index_cast %1515 : i32 to index
    %c0_505 = arith.constant 0 : index
    %1520 = vector.load %arg3[%1519, %c0_505] : memref<512x128xf32, #tpu.memory_space<vmem>>, vector<1x128xf32>
    %1521 = arith.index_cast %1518 : i32 to index
    %c0_506 = arith.constant 0 : index
    %1522 = vector.load %arg4[%1521, %c0_506] : memref<64x128xf32, #tpu.memory_space<vmem>>, vector<1x128xf32>
    %1523 = arith.addf %1520, %1522 : vector<1x128xf32>
    %c126 = arith.constant 126 : index
    %c0_507 = arith.constant 0 : index
    %1524 = vector.load %arg5[%c126, %c0_507] : memref<128x128xf32, #tpu.memory_space<vmem>>, vector<1x128xf32>
    tpu.vector_store %arg5[%c126, %c0_507], %1523 {strides = array<i32>} : memref<128x128xf32, #tpu.memory_space<vmem>>, vector<1x128xf32>,
    %c127_i32 = arith.constant 127 : i32
    %1525 = arith.addi %0, %c127_i32 : i32
    %1526 = arith.index_cast %1525 : i32 to index
    %1527 = memref.load %arg1[%1526] : memref<128xi32, #tpu.memory_space<smem>>
    %c127_i32_508 = arith.constant 127 : i32
    %1528 = arith.addi %0, %c127_i32_508 : i32
    %1529 = arith.index_cast %1528 : i32 to index
    %1530 = memref.load %arg2[%1529] : memref<128xi32, #tpu.memory_space<smem>>
    %1531 = arith.index_cast %1527 : i32 to index
    %c0_509 = arith.constant 0 : index
    %1532 = vector.load %arg3[%1531, %c0_509] : memref<512x128xf32, #tpu.memory_space<vmem>>, vector<1x128xf32>
    %1533 = arith.index_cast %1530 : i32 to index
    %c0_510 = arith.constant 0 : index
    %1534 = vector.load %arg4[%1533, %c0_510] : memref<64x128xf32, #tpu.memory_space<vmem>>, vector<1x128xf32>
    %1535 = arith.addf %1532, %1534 : vector<1x128xf32>
    %c127 = arith.constant 127 : index
    %c0_511 = arith.constant 0 : index
    %1536 = vector.load %arg5[%c127, %c0_511] : memref<128x128xf32, #tpu.memory_space<vmem>>, vector<1x128xf32>
    tpu.vector_store %arg5[%c127, %c0_511], %1535 {strides = array<i32>} : memref<128x128xf32, #tpu.memory_space<vmem>>, vector<1x128xf32>,
    return
  }
  func.func @transform_0(%arg0: i32, %arg1: memref<128xi32, #tpu.memory_space<smem>>, %arg2: memref<128xi32, #tpu.memory_space<smem>>) -> (i32, i32) {
    %c0_i32 = arith.constant 0 : i32
    %c0_i32_0 = arith.constant 0 : i32
    %c0_i32_1 = arith.constant 0 : i32
    return %c0_i32, %c0_i32_0 : i32, i32
  }
  func.func @transform_1(%arg0: i32, %arg1: memref<128xi32, #tpu.memory_space<smem>>, %arg2: memref<128xi32, #tpu.memory_space<smem>>) -> (i32, i32) {
    %c0_i32 = arith.constant 0 : i32
    %c0_i32_0 = arith.constant 0 : i32
    %c0_i32_1 = arith.constant 0 : i32
    return %c0_i32, %c0_i32_0 : i32, i32
  }
  func.func @transform_2(%arg0: i32, %arg1: memref<128xi32, #tpu.memory_space<smem>>, %arg2: memref<128xi32, #tpu.memory_space<smem>>) -> (i32, i32) {
    %c0_i32 = arith.constant 0 : i32
    %c0_i32_0 = arith.constant 0 : i32
    return %arg0, %c0_i32 : i32, i32
  }
}

</mosaic_0001>

<llo_original>
// kernel: tpu_custom_call.1
$region0: #{tpu_custom_call.1}
  #allocation0 [shape = 'u32[]', space=smem, size = 0x4, offset = 0x4, fixed_abs, tag = 'smem constant byte address 0x4 - core index']
  #allocation1 [shape = 'u32[144,128]{1,0:T(1,128)}', space=vmem, size = 0x12000, scoped, tag = 'internal scratch']
  #allocation2 [shape = 's32[1]{0}', space=sflag, size = 0x4, scoped, tag = 'scoped memory for tpu_custom_call.1']
  #allocation3 [shape = 'u8[512]{0}', space=smem, size = 0x200, scoped, tag = 'prefetched SMEM operand 0']
  #allocation4 [shape = 'u8[512]{0}', space=smem, size = 0x200, scoped, tag = 'prefetched SMEM operand 1']
  %s0 = inlined_call_operand.hbm [shape: s32[128], index: 0, kind: input, shape index: {}]
  %s1 = inlined_call_operand.vmem [shape: s32[128], index: 1, kind: input, shape index: {}]
  %s2 = inlined_call_operand.hbm [shape: f32[512,128], index: 2, kind: input, shape index: {}]
  %s3 = inlined_call_operand.hbm [shape: f32[64,128], index: 3, kind: input, shape index: {}]
  %s4 = inlined_call_operand.hbm [shape: f32[128,128], index: 4, kind: output, shape index: {}]
  %s5 = sld [smem:[#allocation0]]
  $region26: #{tpu_custom_call.1} parent=0
    _
  %s7 = ssub.s32 1, %s5
  %s8 = scalar_select 0, %s7, %s5
  %10 = dma.hbm_to_smem %s0, 16, [#allocation3], [#allocation2]
  %s11 = sshll.u32 %s1, 4
  %s12 = int_to_ptr.vmem [resolvable:$true] %s11
  %14 = dma.vmem_to_smem %s12, 16, [#allocation4], [#allocation2]
  %15 = dma.done [#allocation2], 32
  %16 = sfence
  $region1: #{tpu_custom_call.1} parent=0
    #allocation5 [shape = 'u8[262144]{0}', space=vmem, size = 0x40000, scoped, tag = 'input window, operand 2, single buffered']
    #allocation6 [shape = 's32[1]{0}', space=sflag, size = 0x4, scoped, tag = 'scoped memory for tpu_custom_call.1']
    #allocation7 [shape = 's32[1]{0}', space=sflag, size = 0x4, scoped, tag = 'scoped memory for tpu_custom_call.1']
    #allocation8 [shape = 'u8[32768]{0}', space=vmem, size = 0x8000, scoped, tag = 'input window, operand 3, single buffered']
    #allocation9 [shape = 's32[1]{0}', space=sflag, size = 0x4, scoped, tag = 'scoped memory for tpu_custom_call.1']
    #allocation10 [shape = 'u8[65536]{0}', space=vmem, size = 0x10000, scoped, tag = 'output window, operand 0, single buffered']
    %17 = vsyncpa [#allocation6], 0
    %18 = vsyncpa [#allocation9], 0
    %19 = vsyncpa [#allocation7], 0
    // Predicated region
    $region2: #{tpu_custom_call.1} parent=1 // pred_check
      _
    $region3: #{tpu_custom_call.1} parent=1 // pred_check_branch
      %21 = sbr.rel (0) target = $region5
    $region4: #{tpu_custom_call.1} parent=1 // pred_region
      %s23 = ssub.s32 8192, 8192
      %24 = vsyncadd [#allocation6], %s23
      %s25 = sshll.u32 [#allocation5], 4
      %s26 = int_to_ptr.vmem [resolvable:$true] %s25
      %31 = dma.hbm_to_vmem [thread:$0]  %s2, 8192, %s26, [#allocation6], 128, 128, 8
    $region5: #{tpu_custom_call.1} parent=1 // pred_fallthru
      _
    // Predicated region
    $region6: #{tpu_custom_call.1} parent=1 // pred_check
      _
    $region7: #{tpu_custom_call.1} parent=1 // pred_check_branch
      %33 = sbr.rel (0) target = $region9
    $region8: #{tpu_custom_call.1} parent=1 // pred_region
      %s35 = ssub.s32 1024, 1024
      %36 = vsyncadd [#allocation9], %s35
      %s37 = sshll.u32 [#allocation8], 4
      %s38 = int_to_ptr.vmem [resolvable:$true] %s37
      %43 = dma.hbm_to_vmem [thread:$0]  %s3, 1024, %s38, [#allocation9], 128, 128, 8
    $region9: #{tpu_custom_call.1} parent=1 // pred_fallthru
      _
    // Predicated region
    $region10: #{tpu_custom_call.1} parent=1 // pred_check
      _
    $region11: #{tpu_custom_call.1} parent=1 // pred_check_branch
      %45 = sbr.rel (0) target = $region13
    $region12: #{tpu_custom_call.1} parent=1 // pred_region
      %46 = dma.done [#allocation6], 8192
    $region13: #{tpu_custom_call.1} parent=1 // pred_fallthru
      _
    // Predicated region
    $region14: #{tpu_custom_call.1} parent=1 // pred_check
      _
    $region15: #{tpu_custom_call.1} parent=1 // pred_check_branch
      %48 = sbr.rel (0) target = $region17
    $region16: #{tpu_custom_call.1} parent=1 // pred_region
      %49 = dma.done [#allocation9], 1024
    $region17: #{tpu_custom_call.1} parent=1 // pred_fallthru
      _
    %s50 = smul.u32 0, 128
    %s51 = sld [smem:[#allocation3 + %s50]]
    %s52 = sld [smem:[#allocation4 + %s50]]
    %s53 = scalar_lea.vmem [#allocation5], %s51
    %v54 = vld [vmem:[%s53] sm:$0x1]
    %s55 = scalar_lea.vmem [#allocation8], %s52
    %v56 = vld [vmem:[%s55] sm:$0x1]
    %v57 = vadd.f32 %v54, %v56
    %58 = vst [vmem:[#allocation10] sm:$0x1] %v57
    %s59 = sadd.s32 %s50, 1
    %s60 = sld [smem:[#allocation3 + %s59]]
    %s61 = sld [smem:[#allocation4 + %s59]]
    %s62 = scalar_lea.vmem [#allocation5], %s60
    %v63 = vld [vmem:[%s62] sm:$0x1]
    %s64 = scalar_lea.vmem [#allocation8], %s61
    %v65 = vld [vmem:[%s64] sm:$0x1]
    %v66 = vadd.f32 %v63, %v65
    %67 = vst [vmem:[#allocation10 + $0x1] sm:$0x1] %v66
    %s68 = sadd.s32 %s50, 2
    %s69 = sld [smem:[#allocation3 + %s68]]
    %s70 = sld [smem:[#allocation4 + %s68]]
    %s71 = scalar_lea.vmem [#allocation5], %s69
    %v72 = vld [vmem:[%s71] sm:$0x1]
    %s73 = scalar_lea.vmem [#allocation8], %s70
    %v74 = vld [vmem:[%s73] sm:$0x1]
    %v75 = vadd.f32 %v72, %v74
    %76 = vst [vmem:[#allocation10 + $0x2] sm:$0x1] %v75
    %s77 = sadd.s32 %s50, 3
    %s78 = sld [smem:[#allocation3 + %s77]]
    %s79 = sld [smem:[#allocation4 + %s77]]
    %s80 = scalar_lea.vmem [#allocation5], %s78
    %v81 = vld [vmem:[%s80] sm:$0x1]
    %s82 = scalar_lea.vmem [#allocation8], %s79
    %v83 = vld [vmem:[%s82] sm:$0x1]
    %v84 = vadd.f32 %v81, %v83
    %85 = vst [vmem:[#allocation10 + $0x3] sm:$0x1] %v84
    %s86 = sadd.s32 %s50, 4
    %s87 = sld [smem:[#allocation3 + %s86]]
    %s88 = sld [smem:[#allocation4 + %s86]]
    %s89 = scalar_lea.vmem [#allocation5], %s87
    %v90 = vld [vmem:[%s89] sm:$0x1]
    %s91 = scalar_lea.vmem [#allocation8], %s88
    %v92 = vld [vmem:[%s91] sm:$0x1]
    %v93 = vadd.f32 %v90, %v92
    %94 = vst [vmem:[#allocation10 + $0x4] sm:$0x1] %v93
    %s95 = sadd.s32 %s50, 5
    %s96 = sld [smem:[#allocation3 + %s95]]
    %s97 = sld [smem:[#allocation4 + %s95]]
    %s98 = scalar_lea.vmem [#allocation5], %s96
    %v99 = vld [vmem:[%s98] sm:$0x1]
    %s100 = scalar_lea.vmem [#allocation8], %s97
    %v101 = vld [vmem:[%s100] sm:$0x1]
    %v102 = vadd.f32 %v99, %v101
    %103 = vst [vmem:[#allocation10 + $0x5] sm:$0x1] %v102
    %s104 = sadd.s32 %s50, 6
    %s105 = sld [smem:[#allocation3 + %s104]]
    %s106 = sld [smem:[#allocation4 + %s104]]
    %s107 = scalar_lea.vmem [#allocation5], %s105
    %v108 = vld [vmem:[%s107] sm:$0x1]
    %s109 = scalar_lea.vmem [#allocation8], %s106
    %v110 = vld [vmem:[%s109] sm:$0x1]
    %v111 = vadd.f32 %v108, %v110
    %112 = vst [vmem:[#allocation10 + $0x6] sm:$0x1] %v111
    %s113 = sadd.s32 %s50, 7
    %s114 = sld [smem:[#allocation3 + %s113]]
    %s115 = sld [smem:[#allocation4 + %s113]]
    %s116 = scalar_lea.vmem [#allocation5], %s114
    %v117 = vld [vmem:[%s116] sm:$0x1]
    %s118 = scalar_lea.vmem [#allocation8], %s115
    %v119 = vld [vmem:[%s118] sm:$0x1]
    %v120 = vadd.f32 %v117, %v119
    %121 = vst [vmem:[#allocation10 + $0x7] sm:$0x1] %v120
    %s122 = sadd.s32 %s50, 8
    %s123 = sld [smem:[#allocation3 + %s122]]
    %s124 = sld [smem:[#allocation4 + %s122]]
    %s125 = scalar_lea.vmem [#allocation5], %s123
    %v126 = vld [vmem:[%s125] sm:$0x1]
    %s127 = scalar_lea.vmem [#allocation8], %s124
    %v128 = vld [vmem:[%s127] sm:$0x1]
    %v129 = vadd.f32 %v126, %v128
    %130 = vst [vmem:[#allocation10 + $0x8] sm:$0x1] %v129
    %s131 = sadd.s32 %s50, 9
    %s132 = sld [smem:[#allocation3 + %s131]]
    %s133 = sld [smem:[#allocation4 + %s131]]
    %s134 = scalar_lea.vmem [#allocation5], %s132
    %v135 = vld [vmem:[%s134] sm:$0x1]
    %s136 = scalar_lea.vmem [#allocation8], %s133
    %v137 = vld [vmem:[%s136] sm:$0x1]
    %v138 = vadd.f32 %v135, %v137
    %139 = vst [vmem:[#allocation10 + $0x9] sm:$0x1] %v138
    %s140 = sadd.s32 %s50, 10
    %s141 = sld [smem:[#allocation3 + %s140]]
    %s142 = sld [smem:[#allocation4 + %s140]]
    %s143 = scalar_lea.vmem [#allocation5], %s141
    %v144 = vld [vmem:[%s143] sm:$0x1]
    %s145 = scalar_lea.vmem [#allocation8], %s142
    %v146 = vld [vmem:[%s145] sm:$0x1]
    %v147 = vadd.f32 %v144, %v146
    %148 = vst [vmem:[#allocation10 + $0xa] sm:$0x1] %v147
    %s149 = sadd.s32 %s50, 11
    %s150 = sld [smem:[#allocation3 + %s149]]
    %s151 = sld [smem:[#allocation4 + %s149]]
    %s152 = scalar_lea.vmem [#allocation5], %s150
    %v153 = vld [vmem:[%s152] sm:$0x1]
    %s154 = scalar_lea.vmem [#allocation8], %s151
    %v155 = vld [vmem:[%s154] sm:$0x1]
    %v156 = vadd.f32 %v153, %v155
    %157 = vst [vmem:[#allocation10 + $0xb] sm:$0x1] %v156
    %s158 = sadd.s32 %s50, 12
    %s159 = sld [smem:[#allocation3 + %s158]]
    %s160 = sld [smem:[#allocation4 + %s158]]
    %s161 = scalar_lea.vmem [#allocation5], %s159
    %v162 = vld [vmem:[%s161] sm:$0x1]
    %s163 = scalar_lea.vmem [#allocation8], %s160
    %v164 = vld [vmem:[%s163] sm:$0x1]
    %v165 = vadd.f32 %v162, %v164
    %166 = vst [vmem:[#allocation10 + $0xc] sm:$0x1] %v165
    %s167 = sadd.s32 %s50, 13
    %s168 = sld [smem:[#allocation3 + %s167]]
    %s169 = sld [smem:[#allocation4 + %s167]]
    %s170 = scalar_lea.vmem [#allocation5], %s168
    %v171 = vld [vmem:[%s170] sm:$0x1]
    %s172 = scalar_lea.vmem [#allocation8], %s169
    %v173 = vld [vmem:[%s172] sm:$0x1]
    %v174 = vadd.f32 %v171, %v173
    %175 = vst [vmem:[#allocation10 + $0xd] sm:$0x1] %v174
    %s176 = sadd.s32 %s50, 14
    %s177 = sld [smem:[#allocation3 + %s176]]
    %s178 = sld [smem:[#allocation4 + %s176]]
    %s179 = scalar_lea.vmem [#allocation5], %s177
    %v180 = vld [vmem:[%s179] sm:$0x1]
    %s181 = scalar_lea.vmem [#allocation8], %s178
    %v182 = vld [vmem:[%s181] sm:$0x1]
    %v183 = vadd.f32 %v180, %v182
    %184 = vst [vmem:[#allocation10 + $0xe] sm:$0x1] %v183
    %s185 = sadd.s32 %s50, 15
    %s186 = sld [smem:[#allocation3 + %s185]]
    %s187 = sld [smem:[#allocation4 + %s185]]
    %s188 = scalar_lea.vmem [#allocation5], %s186
    %v189 = vld [vmem:[%s188] sm:$0x1]
    %s190 = scalar_lea.vmem [#allocation8], %s187
    %v191 = vld [vmem:[%s190] sm:$0x1]
    %v192 = vadd.f32 %v189, %v191
    %193 = vst [vmem:[#allocation10 + $0xf] sm:$0x1] %v192
    %s194 = sadd.s32 %s50, 16
    %s195 = sld [smem:[#allocation3 + %s194]]
    %s196 = sld [smem:[#allocation4 + %s194]]
    %s197 = scalar_lea.vmem [#allocation5], %s195
    %v198 = vld [vmem:[%s197] sm:$0x1]
    %s199 = scalar_lea.vmem [#allocation8], %s196
    %v200 = vld [vmem:[%s199] sm:$0x1]
    %v201 = vadd.f32 %v198, %v200
    %202 = vst [vmem:[#allocation10 + $0x10] sm:$0x1] %v201
    %s203 = sadd.s32 %s50, 17
    %s204 = sld [smem:[#allocation3 + %s203]]
    %s205 = sld [smem:[#allocation4 + %s203]]
    %s206 = scalar_lea.vmem [#allocation5], %s204
    %v207 = vld [vmem:[%s206] sm:$0x1]
    %s208 = scalar_lea.vmem [#allocation8], %s205
    %v209 = vld [vmem:[%s208] sm:$0x1]
    %v210 = vadd.f32 %v207, %v209
    %211 = vst [vmem:[#allocation10 + $0x11] sm:$0x1] %v210
    %s212 = sadd.s32 %s50, 18
    %s213 = sld [smem:[#allocation3 + %s212]]
    %s214 = sld [smem:[#allocation4 + %s212]]
    %s215 = scalar_lea.vmem [#allocation5], %s213
    %v216 = vld [vmem:[%s215] sm:$0x1]
    %s217 = scalar_lea.vmem [#allocation8], %s214
    %v218 = vld [vmem:[%s217] sm:$0x1]
    %v219 = vadd.f32 %v216, %v218
    %220 = vst [vmem:[#allocation10 + $0x12] sm:$0x1] %v219
    %s221 = sadd.s32 %s50, 19
    %s222 = sld [smem:[#allocation3 + %s221]]
    %s223 = sld [smem:[#allocation4 + %s221]]
    %s224 = scalar_lea.vmem [#allocation5], %s222
    %v225 = vld [vmem:[%s224] sm:$0x1]
    %s226 = scalar_lea.vmem [#allocation8], %s223
    %v227 = vld [vmem:[%s226] sm:$0x1]
    %v228 = vadd.f32 %v225, %v227
    %229 = vst [vmem:[#allocation10 + $0x13] sm:$0x1] %v228
    %s230 = sadd.s32 %s50, 20
    %s231 = sld [smem:[#allocation3 + %s230]]
    %s232 = sld [smem:[#allocation4 + %s230]]
    %s233 = scalar_lea.vmem [#allocation5], %s231
    %v234 = vld [vmem:[%s233] sm:$0x1]
    %s235 = scalar_lea.vmem [#allocation8], %s232
    %v236 = vld [vmem:[%s235] sm:$0x1]
    %v237 = vadd.f32 %v234, %v236
    %238 = vst [vmem:[#allocation10 + $0x14] sm:$0x1] %v237
    %s239 = sadd.s32 %s50, 21
    %s240 = sld [smem:[#allocation3 + %s239]]
    %s241 = sld [smem:[#allocation4 + %s239]]
    %s242 = scalar_lea.vmem [#allocation5], %s240
    %v243 = vld [vmem:[%s242] sm:$0x1]
    %s244 = scalar_lea.vmem [#allocation8], %s241
    %v245 = vld [vmem:[%s244] sm:$0x1]
    %v246 = vadd.f32 %v243, %v245
    %247 = vst [vmem:[#allocation10 + $0x15] sm:$0x1] %v246
    %s248 = sadd.s32 %s50, 22
    %s249 = sld [smem:[#allocation3 + %s248]]
    %s250 = sld [smem:[#allocation4 + %s248]]
    %s251 = scalar_lea.vmem [#allocation5], %s249
    %v252 = vld [vmem:[%s251] sm:$0x1]
    %s253 = scalar_lea.vmem [#allocation8], %s250
    %v254 = vld [vmem:[%s253] sm:$0x1]
    %v255 = vadd.f32 %v252, %v254
    %256 = vst [vmem:[#allocation10 + $0x16] sm:$0x1] %v255
    %s257 = sadd.s32 %s50, 23
    %s258 = sld [smem:[#allocation3 + %s257]]
    %s259 = sld [smem:[#allocation4 + %s257]]
    %s260 = scalar_lea.vmem [#allocation5], %s258
    %v261 = vld [vmem:[%s260] sm:$0x1]
    %s262 = scalar_lea.vmem [#allocation8], %s259
    %v263 = vld [vmem:[%s262] sm:$0x1]
    %v264 = vadd.f32 %v261, %v263
    %265 = vst [vmem:[#allocation10 + $0x17] sm:$0x1] %v264
    %s266 = sadd.s32 %s50, 24
    %s267 = sld [smem:[#allocation3 + %s266]]
    %s268 = sld [smem:[#allocation4 + %s266]]
    %s269 = scalar_lea.vmem [#allocation5], %s267
    %v270 = vld [vmem:[%s269] sm:$0x1]
    %s271 = scalar_lea.vmem [#allocation8], %s268
    %v272 = vld [vmem:[%s271] sm:$0x1]
    %v273 = vadd.f32 %v270, %v272
    %274 = vst [vmem:[#allocation10 + $0x18] sm:$0x1] %v273
    %s275 = sadd.s32 %s50, 25
    %s276 = sld [smem:[#allocation3 + %s275]]
    %s277 = sld [smem:[#allocation4 + %s275]]
    %s278 = scalar_lea.vmem [#allocation5], %s276
    %v279 = vld [vmem:[%s278] sm:$0x1]
    %s280 = scalar_lea.vmem [#allocation8], %s277
    %v281 = vld [vmem:[%s280] sm:$0x1]
    %v282 = vadd.f32 %v279, %v281
    %283 = vst [vmem:[#allocation10 + $0x19] sm:$0x1] %v282
    %s284 = sadd.s32 %s50, 26
    %s285 = sld [smem:[#allocation3 + %s284]]
    %s286 = sld [smem:[#allocation4 + %s284]]
    %s287 = scalar_lea.vmem [#allocation5], %s285
    %v288 = vld [vmem:[%s287] sm:$0x1]
    %s289 = scalar_lea.vmem [#allocation8], %s286
    %v290 = vld [vmem:[%s289] sm:$0x1]
    %v291 = vadd.f32 %v288, %v290
    %292 = vst [vmem:[#allocation10 + $0x1a] sm:$0x1] %v291
    %s293 = sadd.s32 %s50, 27
    %s294 = sld [smem:[#allocation3 + %s293]]
    %s295 = sld [smem:[#allocation4 + %s293]]
    %s296 = scalar_lea.vmem [#allocation5], %s294
    %v297 = vld [vmem:[%s296] sm:$0x1]
    %s298 = scalar_lea.vmem [#allocation8], %s295
    %v299 = vld [vmem:[%s298] sm:$0x1]
    %v300 = vadd.f32 %v297, %v299
    %301 = vst [vmem:[#allocation10 + $0x1b] sm:$0x1] %v300
    %s302 = sadd.s32 %s50, 28
    %s303 = sld [smem:[#allocation3 + %s302]]
    %s304 = sld [smem:[#allocation4 + %s302]]
    %s305 = scalar_lea.vmem [#allocation5], %s303
    %v306 = vld [vmem:[%s305] sm:$0x1]
    %s307 = scalar_lea.vmem [#allocation8], %s304
    %v308 = vld [vmem:[%s307] sm:$0x1]
    %v309 = vadd.f32 %v306, %v308
    %310 = vst [vmem:[#allocation10 + $0x1c] sm:$0x1] %v309
    %s311 = sadd.s32 %s50, 29
    %s312 = sld [smem:[#allocation3 + %s311]]
    %s313 = sld [smem:[#allocation4 + %s311]]
    %s314 = scalar_lea.vmem [#allocation5], %s312
    %v315 = vld [vmem:[%s314] sm:$0x1]
    %s316 = scalar_lea.vmem [#allocation8], %s313
    %v317 = vld [vmem:[%s316] sm:$0x1]
    %v318 = vadd.f32 %v315, %v317
    %319 = vst [vmem:[#allocation10 + $0x1d] sm:$0x1] %v318
    %s320 = sadd.s32 %s50, 30
    %s321 = sld [smem:[#allocation3 + %s320]]
    %s322 = sld [smem:[#allocation4 + %s320]]
    %s323 = scalar_lea.vmem [#allocation5], %s321
    %v324 = vld [vmem:[%s323] sm:$0x1]
    %s325 = scalar_lea.vmem [#allocation8], %s322
    %v326 = vld [vmem:[%s325] sm:$0x1]
    %v327 = vadd.f32 %v324, %v326
    %328 = vst [vmem:[#allocation10 + $0x1e] sm:$0x1] %v327
    %s329 = sadd.s32 %s50, 31
    %s330 = sld [smem:[#allocation3 + %s329]]
    %s331 = sld [smem:[#allocation4 + %s329]]
    %s332 = scalar_lea.vmem [#allocation5], %s330
    %v333 = vld [vmem:[%s332] sm:$0x1]
    %s334 = scalar_lea.vmem [#allocation8], %s331
    %v335 = vld [vmem:[%s334] sm:$0x1]
    %v336 = vadd.f32 %v333, %v335
    %337 = vst [vmem:[#allocation10 + $0x1f] sm:$0x1] %v336
    %s338 = sadd.s32 %s50, 32
    %s339 = sld [smem:[#allocation3 + %s338]]
    %s340 = sld [smem:[#allocation4 + %s338]]
    %s341 = scalar_lea.vmem [#allocation5], %s339
    %v342 = vld [vmem:[%s341] sm:$0x1]
    %s343 = scalar_lea.vmem [#allocation8], %s340
    %v344 = vld [vmem:[%s343] sm:$0x1]
    %v345 = vadd.f32 %v342, %v344
    %346 = vst [vmem:[#allocation10 + $0x20] sm:$0x1] %v345
    %s347 = sadd.s32 %s50, 33
    %s348 = sld [smem:[#allocation3 + %s347]]
    %s349 = sld [smem:[#allocation4 + %s347]]
    %s350 = scalar_lea.vmem [#allocation5], %s348
    %v351 = vld [vmem:[%s350] sm:$0x1]
    %s352 = scalar_lea.vmem [#allocation8], %s349
    %v353 = vld [vmem:[%s352] sm:$0x1]
    %v354 = vadd.f32 %v351, %v353
    %355 = vst [vmem:[#allocation10 + $0x21] sm:$0x1] %v354
    %s356 = sadd.s32 %s50, 34
    %s357 = sld [smem:[#allocation3 + %s356]]
    %s358 = sld [smem:[#allocation4 + %s356]]
    %s359 = scalar_lea.vmem [#allocation5], %s357
    %v360 = vld [vmem:[%s359] sm:$0x1]
    %s361 = scalar_lea.vmem [#allocation8], %s358
    %v362 = vld [vmem:[%s361] sm:$0x1]
    %v363 = vadd.f32 %v360, %v362
    %364 = vst [vmem:[#allocation10 + $0x22] sm:$0x1] %v363
    %s365 = sadd.s32 %s50, 35
    %s366 = sld [smem:[#allocation3 + %s365]]
    %s367 = sld [smem:[#allocation4 + %s365]]
    %s368 = scalar_lea.vmem [#allocation5], %s366
    %v369 = vld [vmem:[%s368] sm:$0x1]
    %s370 = scalar_lea.vmem [#allocation8], %s367
    %v371 = vld [vmem:[%s370] sm:$0x1]
    %v372 = vadd.f32 %v369, %v371
    %373 = vst [vmem:[#allocation10 + $0x23] sm:$0x1] %v372
    %s374 = sadd.s32 %s50, 36
    %s375 = sld [smem:[#allocation3 + %s374]]
    %s376 = sld [smem:[#allocation4 + %s374]]
    %s377 = scalar_lea.vmem [#allocation5], %s375
    %v378 = vld [vmem:[%s377] sm:$0x1]
    %s379 = scalar_lea.vmem [#allocation8], %s376
    %v380 = vld [vmem:[%s379] sm:$0x1]
    %v381 = vadd.f32 %v378, %v380
    %382 = vst [vmem:[#allocation10 + $0x24] sm:$0x1] %v381
    %s383 = sadd.s32 %s50, 37
    %s384 = sld [smem:[#allocation3 + %s383]]
    %s385 = sld [smem:[#allocation4 + %s383]]
    %s386 = scalar_lea.vmem [#allocation5], %s384
    %v387 = vld [vmem:[%s386] sm:$0x1]
    %s388 = scalar_lea.vmem [#allocation8], %s385
    %v389 = vld [vmem:[%s388] sm:$0x1]
    %v390 = vadd.f32 %v387, %v389
    %391 = vst [vmem:[#allocation10 + $0x25] sm:$0x1] %v390
    %s392 = sadd.s32 %s50, 38
    %s393 = sld [smem:[#allocation3 + %s392]]
    %s394 = sld [smem:[#allocation4 + %s392]]
    %s395 = scalar_lea.vmem [#allocation5], %s393
    %v396 = vld [vmem:[%s395] sm:$0x1]
    %s397 = scalar_lea.vmem [#allocation8], %s394
    %v398 = vld [vmem:[%s397] sm:$0x1]
    %v399 = vadd.f32 %v396, %v398
    %400 = vst [vmem:[#allocation10 + $0x26] sm:$0x1] %v399
    %s401 = sadd.s32 %s50, 39
    %s402 = sld [smem:[#allocation3 + %s401]]
    %s403 = sld [smem:[#allocation4 + %s401]]
    %s404 = scalar_lea.vmem [#allocation5], %s402
    %v405 = vld [vmem:[%s404] sm:$0x1]
    %s406 = scalar_lea.vmem [#allocation8], %s403
    %v407 = vld [vmem:[%s406] sm:$0x1]
    %v408 = vadd.f32 %v405, %v407
    %409 = vst [vmem:[#allocation10 + $0x27] sm:$0x1] %v408
    %s410 = sadd.s32 %s50, 40
    %s411 = sld [smem:[#allocation3 + %s410]]
    %s412 = sld [smem:[#allocation4 + %s410]]
    %s413 = scalar_lea.vmem [#allocation5], %s411
    %v414 = vld [vmem:[%s413] sm:$0x1]
    %s415 = scalar_lea.vmem [#allocation8], %s412
    %v416 = vld [vmem:[%s415] sm:$0x1]
    %v417 = vadd.f32 %v414, %v416
    %418 = vst [vmem:[#allocation10 + $0x28] sm:$0x1] %v417
    %s419 = sadd.s32 %s50, 41
    %s420 = sld [smem:[#allocation3 + %s419]]
    %s421 = sld [smem:[#allocation4 + %s419]]
    %s422 = scalar_lea.vmem [#allocation5], %s420
    %v423 = vld [vmem:[%s422] sm:$0x1]
    %s424 = scalar_lea.vmem [#allocation8], %s421
    %v425 = vld [vmem:[%s424] sm:$0x1]
    %v426 = vadd.f32 %v423, %v425
    %427 = vst [vmem:[#allocation10 + $0x29] sm:$0x1] %v426
    %s428 = sadd.s32 %s50, 42
    %s429 = sld [smem:[#allocation3 + %s428]]
    %s430 = sld [smem:[#allocation4 + %s428]]
    %s431 = scalar_lea.vmem [#allocation5], %s429
    %v432 = vld [vmem:[%s431] sm:$0x1]
    %s433 = scalar_lea.vmem [#allocation8], %s430
    %v434 = vld [vmem:[%s433] sm:$0x1]
    %v435 = vadd.f32 %v432, %v434
    %436 = vst [vmem:[#allocation10 + $0x2a] sm:$0x1] %v435
    %s437 = sadd.s32 %s50, 43
    %s438 = sld [smem:[#allocation3 + %s437]]
    %s439 = sld [smem:[#allocation4 + %s437]]
    %s440 = scalar_lea.vmem [#allocation5], %s438
    %v441 = vld [vmem:[%s440] sm:$0x1]
    %s442 = scalar_lea.vmem [#allocation8], %s439
    %v443 = vld [vmem:[%s442] sm:$0x1]
    %v444 = vadd.f32 %v441, %v443
    %445 = vst [vmem:[#allocation10 + $0x2b] sm:$0x1] %v444
    %s446 = sadd.s32 %s50, 44
    %s447 = sld [smem:[#allocation3 + %s446]]
    %s448 = sld [smem:[#allocation4 + %s446]]
    %s449 = scalar_lea.vmem [#allocation5], %s447
    %v450 = vld [vmem:[%s449] sm:$0x1]
    %s451 = scalar_lea.vmem [#allocation8], %s448
    %v452 = vld [vmem:[%s451] sm:$0x1]
    %v453 = vadd.f32 %v450, %v452
    %454 = vst [vmem:[#allocation10 + $0x2c] sm:$0x1] %v453
    %s455 = sadd.s32 %s50, 45
    %s456 = sld [smem:[#allocation3 + %s455]]
    %s457 = sld [smem:[#allocation4 + %s455]]
    %s458 = scalar_lea.vmem [#allocation5], %s456
    %v459 = vld [vmem:[%s458] sm:$0x1]
    %s460 = scalar_lea.vmem [#allocation8], %s457
    %v461 = vld [vmem:[%s460] sm:$0x1]
    %v462 = vadd.f32 %v459, %v461
    %463 = vst [vmem:[#allocation10 + $0x2d] sm:$0x1] %v462
    %s464 = sadd.s32 %s50, 46
    %s465 = sld [smem:[#allocation3 + %s464]]
    %s466 = sld [smem:[#allocation4 + %s464]]
    %s467 = scalar_lea.vmem [#allocation5], %s465
    %v468 = vld [vmem:[%s467] sm:$0x1]
    %s469 = scalar_lea.vmem [#allocation8], %s466
    %v470 = vld [vmem:[%s469] sm:$0x1]
    %v471 = vadd.f32 %v468, %v470
    %472 = vst [vmem:[#allocation10 + $0x2e] sm:$0x1] %v471
    %s473 = sadd.s32 %s50, 47
    %s474 = sld [smem:[#allocation3 + %s473]]
    %s475 = sld [smem:[#allocation4 + %s473]]
    %s476 = scalar_lea.vmem [#allocation5], %s474
    %v477 = vld [vmem:[%s476] sm:$0x1]
    %s478 = scalar_lea.vmem [#allocation8], %s475
    %v479 = vld [vmem:[%s478] sm:$0x1]
    %v480 = vadd.f32 %v477, %v479
    %481 = vst [vmem:[#allocation10 + $0x2f] sm:$0x1] %v480
    %s482 = sadd.s32 %s50, 48
    %s483 = sld [smem:[#allocation3 + %s482]]
    %s484 = sld [smem:[#allocation4 + %s482]]
    %s485 = scalar_lea.vmem [#allocation5], %s483
    %v486 = vld [vmem:[%s485] sm:$0x1]
    %s487 = scalar_lea.vmem [#allocation8], %s484
    %v488 = vld [vmem:[%s487] sm:$0x1]
    %v489 = vadd.f32 %v486, %v488
    %490 = vst [vmem:[#allocation10 + $0x30] sm:$0x1] %v489
    %s491 = sadd.s32 %s50, 49
    %s492 = sld [smem:[#allocation3 + %s491]]
    %s493 = sld [smem:[#allocation4 + %s491]]
    %s494 = scalar_lea.vmem [#allocation5], %s492
    %v495 = vld [vmem:[%s494] sm:$0x1]
    %s496 = scalar_lea.vmem [#allocation8], %s493
    %v497 = vld [vmem:[%s496] sm:$0x1]
    %v498 = vadd.f32 %v495, %v497
    %499 = vst [vmem:[#allocation10 + $0x31] sm:$0x1] %v498
    %s500 = sadd.s32 %s50, 50
    %s501 = sld [smem:[#allocation3 + %s500]]
    %s502 = sld [smem:[#allocation4 + %s500]]
    %s503 = scalar_lea.vmem [#allocation5], %s501
    %v504 = vld [vmem:[%s503] sm:$0x1]
    %s505 = scalar_lea.vmem [#allocation8], %s502
    %v506 = vld [vmem:[%s505] sm:$0x1]
    %v507 = vadd.f32 %v504, %v506
    %508 = vst [vmem:[#allocation10 + $0x32] sm:$0x1] %v507
    %s509 = sadd.s32 %s50, 51
    %s510 = sld [smem:[#allocation3 + %s509]]
    %s511 = sld [smem:[#allocation4 + %s509]]
    %s512 = scalar_lea.vmem [#allocation5], %s510
    %v513 = vld [vmem:[%s512] sm:$0x1]
    %s514 = scalar_lea.vmem [#allocation8], %s511
    %v515 = vld [vmem:[%s514] sm:$0x1]
    %v516 = vadd.f32 %v513, %v515
    %517 = vst [vmem:[#allocation10 + $0x33] sm:$0x1] %v516
    %s518 = sadd.s32 %s50, 52
    %s519 = sld [smem:[#allocation3 + %s518]]
    %s520 = sld [smem:[#allocation4 + %s518]]
    %s521 = scalar_lea.vmem [#allocation5], %s519
    %v522 = vld [vmem:[%s521] sm:$0x1]
    %s523 = scalar_lea.vmem [#allocation8], %s520
    %v524 = vld [vmem:[%s523] sm:$0x1]
    %v525 = vadd.f32 %v522, %v524
    %526 = vst [vmem:[#allocation10 + $0x34] sm:$0x1] %v525
    %s527 = sadd.s32 %s50, 53
    %s528 = sld [smem:[#allocation3 + %s527]]
    %s529 = sld [smem:[#allocation4 + %s527]]
    %s530 = scalar_lea.vmem [#allocation5], %s528
    %v531 = vld [vmem:[%s530] sm:$0x1]
    %s532 = scalar_lea.vmem [#allocation8], %s529
    %v533 = vld [vmem:[%s532] sm:$0x1]
    %v534 = vadd.f32 %v531, %v533
    %535 = vst [vmem:[#allocation10 + $0x35] sm:$0x1] %v534
    %s536 = sadd.s32 %s50, 54
    %s537 = sld [smem:[#allocation3 + %s536]]
    %s538 = sld [smem:[#allocation4 + %s536]]
    %s539 = scalar_lea.vmem [#allocation5], %s537
    %v540 = vld [vmem:[%s539] sm:$0x1]
    %s541 = scalar_lea.vmem [#allocation8], %s538
    %v542 = vld [vmem:[%s541] sm:$0x1]
    %v543 = vadd.f32 %v540, %v542
    %544 = vst [vmem:[#allocation10 + $0x36] sm:$0x1] %v543
    %s545 = sadd.s32 %s50, 55
    %s546 = sld [smem:[#allocation3 + %s545]]
    %s547 = sld [smem:[#allocation4 + %s545]]
    %s548 = scalar_lea.vmem [#allocation5], %s546
    %v549 = vld [vmem:[%s548] sm:$0x1]
    %s550 = scalar_lea.vmem [#allocation8], %s547
    %v551 = vld [vmem:[%s550] sm:$0x1]
    %v552 = vadd.f32 %v549, %v551
    %553 = vst [vmem:[#allocation10 + $0x37] sm:$0x1] %v552
    %s554 = sadd.s32 %s50, 56
    %s555 = sld [smem:[#allocation3 + %s554]]
    %s556 = sld [smem:[#allocation4 + %s554]]
    %s557 = scalar_lea.vmem [#allocation5], %s555
    %v558 = vld [vmem:[%s557] sm:$0x1]
    %s559 = scalar_lea.vmem [#allocation8], %s556
    %v560 = vld [vmem:[%s559] sm:$0x1]
    %v561 = vadd.f32 %v558, %v560
    %562 = vst [vmem:[#allocation10 + $0x38] sm:$0x1] %v561
    %s563 = sadd.s32 %s50, 57
    %s564 = sld [smem:[#allocation3 + %s563]]
    %s565 = sld [smem:[#allocation4 + %s563]]
    %s566 = scalar_lea.vmem [#allocation5], %s564
    %v567 = vld [vmem:[%s566] sm:$0x1]
    %s568 = scalar_lea.vmem [#allocation8], %s565
    %v569 = vld [vmem:[%s568] sm:$0x1]
    %v570 = vadd.f32 %v567, %v569
    %571 = vst [vmem:[#allocation10 + $0x39] sm:$0x1] %v570
    %s572 = sadd.s32 %s50, 58
    %s573 = sld [smem:[#allocation3 + %s572]]
    %s574 = sld [smem:[#allocation4 + %s572]]
    %s575 = scalar_lea.vmem [#allocation5], %s573
    %v576 = vld [vmem:[%s575] sm:$0x1]
    %s577 = scalar_lea.vmem [#allocation8], %s574
    %v578 = vld [vmem:[%s577] sm:$0x1]
    %v579 = vadd.f32 %v576, %v578
    %580 = vst [vmem:[#allocation10 + $0x3a] sm:$0x1] %v579
    %s581 = sadd.s32 %s50, 59
    %s582 = sld [smem:[#allocation3 + %s581]]
    %s583 = sld [smem:[#allocation4 + %s581]]
    %s584 = scalar_lea.vmem [#allocation5], %s582
    %v585 = vld [vmem:[%s584] sm:$0x1]
    %s586 = scalar_lea.vmem [#allocation8], %s583
    %v587 = vld [vmem:[%s586] sm:$0x1]
    %v588 = vadd.f32 %v585, %v587
    %589 = vst [vmem:[#allocation10 + $0x3b] sm:$0x1] %v588
    %s590 = sadd.s32 %s50, 60
    %s591 = sld [smem:[#allocation3 + %s590]]
    %s592 = sld [smem:[#allocation4 + %s590]]
    %s593 = scalar_lea.vmem [#allocation5], %s591
    %v594 = vld [vmem:[%s593] sm:$0x1]
    %s595 = scalar_lea.vmem [#allocation8], %s592
    %v596 = vld [vmem:[%s595] sm:$0x1]
    %v597 = vadd.f32 %v594, %v596
    %598 = vst [vmem:[#allocation10 + $0x3c] sm:$0x1] %v597
    %s599 = sadd.s32 %s50, 61
    %s600 = sld [smem:[#allocation3 + %s599]]
    %s601 = sld [smem:[#allocation4 + %s599]]
    %s602 = scalar_lea.vmem [#allocation5], %s600
    %v603 = vld [vmem:[%s602] sm:$0x1]
    %s604 = scalar_lea.vmem [#allocation8], %s601
    %v605 = vld [vmem:[%s604] sm:$0x1]
    %v606 = vadd.f32 %v603, %v605
    %607 = vst [vmem:[#allocation10 + $0x3d] sm:$0x1] %v606
    %s608 = sadd.s32 %s50, 62
    %s609 = sld [smem:[#allocation3 + %s608]]
    %s610 = sld [smem:[#allocation4 + %s608]]
    %s611 = scalar_lea.vmem [#allocation5], %s609
    %v612 = vld [vmem:[%s611] sm:$0x1]
    %s613 = scalar_lea.vmem [#allocation8], %s610
    %v614 = vld [vmem:[%s613] sm:$0x1]
    %v615 = vadd.f32 %v612, %v614
    %616 = vst [vmem:[#allocation10 + $0x3e] sm:$0x1] %v615
    %s617 = sadd.s32 %s50, 63
    %s618 = sld [smem:[#allocation3 + %s617]]
    %s619 = sld [smem:[#allocation4 + %s617]]
    %s620 = scalar_lea.vmem [#allocation5], %s618
    %v621 = vld [vmem:[%s620] sm:$0x1]
    %s622 = scalar_lea.vmem [#allocation8], %s619
    %v623 = vld [vmem:[%s622] sm:$0x1]
    %v624 = vadd.f32 %v621, %v623
    %625 = vst [vmem:[#allocation10 + $0x3f] sm:$0x1] %v624
    %s626 = sadd.s32 %s50, 64
    %s627 = sld [smem:[#allocation3 + %s626]]
    %s628 = sld [smem:[#allocation4 + %s626]]
    %s629 = scalar_lea.vmem [#allocation5], %s627
    %v630 = vld [vmem:[%s629] sm:$0x1]
    %s631 = scalar_lea.vmem [#allocation8], %s628
    %v632 = vld [vmem:[%s631] sm:$0x1]
    %v633 = vadd.f32 %v630, %v632
    %634 = vst [vmem:[#allocation10 + $0x40] sm:$0x1] %v633
    %s635 = sadd.s32 %s50, 65
    %s636 = sld [smem:[#allocation3 + %s635]]
    %s637 = sld [smem:[#allocation4 + %s635]]
    %s638 = scalar_lea.vmem [#allocation5], %s636
    %v639 = vld [vmem:[%s638] sm:$0x1]
    %s640 = scalar_lea.vmem [#allocation8], %s637
    %v641 = vld [vmem:[%s640] sm:$0x1]
    %v642 = vadd.f32 %v639, %v641
    %643 = vst [vmem:[#allocation10 + $0x41] sm:$0x1] %v642
    %s644 = sadd.s32 %s50, 66
    %s645 = sld [smem:[#allocation3 + %s644]]
    %s646 = sld [smem:[#allocation4 + %s644]]
    %s647 = scalar_lea.vmem [#allocation5], %s645
    %v648 = vld [vmem:[%s647] sm:$0x1]
    %s649 = scalar_lea.vmem [#allocation8], %s646
    %v650 = vld [vmem:[%s649] sm:$0x1]
    %v651 = vadd.f32 %v648, %v650
    %652 = vst [vmem:[#allocation10 + $0x42] sm:$0x1] %v651
    %s653 = sadd.s32 %s50, 67
    %s654 = sld [smem:[#allocation3 + %s653]]
    %s655 = sld [smem:[#allocation4 + %s653]]
    %s656 = scalar_lea.vmem [#allocation5], %s654
    %v657 = vld [vmem:[%s656] sm:$0x1]
    %s658 = scalar_lea.vmem [#allocation8], %s655
    %v659 = vld [vmem:[%s658] sm:$0x1]
    %v660 = vadd.f32 %v657, %v659
    %661 = vst [vmem:[#allocation10 + $0x43] sm:$0x1] %v660
    %s662 = sadd.s32 %s50, 68
    %s663 = sld [smem:[#allocation3 + %s662]]
    %s664 = sld [smem:[#allocation4 + %s662]]
    %s665 = scalar_lea.vmem [#allocation5], %s663
    %v666 = vld [vmem:[%s665] sm:$0x1]
    %s667 = scalar_lea.vmem [#allocation8], %s664
    %v668 = vld [vmem:[%s667] sm:$0x1]
    %v669 = vadd.f32 %v666, %v668
    %670 = vst [vmem:[#allocation10 + $0x44] sm:$0x1] %v669
    %s671 = sadd.s32 %s50, 69
    %s672 = sld [smem:[#allocation3 + %s671]]
    %s673 = sld [smem:[#allocation4 + %s671]]
    %s674 = scalar_lea.vmem [#allocation5], %s672
    %v675 = vld [vmem:[%s674] sm:$0x1]
    %s676 = scalar_lea.vmem [#allocation8], %s673
    %v677 = vld [vmem:[%s676] sm:$0x1]
    %v678 = vadd.f32 %v675, %v677
    %679 = vst [vmem:[#allocation10 + $0x45] sm:$0x1] %v678
    %s680 = sadd.s32 %s50, 70
    %s681 = sld [smem:[#allocation3 + %s680]]
    %s682 = sld [smem:[#allocation4 + %s680]]
    %s683 = scalar_lea.vmem [#allocation5], %s681
    %v684 = vld [vmem:[%s683] sm:$0x1]
    %s685 = scalar_lea.vmem [#allocation8], %s682
    %v686 = vld [vmem:[%s685] sm:$0x1]
    %v687 = vadd.f32 %v684, %v686
    %688 = vst [vmem:[#allocation10 + $0x46] sm:$0x1] %v687
    %s689 = sadd.s32 %s50, 71
    %s690 = sld [smem:[#allocation3 + %s689]]
    %s691 = sld [smem:[#allocation4 + %s689]]
    %s692 = scalar_lea.vmem [#allocation5], %s690
    %v693 = vld [vmem:[%s692] sm:$0x1]
    %s694 = scalar_lea.vmem [#allocation8], %s691
    %v695 = vld [vmem:[%s694] sm:$0x1]
    %v696 = vadd.f32 %v693, %v695
    %697 = vst [vmem:[#allocation10 + $0x47] sm:$0x1] %v696
    %s698 = sadd.s32 %s50, 72
    %s699 = sld [smem:[#allocation3 + %s698]]
    %s700 = sld [smem:[#allocation4 + %s698]]
    %s701 = scalar_lea.vmem [#allocation5], %s699
    %v702 = vld [vmem:[%s701] sm:$0x1]
    %s703 = scalar_lea.vmem [#allocation8], %s700
    %v704 = vld [vmem:[%s703] sm:$0x1]
    %v705 = vadd.f32 %v702, %v704
    %706 = vst [vmem:[#allocation10 + $0x48] sm:$0x1] %v705
    %s707 = sadd.s32 %s50, 73
    %s708 = sld [smem:[#allocation3 + %s707]]
    %s709 = sld [smem:[#allocation4 + %s707]]
    %s710 = scalar_lea.vmem [#allocation5], %s708
    %v711 = vld [vmem:[%s710] sm:$0x1]
    %s712 = scalar_lea.vmem [#allocation8], %s709
    %v713 = vld [vmem:[%s712] sm:$0x1]
    %v714 = vadd.f32 %v711, %v713
    %715 = vst [vmem:[#allocation10 + $0x49] sm:$0x1] %v714
    %s716 = sadd.s32 %s50, 74
    %s717 = sld [smem:[#allocation3 + %s716]]
    %s718 = sld [smem:[#allocation4 + %s716]]
    %s719 = scalar_lea.vmem [#allocation5], %s717
    %v720 = vld [vmem:[%s719] sm:$0x1]
    %s721 = scalar_lea.vmem [#allocation8], %s718
    %v722 = vld [vmem:[%s721] sm:$0x1]
    %v723 = vadd.f32 %v720, %v722
    %724 = vst [vmem:[#allocation10 + $0x4a] sm:$0x1] %v723
    %s725 = sadd.s32 %s50, 75
    %s726 = sld [smem:[#allocation3 + %s725]]
    %s727 = sld [smem:[#allocation4 + %s725]]
    %s728 = scalar_lea.vmem [#allocation5], %s726
    %v729 = vld [vmem:[%s728] sm:$0x1]
    %s730 = scalar_lea.vmem [#allocation8], %s727
    %v731 = vld [vmem:[%s730] sm:$0x1]
    %v732 = vadd.f32 %v729, %v731
    %733 = vst [vmem:[#allocation10 + $0x4b] sm:$0x1] %v732
    %s734 = sadd.s32 %s50, 76
    %s735 = sld [smem:[#allocation3 + %s734]]
    %s736 = sld [smem:[#allocation4 + %s734]]
    %s737 = scalar_lea.vmem [#allocation5], %s735
    %v738 = vld [vmem:[%s737] sm:$0x1]
    %s739 = scalar_lea.vmem [#allocation8], %s736
    %v740 = vld [vmem:[%s739] sm:$0x1]
    %v741 = vadd.f32 %v738, %v740
    %742 = vst [vmem:[#allocation10 + $0x4c] sm:$0x1] %v741
    %s743 = sadd.s32 %s50, 77
    %s744 = sld [smem:[#allocation3 + %s743]]
    %s745 = sld [smem:[#allocation4 + %s743]]
    %s746 = scalar_lea.vmem [#allocation5], %s744
    %v747 = vld [vmem:[%s746] sm:$0x1]
    %s748 = scalar_lea.vmem [#allocation8], %s745
    %v749 = vld [vmem:[%s748] sm:$0x1]
    %v750 = vadd.f32 %v747, %v749
    %751 = vst [vmem:[#allocation10 + $0x4d] sm:$0x1] %v750
    %s752 = sadd.s32 %s50, 78
    %s753 = sld [smem:[#allocation3 + %s752]]
    %s754 = sld [smem:[#allocation4 + %s752]]
    %s755 = scalar_lea.vmem [#allocation5], %s753
    %v756 = vld [vmem:[%s755] sm:$0x1]
    %s757 = scalar_lea.vmem [#allocation8], %s754
    %v758 = vld [vmem:[%s757] sm:$0x1]
    %v759 = vadd.f32 %v756, %v758
    %760 = vst [vmem:[#allocation10 + $0x4e] sm:$0x1] %v759
    %s761 = sadd.s32 %s50, 79
    %s762 = sld [smem:[#allocation3 + %s761]]
    %s763 = sld [smem:[#allocation4 + %s761]]
    %s764 = scalar_lea.vmem [#allocation5], %s762
    %v765 = vld [vmem:[%s764] sm:$0x1]
    %s766 = scalar_lea.vmem [#allocation8], %s763
    %v767 = vld [vmem:[%s766] sm:$0x1]
    %v768 = vadd.f32 %v765, %v767
    %769 = vst [vmem:[#allocation10 + $0x4f] sm:$0x1] %v768
    %s770 = sadd.s32 %s50, 80
    %s771 = sld [smem:[#allocation3 + %s770]]
    %s772 = sld [smem:[#allocation4 + %s770]]
    %s773 = scalar_lea.vmem [#allocation5], %s771
    %v774 = vld [vmem:[%s773] sm:$0x1]
    %s775 = scalar_lea.vmem [#allocation8], %s772
    %v776 = vld [vmem:[%s775] sm:$0x1]
    %v777 = vadd.f32 %v774, %v776
    %778 = vst [vmem:[#allocation10 + $0x50] sm:$0x1] %v777
    %s779 = sadd.s32 %s50, 81
    %s780 = sld [smem:[#allocation3 + %s779]]
    %s781 = sld [smem:[#allocation4 + %s779]]
    %s782 = scalar_lea.vmem [#allocation5], %s780
    %v783 = vld [vmem:[%s782] sm:$0x1]
    %s784 = scalar_lea.vmem [#allocation8], %s781
    %v785 = vld [vmem:[%s784] sm:$0x1]
    %v786 = vadd.f32 %v783, %v785
    %787 = vst [vmem:[#allocation10 + $0x51] sm:$0x1] %v786
    %s788 = sadd.s32 %s50, 82
    %s789 = sld [smem:[#allocation3 + %s788]]
    %s790 = sld [smem:[#allocation4 + %s788]]
    %s791 = scalar_lea.vmem [#allocation5], %s789
    %v792 = vld [vmem:[%s791] sm:$0x1]
    %s793 = scalar_lea.vmem [#allocation8], %s790
    %v794 = vld [vmem:[%s793] sm:$0x1]
    %v795 = vadd.f32 %v792, %v794
    %796 = vst [vmem:[#allocation10 + $0x52] sm:$0x1] %v795
    %s797 = sadd.s32 %s50, 83
    %s798 = sld [smem:[#allocation3 + %s797]]
    %s799 = sld [smem:[#allocation4 + %s797]]
    %s800 = scalar_lea.vmem [#allocation5], %s798
    %v801 = vld [vmem:[%s800] sm:$0x1]
    %s802 = scalar_lea.vmem [#allocation8], %s799
    %v803 = vld [vmem:[%s802] sm:$0x1]
    %v804 = vadd.f32 %v801, %v803
    %805 = vst [vmem:[#allocation10 + $0x53] sm:$0x1] %v804
    %s806 = sadd.s32 %s50, 84
    %s807 = sld [smem:[#allocation3 + %s806]]
    %s808 = sld [smem:[#allocation4 + %s806]]
    %s809 = scalar_lea.vmem [#allocation5], %s807
    %v810 = vld [vmem:[%s809] sm:$0x1]
    %s811 = scalar_lea.vmem [#allocation8], %s808
    %v812 = vld [vmem:[%s811] sm:$0x1]
    %v813 = vadd.f32 %v810, %v812
    %814 = vst [vmem:[#allocation10 + $0x54] sm:$0x1] %v813
    %s815 = sadd.s32 %s50, 85
    %s816 = sld [smem:[#allocation3 + %s815]]
    %s817 = sld [smem:[#allocation4 + %s815]]
    %s818 = scalar_lea.vmem [#allocation5], %s816
    %v819 = vld [vmem:[%s818] sm:$0x1]
    %s820 = scalar_lea.vmem [#allocation8], %s817
    %v821 = vld [vmem:[%s820] sm:$0x1]
    %v822 = vadd.f32 %v819, %v821
    %823 = vst [vmem:[#allocation10 + $0x55] sm:$0x1] %v822
    %s824 = sadd.s32 %s50, 86
    %s825 = sld [smem:[#allocation3 + %s824]]
    %s826 = sld [smem:[#allocation4 + %s824]]
    %s827 = scalar_lea.vmem [#allocation5], %s825
    %v828 = vld [vmem:[%s827] sm:$0x1]
    %s829 = scalar_lea.vmem [#allocation8], %s826
    %v830 = vld [vmem:[%s829] sm:$0x1]
    %v831 = vadd.f32 %v828, %v830
    %832 = vst [vmem:[#allocation10 + $0x56] sm:$0x1] %v831
    %s833 = sadd.s32 %s50, 87
    %s834 = sld [smem:[#allocation3 + %s833]]
    %s835 = sld [smem:[#allocation4 + %s833]]
    %s836 = scalar_lea.vmem [#allocation5], %s834
    %v837 = vld [vmem:[%s836] sm:$0x1]
    %s838 = scalar_lea.vmem [#allocation8], %s835
    %v839 = vld [vmem:[%s838] sm:$0x1]
    %v840 = vadd.f32 %v837, %v839
    %841 = vst [vmem:[#allocation10 + $0x57] sm:$0x1] %v840
    %s842 = sadd.s32 %s50, 88
    %s843 = sld [smem:[#allocation3 + %s842]]
    %s844 = sld [smem:[#allocation4 + %s842]]
    %s845 = scalar_lea.vmem [#allocation5], %s843
    %v846 = vld [vmem:[%s845] sm:$0x1]
    %s847 = scalar_lea.vmem [#allocation8], %s844
    %v848 = vld [vmem:[%s847] sm:$0x1]
    %v849 = vadd.f32 %v846, %v848
    %850 = vst [vmem:[#allocation10 + $0x58] sm:$0x1] %v849
    %s851 = sadd.s32 %s50, 89
    %s852 = sld [smem:[#allocation3 + %s851]]
    %s853 = sld [smem:[#allocation4 + %s851]]
    %s854 = scalar_lea.vmem [#allocation5], %s852
    %v855 = vld [vmem:[%s854] sm:$0x1]
    %s856 = scalar_lea.vmem [#allocation8], %s853
    %v857 = vld [vmem:[%s856] sm:$0x1]
    %v858 = vadd.f32 %v855, %v857
    %859 = vst [vmem:[#allocation10 + $0x59] sm:$0x1] %v858
    %s860 = sadd.s32 %s50, 90
    %s861 = sld [smem:[#allocation3 + %s860]]
    %s862 = sld [smem:[#allocation4 + %s860]]
    %s863 = scalar_lea.vmem [#allocation5], %s861
    %v864 = vld [vmem:[%s863] sm:$0x1]
    %s865 = scalar_lea.vmem [#allocation8], %s862
    %v866 = vld [vmem:[%s865] sm:$0x1]
    %v867 = vadd.f32 %v864, %v866
    %868 = vst [vmem:[#allocation10 + $0x5a] sm:$0x1] %v867
    %s869 = sadd.s32 %s50, 91
    %s870 = sld [smem:[#allocation3 + %s869]]
    %s871 = sld [smem:[#allocation4 + %s869]]
    %s872 = scalar_lea.vmem [#allocation5], %s870
    %v873 = vld [vmem:[%s872] sm:$0x1]
    %s874 = scalar_lea.vmem [#allocation8], %s871
    %v875 = vld [vmem:[%s874] sm:$0x1]
    %v876 = vadd.f32 %v873, %v875
    %877 = vst [vmem:[#allocation10 + $0x5b] sm:$0x1] %v876
    %s878 = sadd.s32 %s50, 92
    %s879 = sld [smem:[#allocation3 + %s878]]
    %s880 = sld [smem:[#allocation4 + %s878]]
    %s881 = scalar_lea.vmem [#allocation5], %s879
    %v882 = vld [vmem:[%s881] sm:$0x1]
    %s883 = scalar_lea.vmem [#allocation8], %s880
    %v884 = vld [vmem:[%s883] sm:$0x1]
    %v885 = vadd.f32 %v882, %v884
    %886 = vst [vmem:[#allocation10 + $0x5c] sm:$0x1] %v885
    %s887 = sadd.s32 %s50, 93
    %s888 = sld [smem:[#allocation3 + %s887]]
    %s889 = sld [smem:[#allocation4 + %s887]]
    %s890 = scalar_lea.vmem [#allocation5], %s888
    %v891 = vld [vmem:[%s890] sm:$0x1]
    %s892 = scalar_lea.vmem [#allocation8], %s889
    %v893 = vld [vmem:[%s892] sm:$0x1]
    %v894 = vadd.f32 %v891, %v893
    %895 = vst [vmem:[#allocation10 + $0x5d] sm:$0x1] %v894
    %s896 = sadd.s32 %s50, 94
    %s897 = sld [smem:[#allocation3 + %s896]]
    %s898 = sld [smem:[#allocation4 + %s896]]
    %s899 = scalar_lea.vmem [#allocation5], %s897
    %v900 = vld [vmem:[%s899] sm:$0x1]
    %s901 = scalar_lea.vmem [#allocation8], %s898
    %v902 = vld [vmem:[%s901] sm:$0x1]
    %v903 = vadd.f32 %v900, %v902
    %904 = vst [vmem:[#allocation10 + $0x5e] sm:$0x1] %v903
    %s905 = sadd.s32 %s50, 95
    %s906 = sld [smem:[#allocation3 + %s905]]
    %s907 = sld [smem:[#allocation4 + %s905]]
    %s908 = scalar_lea.vmem [#allocation5], %s906
    %v909 = vld [vmem:[%s908] sm:$0x1]
    %s910 = scalar_lea.vmem [#allocation8], %s907
    %v911 = vld [vmem:[%s910] sm:$0x1]
    %v912 = vadd.f32 %v909, %v911
    %913 = vst [vmem:[#allocation10 + $0x5f] sm:$0x1] %v912
    %s914 = sadd.s32 %s50, 96
    %s915 = sld [smem:[#allocation3 + %s914]]
    %s916 = sld [smem:[#allocation4 + %s914]]
    %s917 = scalar_lea.vmem [#allocation5], %s915
    %v918 = vld [vmem:[%s917] sm:$0x1]
    %s919 = scalar_lea.vmem [#allocation8], %s916
    %v920 = vld [vmem:[%s919] sm:$0x1]
    %v921 = vadd.f32 %v918, %v920
    %922 = vst [vmem:[#allocation10 + $0x60] sm:$0x1] %v921
    %s923 = sadd.s32 %s50, 97
    %s924 = sld [smem:[#allocation3 + %s923]]
    %s925 = sld [smem:[#allocation4 + %s923]]
    %s926 = scalar_lea.vmem [#allocation5], %s924
    %v927 = vld [vmem:[%s926] sm:$0x1]
    %s928 = scalar_lea.vmem [#allocation8], %s925
    %v929 = vld [vmem:[%s928] sm:$0x1]
    %v930 = vadd.f32 %v927, %v929
    %931 = vst [vmem:[#allocation10 + $0x61] sm:$0x1] %v930
    %s932 = sadd.s32 %s50, 98
    %s933 = sld [smem:[#allocation3 + %s932]]
    %s934 = sld [smem:[#allocation4 + %s932]]
    %s935 = scalar_lea.vmem [#allocation5], %s933
    %v936 = vld [vmem:[%s935] sm:$0x1]
    %s937 = scalar_lea.vmem [#allocation8], %s934
    %v938 = vld [vmem:[%s937] sm:$0x1]
    %v939 = vadd.f32 %v936, %v938
    %940 = vst [vmem:[#allocation10 + $0x62] sm:$0x1] %v939
    %s941 = sadd.s32 %s50, 99
    %s942 = sld [smem:[#allocation3 + %s941]]
    %s943 = sld [smem:[#allocation4 + %s941]]
    %s944 = scalar_lea.vmem [#allocation5], %s942
    %v945 = vld [vmem:[%s944] sm:$0x1]
    %s946 = scalar_lea.vmem [#allocation8], %s943
    %v947 = vld [vmem:[%s946] sm:$0x1]
    %v948 = vadd.f32 %v945, %v947
    %949 = vst [vmem:[#allocation10 + $0x63] sm:$0x1] %v948
    %s950 = sadd.s32 %s50, 100
    %s951 = sld [smem:[#allocation3 + %s950]]
    %s952 = sld [smem:[#allocation4 + %s950]]
    %s953 = scalar_lea.vmem [#allocation5], %s951
    %v954 = vld [vmem:[%s953] sm:$0x1]
    %s955 = scalar_lea.vmem [#allocation8], %s952
    %v956 = vld [vmem:[%s955] sm:$0x1]
    %v957 = vadd.f32 %v954, %v956
    %958 = vst [vmem:[#allocation10 + $0x64] sm:$0x1] %v957
    %s959 = sadd.s32 %s50, 101
    %s960 = sld [smem:[#allocation3 + %s959]]
    %s961 = sld [smem:[#allocation4 + %s959]]
    %s962 = scalar_lea.vmem [#allocation5], %s960
    %v963 = vld [vmem:[%s962] sm:$0x1]
    %s964 = scalar_lea.vmem [#allocation8], %s961
    %v965 = vld [vmem:[%s964] sm:$0x1]
    %v966 = vadd.f32 %v963, %v965
    %967 = vst [vmem:[#allocation10 + $0x65] sm:$0x1] %v966
    %s968 = sadd.s32 %s50, 102
    %s969 = sld [smem:[#allocation3 + %s968]]
    %s970 = sld [smem:[#allocation4 + %s968]]
    %s971 = scalar_lea.vmem [#allocation5], %s969
    %v972 = vld [vmem:[%s971] sm:$0x1]
    %s973 = scalar_lea.vmem [#allocation8], %s970
    %v974 = vld [vmem:[%s973] sm:$0x1]
    %v975 = vadd.f32 %v972, %v974
    %976 = vst [vmem:[#allocation10 + $0x66] sm:$0x1] %v975
    %s977 = sadd.s32 %s50, 103
    %s978 = sld [smem:[#allocation3 + %s977]]
    %s979 = sld [smem:[#allocation4 + %s977]]
    %s980 = scalar_lea.vmem [#allocation5], %s978
    %v981 = vld [vmem:[%s980] sm:$0x1]
    %s982 = scalar_lea.vmem [#allocation8], %s979
    %v983 = vld [vmem:[%s982] sm:$0x1]
    %v984 = vadd.f32 %v981, %v983
    %985 = vst [vmem:[#allocation10 + $0x67] sm:$0x1] %v984
    %s986 = sadd.s32 %s50, 104
    %s987 = sld [smem:[#allocation3 + %s986]]
    %s988 = sld [smem:[#allocation4 + %s986]]
    %s989 = scalar_lea.vmem [#allocation5], %s987
    %v990 = vld [vmem:[%s989] sm:$0x1]
    %s991 = scalar_lea.vmem [#allocation8], %s988
    %v992 = vld [vmem:[%s991] sm:$0x1]
    %v993 = vadd.f32 %v990, %v992
    %994 = vst [vmem:[#allocation10 + $0x68] sm:$0x1] %v993
    %s995 = sadd.s32 %s50, 105
    %s996 = sld [smem:[#allocation3 + %s995]]
    %s997 = sld [smem:[#allocation4 + %s995]]
    %s998 = scalar_lea.vmem [#allocation5], %s996
    %v999 = vld [vmem:[%s998] sm:$0x1]
    %s1000 = scalar_lea.vmem [#allocation8], %s997
    %v1001 = vld [vmem:[%s1000] sm:$0x1]
    %v1002 = vadd.f32 %v999, %v1001
    %1003 = vst [vmem:[#allocation10 + $0x69] sm:$0x1] %v1002
    %s1004 = sadd.s32 %s50, 106
    %s1005 = sld [smem:[#allocation3 + %s1004]]
    %s1006 = sld [smem:[#allocation4 + %s1004]]
    %s1007 = scalar_lea.vmem [#allocation5], %s1005
    %v1008 = vld [vmem:[%s1007] sm:$0x1]
    %s1009 = scalar_lea.vmem [#allocation8], %s1006
    %v1010 = vld [vmem:[%s1009] sm:$0x1]
    %v1011 = vadd.f32 %v1008, %v1010
    %1012 = vst [vmem:[#allocation10 + $0x6a] sm:$0x1] %v1011
    %s1013 = sadd.s32 %s50, 107
    %s1014 = sld [smem:[#allocation3 + %s1013]]
    %s1015 = sld [smem:[#allocation4 + %s1013]]
    %s1016 = scalar_lea.vmem [#allocation5], %s1014
    %v1017 = vld [vmem:[%s1016] sm:$0x1]
    %s1018 = scalar_lea.vmem [#allocation8], %s1015
    %v1019 = vld [vmem:[%s1018] sm:$0x1]
    %v1020 = vadd.f32 %v1017, %v1019
    %1021 = vst [vmem:[#allocation10 + $0x6b] sm:$0x1] %v1020
    %s1022 = sadd.s32 %s50, 108
    %s1023 = sld [smem:[#allocation3 + %s1022]]
    %s1024 = sld [smem:[#allocation4 + %s1022]]
    %s1025 = scalar_lea.vmem [#allocation5], %s1023
    %v1026 = vld [vmem:[%s1025] sm:$0x1]
    %s1027 = scalar_lea.vmem [#allocation8], %s1024
    %v1028 = vld [vmem:[%s1027] sm:$0x1]
    %v1029 = vadd.f32 %v1026, %v1028
    %1030 = vst [vmem:[#allocation10 + $0x6c] sm:$0x1] %v1029
    %s1031 = sadd.s32 %s50, 109
    %s1032 = sld [smem:[#allocation3 + %s1031]]
    %s1033 = sld [smem:[#allocation4 + %s1031]]
    %s1034 = scalar_lea.vmem [#allocation5], %s1032
    %v1035 = vld [vmem:[%s1034] sm:$0x1]
    %s1036 = scalar_lea.vmem [#allocation8], %s1033
    %v1037 = vld [vmem:[%s1036] sm:$0x1]
    %v1038 = vadd.f32 %v1035, %v1037
    %1039 = vst [vmem:[#allocation10 + $0x6d] sm:$0x1] %v1038
    %s1040 = sadd.s32 %s50, 110
    %s1041 = sld [smem:[#allocation3 + %s1040]]
    %s1042 = sld [smem:[#allocation4 + %s1040]]
    %s1043 = scalar_lea.vmem [#allocation5], %s1041
    %v1044 = vld [vmem:[%s1043] sm:$0x1]
    %s1045 = scalar_lea.vmem [#allocation8], %s1042
    %v1046 = vld [vmem:[%s1045] sm:$0x1]
    %v1047 = vadd.f32 %v1044, %v1046
    %1048 = vst [vmem:[#allocation10 + $0x6e] sm:$0x1] %v1047
    %s1049 = sadd.s32 %s50, 111
    %s1050 = sld [smem:[#allocation3 + %s1049]]
    %s1051 = sld [smem:[#allocation4 + %s1049]]
    %s1052 = scalar_lea.vmem [#allocation5], %s1050
    %v1053 = vld [vmem:[%s1052] sm:$0x1]
    %s1054 = scalar_lea.vmem [#allocation8], %s1051
    %v1055 = vld [vmem:[%s1054] sm:$0x1]
    %v1056 = vadd.f32 %v1053, %v1055
    %1057 = vst [vmem:[#allocation10 + $0x6f] sm:$0x1] %v1056
    %s1058 = sadd.s32 %s50, 112
    %s1059 = sld [smem:[#allocation3 + %s1058]]
    %s1060 = sld [smem:[#allocation4 + %s1058]]
    %s1061 = scalar_lea.vmem [#allocation5], %s1059
    %v1062 = vld [vmem:[%s1061] sm:$0x1]
    %s1063 = scalar_lea.vmem [#allocation8], %s1060
    %v1064 = vld [vmem:[%s1063] sm:$0x1]
    %v1065 = vadd.f32 %v1062, %v1064
    %1066 = vst [vmem:[#allocation10 + $0x70] sm:$0x1] %v1065
    %s1067 = sadd.s32 %s50, 113
    %s1068 = sld [smem:[#allocation3 + %s1067]]
    %s1069 = sld [smem:[#allocation4 + %s1067]]
    %s1070 = scalar_lea.vmem [#allocation5], %s1068
    %v1071 = vld [vmem:[%s1070] sm:$0x1]
    %s1072 = scalar_lea.vmem [#allocation8], %s1069
    %v1073 = vld [vmem:[%s1072] sm:$0x1]
    %v1074 = vadd.f32 %v1071, %v1073
    %1075 = vst [vmem:[#allocation10 + $0x71] sm:$0x1] %v1074
    %s1076 = sadd.s32 %s50, 114
    %s1077 = sld [smem:[#allocation3 + %s1076]]
    %s1078 = sld [smem:[#allocation4 + %s1076]]
    %s1079 = scalar_lea.vmem [#allocation5], %s1077
    %v1080 = vld [vmem:[%s1079] sm:$0x1]
    %s1081 = scalar_lea.vmem [#allocation8], %s1078
    %v1082 = vld [vmem:[%s1081] sm:$0x1]
    %v1083 = vadd.f32 %v1080, %v1082
    %1084 = vst [vmem:[#allocation10 + $0x72] sm:$0x1] %v1083
    %s1085 = sadd.s32 %s50, 115
    %s1086 = sld [smem:[#allocation3 + %s1085]]
    %s1087 = sld [smem:[#allocation4 + %s1085]]
    %s1088 = scalar_lea.vmem [#allocation5], %s1086
    %v1089 = vld [vmem:[%s1088] sm:$0x1]
    %s1090 = scalar_lea.vmem [#allocation8], %s1087
    %v1091 = vld [vmem:[%s1090] sm:$0x1]
    %v1092 = vadd.f32 %v1089, %v1091
    %1093 = vst [vmem:[#allocation10 + $0x73] sm:$0x1] %v1092
    %s1094 = sadd.s32 %s50, 116
    %s1095 = sld [smem:[#allocation3 + %s1094]]
    %s1096 = sld [smem:[#allocation4 + %s1094]]
    %s1097 = scalar_lea.vmem [#allocation5], %s1095
    %v1098 = vld [vmem:[%s1097] sm:$0x1]
    %s1099 = scalar_lea.vmem [#allocation8], %s1096
    %v1100 = vld [vmem:[%s1099] sm:$0x1]
    %v1101 = vadd.f32 %v1098, %v1100
    %1102 = vst [vmem:[#allocation10 + $0x74] sm:$0x1] %v1101
    %s1103 = sadd.s32 %s50, 117
    %s1104 = sld [smem:[#allocation3 + %s1103]]
    %s1105 = sld [smem:[#allocation4 + %s1103]]
    %s1106 = scalar_lea.vmem [#allocation5], %s1104
    %v1107 = vld [vmem:[%s1106] sm:$0x1]
    %s1108 = scalar_lea.vmem [#allocation8], %s1105
    %v1109 = vld [vmem:[%s1108] sm:$0x1]
    %v1110 = vadd.f32 %v1107, %v1109
    %1111 = vst [vmem:[#allocation10 + $0x75] sm:$0x1] %v1110
    %s1112 = sadd.s32 %s50, 118
    %s1113 = sld [smem:[#allocation3 + %s1112]]
    %s1114 = sld [smem:[#allocation4 + %s1112]]
    %s1115 = scalar_lea.vmem [#allocation5], %s1113
    %v1116 = vld [vmem:[%s1115] sm:$0x1]
    %s1117 = scalar_lea.vmem [#allocation8], %s1114
    %v1118 = vld [vmem:[%s1117] sm:$0x1]
    %v1119 = vadd.f32 %v1116, %v1118
    %1120 = vst [vmem:[#allocation10 + $0x76] sm:$0x1] %v1119
    %s1121 = sadd.s32 %s50, 119
    %s1122 = sld [smem:[#allocation3 + %s1121]]
    %s1123 = sld [smem:[#allocation4 + %s1121]]
    %s1124 = scalar_lea.vmem [#allocation5], %s1122
    %v1125 = vld [vmem:[%s1124] sm:$0x1]
    %s1126 = scalar_lea.vmem [#allocation8], %s1123
    %v1127 = vld [vmem:[%s1126] sm:$0x1]
    %v1128 = vadd.f32 %v1125, %v1127
    %1129 = vst [vmem:[#allocation10 + $0x77] sm:$0x1] %v1128
    %s1130 = sadd.s32 %s50, 120
    %s1131 = sld [smem:[#allocation3 + %s1130]]
    %s1132 = sld [smem:[#allocation4 + %s1130]]
    %s1133 = scalar_lea.vmem [#allocation5], %s1131
    %v1134 = vld [vmem:[%s1133] sm:$0x1]
    %s1135 = scalar_lea.vmem [#allocation8], %s1132
    %v1136 = vld [vmem:[%s1135] sm:$0x1]
    %v1137 = vadd.f32 %v1134, %v1136
    %1138 = vst [vmem:[#allocation10 + $0x78] sm:$0x1] %v1137
    %s1139 = sadd.s32 %s50, 121
    %s1140 = sld [smem:[#allocation3 + %s1139]]
    %s1141 = sld [smem:[#allocation4 + %s1139]]
    %s1142 = scalar_lea.vmem [#allocation5], %s1140
    %v1143 = vld [vmem:[%s1142] sm:$0x1]
    %s1144 = scalar_lea.vmem [#allocation8], %s1141
    %v1145 = vld [vmem:[%s1144] sm:$0x1]
    %v1146 = vadd.f32 %v1143, %v1145
    %1147 = vst [vmem:[#allocation10 + $0x79] sm:$0x1] %v1146
    %s1148 = sadd.s32 %s50, 122
    %s1149 = sld [smem:[#allocation3 + %s1148]]
    %s1150 = sld [smem:[#allocation4 + %s1148]]
    %s1151 = scalar_lea.vmem [#allocation5], %s1149
    %v1152 = vld [vmem:[%s1151] sm:$0x1]
    %s1153 = scalar_lea.vmem [#allocation8], %s1150
    %v1154 = vld [vmem:[%s1153] sm:$0x1]
    %v1155 = vadd.f32 %v1152, %v1154
    %1156 = vst [vmem:[#allocation10 + $0x7a] sm:$0x1] %v1155
    %s1157 = sadd.s32 %s50, 123
    %s1158 = sld [smem:[#allocation3 + %s1157]]
    %s1159 = sld [smem:[#allocation4 + %s1157]]
    %s1160 = scalar_lea.vmem [#allocation5], %s1158
    %v1161 = vld [vmem:[%s1160] sm:$0x1]
    %s1162 = scalar_lea.vmem [#allocation8], %s1159
    %v1163 = vld [vmem:[%s1162] sm:$0x1]
    %v1164 = vadd.f32 %v1161, %v1163
    %1165 = vst [vmem:[#allocation10 + $0x7b] sm:$0x1] %v1164
    %s1166 = sadd.s32 %s50, 124
    %s1167 = sld [smem:[#allocation3 + %s1166]]
    %s1168 = sld [smem:[#allocation4 + %s1166]]
    %s1169 = scalar_lea.vmem [#allocation5], %s1167
    %v1170 = vld [vmem:[%s1169] sm:$0x1]
    %s1171 = scalar_lea.vmem [#allocation8], %s1168
    %v1172 = vld [vmem:[%s1171] sm:$0x1]
    %v1173 = vadd.f32 %v1170, %v1172
    %1174 = vst [vmem:[#allocation10 + $0x7c] sm:$0x1] %v1173
    %s1175 = sadd.s32 %s50, 125
    %s1176 = sld [smem:[#allocation3 + %s1175]]
    %s1177 = sld [smem:[#allocation4 + %s1175]]
    %s1178 = scalar_lea.vmem [#allocation5], %s1176
    %v1179 = vld [vmem:[%s1178] sm:$0x1]
    %s1180 = scalar_lea.vmem [#allocation8], %s1177
    %v1181 = vld [vmem:[%s1180] sm:$0x1]
    %v1182 = vadd.f32 %v1179, %v1181
    %1183 = vst [vmem:[#allocation10 + $0x7d] sm:$0x1] %v1182
    %s1184 = sadd.s32 %s50, 126
    %s1185 = sld [smem:[#allocation3 + %s1184]]
    %s1186 = sld [smem:[#allocation4 + %s1184]]
    %s1187 = scalar_lea.vmem [#allocation5], %s1185
    %v1188 = vld [vmem:[%s1187] sm:$0x1]
    %s1189 = scalar_lea.vmem [#allocation8], %s1186
    %v1190 = vld [vmem:[%s1189] sm:$0x1]
    %v1191 = vadd.f32 %v1188, %v1190
    %1192 = vst [vmem:[#allocation10 + $0x7e] sm:$0x1] %v1191
    %s1193 = sadd.s32 %s50, 127
    %s1194 = sld [smem:[#allocation3 + %s1193]]
    %s1195 = sld [smem:[#allocation4 + %s1193]]
    %s1196 = scalar_lea.vmem [#allocation5], %s1194
    %v1197 = vld [vmem:[%s1196] sm:$0x1]
    %s1198 = scalar_lea.vmem [#allocation8], %s1195
    %v1199 = vld [vmem:[%s1198] sm:$0x1]
    %v1200 = vadd.f32 %v1197, %v1199
    %1201 = vst [vmem:[#allocation10 + $0x7f] sm:$0x1] %v1200
    // Predicated region
    $region18: #{tpu_custom_call.1} parent=1 // pred_check
      _
    $region19: #{tpu_custom_call.1} parent=1 // pred_check_branch
      %1203 = sbr.rel (0) target = $region21
    $region20: #{tpu_custom_call.1} parent=1 // pred_region
      %s1205 = ssub.s32 2048, 2048
      %1206 = vsyncadd [#allocation7], %s1205
      %s1207 = sshll.u32 [#allocation10], 4
      %s1208 = int_to_ptr.vmem [resolvable:$true] %s1207
      %1213 = dma.vmem_to_hbm [thread:$0]  %s1208, 2048, %s4, [#allocation7], 128, 128, 8
    $region21: #{tpu_custom_call.1} parent=1 // pred_fallthru
      _
    // Predicated region
    $region22: #{tpu_custom_call.1} parent=1 // pred_check
      _
    $region23: #{tpu_custom_call.1} parent=1 // pred_check_branch
      %1215 = sbr.rel (0) target = $region25
    $region24: #{tpu_custom_call.1} parent=1 // pred_region
      %1216 = dma.done [#allocation7], 2048
    $region25: #{tpu_custom_call.1} parent=1 // pred_fallthru
      _
    %1217 = vsyncpa [#allocation6], 1
    %1218 = vsyncpa [#allocation9], 1
    %1219 = vsyncpa [#allocation7], 1

// kernel: tpu_custom_call.1
$region0: #{tpu_custom_call.1}
  #allocation0 [shape = 'u32[]', space=smem, size = 0x4, offset = 0x4, fixed_abs, tag = 'smem constant byte address 0x4 - core index']
  #allocation1 [shape = 'u32[144,128]{1,0:T(1,128)}', space=vmem, size = 0x12000, scoped, tag = 'internal scratch']
  #allocation2 [shape = 's32[1]{0}', space=sflag, size = 0x4, scoped, tag = 'scoped memory for tpu_custom_call.1']
  #allocation3 [shape = 'u8[512]{0}', space=smem, size = 0x200, scoped, tag = 'prefetched SMEM operand 0']
  #allocation4 [shape = 'u8[512]{0}', space=smem, size = 0x200, scoped, tag = 'prefetched SMEM operand 1']
  %s0 = inlined_call_operand.hbm [shape: s32[128], index: 0, kind: input, shape index: {}]
  %s1 = inlined_call_operand.vmem [shape: s32[128], index: 1, kind: input, shape index: {}]
  %s2 = inlined_call_operand.hbm [shape: f32[512,128], index: 2, kind: input, shape index: {}]
  %s3 = inlined_call_operand.hbm [shape: f32[64,128], index: 3, kind: input, shape index: {}]
  %s4 = inlined_call_operand.hbm [shape: f32[128,128], index: 4, kind: output, shape index: {}]
  %s5 = sld [smem:[#allocation0]]
  $region26: #{tpu_custom_call.1} parent=0
    _
  %s7 = ssub.s32 1, %s5
  %s8 = scalar_select 0, %s7, %s5
  %10 = dma.hbm_to_smem %s0, 16, [#allocation3], [#allocation2]
  %s11 = sshll.u32 %s1, 4
  %s12 = int_to_ptr.vmem [resolvable:$true] %s11
  %14 = dma.vmem_to_smem %s12, 16, [#allocation4], [#allocation2]
  %15 = dma.done [#allocation2], 32
  %16 = sfence
  $region1: #{tpu_custom_call.1} parent=0
    #allocation5 [shape = 'u8[262144]{0}', space=vmem, size = 0x40000, scoped, tag = 'input window, operand 2, single buffered']
    #allocation6 [shape = 's32[1]{0}', space=sflag, size = 0x4, scoped, tag = 'scoped memory for tpu_custom_call.1']
    #allocation7 [shape = 's32[1]{0}', space=sflag, size = 0x4, scoped, tag = 'scoped memory for tpu_custom_call.1']
    #allocation8 [shape = 'u8[32768]{0}', space=vmem, size = 0x8000, scoped, tag = 'input window, operand 3, single buffered']
    #allocation9 [shape = 's32[1]{0}', space=sflag, size = 0x4, scoped, tag = 'scoped memory for tpu_custom_call.1']
    #allocation10 [shape = 'u8[65536]{0}', space=vmem, size = 0x10000, scoped, tag = 'output window, operand 0, single buffered']
    %17 = vsyncpa [#allocation6], 0
    %18 = vsyncpa [#allocation9], 0
    %19 = vsyncpa [#allocation7], 0
    // Predicated region
    $region2: #{tpu_custom_call.1} parent=1 // pred_check
      _
    $region3: #{tpu_custom_call.1} parent=1 // pred_check_branch
      %21 = sbr.rel (0) target = $region5
    $region4: #{tpu_custom_call.1} parent=1 // pred_region
      %s23 = ssub.s32 8192, 8192
      %24 = vsyncadd [#allocation6], %s23
      %s25 = sshll.u32 [#allocation5], 4
      %s26 = int_to_ptr.vmem [resolvable:$true] %s25
      %31 = dma.hbm_to_vmem [thread:$0]  %s2, 8192, %s26, [#allocation6], 128, 128, 8
    $region5: #{tpu_custom_call.1} parent=1 // pred_fallthru
      _
    // Predicated region
    $region6: #{tpu_custom_call.1} parent=1 // pred_check
      _
    $region7: #{tpu_custom_call.1} parent=1 // pred_check_branch
      %33 = sbr.rel (0) target = $region9
    $region8: #{tpu_custom_call.1} parent=1 // pred_region
      %s35 = ssub.s32 1024, 1024
      %36 = vsyncadd [#allocation9], %s35
      %s37 = sshll.u32 [#allocation8], 4
      %s38 = int_to_ptr.vmem [resolvable:$true] %s37
      %43 = dma.hbm_to_vmem [thread:$0]  %s3, 1024, %s38, [#allocation9], 128, 128, 8
    $region9: #{tpu_custom_call.1} parent=1 // pred_fallthru
      _
    // Predicated region
    $region10: #{tpu_custom_call.1} parent=1 // pred_check
      _
    $region11: #{tpu_custom_call.1} parent=1 // pred_check_branch
      %45 = sbr.rel (0) target = $region13
    $region12: #{tpu_custom_call.1} parent=1 // pred_region
      %46 = dma.done [#allocation6], 8192
    $region13: #{tpu_custom_call.1} parent=1 // pred_fallthru
      _
    // Predicated region
    $region14: #{tpu_custom_call.1} parent=1 // pred_check
      _
    $region15: #{tpu_custom_call.1} parent=1 // pred_check_branch
      %48 = sbr.rel (0) target = $region17
    $region16: #{tpu_custom_call.1} parent=1 // pred_region
      %49 = dma.done [#allocation9], 1024
    $region17: #{tpu_custom_call.1} parent=1 // pred_fallthru
      _
    %s50 = smul.u32 0, 128
    %s51 = sld [smem:[#allocation3 + %s50]]
    %s52 = sld [smem:[#allocation4 + %s50]]
    %s53 = scalar_lea.vmem [#allocation5], %s51
    %v54 = vld [vmem:[%s53] sm:$0x1]
    %s55 = scalar_lea.vmem [#allocation8], %s52
    %v56 = vld [vmem:[%s55] sm:$0x1]
    %v57 = vadd.f32 %v54, %v56
    %58 = vst [vmem:[#allocation10] sm:$0x1] %v57
    %s59 = sadd.s32 %s50, 1
    %s60 = sld [smem:[#allocation3 + %s59]]
    %s61 = sld [smem:[#allocation4 + %s59]]
    %s62 = scalar_lea.vmem [#allocation5], %s60
    %v63 = vld [vmem:[%s62] sm:$0x1]
    %s64 = scalar_lea.vmem [#allocation8], %s61
    %v65 = vld [vmem:[%s64] sm:$0x1]
    %v66 = vadd.f32 %v63, %v65
    %67 = vst [vmem:[#allocation10 + $0x1] sm:$0x1] %v66
    %s68 = sadd.s32 %s50, 2
    %s69 = sld [smem:[#allocation3 + %s68]]
    %s70 = sld [smem:[#allocation4 + %s68]]
    %s71 = scalar_lea.vmem [#allocation5], %s69
    %v72 = vld [vmem:[%s71] sm:$0x1]
    %s73 = scalar_lea.vmem [#allocation8], %s70
    %v74 = vld [vmem:[%s73] sm:$0x1]
    %v75 = vadd.f32 %v72, %v74
    %76 = vst [vmem:[#allocation10 + $0x2] sm:$0x1] %v75
    %s77 = sadd.s32 %s50, 3
    %s78 = sld [smem:[#allocation3 + %s77]]
    %s79 = sld [smem:[#allocation4 + %s77]]
    %s80 = scalar_lea.vmem [#allocation5], %s78
    %v81 = vld [vmem:[%s80] sm:$0x1]
    %s82 = scalar_lea.vmem [#allocation8], %s79
    %v83 = vld [vmem:[%s82] sm:$0x1]
    %v84 = vadd.f32 %v81, %v83
    %85 = vst [vmem:[#allocation10 + $0x3] sm:$0x1] %v84
    %s86 = sadd.s32 %s50, 4
    %s87 = sld [smem:[#allocation3 + %s86]]
    %s88 = sld [smem:[#allocation4 + %s86]]
    %s89 = scalar_lea.vmem [#allocation5], %s87
    %v90 = vld [vmem:[%s89] sm:$0x1]
    %s91 = scalar_lea.vmem [#allocation8], %s88
    %v92 = vld [vmem:[%s91] sm:$0x1]
    %v93 = vadd.f32 %v90, %v92
    %94 = vst [vmem:[#allocation10 + $0x4] sm:$0x1] %v93
    %s95 = sadd.s32 %s50, 5
    %s96 = sld [smem:[#allocation3 + %s95]]
    %s97 = sld [smem:[#allocation4 + %s95]]
    %s98 = scalar_lea.vmem [#allocation5], %s96
    %v99 = vld [vmem:[%s98] sm:$0x1]
    %s100 = scalar_lea.vmem [#allocation8], %s97
    %v101 = vld [vmem:[%s100] sm:$0x1]
    %v102 = vadd.f32 %v99, %v101
    %103 = vst [vmem:[#allocation10 + $0x5] sm:$0x1] %v102
    %s104 = sadd.s32 %s50, 6
    %s105 = sld [smem:[#allocation3 + %s104]]
    %s106 = sld [smem:[#allocation4 + %s104]]
    %s107 = scalar_lea.vmem [#allocation5], %s105
    %v108 = vld [vmem:[%s107] sm:$0x1]
    %s109 = scalar_lea.vmem [#allocation8], %s106
    %v110 = vld [vmem:[%s109] sm:$0x1]
    %v111 = vadd.f32 %v108, %v110
    %112 = vst [vmem:[#allocation10 + $0x6] sm:$0x1] %v111
    %s113 = sadd.s32 %s50, 7
    %s114 = sld [smem:[#allocation3 + %s113]]
    %s115 = sld [smem:[#allocation4 + %s113]]
    %s116 = scalar_lea.vmem [#allocation5], %s114
    %v117 = vld [vmem:[%s116] sm:$0x1]
    %s118 = scalar_lea.vmem [#allocation8], %s115
    %v119 = vld [vmem:[%s118] sm:$0x1]
    %v120 = vadd.f32 %v117, %v119
    %121 = vst [vmem:[#allocation10 + $0x7] sm:$0x1] %v120
    %s122 = sadd.s32 %s50, 8
    %s123 = sld [smem:[#allocation3 + %s122]]
    %s124 = sld [smem:[#allocation4 + %s122]]
    %s125 = scalar_lea.vmem [#allocation5], %s123
    %v126 = vld [vmem:[%s125] sm:$0x1]
    %s127 = scalar_lea.vmem [#allocation8], %s124
    %v128 = vld [vmem:[%s127] sm:$0x1]
    %v129 = vadd.f32 %v126, %v128
    %130 = vst [vmem:[#allocation10 + $0x8] sm:$0x1] %v129
    %s131 = sadd.s32 %s50, 9
    %s132 = sld [smem:[#allocation3 + %s131]]
    %s133 = sld [smem:[#allocation4 + %s131]]
    %s134 = scalar_lea.vmem [#allocation5], %s132
    %v135 = vld [vmem:[%s134] sm:$0x1]
    %s136 = scalar_lea.vmem [#allocation8], %s133
    %v137 = vld [vmem:[%s136] sm:$0x1]
    %v138 = vadd.f32 %v135, %v137
    %139 = vst [vmem:[#allocation10 + $0x9] sm:$0x1] %v138
    %s140 = sadd.s32 %s50, 10
    %s141 = sld [smem:[#allocation3 + %s140]]
    %s142 = sld [smem:[#allocation4 + %s140]]
    %s143 = scalar_lea.vmem [#allocation5], %s141
    %v144 = vld [vmem:[%s143] sm:$0x1]
    %s145 = scalar_lea.vmem [#allocation8], %s142
    %v146 = vld [vmem:[%s145] sm:$0x1]
    %v147 = vadd.f32 %v144, %v146
    %148 = vst [vmem:[#allocation10 + $0xa] sm:$0x1] %v147
    %s149 = sadd.s32 %s50, 11
    %s150 = sld [smem:[#allocation3 + %s149]]
    %s151 = sld [smem:[#allocation4 + %s149]]
    %s152 = scalar_lea.vmem [#allocation5], %s150
    %v153 = vld [vmem:[%s152] sm:$0x1]
    %s154 = scalar_lea.vmem [#allocation8], %s151
    %v155 = vld [vmem:[%s154] sm:$0x1]
    %v156 = vadd.f32 %v153, %v155
    %157 = vst [vmem:[#allocation10 + $0xb] sm:$0x1] %v156
    %s158 = sadd.s32 %s50, 12
    %s159 = sld [smem:[#allocation3 + %s158]]
    %s160 = sld [smem:[#allocation4 + %s158]]
    %s161 = scalar_lea.vmem [#allocation5], %s159
    %v162 = vld [vmem:[%s161] sm:$0x1]
    %s163 = scalar_lea.vmem [#allocation8], %s160
    %v164 = vld [vmem:[%s163] sm:$0x1]
    %v165 = vadd.f32 %v162, %v164
    %166 = vst [vmem:[#allocation10 + $0xc] sm:$0x1] %v165
    %s167 = sadd.s32 %s50, 13
    %s168 = sld [smem:[#allocation3 + %s167]]
    %s169 = sld [smem:[#allocation4 + %s167]]
    %s170 = scalar_lea.vmem [#allocation5], %s168
    %v171 = vld [vmem:[%s170] sm:$0x1]
    %s172 = scalar_lea.vmem [#allocation8], %s169
    %v173 = vld [vmem:[%s172] sm:$0x1]
    %v174 = vadd.f32 %v171, %v173
    %175 = vst [vmem:[#allocation10 + $0xd] sm:$0x1] %v174
    %s176 = sadd.s32 %s50, 14
    %s177 = sld [smem:[#allocation3 + %s176]]
    %s178 = sld [smem:[#allocation4 + %s176]]
    %s179 = scalar_lea.vmem [#allocation5], %s177
    %v180 = vld [vmem:[%s179] sm:$0x1]
    %s181 = scalar_lea.vmem [#allocation8], %s178
    %v182 = vld [vmem:[%s181] sm:$0x1]
    %v183 = vadd.f32 %v180, %v182
    %184 = vst [vmem:[#allocation10 + $0xe] sm:$0x1] %v183
    %s185 = sadd.s32 %s50, 15
    %s186 = sld [smem:[#allocation3 + %s185]]
    %s187 = sld [smem:[#allocation4 + %s185]]
    %s188 = scalar_lea.vmem [#allocation5], %s186
    %v189 = vld [vmem:[%s188] sm:$0x1]
    %s190 = scalar_lea.vmem [#allocation8], %s187
    %v191 = vld [vmem:[%s190] sm:$0x1]
    %v192 = vadd.f32 %v189, %v191
    %193 = vst [vmem:[#allocation10 + $0xf] sm:$0x1] %v192
    %s194 = sadd.s32 %s50, 16
    %s195 = sld [smem:[#allocation3 + %s194]]
    %s196 = sld [smem:[#allocation4 + %s194]]
    %s197 = scalar_lea.vmem [#allocation5], %s195
    %v198 = vld [vmem:[%s197] sm:$0x1]
    %s199 = scalar_lea.vmem [#allocation8], %s196
    %v200 = vld [vmem:[%s199] sm:$0x1]
    %v201 = vadd.f32 %v198, %v200
    %202 = vst [vmem:[#allocation10 + $0x10] sm:$0x1] %v201
    %s203 = sadd.s32 %s50, 17
    %s204 = sld [smem:[#allocation3 + %s203]]
    %s205 = sld [smem:[#allocation4 + %s203]]
    %s206 = scalar_lea.vmem [#allocation5], %s204
    %v207 = vld [vmem:[%s206] sm:$0x1]
    %s208 = scalar_lea.vmem [#allocation8], %s205
    %v209 = vld [vmem:[%s208] sm:$0x1]
    %v210 = vadd.f32 %v207, %v209
    %211 = vst [vmem:[#allocation10 + $0x11] sm:$0x1] %v210
    %s212 = sadd.s32 %s50, 18
    %s213 = sld [smem:[#allocation3 + %s212]]
    %s214 = sld [smem:[#allocation4 + %s212]]
    %s215 = scalar_lea.vmem [#allocation5], %s213
    %v216 = vld [vmem:[%s215] sm:$0x1]
    %s217 = scalar_lea.vmem [#allocation8], %s214
    %v218 = vld [vmem:[%s217] sm:$0x1]
    %v219 = vadd.f32 %v216, %v218
    %220 = vst [vmem:[#allocation10 + $0x12] sm:$0x1] %v219
    %s221 = sadd.s32 %s50, 19
    %s222 = sld [smem:[#allocation3 + %s221]]
    %s223 = sld [smem:[#allocation4 + %s221]]
    %s224 = scalar_lea.vmem [#allocation5], %s222
    %v225 = vld [vmem:[%s224] sm:$0x1]
    %s226 = scalar_lea.vmem [#allocation8], %s223
    %v227 = vld [vmem:[%s226] sm:$0x1]
    %v228 = vadd.f32 %v225, %v227
    %229 = vst [vmem:[#allocation10 + $0x13] sm:$0x1] %v228
    %s230 = sadd.s32 %s50, 20
    %s231 = sld [smem:[#allocation3 + %s230]]
    %s232 = sld [smem:[#allocation4 + %s230]]
    %s233 = scalar_lea.vmem [#allocation5], %s231
    %v234 = vld [vmem:[%s233] sm:$0x1]
    %s235 = scalar_lea.vmem [#allocation8], %s232
    %v236 = vld [vmem:[%s235] sm:$0x1]
    %v237 = vadd.f32 %v234, %v236
    %238 = vst [vmem:[#allocation10 + $0x14] sm:$0x1] %v237
    %s239 = sadd.s32 %s50, 21
    %s240 = sld [smem:[#allocation3 + %s239]]
    %s241 = sld [smem:[#allocation4 + %s239]]
    %s242 = scalar_lea.vmem [#allocation5], %s240
    %v243 = vld [vmem:[%s242] sm:$0x1]
    %s244 = scalar_lea.vmem [#allocation8], %s241
    %v245 = vld [vmem:[%s244] sm:$0x1]
    %v246 = vadd.f32 %v243, %v245
    %247 = vst [vmem:[#allocation10 + $0x15] sm:$0x1] %v246
    %s248 = sadd.s32 %s50, 22
    %s249 = sld [smem:[#allocation3 + %s248]]
    %s250 = sld [smem:[#allocation4 + %s248]]
    %s251 = scalar_lea.vmem [#allocation5], %s249
    %v252 = vld [vmem:[%s251] sm:$0x1]
    %s253 = scalar_lea.vmem [#allocation8], %s250
    %v254 = vld [vmem:[%s253] sm:$0x1]
    %v255 = vadd.f32 %v252, %v254
    %256 = vst [vmem:[#allocation10 + $0x16] sm:$0x1] %v255
    %s257 = sadd.s32 %s50, 23
    %s258 = sld [smem:[#allocation3 + %s257]]
    %s259 = sld [smem:[#allocation4 + %s257]]
    %s260 = scalar_lea.vmem [#allocation5], %s258
    %v261 = vld [vmem:[%s260] sm:$0x1]
    %s262 = scalar_lea.vmem [#allocation8], %s259
    %v263 = vld [vmem:[%s262] sm:$0x1]
    %v264 = vadd.f32 %v261, %v263
    %265 = vst [vmem:[#allocation10 + $0x17] sm:$0x1] %v264
    %s266 = sadd.s32 %s50, 24
    %s267 = sld [smem:[#allocation3 + %s266]]
    %s268 = sld [smem:[#allocation4 + %s266]]
    %s269 = scalar_lea.vmem [#allocation5], %s267
    %v270 = vld [vmem:[%s269] sm:$0x1]
    %s271 = scalar_lea.vmem [#allocation8], %s268
    %v272 = vld [vmem:[%s271] sm:$0x1]
    %v273 = vadd.f32 %v270, %v272
    %274 = vst [vmem:[#allocation10 + $0x18] sm:$0x1] %v273
    %s275 = sadd.s32 %s50, 25
    %s276 = sld [smem:[#allocation3 + %s275]]
    %s277 = sld [smem:[#allocation4 + %s275]]
    %s278 = scalar_lea.vmem [#allocation5], %s276
    %v279 = vld [vmem:[%s278] sm:$0x1]
    %s280 = scalar_lea.vmem [#allocation8], %s277
    %v281 = vld [vmem:[%s280] sm:$0x1]
    %v282 = vadd.f32 %v279, %v281
    %283 = vst [vmem:[#allocation10 + $0x19] sm:$0x1] %v282
    %s284 = sadd.s32 %s50, 26
    %s285 = sld [smem:[#allocation3 + %s284]]
    %s286 = sld [smem:[#allocation4 + %s284]]
    %s287 = scalar_lea.vmem [#allocation5], %s285
    %v288 = vld [vmem:[%s287] sm:$0x1]
    %s289 = scalar_lea.vmem [#allocation8], %s286
    %v290 = vld [vmem:[%s289] sm:$0x1]
    %v291 = vadd.f32 %v288, %v290
    %292 = vst [vmem:[#allocation10 + $0x1a] sm:$0x1] %v291
    %s293 = sadd.s32 %s50, 27
    %s294 = sld [smem:[#allocation3 + %s293]]
    %s295 = sld [smem:[#allocation4 + %s293]]
    %s296 = scalar_lea.vmem [#allocation5], %s294
    %v297 = vld [vmem:[%s296] sm:$0x1]
    %s298 = scalar_lea.vmem [#allocation8], %s295
    %v299 = vld [vmem:[%s298] sm:$0x1]
    %v300 = vadd.f32 %v297, %v299
    %301 = vst [vmem:[#allocation10 + $0x1b] sm:$0x1] %v300
    %s302 = sadd.s32 %s50, 28
    %s303 = sld [smem:[#allocation3 + %s302]]
    %s304 = sld [smem:[#allocation4 + %s302]]
    %s305 = scalar_lea.vmem [#allocation5], %s303
    %v306 = vld [vmem:[%s305] sm:$0x1]
    %s307 = scalar_lea.vmem [#allocation8], %s304
    %v308 = vld [vmem:[%s307] sm:$0x1]
    %v309 = vadd.f32 %v306, %v308
    %310 = vst [vmem:[#allocation10 + $0x1c] sm:$0x1] %v309
    %s311 = sadd.s32 %s50, 29
    %s312 = sld [smem:[#allocation3 + %s311]]
    %s313 = sld [smem:[#allocation4 + %s311]]
    %s314 = scalar_lea.vmem [#allocation5], %s312
    %v315 = vld [vmem:[%s314] sm:$0x1]
    %s316 = scalar_lea.vmem [#allocation8], %s313
    %v317 = vld [vmem:[%s316] sm:$0x1]
    %v318 = vadd.f32 %v315, %v317
    %319 = vst [vmem:[#allocation10 + $0x1d] sm:$0x1] %v318
    %s320 = sadd.s32 %s50, 30
    %s321 = sld [smem:[#allocation3 + %s320]]
    %s322 = sld [smem:[#allocation4 + %s320]]
    %s323 = scalar_lea.vmem [#allocation5], %s321
    %v324 = vld [vmem:[%s323] sm:$0x1]
    %s325 = scalar_lea.vmem [#allocation8], %s322
    %v326 = vld [vmem:[%s325] sm:$0x1]
    %v327 = vadd.f32 %v324, %v326
    %328 = vst [vmem:[#allocation10 + $0x1e] sm:$0x1] %v327
    %s329 = sadd.s32 %s50, 31
    %s330 = sld [smem:[#allocation3 + %s329]]
    %s331 = sld [smem:[#allocation4 + %s329]]
    %s332 = scalar_lea.vmem [#allocation5], %s330
    %v333 = vld [vmem:[%s332] sm:$0x1]
    %s334 = scalar_lea.vmem [#allocation8], %s331
    %v335 = vld [vmem:[%s334] sm:$0x1]
    %v336 = vadd.f32 %v333, %v335
    %337 = vst [vmem:[#allocation10 + $0x1f] sm:$0x1] %v336
    %s338 = sadd.s32 %s50, 32
    %s339 = sld [smem:[#allocation3 + %s338]]
    %s340 = sld [smem:[#allocation4 + %s338]]
    %s341 = scalar_lea.vmem [#allocation5], %s339
    %v342 = vld [vmem:[%s341] sm:$0x1]
    %s343 = scalar_lea.vmem [#allocation8], %s340
    %v344 = vld [vmem:[%s343] sm:$0x1]
    %v345 = vadd.f32 %v342, %v344
    %346 = vst [vmem:[#allocation10 + $0x20] sm:$0x1] %v345
    %s347 = sadd.s32 %s50, 33
    %s348 = sld [smem:[#allocation3 + %s347]]
    %s349 = sld [smem:[#allocation4 + %s347]]
    %s350 = scalar_lea.vmem [#allocation5], %s348
    %v351 = vld [vmem:[%s350] sm:$0x1]
    %s352 = scalar_lea.vmem [#allocation8], %s349
    %v353 = vld [vmem:[%s352] sm:$0x1]
    %v354 = vadd.f32 %v351, %v353
    %355 = vst [vmem:[#allocation10 + $0x21] sm:$0x1] %v354
    %s356 = sadd.s32 %s50, 34
    %s357 = sld [smem:[#allocation3 + %s356]]
    %s358 = sld [smem:[#allocation4 + %s356]]
    %s359 = scalar_lea.vmem [#allocation5], %s357
    %v360 = vld [vmem:[%s359] sm:$0x1]
    %s361 = scalar_lea.vmem [#allocation8], %s358
    %v362 = vld [vmem:[%s361] sm:$0x1]
    %v363 = vadd.f32 %v360, %v362
    %364 = vst [vmem:[#allocation10 + $0x22] sm:$0x1] %v363
    %s365 = sadd.s32 %s50, 35
    %s366 = sld [smem:[#allocation3 + %s365]]
    %s367 = sld [smem:[#allocation4 + %s365]]
    %s368 = scalar_lea.vmem [#allocation5], %s366
    %v369 = vld [vmem:[%s368] sm:$0x1]
    %s370 = scalar_lea.vmem [#allocation8], %s367
    %v371 = vld [vmem:[%s370] sm:$0x1]
    %v372 = vadd.f32 %v369, %v371
    %373 = vst [vmem:[#allocation10 + $0x23] sm:$0x1] %v372
    %s374 = sadd.s32 %s50, 36
    %s375 = sld [smem:[#allocation3 + %s374]]
    %s376 = sld [smem:[#allocation4 + %s374]]
    %s377 = scalar_lea.vmem [#allocation5], %s375
    %v378 = vld [vmem:[%s377] sm:$0x1]
    %s379 = scalar_lea.vmem [#allocation8], %s376
    %v380 = vld [vmem:[%s379] sm:$0x1]
    %v381 = vadd.f32 %v378, %v380
    %382 = vst [vmem:[#allocation10 + $0x24] sm:$0x1] %v381
    %s383 = sadd.s32 %s50, 37
    %s384 = sld [smem:[#allocation3 + %s383]]
    %s385 = sld [smem:[#allocation4 + %s383]]
    %s386 = scalar_lea.vmem [#allocation5], %s384
    %v387 = vld [vmem:[%s386] sm:$0x1]
    %s388 = scalar_lea.vmem [#allocation8], %s385
    %v389 = vld [vmem:[%s388] sm:$0x1]
    %v390 = vadd.f32 %v387, %v389
    %391 = vst [vmem:[#allocation10 + $0x25] sm:$0x1] %v390
    %s392 = sadd.s32 %s50, 38
    %s393 = sld [smem:[#allocation3 + %s392]]
    %s394 = sld [smem:[#allocation4 + %s392]]
    %s395 = scalar_lea.vmem [#allocation5], %s393
    %v396 = vld [vmem:[%s395] sm:$0x1]
    %s397 = scalar_lea.vmem [#allocation8], %s394
    %v398 = vld [vmem:[%s397] sm:$0x1]
    %v399 = vadd.f32 %v396, %v398
    %400 = vst [vmem:[#allocation10 + $0x26] sm:$0x1] %v399
    %s401 = sadd.s32 %s50, 39
    %s402 = sld [smem:[#allocation3 + %s401]]
    %s403 = sld [smem:[#allocation4 + %s401]]
    %s404 = scalar_lea.vmem [#allocation5], %s402
    %v405 = vld [vmem:[%s404] sm:$0x1]
    %s406 = scalar_lea.vmem [#allocation8], %s403
    %v407 = vld [vmem:[%s406] sm:$0x1]
    %v408 = vadd.f32 %v405, %v407
    %409 = vst [vmem:[#allocation10 + $0x27] sm:$0x1] %v408
    %s410 = sadd.s32 %s50, 40
    %s411 = sld [smem:[#allocation3 + %s410]]
    %s412 = sld [smem:[#allocation4 + %s410]]
    %s413 = scalar_lea.vmem [#allocation5], %s411
    %v414 = vld [vmem:[%s413] sm:$0x1]
    %s415 = scalar_lea.vmem [#allocation8], %s412
    %v416 = vld [vmem:[%s415] sm:$0x1]
    %v417 = vadd.f32 %v414, %v416
    %418 = vst [vmem:[#allocation10 + $0x28] sm:$0x1] %v417
    %s419 = sadd.s32 %s50, 41
    %s420 = sld [smem:[#allocation3 + %s419]]
    %s421 = sld [smem:[#allocation4 + %s419]]
    %s422 = scalar_lea.vmem [#allocation5], %s420
    %v423 = vld [vmem:[%s422] sm:$0x1]
    %s424 = scalar_lea.vmem [#allocation8], %s421
    %v425 = vld [vmem:[%s424] sm:$0x1]
    %v426 = vadd.f32 %v423, %v425
    %427 = vst [vmem:[#allocation10 + $0x29] sm:$0x1] %v426
    %s428 = sadd.s32 %s50, 42
    %s429 = sld [smem:[#allocation3 + %s428]]
    %s430 = sld [smem:[#allocation4 + %s428]]
    %s431 = scalar_lea.vmem [#allocation5], %s429
    %v432 = vld [vmem:[%s431] sm:$0x1]
    %s433 = scalar_lea.vmem [#allocation8], %s430
    %v434 = vld [vmem:[%s433] sm:$0x1]
    %v435 = vadd.f32 %v432, %v434
    %436 = vst [vmem:[#allocation10 + $0x2a] sm:$0x1] %v435
    %s437 = sadd.s32 %s50, 43
    %s438 = sld [smem:[#allocation3 + %s437]]
    %s439 = sld [smem:[#allocation4 + %s437]]
    %s440 = scalar_lea.vmem [#allocation5], %s438
    %v441 = vld [vmem:[%s440] sm:$0x1]
    %s442 = scalar_lea.vmem [#allocation8], %s439
    %v443 = vld [vmem:[%s442] sm:$0x1]
    %v444 = vadd.f32 %v441, %v443
    %445 = vst [vmem:[#allocation10 + $0x2b] sm:$0x1] %v444
    %s446 = sadd.s32 %s50, 44
    %s447 = sld [smem:[#allocation3 + %s446]]
    %s448 = sld [smem:[#allocation4 + %s446]]
    %s449 = scalar_lea.vmem [#allocation5], %s447
    %v450 = vld [vmem:[%s449] sm:$0x1]
    %s451 = scalar_lea.vmem [#allocation8], %s448
    %v452 = vld [vmem:[%s451] sm:$0x1]
    %v453 = vadd.f32 %v450, %v452
    %454 = vst [vmem:[#allocation10 + $0x2c] sm:$0x1] %v453
    %s455 = sadd.s32 %s50, 45
    %s456 = sld [smem:[#allocation3 + %s455]]
    %s457 = sld [smem:[#allocation4 + %s455]]
    %s458 = scalar_lea.vmem [#allocation5], %s456
    %v459 = vld [vmem:[%s458] sm:$0x1]
    %s460 = scalar_lea.vmem [#allocation8], %s457
    %v461 = vld [vmem:[%s460] sm:$0x1]
    %v462 = vadd.f32 %v459, %v461
    %463 = vst [vmem:[#allocation10 + $0x2d] sm:$0x1] %v462
    %s464 = sadd.s32 %s50, 46
    %s465 = sld [smem:[#allocation3 + %s464]]
    %s466 = sld [smem:[#allocation4 + %s464]]
    %s467 = scalar_lea.vmem [#allocation5], %s465
    %v468 = vld [vmem:[%s467] sm:$0x1]
    %s469 = scalar_lea.vmem [#allocation8], %s466
    %v470 = vld [vmem:[%s469] sm:$0x1]
    %v471 = vadd.f32 %v468, %v470
    %472 = vst [vmem:[#allocation10 + $0x2e] sm:$0x1] %v471
    %s473 = sadd.s32 %s50, 47
    %s474 = sld [smem:[#allocation3 + %s473]]
    %s475 = sld [smem:[#allocation4 + %s473]]
    %s476 = scalar_lea.vmem [#allocation5], %s474
    %v477 = vld [vmem:[%s476] sm:$0x1]
    %s478 = scalar_lea.vmem [#allocation8], %s475
    %v479 = vld [vmem:[%s478] sm:$0x1]
    %v480 = vadd.f32 %v477, %v479
    %481 = vst [vmem:[#allocation10 + $0x2f] sm:$0x1] %v480
    %s482 = sadd.s32 %s50, 48
    %s483 = sld [smem:[#allocation3 + %s482]]
    %s484 = sld [smem:[#allocation4 + %s482]]
    %s485 = scalar_lea.vmem [#allocation5], %s483
    %v486 = vld [vmem:[%s485] sm:$0x1]
    %s487 = scalar_lea.vmem [#allocation8], %s484
    %v488 = vld [vmem:[%s487] sm:$0x1]
    %v489 = vadd.f32 %v486, %v488
    %490 = vst [vmem:[#allocation10 + $0x30] sm:$0x1] %v489
    %s491 = sadd.s32 %s50, 49
    %s492 = sld [smem:[#allocation3 + %s491]]
    %s493 = sld [smem:[#allocation4 + %s491]]
    %s494 = scalar_lea.vmem [#allocation5], %s492
    %v495 = vld [vmem:[%s494] sm:$0x1]
    %s496 = scalar_lea.vmem [#allocation8], %s493
    %v497 = vld [vmem:[%s496] sm:$0x1]
    %v498 = vadd.f32 %v495, %v497
    %499 = vst [vmem:[#allocation10 + $0x31] sm:$0x1] %v498
    %s500 = sadd.s32 %s50, 50
    %s501 = sld [smem:[#allocation3 + %s500]]
    %s502 = sld [smem:[#allocation4 + %s500]]
    %s503 = scalar_lea.vmem [#allocation5], %s501
    %v504 = vld [vmem:[%s503] sm:$0x1]
    %s505 = scalar_lea.vmem [#allocation8], %s502
    %v506 = vld [vmem:[%s505] sm:$0x1]
    %v507 = vadd.f32 %v504, %v506
    %508 = vst [vmem:[#allocation10 + $0x32] sm:$0x1] %v507
    %s509 = sadd.s32 %s50, 51
    %s510 = sld [smem:[#allocation3 + %s509]]
    %s511 = sld [smem:[#allocation4 + %s509]]
    %s512 = scalar_lea.vmem [#allocation5], %s510
    %v513 = vld [vmem:[%s512] sm:$0x1]
    %s514 = scalar_lea.vmem [#allocation8], %s511
    %v515 = vld [vmem:[%s514] sm:$0x1]
    %v516 = vadd.f32 %v513, %v515
    %517 = vst [vmem:[#allocation10 + $0x33] sm:$0x1] %v516
    %s518 = sadd.s32 %s50, 52
    %s519 = sld [smem:[#allocation3 + %s518]]
    %s520 = sld [smem:[#allocation4 + %s518]]
    %s521 = scalar_lea.vmem [#allocation5], %s519
    %v522 = vld [vmem:[%s521] sm:$0x1]
    %s523 = scalar_lea.vmem [#allocation8], %s520
    %v524 = vld [vmem:[%s523] sm:$0x1]
    %v525 = vadd.f32 %v522, %v524
    %526 = vst [vmem:[#allocation10 + $0x34] sm:$0x1] %v525
    %s527 = sadd.s32 %s50, 53
    %s528 = sld [smem:[#allocation3 + %s527]]
    %s529 = sld [smem:[#allocation4 + %s527]]
    %s530 = scalar_lea.vmem [#allocation5], %s528
    %v531 = vld [vmem:[%s530] sm:$0x1]
    %s532 = scalar_lea.vmem [#allocation8], %s529
    %v533 = vld [vmem:[%s532] sm:$0x1]
    %v534 = vadd.f32 %v531, %v533
    %535 = vst [vmem:[#allocation10 + $0x35] sm:$0x1] %v534
    %s536 = sadd.s32 %s50, 54
    %s537 = sld [smem:[#allocation3 + %s536]]
    %s538 = sld [smem:[#allocation4 + %s536]]
    %s539 = scalar_lea.vmem [#allocation5], %s537
    %v540 = vld [vmem:[%s539] sm:$0x1]
    %s541 = scalar_lea.vmem [#allocation8], %s538
    %v542 = vld [vmem:[%s541] sm:$0x1]
    %v543 = vadd.f32 %v540, %v542
    %544 = vst [vmem:[#allocation10 + $0x36] sm:$0x1] %v543
    %s545 = sadd.s32 %s50, 55
    %s546 = sld [smem:[#allocation3 + %s545]]
    %s547 = sld [smem:[#allocation4 + %s545]]
    %s548 = scalar_lea.vmem [#allocation5], %s546
    %v549 = vld [vmem:[%s548] sm:$0x1]
    %s550 = scalar_lea.vmem [#allocation8], %s547
    %v551 = vld [vmem:[%s550] sm:$0x1]
    %v552 = vadd.f32 %v549, %v551
    %553 = vst [vmem:[#allocation10 + $0x37] sm:$0x1] %v552
    %s554 = sadd.s32 %s50, 56
    %s555 = sld [smem:[#allocation3 + %s554]]
    %s556 = sld [smem:[#allocation4 + %s554]]
    %s557 = scalar_lea.vmem [#allocation5], %s555
    %v558 = vld [vmem:[%s557] sm:$0x1]
    %s559 = scalar_lea.vmem [#allocation8], %s556
    %v560 = vld [vmem:[%s559] sm:$0x1]
    %v561 = vadd.f32 %v558, %v560
    %562 = vst [vmem:[#allocation10 + $0x38] sm:$0x1] %v561
    %s563 = sadd.s32 %s50, 57
    %s564 = sld [smem:[#allocation3 + %s563]]
    %s565 = sld [smem:[#allocation4 + %s563]]
    %s566 = scalar_lea.vmem [#allocation5], %s564
    %v567 = vld [vmem:[%s566] sm:$0x1]
    %s568 = scalar_lea.vmem [#allocation8], %s565
    %v569 = vld [vmem:[%s568] sm:$0x1]
    %v570 = vadd.f32 %v567, %v569
    %571 = vst [vmem:[#allocation10 + $0x39] sm:$0x1] %v570
    %s572 = sadd.s32 %s50, 58
    %s573 = sld [smem:[#allocation3 + %s572]]
    %s574 = sld [smem:[#allocation4 + %s572]]
    %s575 = scalar_lea.vmem [#allocation5], %s573
    %v576 = vld [vmem:[%s575] sm:$0x1]
    %s577 = scalar_lea.vmem [#allocation8], %s574
    %v578 = vld [vmem:[%s577] sm:$0x1]
    %v579 = vadd.f32 %v576, %v578
    %580 = vst [vmem:[#allocation10 + $0x3a] sm:$0x1] %v579
    %s581 = sadd.s32 %s50, 59
    %s582 = sld [smem:[#allocation3 + %s581]]
    %s583 = sld [smem:[#allocation4 + %s581]]
    %s584 = scalar_lea.vmem [#allocation5], %s582
    %v585 = vld [vmem:[%s584] sm:$0x1]
    %s586 = scalar_lea.vmem [#allocation8], %s583
    %v587 = vld [vmem:[%s586] sm:$0x1]
    %v588 = vadd.f32 %v585, %v587
    %589 = vst [vmem:[#allocation10 + $0x3b] sm:$0x1] %v588
    %s590 = sadd.s32 %s50, 60
    %s591 = sld [smem:[#allocation3 + %s590]]
    %s592 = sld [smem:[#allocation4 + %s590]]
    %s593 = scalar_lea.vmem [#allocation5], %s591
    %v594 = vld [vmem:[%s593] sm:$0x1]
    %s595 = scalar_lea.vmem [#allocation8], %s592
    %v596 = vld [vmem:[%s595] sm:$0x1]
    %v597 = vadd.f32 %v594, %v596
    %598 = vst [vmem:[#allocation10 + $0x3c] sm:$0x1] %v597
    %s599 = sadd.s32 %s50, 61
    %s600 = sld [smem:[#allocation3 + %s599]]
    %s601 = sld [smem:[#allocation4 + %s599]]
    %s602 = scalar_lea.vmem [#allocation5], %s600
    %v603 = vld [vmem:[%s602] sm:$0x1]
    %s604 = scalar_lea.vmem [#allocation8], %s601
    %v605 = vld [vmem:[%s604] sm:$0x1]
    %v606 = vadd.f32 %v603, %v605
    %607 = vst [vmem:[#allocation10 + $0x3d] sm:$0x1] %v606
    %s608 = sadd.s32 %s50, 62
    %s609 = sld [smem:[#allocation3 + %s608]]
    %s610 = sld [smem:[#allocation4 + %s608]]
    %s611 = scalar_lea.vmem [#allocation5], %s609
    %v612 = vld [vmem:[%s611] sm:$0x1]
    %s613 = scalar_lea.vmem [#allocation8], %s610
    %v614 = vld [vmem:[%s613] sm:$0x1]
    %v615 = vadd.f32 %v612, %v614
    %616 = vst [vmem:[#allocation10 + $0x3e] sm:$0x1] %v615
    %s617 = sadd.s32 %s50, 63
    %s618 = sld [smem:[#allocation3 + %s617]]
    %s619 = sld [smem:[#allocation4 + %s617]]
    %s620 = scalar_lea.vmem [#allocation5], %s618
    %v621 = vld [vmem:[%s620] sm:$0x1]
    %s622 = scalar_lea.vmem [#allocation8], %s619
    %v623 = vld [vmem:[%s622] sm:$0x1]
    %v624 = vadd.f32 %v621, %v623
    %625 = vst [vmem:[#allocation10 + $0x3f] sm:$0x1] %v624
    %s626 = sadd.s32 %s50, 64
    %s627 = sld [smem:[#allocation3 + %s626]]
    %s628 = sld [smem:[#allocation4 + %s626]]
    %s629 = scalar_lea.vmem [#allocation5], %s627
    %v630 = vld [vmem:[%s629] sm:$0x1]
    %s631 = scalar_lea.vmem [#allocation8], %s628
    %v632 = vld [vmem:[%s631] sm:$0x1]
    %v633 = vadd.f32 %v630, %v632
    %634 = vst [vmem:[#allocation10 + $0x40] sm:$0x1] %v633
    %s635 = sadd.s32 %s50, 65
    %s636 = sld [smem:[#allocation3 + %s635]]
    %s637 = sld [smem:[#allocation4 + %s635]]
    %s638 = scalar_lea.vmem [#allocation5], %s636
    %v639 = vld [vmem:[%s638] sm:$0x1]
    %s640 = scalar_lea.vmem [#allocation8], %s637
    %v641 = vld [vmem:[%s640] sm:$0x1]
    %v642 = vadd.f32 %v639, %v641
    %643 = vst [vmem:[#allocation10 + $0x41] sm:$0x1] %v642
    %s644 = sadd.s32 %s50, 66
    %s645 = sld [smem:[#allocation3 + %s644]]
    %s646 = sld [smem:[#allocation4 + %s644]]
    %s647 = scalar_lea.vmem [#allocation5], %s645
    %v648 = vld [vmem:[%s647] sm:$0x1]
    %s649 = scalar_lea.vmem [#allocation8], %s646
    %v650 = vld [vmem:[%s649] sm:$0x1]
    %v651 = vadd.f32 %v648, %v650
    %652 = vst [vmem:[#allocation10 + $0x42] sm:$0x1] %v651
    %s653 = sadd.s32 %s50, 67
    %s654 = sld [smem:[#allocation3 + %s653]]
    %s655 = sld [smem:[#allocation4 + %s653]]
    %s656 = scalar_lea.vmem [#allocation5], %s654
    %v657 = vld [vmem:[%s656] sm:$0x1]
    %s658 = scalar_lea.vmem [#allocation8], %s655
    %v659 = vld [vmem:[%s658] sm:$0x1]
    %v660 = vadd.f32 %v657, %v659
    %661 = vst [vmem:[#allocation10 + $0x43] sm:$0x1] %v660
    %s662 = sadd.s32 %s50, 68
    %s663 = sld [smem:[#allocation3 + %s662]]
    %s664 = sld [smem:[#allocation4 + %s662]]
    %s665 = scalar_lea.vmem [#allocation5], %s663
    %v666 = vld [vmem:[%s665] sm:$0x1]
    %s667 = scalar_lea.vmem [#allocation8], %s664
    %v668 = vld [vmem:[%s667] sm:$0x1]
    %v669 = vadd.f32 %v666, %v668
    %670 = vst [vmem:[#allocation10 + $0x44] sm:$0x1] %v669
    %s671 = sadd.s32 %s50, 69
    %s672 = sld [smem:[#allocation3 + %s671]]
    %s673 = sld [smem:[#allocation4 + %s671]]
    %s674 = scalar_lea.vmem [#allocation5], %s672
    %v675 = vld [vmem:[%s674] sm:$0x1]
    %s676 = scalar_lea.vmem [#allocation8], %s673
    %v677 = vld [vmem:[%s676] sm:$0x1]
    %v678 = vadd.f32 %v675, %v677
    %679 = vst [vmem:[#allocation10 + $0x45] sm:$0x1] %v678
    %s680 = sadd.s32 %s50, 70
    %s681 = sld [smem:[#allocation3 + %s680]]
    %s682 = sld [smem:[#allocation4 + %s680]]
    %s683 = scalar_lea.vmem [#allocation5], %s681
    %v684 = vld [vmem:[%s683] sm:$0x1]
    %s685 = scalar_lea.vmem [#allocation8], %s682
    %v686 = vld [vmem:[%s685] sm:$0x1]
    %v687 = vadd.f32 %v684, %v686
    %688 = vst [vmem:[#allocation10 + $0x46] sm:$0x1] %v687
    %s689 = sadd.s32 %s50, 71
    %s690 = sld [smem:[#allocation3 + %s689]]
    %s691 = sld [smem:[#allocation4 + %s689]]
    %s692 = scalar_lea.vmem [#allocation5], %s690
    %v693 = vld [vmem:[%s692] sm:$0x1]
    %s694 = scalar_lea.vmem [#allocation8], %s691
    %v695 = vld [vmem:[%s694] sm:$0x1]
    %v696 = vadd.f32 %v693, %v695
    %697 = vst [vmem:[#allocation10 + $0x47] sm:$0x1] %v696
    %s698 = sadd.s32 %s50, 72
    %s699 = sld [smem:[#allocation3 + %s698]]
    %s700 = sld [smem:[#allocation4 + %s698]]
    %s701 = scalar_lea.vmem [#allocation5], %s699
    %v702 = vld [vmem:[%s701] sm:$0x1]
    %s703 = scalar_lea.vmem [#allocation8], %s700
    %v704 = vld [vmem:[%s703] sm:$0x1]
    %v705 = vadd.f32 %v702, %v704
    %706 = vst [vmem:[#allocation10 + $0x48] sm:$0x1] %v705
    %s707 = sadd.s32 %s50, 73
    %s708 = sld [smem:[#allocation3 + %s707]]
    %s709 = sld [smem:[#allocation4 + %s707]]
    %s710 = scalar_lea.vmem [#allocation5], %s708
    %v711 = vld [vmem:[%s710] sm:$0x1]
    %s712 = scalar_lea.vmem [#allocation8], %s709
    %v713 = vld [vmem:[%s712] sm:$0x1]
    %v714 = vadd.f32 %v711, %v713
    %715 = vst [vmem:[#allocation10 + $0x49] sm:$0x1] %v714
    %s716 = sadd.s32 %s50, 74
    %s717 = sld [smem:[#allocation3 + %s716]]
    %s718 = sld [smem:[#allocation4 + %s716]]
    %s719 = scalar_lea.vmem [#allocation5], %s717
    %v720 = vld [vmem:[%s719] sm:$0x1]
    %s721 = scalar_lea.vmem [#allocation8], %s718
    %v722 = vld [vmem:[%s721] sm:$0x1]
    %v723 = vadd.f32 %v720, %v722
    %724 = vst [vmem:[#allocation10 + $0x4a] sm:$0x1] %v723
    %s725 = sadd.s32 %s50, 75
    %s726 = sld [smem:[#allocation3 + %s725]]
    %s727 = sld [smem:[#allocation4 + %s725]]
    %s728 = scalar_lea.vmem [#allocation5], %s726
    %v729 = vld [vmem:[%s728] sm:$0x1]
    %s730 = scalar_lea.vmem [#allocation8], %s727
    %v731 = vld [vmem:[%s730] sm:$0x1]
    %v732 = vadd.f32 %v729, %v731
    %733 = vst [vmem:[#allocation10 + $0x4b] sm:$0x1] %v732
    %s734 = sadd.s32 %s50, 76
    %s735 = sld [smem:[#allocation3 + %s734]]
    %s736 = sld [smem:[#allocation4 + %s734]]
    %s737 = scalar_lea.vmem [#allocation5], %s735
    %v738 = vld [vmem:[%s737] sm:$0x1]
    %s739 = scalar_lea.vmem [#allocation8], %s736
    %v740 = vld [vmem:[%s739] sm:$0x1]
    %v741 = vadd.f32 %v738, %v740
    %742 = vst [vmem:[#allocation10 + $0x4c] sm:$0x1] %v741
    %s743 = sadd.s32 %s50, 77
    %s744 = sld [smem:[#allocation3 + %s743]]
    %s745 = sld [smem:[#allocation4 + %s743]]
    %s746 = scalar_lea.vmem [#allocation5], %s744
    %v747 = vld [vmem:[%s746] sm:$0x1]
    %s748 = scalar_lea.vmem [#allocation8], %s745
    %v749 = vld [vmem:[%s748] sm:$0x1]
    %v750 = vadd.f32 %v747, %v749
    %751 = vst [vmem:[#allocation10 + $0x4d] sm:$0x1] %v750
    %s752 = sadd.s32 %s50, 78
    %s753 = sld [smem:[#allocation3 + %s752]]
    %s754 = sld [smem:[#allocation4 + %s752]]
    %s755 = scalar_lea.vmem [#allocation5], %s753
    %v756 = vld [vmem:[%s755] sm:$0x1]
    %s757 = scalar_lea.vmem [#allocation8], %s754
    %v758 = vld [vmem:[%s757] sm:$0x1]
    %v759 = vadd.f32 %v756, %v758
    %760 = vst [vmem:[#allocation10 + $0x4e] sm:$0x1] %v759
    %s761 = sadd.s32 %s50, 79
    %s762 = sld [smem:[#allocation3 + %s761]]
    %s763 = sld [smem:[#allocation4 + %s761]]
    %s764 = scalar_lea.vmem [#allocation5], %s762
    %v765 = vld [vmem:[%s764] sm:$0x1]
    %s766 = scalar_lea.vmem [#allocation8], %s763
    %v767 = vld [vmem:[%s766] sm:$0x1]
    %v768 = vadd.f32 %v765, %v767
    %769 = vst [vmem:[#allocation10 + $0x4f] sm:$0x1] %v768
    %s770 = sadd.s32 %s50, 80
    %s771 = sld [smem:[#allocation3 + %s770]]
    %s772 = sld [smem:[#allocation4 + %s770]]
    %s773 = scalar_lea.vmem [#allocation5], %s771
    %v774 = vld [vmem:[%s773] sm:$0x1]
    %s775 = scalar_lea.vmem [#allocation8], %s772
    %v776 = vld [vmem:[%s775] sm:$0x1]
    %v777 = vadd.f32 %v774, %v776
    %778 = vst [vmem:[#allocation10 + $0x50] sm:$0x1] %v777
    %s779 = sadd.s32 %s50, 81
    %s780 = sld [smem:[#allocation3 + %s779]]
    %s781 = sld [smem:[#allocation4 + %s779]]
    %s782 = scalar_lea.vmem [#allocation5], %s780
    %v783 = vld [vmem:[%s782] sm:$0x1]
    %s784 = scalar_lea.vmem [#allocation8], %s781
    %v785 = vld [vmem:[%s784] sm:$0x1]
    %v786 = vadd.f32 %v783, %v785
    %787 = vst [vmem:[#allocation10 + $0x51] sm:$0x1] %v786
    %s788 = sadd.s32 %s50, 82
    %s789 = sld [smem:[#allocation3 + %s788]]
    %s790 = sld [smem:[#allocation4 + %s788]]
    %s791 = scalar_lea.vmem [#allocation5], %s789
    %v792 = vld [vmem:[%s791] sm:$0x1]
    %s793 = scalar_lea.vmem [#allocation8], %s790
    %v794 = vld [vmem:[%s793] sm:$0x1]
    %v795 = vadd.f32 %v792, %v794
    %796 = vst [vmem:[#allocation10 + $0x52] sm:$0x1] %v795
    %s797 = sadd.s32 %s50, 83
    %s798 = sld [smem:[#allocation3 + %s797]]
    %s799 = sld [smem:[#allocation4 + %s797]]
    %s800 = scalar_lea.vmem [#allocation5], %s798
    %v801 = vld [vmem:[%s800] sm:$0x1]
    %s802 = scalar_lea.vmem [#allocation8], %s799
    %v803 = vld [vmem:[%s802] sm:$0x1]
    %v804 = vadd.f32 %v801, %v803
    %805 = vst [vmem:[#allocation10 + $0x53] sm:$0x1] %v804
    %s806 = sadd.s32 %s50, 84
    %s807 = sld [smem:[#allocation3 + %s806]]
    %s808 = sld [smem:[#allocation4 + %s806]]
    %s809 = scalar_lea.vmem [#allocation5], %s807
    %v810 = vld [vmem:[%s809] sm:$0x1]
    %s811 = scalar_lea.vmem [#allocation8], %s808
    %v812 = vld [vmem:[%s811] sm:$0x1]
    %v813 = vadd.f32 %v810, %v812
    %814 = vst [vmem:[#allocation10 + $0x54] sm:$0x1] %v813
    %s815 = sadd.s32 %s50, 85
    %s816 = sld [smem:[#allocation3 + %s815]]
    %s817 = sld [smem:[#allocation4 + %s815]]
    %s818 = scalar_lea.vmem [#allocation5], %s816
    %v819 = vld [vmem:[%s818] sm:$0x1]
    %s820 = scalar_lea.vmem [#allocation8], %s817
    %v821 = vld [vmem:[%s820] sm:$0x1]
    %v822 = vadd.f32 %v819, %v821
    %823 = vst [vmem:[#allocation10 + $0x55] sm:$0x1] %v822
    %s824 = sadd.s32 %s50, 86
    %s825 = sld [smem:[#allocation3 + %s824]]
    %s826 = sld [smem:[#allocation4 + %s824]]
    %s827 = scalar_lea.vmem [#allocation5], %s825
    %v828 = vld [vmem:[%s827] sm:$0x1]
    %s829 = scalar_lea.vmem [#allocation8], %s826
    %v830 = vld [vmem:[%s829] sm:$0x1]
    %v831 = vadd.f32 %v828, %v830
    %832 = vst [vmem:[#allocation10 + $0x56] sm:$0x1] %v831
    %s833 = sadd.s32 %s50, 87
    %s834 = sld [smem:[#allocation3 + %s833]]
    %s835 = sld [smem:[#allocation4 + %s833]]
    %s836 = scalar_lea.vmem [#allocation5], %s834
    %v837 = vld [vmem:[%s836] sm:$0x1]
    %s838 = scalar_lea.vmem [#allocation8], %s835
    %v839 = vld [vmem:[%s838] sm:$0x1]
    %v840 = vadd.f32 %v837, %v839
    %841 = vst [vmem:[#allocation10 + $0x57] sm:$0x1] %v840
    %s842 = sadd.s32 %s50, 88
    %s843 = sld [smem:[#allocation3 + %s842]]
    %s844 = sld [smem:[#allocation4 + %s842]]
    %s845 = scalar_lea.vmem [#allocation5], %s843
    %v846 = vld [vmem:[%s845] sm:$0x1]
    %s847 = scalar_lea.vmem [#allocation8], %s844
    %v848 = vld [vmem:[%s847] sm:$0x1]
    %v849 = vadd.f32 %v846, %v848
    %850 = vst [vmem:[#allocation10 + $0x58] sm:$0x1] %v849
    %s851 = sadd.s32 %s50, 89
    %s852 = sld [smem:[#allocation3 + %s851]]
    %s853 = sld [smem:[#allocation4 + %s851]]
    %s854 = scalar_lea.vmem [#allocation5], %s852
    %v855 = vld [vmem:[%s854] sm:$0x1]
    %s856 = scalar_lea.vmem [#allocation8], %s853
    %v857 = vld [vmem:[%s856] sm:$0x1]
    %v858 = vadd.f32 %v855, %v857
    %859 = vst [vmem:[#allocation10 + $0x59] sm:$0x1] %v858
    %s860 = sadd.s32 %s50, 90
    %s861 = sld [smem:[#allocation3 + %s860]]
    %s862 = sld [smem:[#allocation4 + %s860]]
    %s863 = scalar_lea.vmem [#allocation5], %s861
    %v864 = vld [vmem:[%s863] sm:$0x1]
    %s865 = scalar_lea.vmem [#allocation8], %s862
    %v866 = vld [vmem:[%s865] sm:$0x1]
    %v867 = vadd.f32 %v864, %v866
    %868 = vst [vmem:[#allocation10 + $0x5a] sm:$0x1] %v867
    %s869 = sadd.s32 %s50, 91
    %s870 = sld [smem:[#allocation3 + %s869]]
    %s871 = sld [smem:[#allocation4 + %s869]]
    %s872 = scalar_lea.vmem [#allocation5], %s870
    %v873 = vld [vmem:[%s872] sm:$0x1]
    %s874 = scalar_lea.vmem [#allocation8], %s871
    %v875 = vld [vmem:[%s874] sm:$0x1]
    %v876 = vadd.f32 %v873, %v875
    %877 = vst [vmem:[#allocation10 + $0x5b] sm:$0x1] %v876
    %s878 = sadd.s32 %s50, 92
    %s879 = sld [smem:[#allocation3 + %s878]]
    %s880 = sld [smem:[#allocation4 + %s878]]
    %s881 = scalar_lea.vmem [#allocation5], %s879
    %v882 = vld [vmem:[%s881] sm:$0x1]
    %s883 = scalar_lea.vmem [#allocation8], %s880
    %v884 = vld [vmem:[%s883] sm:$0x1]
    %v885 = vadd.f32 %v882, %v884
    %886 = vst [vmem:[#allocation10 + $0x5c] sm:$0x1] %v885
    %s887 = sadd.s32 %s50, 93
    %s888 = sld [smem:[#allocation3 + %s887]]
    %s889 = sld [smem:[#allocation4 + %s887]]
    %s890 = scalar_lea.vmem [#allocation5], %s888
    %v891 = vld [vmem:[%s890] sm:$0x1]
    %s892 = scalar_lea.vmem [#allocation8], %s889
    %v893 = vld [vmem:[%s892] sm:$0x1]
    %v894 = vadd.f32 %v891, %v893
    %895 = vst [vmem:[#allocation10 + $0x5d] sm:$0x1] %v894
    %s896 = sadd.s32 %s50, 94
    %s897 = sld [smem:[#allocation3 + %s896]]
    %s898 = sld [smem:[#allocation4 + %s896]]
    %s899 = scalar_lea.vmem [#allocation5], %s897
    %v900 = vld [vmem:[%s899] sm:$0x1]
    %s901 = scalar_lea.vmem [#allocation8], %s898
    %v902 = vld [vmem:[%s901] sm:$0x1]
    %v903 = vadd.f32 %v900, %v902
    %904 = vst [vmem:[#allocation10 + $0x5e] sm:$0x1] %v903
    %s905 = sadd.s32 %s50, 95
    %s906 = sld [smem:[#allocation3 + %s905]]
    %s907 = sld [smem:[#allocation4 + %s905]]
    %s908 = scalar_lea.vmem [#allocation5], %s906
    %v909 = vld [vmem:[%s908] sm:$0x1]
    %s910 = scalar_lea.vmem [#allocation8], %s907
    %v911 = vld [vmem:[%s910] sm:$0x1]
    %v912 = vadd.f32 %v909, %v911
    %913 = vst [vmem:[#allocation10 + $0x5f] sm:$0x1] %v912
    %s914 = sadd.s32 %s50, 96
    %s915 = sld [smem:[#allocation3 + %s914]]
    %s916 = sld [smem:[#allocation4 + %s914]]
    %s917 = scalar_lea.vmem [#allocation5], %s915
    %v918 = vld [vmem:[%s917] sm:$0x1]
    %s919 = scalar_lea.vmem [#allocation8], %s916
    %v920 = vld [vmem:[%s919] sm:$0x1]
    %v921 = vadd.f32 %v918, %v920
    %922 = vst [vmem:[#allocation10 + $0x60] sm:$0x1] %v921
    %s923 = sadd.s32 %s50, 97
    %s924 = sld [smem:[#allocation3 + %s923]]
    %s925 = sld [smem:[#allocation4 + %s923]]
    %s926 = scalar_lea.vmem [#allocation5], %s924
    %v927 = vld [vmem:[%s926] sm:$0x1]
    %s928 = scalar_lea.vmem [#allocation8], %s925
    %v929 = vld [vmem:[%s928] sm:$0x1]
    %v930 = vadd.f32 %v927, %v929
    %931 = vst [vmem:[#allocation10 + $0x61] sm:$0x1] %v930
    %s932 = sadd.s32 %s50, 98
    %s933 = sld [smem:[#allocation3 + %s932]]
    %s934 = sld [smem:[#allocation4 + %s932]]
    %s935 = scalar_lea.vmem [#allocation5], %s933
    %v936 = vld [vmem:[%s935] sm:$0x1]
    %s937 = scalar_lea.vmem [#allocation8], %s934
    %v938 = vld [vmem:[%s937] sm:$0x1]
    %v939 = vadd.f32 %v936, %v938
    %940 = vst [vmem:[#allocation10 + $0x62] sm:$0x1] %v939
    %s941 = sadd.s32 %s50, 99
    %s942 = sld [smem:[#allocation3 + %s941]]
    %s943 = sld [smem:[#allocation4 + %s941]]
    %s944 = scalar_lea.vmem [#allocation5], %s942
    %v945 = vld [vmem:[%s944] sm:$0x1]
    %s946 = scalar_lea.vmem [#allocation8], %s943
    %v947 = vld [vmem:[%s946] sm:$0x1]
    %v948 = vadd.f32 %v945, %v947
    %949 = vst [vmem:[#allocation10 + $0x63] sm:$0x1] %v948
    %s950 = sadd.s32 %s50, 100
    %s951 = sld [smem:[#allocation3 + %s950]]
    %s952 = sld [smem:[#allocation4 + %s950]]
    %s953 = scalar_lea.vmem [#allocation5], %s951
    %v954 = vld [vmem:[%s953] sm:$0x1]
    %s955 = scalar_lea.vmem [#allocation8], %s952
    %v956 = vld [vmem:[%s955] sm:$0x1]
    %v957 = vadd.f32 %v954, %v956
    %958 = vst [vmem:[#allocation10 + $0x64] sm:$0x1] %v957
    %s959 = sadd.s32 %s50, 101
    %s960 = sld [smem:[#allocation3 + %s959]]
    %s961 = sld [smem:[#allocation4 + %s959]]
    %s962 = scalar_lea.vmem [#allocation5], %s960
    %v963 = vld [vmem:[%s962] sm:$0x1]
    %s964 = scalar_lea.vmem [#allocation8], %s961
    %v965 = vld [vmem:[%s964] sm:$0x1]
    %v966 = vadd.f32 %v963, %v965
    %967 = vst [vmem:[#allocation10 + $0x65] sm:$0x1] %v966
    %s968 = sadd.s32 %s50, 102
    %s969 = sld [smem:[#allocation3 + %s968]]
    %s970 = sld [smem:[#allocation4 + %s968]]
    %s971 = scalar_lea.vmem [#allocation5], %s969
    %v972 = vld [vmem:[%s971] sm:$0x1]
    %s973 = scalar_lea.vmem [#allocation8], %s970
    %v974 = vld [vmem:[%s973] sm:$0x1]
    %v975 = vadd.f32 %v972, %v974
    %976 = vst [vmem:[#allocation10 + $0x66] sm:$0x1] %v975
    %s977 = sadd.s32 %s50, 103
    %s978 = sld [smem:[#allocation3 + %s977]]
    %s979 = sld [smem:[#allocation4 + %s977]]
    %s980 = scalar_lea.vmem [#allocation5], %s978
    %v981 = vld [vmem:[%s980] sm:$0x1]
    %s982 = scalar_lea.vmem [#allocation8], %s979
    %v983 = vld [vmem:[%s982] sm:$0x1]
    %v984 = vadd.f32 %v981, %v983
    %985 = vst [vmem:[#allocation10 + $0x67] sm:$0x1] %v984
    %s986 = sadd.s32 %s50, 104
    %s987 = sld [smem:[#allocation3 + %s986]]
    %s988 = sld [smem:[#allocation4 + %s986]]
    %s989 = scalar_lea.vmem [#allocation5], %s987
    %v990 = vld [vmem:[%s989] sm:$0x1]
    %s991 = scalar_lea.vmem [#allocation8], %s988
    %v992 = vld [vmem:[%s991] sm:$0x1]
    %v993 = vadd.f32 %v990, %v992
    %994 = vst [vmem:[#allocation10 + $0x68] sm:$0x1] %v993
    %s995 = sadd.s32 %s50, 105
    %s996 = sld [smem:[#allocation3 + %s995]]
    %s997 = sld [smem:[#allocation4 + %s995]]
    %s998 = scalar_lea.vmem [#allocation5], %s996
    %v999 = vld [vmem:[%s998] sm:$0x1]
    %s1000 = scalar_lea.vmem [#allocation8], %s997
    %v1001 = vld [vmem:[%s1000] sm:$0x1]
    %v1002 = vadd.f32 %v999, %v1001
    %1003 = vst [vmem:[#allocation10 + $0x69] sm:$0x1] %v1002
    %s1004 = sadd.s32 %s50, 106
    %s1005 = sld [smem:[#allocation3 + %s1004]]
    %s1006 = sld [smem:[#allocation4 + %s1004]]
    %s1007 = scalar_lea.vmem [#allocation5], %s1005
    %v1008 = vld [vmem:[%s1007] sm:$0x1]
    %s1009 = scalar_lea.vmem [#allocation8], %s1006
    %v1010 = vld [vmem:[%s1009] sm:$0x1]
    %v1011 = vadd.f32 %v1008, %v1010
    %1012 = vst [vmem:[#allocation10 + $0x6a] sm:$0x1] %v1011
    %s1013 = sadd.s32 %s50, 107
    %s1014 = sld [smem:[#allocation3 + %s1013]]
    %s1015 = sld [smem:[#allocation4 + %s1013]]
    %s1016 = scalar_lea.vmem [#allocation5], %s1014
    %v1017 = vld [vmem:[%s1016] sm:$0x1]
    %s1018 = scalar_lea.vmem [#allocation8], %s1015
    %v1019 = vld [vmem:[%s1018] sm:$0x1]
    %v1020 = vadd.f32 %v1017, %v1019
    %1021 = vst [vmem:[#allocation10 + $0x6b] sm:$0x1] %v1020
    %s1022 = sadd.s32 %s50, 108
    %s1023 = sld [smem:[#allocation3 + %s1022]]
    %s1024 = sld [smem:[#allocation4 + %s1022]]
    %s1025 = scalar_lea.vmem [#allocation5], %s1023
    %v1026 = vld [vmem:[%s1025] sm:$0x1]
    %s1027 = scalar_lea.vmem [#allocation8], %s1024
    %v1028 = vld [vmem:[%s1027] sm:$0x1]
    %v1029 = vadd.f32 %v1026, %v1028
    %1030 = vst [vmem:[#allocation10 + $0x6c] sm:$0x1] %v1029
    %s1031 = sadd.s32 %s50, 109
    %s1032 = sld [smem:[#allocation3 + %s1031]]
    %s1033 = sld [smem:[#allocation4 + %s1031]]
    %s1034 = scalar_lea.vmem [#allocation5], %s1032
    %v1035 = vld [vmem:[%s1034] sm:$0x1]
    %s1036 = scalar_lea.vmem [#allocation8], %s1033
    %v1037 = vld [vmem:[%s1036] sm:$0x1]
    %v1038 = vadd.f32 %v1035, %v1037
    %1039 = vst [vmem:[#allocation10 + $0x6d] sm:$0x1] %v1038
    %s1040 = sadd.s32 %s50, 110
    %s1041 = sld [smem:[#allocation3 + %s1040]]
    %s1042 = sld [smem:[#allocation4 + %s1040]]
    %s1043 = scalar_lea.vmem [#allocation5], %s1041
    %v1044 = vld [vmem:[%s1043] sm:$0x1]
    %s1045 = scalar_lea.vmem [#allocation8], %s1042
    %v1046 = vld [vmem:[%s1045] sm:$0x1]
    %v1047 = vadd.f32 %v1044, %v1046
    %1048 = vst [vmem:[#allocation10 + $0x6e] sm:$0x1] %v1047
    %s1049 = sadd.s32 %s50, 111
    %s1050 = sld [smem:[#allocation3 + %s1049]]
    %s1051 = sld [smem:[#allocation4 + %s1049]]
    %s1052 = scalar_lea.vmem [#allocation5], %s1050
    %v1053 = vld [vmem:[%s1052] sm:$0x1]
    %s1054 = scalar_lea.vmem [#allocation8], %s1051
    %v1055 = vld [vmem:[%s1054] sm:$0x1]
    %v1056 = vadd.f32 %v1053, %v1055
    %1057 = vst [vmem:[#allocation10 + $0x6f] sm:$0x1] %v1056
    %s1058 = sadd.s32 %s50, 112
    %s1059 = sld [smem:[#allocation3 + %s1058]]
    %s1060 = sld [smem:[#allocation4 + %s1058]]
    %s1061 = scalar_lea.vmem [#allocation5], %s1059
    %v1062 = vld [vmem:[%s1061] sm:$0x1]
    %s1063 = scalar_lea.vmem [#allocation8], %s1060
    %v1064 = vld [vmem:[%s1063] sm:$0x1]
    %v1065 = vadd.f32 %v1062, %v1064
    %1066 = vst [vmem:[#allocation10 + $0x70] sm:$0x1] %v1065
    %s1067 = sadd.s32 %s50, 113
    %s1068 = sld [smem:[#allocation3 + %s1067]]
    %s1069 = sld [smem:[#allocation4 + %s1067]]
    %s1070 = scalar_lea.vmem [#allocation5], %s1068
    %v1071 = vld [vmem:[%s1070] sm:$0x1]
    %s1072 = scalar_lea.vmem [#allocation8], %s1069
    %v1073 = vld [vmem:[%s1072] sm:$0x1]
    %v1074 = vadd.f32 %v1071, %v1073
    %1075 = vst [vmem:[#allocation10 + $0x71] sm:$0x1] %v1074
    %s1076 = sadd.s32 %s50, 114
    %s1077 = sld [smem:[#allocation3 + %s1076]]
    %s1078 = sld [smem:[#allocation4 + %s1076]]
    %s1079 = scalar_lea.vmem [#allocation5], %s1077
    %v1080 = vld [vmem:[%s1079] sm:$0x1]
    %s1081 = scalar_lea.vmem [#allocation8], %s1078
    %v1082 = vld [vmem:[%s1081] sm:$0x1]
    %v1083 = vadd.f32 %v1080, %v1082
    %1084 = vst [vmem:[#allocation10 + $0x72] sm:$0x1] %v1083
    %s1085 = sadd.s32 %s50, 115
    %s1086 = sld [smem:[#allocation3 + %s1085]]
    %s1087 = sld [smem:[#allocation4 + %s1085]]
    %s1088 = scalar_lea.vmem [#allocation5], %s1086
    %v1089 = vld [vmem:[%s1088] sm:$0x1]
    %s1090 = scalar_lea.vmem [#allocation8], %s1087
    %v1091 = vld [vmem:[%s1090] sm:$0x1]
    %v1092 = vadd.f32 %v1089, %v1091
    %1093 = vst [vmem:[#allocation10 + $0x73] sm:$0x1] %v1092
    %s1094 = sadd.s32 %s50, 116
    %s1095 = sld [smem:[#allocation3 + %s1094]]
    %s1096 = sld [smem:[#allocation4 + %s1094]]
    %s1097 = scalar_lea.vmem [#allocation5], %s1095
    %v1098 = vld [vmem:[%s1097] sm:$0x1]
    %s1099 = scalar_lea.vmem [#allocation8], %s1096
    %v1100 = vld [vmem:[%s1099] sm:$0x1]
    %v1101 = vadd.f32 %v1098, %v1100
    %1102 = vst [vmem:[#allocation10 + $0x74] sm:$0x1] %v1101
    %s1103 = sadd.s32 %s50, 117
    %s1104 = sld [smem:[#allocation3 + %s1103]]
    %s1105 = sld [smem:[#allocation4 + %s1103]]
    %s1106 = scalar_lea.vmem [#allocation5], %s1104
    %v1107 = vld [vmem:[%s1106] sm:$0x1]
    %s1108 = scalar_lea.vmem [#allocation8], %s1105
    %v1109 = vld [vmem:[%s1108] sm:$0x1]
    %v1110 = vadd.f32 %v1107, %v1109
    %1111 = vst [vmem:[#allocation10 + $0x75] sm:$0x1] %v1110
    %s1112 = sadd.s32 %s50, 118
    %s1113 = sld [smem:[#allocation3 + %s1112]]
    %s1114 = sld [smem:[#allocation4 + %s1112]]
    %s1115 = scalar_lea.vmem [#allocation5], %s1113
    %v1116 = vld [vmem:[%s1115] sm:$0x1]
    %s1117 = scalar_lea.vmem [#allocation8], %s1114
    %v1118 = vld [vmem:[%s1117] sm:$0x1]
    %v1119 = vadd.f32 %v1116, %v1118
    %1120 = vst [vmem:[#allocation10 + $0x76] sm:$0x1] %v1119
    %s1121 = sadd.s32 %s50, 119
    %s1122 = sld [smem:[#allocation3 + %s1121]]
    %s1123 = sld [smem:[#allocation4 + %s1121]]
    %s1124 = scalar_lea.vmem [#allocation5], %s1122
    %v1125 = vld [vmem:[%s1124] sm:$0x1]
    %s1126 = scalar_lea.vmem [#allocation8], %s1123
    %v1127 = vld [vmem:[%s1126] sm:$0x1]
    %v1128 = vadd.f32 %v1125, %v1127
    %1129 = vst [vmem:[#allocation10 + $0x77] sm:$0x1] %v1128
    %s1130 = sadd.s32 %s50, 120
    %s1131 = sld [smem:[#allocation3 + %s1130]]
    %s1132 = sld [smem:[#allocation4 + %s1130]]
    %s1133 = scalar_lea.vmem [#allocation5], %s1131
    %v1134 = vld [vmem:[%s1133] sm:$0x1]
    %s1135 = scalar_lea.vmem [#allocation8], %s1132
    %v1136 = vld [vmem:[%s1135] sm:$0x1]
    %v1137 = vadd.f32 %v1134, %v1136
    %1138 = vst [vmem:[#allocation10 + $0x78] sm:$0x1] %v1137
    %s1139 = sadd.s32 %s50, 121
    %s1140 = sld [smem:[#allocation3 + %s1139]]
    %s1141 = sld [smem:[#allocation4 + %s1139]]
    %s1142 = scalar_lea.vmem [#allocation5], %s1140
    %v1143 = vld [vmem:[%s1142] sm:$0x1]
    %s1144 = scalar_lea.vmem [#allocation8], %s1141
    %v1145 = vld [vmem:[%s1144] sm:$0x1]
    %v1146 = vadd.f32 %v1143, %v1145
    %1147 = vst [vmem:[#allocation10 + $0x79] sm:$0x1] %v1146
    %s1148 = sadd.s32 %s50, 122
    %s1149 = sld [smem:[#allocation3 + %s1148]]
    %s1150 = sld [smem:[#allocation4 + %s1148]]
    %s1151 = scalar_lea.vmem [#allocation5], %s1149
    %v1152 = vld [vmem:[%s1151] sm:$0x1]
    %s1153 = scalar_lea.vmem [#allocation8], %s1150
    %v1154 = vld [vmem:[%s1153] sm:$0x1]
    %v1155 = vadd.f32 %v1152, %v1154
    %1156 = vst [vmem:[#allocation10 + $0x7a] sm:$0x1] %v1155
    %s1157 = sadd.s32 %s50, 123
    %s1158 = sld [smem:[#allocation3 + %s1157]]
    %s1159 = sld [smem:[#allocation4 + %s1157]]
    %s1160 = scalar_lea.vmem [#allocation5], %s1158
    %v1161 = vld [vmem:[%s1160] sm:$0x1]
    %s1162 = scalar_lea.vmem [#allocation8], %s1159
    %v1163 = vld [vmem:[%s1162] sm:$0x1]
    %v1164 = vadd.f32 %v1161, %v1163
    %1165 = vst [vmem:[#allocation10 + $0x7b] sm:$0x1] %v1164
    %s1166 = sadd.s32 %s50, 124
    %s1167 = sld [smem:[#allocation3 + %s1166]]
    %s1168 = sld [smem:[#allocation4 + %s1166]]
    %s1169 = scalar_lea.vmem [#allocation5], %s1167
    %v1170 = vld [vmem:[%s1169] sm:$0x1]
    %s1171 = scalar_lea.vmem [#allocation8], %s1168
    %v1172 = vld [vmem:[%s1171] sm:$0x1]
    %v1173 = vadd.f32 %v1170, %v1172
    %1174 = vst [vmem:[#allocation10 + $0x7c] sm:$0x1] %v1173
    %s1175 = sadd.s32 %s50, 125
    %s1176 = sld [smem:[#allocation3 + %s1175]]
    %s1177 = sld [smem:[#allocation4 + %s1175]]
    %s1178 = scalar_lea.vmem [#allocation5], %s1176
    %v1179 = vld [vmem:[%s1178] sm:$0x1]
    %s1180 = scalar_lea.vmem [#allocation8], %s1177
    %v1181 = vld [vmem:[%s1180] sm:$0x1]
    %v1182 = vadd.f32 %v1179, %v1181
    %1183 = vst [vmem:[#allocation10 + $0x7d] sm:$0x1] %v1182
    %s1184 = sadd.s32 %s50, 126
    %s1185 = sld [smem:[#allocation3 + %s1184]]
    %s1186 = sld [smem:[#allocation4 + %s1184]]
    %s1187 = scalar_lea.vmem [#allocation5], %s1185
    %v1188 = vld [vmem:[%s1187] sm:$0x1]
    %s1189 = scalar_lea.vmem [#allocation8], %s1186
    %v1190 = vld [vmem:[%s1189] sm:$0x1]
    %v1191 = vadd.f32 %v1188, %v1190
    %1192 = vst [vmem:[#allocation10 + $0x7e] sm:$0x1] %v1191
    %s1193 = sadd.s32 %s50, 127
    %s1194 = sld [smem:[#allocation3 + %s1193]]
    %s1195 = sld [smem:[#allocation4 + %s1193]]
    %s1196 = scalar_lea.vmem [#allocation5], %s1194
    %v1197 = vld [vmem:[%s1196] sm:$0x1]
    %s1198 = scalar_lea.vmem [#allocation8], %s1195
    %v1199 = vld [vmem:[%s1198] sm:$0x1]
    %v1200 = vadd.f32 %v1197, %v1199
    %1201 = vst [vmem:[#allocation10 + $0x7f] sm:$0x1] %v1200
    // Predicated region
    $region18: #{tpu_custom_call.1} parent=1 // pred_check
      _
    $region19: #{tpu_custom_call.1} parent=1 // pred_check_branch
      %1203 = sbr.rel (0) target = $region21
    $region20: #{tpu_custom_call.1} parent=1 // pred_region
      %s1205 = ssub.s32 2048, 2048
      %1206 = vsyncadd [#allocation7], %s1205
      %s1207 = sshll.u32 [#allocation10], 4
      %s1208 = int_to_ptr.vmem [resolvable:$true] %s1207
      %1213 = dma.vmem_to_hbm [thread:$0]  %s1208, 2048, %s4, [#allocation7], 128, 128, 8
    $region21: #{tpu_custom_call.1} parent=1 // pred_fallthru
      _
    // Predicated region
    $region22: #{tpu_custom_call.1} parent=1 // pred_check
      _
    $region23: #{tpu_custom_call.1} parent=1 // pred_check_branch
      %1215 = sbr.rel (0) target = $region25
    $region24: #{tpu_custom_call.1} parent=1 // pred_region
      %1216 = dma.done [#allocation7], 2048
    $region25: #{tpu_custom_call.1} parent=1 // pred_fallthru
      _
    %1217 = vsyncpa [#allocation6], 1
    %1218 = vsyncpa [#allocation9], 1
    %1219 = vsyncpa [#allocation7], 1

</llo_original>
